<compile_context>
chip_gen: v5e
topology: v5e:2x2
jax: 0.10.0
libtpu: 0.0.40
codegen_flags: <defaults>
</compile_context>

<pallas_src>
import jax
import jax.numpy as jnp
from jax.experimental import pallas as pl
from jax.experimental.pallas import tpu as pltpu


# --------------------------- helpers -----------------------------------------

def _round_up(x, m):
    return (x + m - 1) // m * m


def _pick_tile(dim, cap):
    """Largest multiple of 128 that divides `dim` (itself a 128-multiple) and is <= cap."""
    best = 128
    t = 256
    while t <= min(dim, cap):
        if dim % t == 0:
            best = t
        t += 128
    return best


# --------------------------- Pallas kernels ---------------------------------

def _matmul_bias_relu_kernel(a_ref, w_ref, b_ref, o_ref, acc_ref):
    # a: (tm, tk) bf16   w: (tk, tn) bf16   b: (1, tn) f32
    # o: (tm, tn) bf16   acc: (tm, tn) f32 VMEM scratch (resident across K steps)
    k = pl.program_id(2)

    @pl.when(k == 0)
    def _():
        acc_ref[...] = jnp.zeros_like(acc_ref)

    acc_ref[...] += jnp.dot(a_ref[...], w_ref[...],
                            preferred_element_type=jnp.float32)

    @pl.when(k == pl.num_programs(2) - 1)
    def _():
        o_ref[...] = jnp.maximum(acc_ref[...] + b_ref[...], 0.0).astype(o_ref.dtype)


def matmul_bias_relu(a, w, b):
    """ReLU(a @ w + b): tiled, pipelined MXU matmul. bf16 in, f32 accumulate, bf16 out."""
    M, K = a.shape
    K2, N = w.shape
    assert K == K2

    Mp = _round_up(M, 128)
    Np = _round_up(N, 128)

    # K tiling: use the whole (padded) K in one step when it fits comfortably,
    # otherwise 512-wide K tiles with K padded up to a tile multiple (avoids the
    # degenerate 13x tk=128 schedule conv2 used to get).
    Kp = _round_up(K, 128)
    tk = Kp if Kp <= 1024 else 512
    Kp = _round_up(K, tk)

    tm = _pick_tile(Mp, 512)
    tn = _pick_tile(Np, 256)
    # v7x has 2 TensorCores: make sure the parallel (i, j) axes expose >= 2 blocks.
    if (Mp // tm) * (Np // tn) < 2:
        if Np // 128 >= 2:
            tn = _pick_tile(Np, max(128, tn // 2))
        elif Mp // 128 >= 2:
            tm = _pick_tile(Mp, max(128, tm // 2))

    # TODO(synk): pad+cast+final-slice are extra XLA passes over the activations;
    #             folding them into the kernel (cdiv grid + masked edge tiles) would
    #             save one HBM round trip per conv layer.
    a_p = jnp.pad(a.astype(jnp.bfloat16), ((0, Mp - M), (0, Kp - K)))
    w_p = jnp.pad(w.astype(jnp.bfloat16), ((0, Kp - K), (0, Np - N)))
    b_p = jnp.pad(b.reshape(1, N).astype(jnp.float32), ((0, 0), (0, Np - N)))

    out = pl.pallas_call(
        _matmul_bias_relu_kernel,
        out_shape=jax.ShapeDtypeStruct((Mp, Np), jnp.bfloat16),
        grid_spec=pltpu.PrefetchScalarGridSpec(
            num_scalar_prefetch=0,
            grid=(Mp // tm, Np // tn, Kp // tk),
            in_specs=[
                pl.BlockSpec((tm, tk), lambda i, j, k: (i, k)),
                pl.BlockSpec((tk, tn), lambda i, j, k: (k, j)),
                pl.BlockSpec((1, tn), lambda i, j, k: (0, j)),
            ],
            out_specs=pl.BlockSpec((tm, tn), lambda i, j, k: (i, j)),
            scratch_shapes=[pltpu.VMEM((tm, tn), jnp.float32)],
        ),
        compiler_params=pltpu.CompilerParams(
            dimension_semantics=("parallel", "parallel", "arbitrary"),
            vmem_limit_bytes=32 * 1024 * 1024,
        ),
    )(a_p, w_p, b_p)
    return out[:M, :N]


def _maxpool3x3s2_kernel(x_ref, o_ref):
    # x: (1, H, W, C)   o: (1, Ho, Wo, C);  PyTorch MaxPool2d(kernel_size=3, stride=2)
    # Fully vectorized window max (contiguous static slices only), then a static
    # stride-2 decimation.  No strided ref indexing (unsupported in interpret mode).
    _, H, W, _ = x_ref.shape
    _, Ho, Wo, _ = o_ref.shape
    x = x_ref[0]                                                           # (H, W, C)
    # 3-row max then 3-col max: every input element touched <= 3 + 3 times.
    r = jnp.maximum(jnp.maximum(x[0:H - 2], x[1:H - 1]), x[2:H])           # (H-2, W, C)
    cm = jnp.maximum(jnp.maximum(r[:, 0:W - 2], r[:, 1:W - 1]), r[:, 2:W])  # (H-2, W-2, C)
    # Decimate by 2 along H and W with static slices; small static extents here.
    # TODO(synk): for real AlexNet sizes (Ho up to 55) block H via an extra grid
    #             axis instead of this trace-time unroll, and flatten the output
    #             to (B, Ho, Wo*C) so pool1's C=64 stores become lane-dense.
    rows = []
    for oh in range(Ho):
        row = cm[2 * oh]                                                   # (W-2, C)
        cols = [row[2 * ow:2 * ow + 1, :] for ow in range(Wo)]
        rows.append(jnp.concatenate(cols, axis=0)[None])                   # (1, Wo, C)
    o_ref[0] = jnp.concatenate(rows, axis=0)                               # (Ho, Wo, C)


def maxpool3x3s2(x):
    B, H, W, C = x.shape
    Ho = (H - 3) // 2 + 1
    Wo = (W - 3) // 2 + 1
    # TODO(synk): when B < 2*num_TensorCores (v7x), also split H into a second
    #             parallel grid axis so both cores stay busy.
    return pl.pallas_call(
        _maxpool3x3s2_kernel,
        out_shape=jax.ShapeDtypeStruct((B, Ho, Wo, C), x.dtype),
        grid=(B,),
        in_specs=[pl.BlockSpec((1, H, W, C), lambda b: (b, 0, 0, 0))],
        out_specs=pl.BlockSpec((1, Ho, Wo, C), lambda b: (b, 0, 0, 0)),
        compiler_params=pltpu.CompilerParams(
            dimension_semantics=("parallel",),
            vmem_limit_bytes=32 * 1024 * 1024,
        ),
    )(x)


# --------------------------- JAX glue ----------------------------------------

def _im2col(x_nhwc, k, stride, pad):
    """Extract conv patches. Returns ((B*Ho*Wo, k*k*Cin), (B, Ho, Wo))."""
    if pad > 0:
        x_nhwc = jnp.pad(x_nhwc, ((0, 0), (pad, pad), (pad, pad), (0, 0)))
    B, H, W, C = x_nhwc.shape
    Ho = (H - k) // stride + 1
    Wo = (W - k) // stride + 1
    patches = []
    for di in range(k):
        for dj in range(k):
            patches.append(
                x_nhwc[:, di:di + stride * (Ho - 1) + 1:stride,
                       dj:dj + stride * (Wo - 1) + 1:stride, :])
    p = jnp.stack(patches, axis=3)                       # (B, Ho, Wo, k*k, C)
    return p.reshape(B * Ho * Wo, k * k * C), (B, Ho, Wo)


def conv2d_relu(x_nhwc, w_oihw, b, stride, pad):
    """Conv2d + ReLU via im2col (bf16) + fused tiled Pallas matmul. Weight is (O,I,kh,kw)."""
    cout, cin, kh, kw = w_oihw.shape
    assert kh == kw
    patches, (B, Ho, Wo) = _im2col(x_nhwc, kh, stride, pad)
    # Match patch flattening order (kh, kw, Cin):
    w2d = jnp.transpose(w_oihw, (2, 3, 1, 0)).reshape(kh * kw * cin, cout)
    out = matmul_bias_relu(patches, w2d, b)
    return out.reshape(B, Ho, Wo, cout)


# --------------------------- AlexNet forward ---------------------------------

ALL_FEAT_NAMES = ['conv1', 'pool1', 'conv2', 'pool2', 'conv3',
                  'conv4', 'conv5', 'pool5', 'flatten']

_CONV_CFG = {          # name -> (stride, padding)
    'conv1': (4, 2), 'conv2': (1, 2), 'conv3': (1, 1), 'conv4': (1, 1), 'conv5': (1, 1),
}


def alexnet_forward(params, x_nchw, out_feat_keys=None):
    """Mirrors AlexNet.forward: returns a single feature (default 'flatten') or a list."""
    keys = [ALL_FEAT_NAMES[-1]] if out_feat_keys is None else list(out_feat_keys)
    max_out_feat = max(ALL_FEAT_NAMES.index(k) for k in keys)

    feats = {}
    # NCHW -> NHWC, and cast once to bf16: the whole activation chain runs in bf16
    # (MXU accumulates in f32).  Recorded features are upcast back to f32.
    x = jnp.transpose(x_nchw, (0, 2, 3, 1)).astype(jnp.bfloat16)

    for f in range(max_out_feat + 1):
        name = ALL_FEAT_NAMES[f]
        if name.startswith('conv'):
            s, p = _CONV_CFG[name]
            x = conv2d_relu(x, params[name + '_w'], params[name + '_b'], s, p)
        elif name.startswith('pool'):
            x = maxpool3x3s2(x)
        # 'flatten' does not change x (it is the last block); record below.
        if name in keys:
            if name == 'flatten':   # PyTorch flattens NCHW -> (B, C*H*W)
                rec = jnp.transpose(x, (0, 3, 1, 2)).reshape(x.shape[0], -1)
            else:                   # record in NCHW like PyTorch
                rec = jnp.transpose(x, (0, 3, 1, 2))
            feats[name] = rec.astype(jnp.float32)

    out = [feats[k] for k in keys]
    return out[0] if len(out) == 1 else out


# --------------------------- Parameters --------------------------------------

def init_params(key):
    specs = {
        'conv1': (64, 3, 11),
        'conv2': (192, 64, 5),
        'conv3': (384, 192, 3),
        'conv4': (256, 384, 3),
        'conv5': (256, 256, 3),
    }
    params = {}
    for name, (cout, cin, k) in specs.items():
        key, wk, bk = jax.random.split(key, 3)
        fan_in = float(cin * k * k)
        params[name + '_w'] = jax.random.normal(
            wk, (cout, cin, k, k), jnp.float32) / jnp.sqrt(fan_in)
        params[name + '_b'] = 0.01 * jax.random.normal(bk, (cout,), jnp.float32)
    return params


# --------------------------- Main ---------------------------------------------

if __name__ == "__main__":
    root = jax.random.PRNGKey(0)
    pkey, xkey = jax.random.split(root)
    params = init_params(pkey)

    # Smallest spatial size that survives pool5 for the standard AlexNet stem.
    x = jax.random.normal(xkey, (2, 3, 64, 64), jnp.float32)   # NCHW, like PyTorch

    fwd = jax.jit(lambda p, xx: alexnet_forward(p, xx))
    out = fwd(params, x)
    out = jax.block_until_ready(out)

    # 64x64 -> conv1 15x15 -> pool1 7x7 -> pool2 3x3 -> pool5 1x1 -> flatten 256
    assert out.shape == (2, 256), out.shape
    assert bool(jnp.all(jnp.isfinite(out)))
    print("KERNEL_OK")
</pallas_src>

<mosaic_0001>
module attributes {stable_mosaic.version = 11 : i64} {
  func.func @_matmul_bias_relu_kernel(%arg0: i32, %arg1: i32, %arg2: i32, %arg3: memref<256x384xbf16, #tpu.memory_space<vmem>>, %arg4: memref<384x128xbf16, #tpu.memory_space<vmem>>, %arg5: memref<1x128xf32, #tpu.memory_space<vmem>>, %arg6: memref<256x128xbf16, #tpu.memory_space<vmem>>, %arg7: memref<256x128xf32, #tpu.memory_space<vmem>>) attributes {dimension_semantics = [#tpu.dimension_semantics<parallel>, #tpu.dimension_semantics<parallel>, #tpu.dimension_semantics<arbitrary>], iteration_bounds = array<i64: 2, 1, 1>, scalar_prefetch = 0 : i64, scratch_operands = 1 : i64, tpu.core_type = #tpu.core_type<tc>, window_params = [{transform_indices = @transform_0, window_bounds = array<i64: 256, 384>}, {transform_indices = @transform_1, window_bounds = array<i64: 384, 128>}, {transform_indices = @transform_2, window_bounds = array<i64: 1, 128>}, {transform_indices = @transform_3, window_bounds = array<i64: 256, 128>}]} {
    %c0_i32 = arith.constant 0 : i32
    %0 = arith.cmpi eq, %arg2, %c0_i32 : i32
    %1 = arith.extui %0 : i1 to i32
    %c0_i32_0 = arith.constant 0 : i32
    %2 = arith.cmpi ne, %1, %c0_i32_0 : i32
    scf.if %2 {
      %cst_10 = arith.constant 0.000000e+00 : f32
      %12 = vector.broadcast %cst_10 : f32 to vector<256x128xf32>
      %c0_11 = arith.constant 0 : index
      %c0_12 = arith.constant 0 : index
      %13 = vector.load %arg7[%c0_11, %c0_12] : memref<256x128xf32, #tpu.memory_space<vmem>>, vector<256x128xf32>
      tpu.vector_store %arg7[%c0_11, %c0_12], %12 {strides = array<i32>} : memref<256x128xf32, #tpu.memory_space<vmem>>, vector<256x128xf32>,
    } else {
    }
    %c0 = arith.constant 0 : index
    %c0_1 = arith.constant 0 : index
    %3 = vector.load %arg7[%c0, %c0_1] : memref<256x128xf32, #tpu.memory_space<vmem>>, vector<256x128xf32>
    %c0_2 = arith.constant 0 : index
    %c0_3 = arith.constant 0 : index
    %4 = vector.load %arg3[%c0_2, %c0_3] : memref<256x384xbf16, #tpu.memory_space<vmem>>, vector<256x384xbf16>
    %c0_4 = arith.constant 0 : index
    %c0_5 = arith.constant 0 : index
    %5 = vector.load %arg4[%c0_4, %c0_5] : memref<384x128xbf16, #tpu.memory_space<vmem>>, vector<384x128xbf16>
    %cst = arith.constant dense<0.000000e+00> : vector<256x128xf32>
    %6 = tpu.matmul %4, %5, %cst {dimension_numbers = #tpu.dot_dimension_numbers<[1], [0], [0], [1], [0, 0, 1, 1], [], []>} : vector<256x384xbf16>, vector<384x128xbf16>, vector<256x128xf32> -> vector<256x128xf32>
    %7 = arith.addf %3, %6 : vector<256x128xf32>
    %c0_6 = arith.constant 0 : index
    %c0_7 = arith.constant 0 : index
    %8 = vector.load %arg7[%c0_6, %c0_7] : memref<256x128xf32, #tpu.memory_space<vmem>>, vector<256x128xf32>
    tpu.vector_store %arg7[%c0_6, %c0_7], %7 {strides = array<i32>} : memref<256x128xf32, #tpu.memory_space<vmem>>, vector<256x128xf32>,
    %c0_i32_8 = arith.constant 0 : i32
    %9 = arith.cmpi eq, %arg2, %c0_i32_8 : i32
    %10 = arith.extui %9 : i1 to i32
    %c0_i32_9 = arith.constant 0 : i32
    %11 = arith.cmpi ne, %10, %c0_i32_9 : i32
    scf.if %11 {
      %c0_10 = arith.constant 0 : index
      %c0_11 = arith.constant 0 : index
      %12 = vector.load %arg7[%c0_10, %c0_11] : memref<256x128xf32, #tpu.memory_space<vmem>>, vector<256x128xf32>
      %c0_12 = arith.constant 0 : index
      %c0_13 = arith.constant 0 : index
      %13 = vector.load %arg5[%c0_12, %c0_13] : memref<1x128xf32, #tpu.memory_space<vmem>>, vector<1x128xf32>
      %14 = vector.broadcast %13 : vector<1x128xf32> to vector<256x128xf32>
      %15 = arith.addf %12, %14 : vector<256x128xf32>
      %cst_14 = arith.constant 0.000000e+00 : f32
      %16 = vector.broadcast %cst_14 : f32 to vector<256x128xf32>
      %17 = arith.maximumf %15, %16 : vector<256x128xf32>
      %18 = arith.truncf %17 : vector<256x128xf32> to vector<256x128xbf16>
      %c0_15 = arith.constant 0 : index
      %c0_16 = arith.constant 0 : index
      %19 = vector.load %arg6[%c0_15, %c0_16] : memref<256x128xbf16, #tpu.memory_space<vmem>>, vector<256x128xbf16>
      tpu.vector_store %arg6[%c0_15, %c0_16], %18 {strides = array<i32>} : memref<256x128xbf16, #tpu.memory_space<vmem>>, vector<256x128xbf16>,
    } else {
    }
    return
  }
  func.func @transform_0(%arg0: i32, %arg1: i32, %arg2: i32) -> (i32, i32) {
    %c0_i32 = arith.constant 0 : i32
    return %arg0, %arg2 : i32, i32
  }
  func.func @transform_1(%arg0: i32, %arg1: i32, %arg2: i32) -> (i32, i32) {
    %c0_i32 = arith.constant 0 : i32
    return %arg2, %arg1 : i32, i32
  }
  func.func @transform_2(%arg0: i32, %arg1: i32, %arg2: i32) -> (i32, i32) {
    %c0_i32 = arith.constant 0 : i32
    %c0_i32_0 = arith.constant 0 : i32
    return %c0_i32, %arg1 : i32, i32
  }
  func.func @transform_3(%arg0: i32, %arg1: i32, %arg2: i32) -> (i32, i32) {
    %c0_i32 = arith.constant 0 : i32
    return %arg0, %arg1 : i32, i32
  }
}

module attributes {stable_mosaic.version = 11 : i64} {
  func.func @_maxpool3x3s2_kernel(%arg0: i32, %arg1: memref<1x15x15x64xbf16, #tpu.memory_space<vmem>>, %arg2: memref<1x7x7x64xbf16, #tpu.memory_space<vmem>>) attributes {dimension_semantics = [#tpu.dimension_semantics<parallel>], iteration_bounds = array<i64: 2>, scalar_prefetch = 0 : i64, scratch_operands = 0 : i64, tpu.core_type = #tpu.core_type<tc>, window_params = [{transform_indices = @transform_0, window_bounds = array<i64: 1, 15, 15, 64>}, {transform_indices = @transform_1, window_bounds = array<i64: 1, 7, 7, 64>}]} {
    %c0 = arith.constant 0 : index
    %c0_0 = arith.constant 0 : index
    %c0_1 = arith.constant 0 : index
    %c0_2 = arith.constant 0 : index
    %0 = vector.load %arg1[%c0, %c0_0, %c0_1, %c0_2] : memref<1x15x15x64xbf16, #tpu.memory_space<vmem>>, vector<1x15x15x64xbf16>
    %1 = vector.shape_cast %0 : vector<1x15x15x64xbf16> to vector<15x15x64xbf16>
    %2 = vector.extract_strided_slice %1 {offsets = [0, 0, 0], sizes = [13, 15, 64], strides = [1, 1, 1]} : vector<15x15x64xbf16> to vector<13x15x64xbf16>
    %3 = vector.extract_strided_slice %1 {offsets = [1, 0, 0], sizes = [13, 15, 64], strides = [1, 1, 1]} : vector<15x15x64xbf16> to vector<13x15x64xbf16>
    %4 = arith.maximumf %2, %3 : vector<13x15x64xbf16>
    %5 = vector.extract_strided_slice %1 {offsets = [2, 0, 0], sizes = [13, 15, 64], strides = [1, 1, 1]} : vector<15x15x64xbf16> to vector<13x15x64xbf16>
    %6 = arith.maximumf %4, %5 : vector<13x15x64xbf16>
    %7 = vector.extract_strided_slice %6 {offsets = [0, 0, 0], sizes = [13, 13, 64], strides = [1, 1, 1]} : vector<13x15x64xbf16> to vector<13x13x64xbf16>
    %8 = vector.extract_strided_slice %6 {offsets = [0, 1, 0], sizes = [13, 13, 64], strides = [1, 1, 1]} : vector<13x15x64xbf16> to vector<13x13x64xbf16>
    %9 = arith.maximumf %7, %8 : vector<13x13x64xbf16>
    %10 = vector.extract_strided_slice %6 {offsets = [0, 2, 0], sizes = [13, 13, 64], strides = [1, 1, 1]} : vector<13x15x64xbf16> to vector<13x13x64xbf16>
    %11 = arith.maximumf %9, %10 : vector<13x13x64xbf16>
    %12 = vector.extract_strided_slice %11 {offsets = [0, 0, 0], sizes = [1, 13, 64], strides = [1, 1, 1]} : vector<13x13x64xbf16> to vector<1x13x64xbf16>
    %13 = vector.shape_cast %12 : vector<1x13x64xbf16> to vector<13x64xbf16>
    %14 = vector.extract_strided_slice %13 {offsets = [0, 0], sizes = [1, 64], strides = [1, 1]} : vector<13x64xbf16> to vector<1x64xbf16>
    %15 = vector.extract_strided_slice %13 {offsets = [2, 0], sizes = [1, 64], strides = [1, 1]} : vector<13x64xbf16> to vector<1x64xbf16>
    %16 = vector.extract_strided_slice %13 {offsets = [4, 0], sizes = [1, 64], strides = [1, 1]} : vector<13x64xbf16> to vector<1x64xbf16>
    %17 = vector.extract_strided_slice %13 {offsets = [6, 0], sizes = [1, 64], strides = [1, 1]} : vector<13x64xbf16> to vector<1x64xbf16>
    %18 = vector.extract_strided_slice %13 {offsets = [8, 0], sizes = [1, 64], strides = [1, 1]} : vector<13x64xbf16> to vector<1x64xbf16>
    %19 = vector.extract_strided_slice %13 {offsets = [10, 0], sizes = [1, 64], strides = [1, 1]} : vector<13x64xbf16> to vector<1x64xbf16>
    %20 = vector.extract_strided_slice %13 {offsets = [12, 0], sizes = [1, 64], strides = [1, 1]} : vector<13x64xbf16> to vector<1x64xbf16>
    %21 = tpu.concatenate %14, %15, %16, %17, %18, %19, %20 in 0 : vector<1x64xbf16>, vector<1x64xbf16>, vector<1x64xbf16>, vector<1x64xbf16>, vector<1x64xbf16>, vector<1x64xbf16>, vector<1x64xbf16> -> vector<7x64xbf16>
    %22 = vector.shape_cast %21 : vector<7x64xbf16> to vector<1x7x64xbf16>
    %23 = vector.extract_strided_slice %11 {offsets = [2, 0, 0], sizes = [1, 13, 64], strides = [1, 1, 1]} : vector<13x13x64xbf16> to vector<1x13x64xbf16>
    %24 = vector.shape_cast %23 : vector<1x13x64xbf16> to vector<13x64xbf16>
    %25 = vector.extract_strided_slice %24 {offsets = [0, 0], sizes = [1, 64], strides = [1, 1]} : vector<13x64xbf16> to vector<1x64xbf16>
    %26 = vector.extract_strided_slice %24 {offsets = [2, 0], sizes = [1, 64], strides = [1, 1]} : vector<13x64xbf16> to vector<1x64xbf16>
    %27 = vector.extract_strided_slice %24 {offsets = [4, 0], sizes = [1, 64], strides = [1, 1]} : vector<13x64xbf16> to vector<1x64xbf16>
    %28 = vector.extract_strided_slice %24 {offsets = [6, 0], sizes = [1, 64], strides = [1, 1]} : vector<13x64xbf16> to vector<1x64xbf16>
    %29 = vector.extract_strided_slice %24 {offsets = [8, 0], sizes = [1, 64], strides = [1, 1]} : vector<13x64xbf16> to vector<1x64xbf16>
    %30 = vector.extract_strided_slice %24 {offsets = [10, 0], sizes = [1, 64], strides = [1, 1]} : vector<13x64xbf16> to vector<1x64xbf16>
    %31 = vector.extract_strided_slice %24 {offsets = [12, 0], sizes = [1, 64], strides = [1, 1]} : vector<13x64xbf16> to vector<1x64xbf16>
    %32 = tpu.concatenate %25, %26, %27, %28, %29, %30, %31 in 0 : vector<1x64xbf16>, vector<1x64xbf16>, vector<1x64xbf16>, vector<1x64xbf16>, vector<1x64xbf16>, vector<1x64xbf16>, vector<1x64xbf16> -> vector<7x64xbf16>
    %33 = vector.shape_cast %32 : vector<7x64xbf16> to vector<1x7x64xbf16>
    %34 = vector.extract_strided_slice %11 {offsets = [4, 0, 0], sizes = [1, 13, 64], strides = [1, 1, 1]} : vector<13x13x64xbf16> to vector<1x13x64xbf16>
    %35 = vector.shape_cast %34 : vector<1x13x64xbf16> to vector<13x64xbf16>
    %36 = vector.extract_strided_slice %35 {offsets = [0, 0], sizes = [1, 64], strides = [1, 1]} : vector<13x64xbf16> to vector<1x64xbf16>
    %37 = vector.extract_strided_slice %35 {offsets = [2, 0], sizes = [1, 64], strides = [1, 1]} : vector<13x64xbf16> to vector<1x64xbf16>
    %38 = vector.extract_strided_slice %35 {offsets = [4, 0], sizes = [1, 64], strides = [1, 1]} : vector<13x64xbf16> to vector<1x64xbf16>
    %39 = vector.extract_strided_slice %35 {offsets = [6, 0], sizes = [1, 64], strides = [1, 1]} : vector<13x64xbf16> to vector<1x64xbf16>
    %40 = vector.extract_strided_slice %35 {offsets = [8, 0], sizes = [1, 64], strides = [1, 1]} : vector<13x64xbf16> to vector<1x64xbf16>
    %41 = vector.extract_strided_slice %35 {offsets = [10, 0], sizes = [1, 64], strides = [1, 1]} : vector<13x64xbf16> to vector<1x64xbf16>
    %42 = vector.extract_strided_slice %35 {offsets = [12, 0], sizes = [1, 64], strides = [1, 1]} : vector<13x64xbf16> to vector<1x64xbf16>
    %43 = tpu.concatenate %36, %37, %38, %39, %40, %41, %42 in 0 : vector<1x64xbf16>, vector<1x64xbf16>, vector<1x64xbf16>, vector<1x64xbf16>, vector<1x64xbf16>, vector<1x64xbf16>, vector<1x64xbf16> -> vector<7x64xbf16>
    %44 = vector.shape_cast %43 : vector<7x64xbf16> to vector<1x7x64xbf16>
    %45 = vector.extract_strided_slice %11 {offsets = [6, 0, 0], sizes = [1, 13, 64], strides = [1, 1, 1]} : vector<13x13x64xbf16> to vector<1x13x64xbf16>
    %46 = vector.shape_cast %45 : vector<1x13x64xbf16> to vector<13x64xbf16>
    %47 = vector.extract_strided_slice %46 {offsets = [0, 0], sizes = [1, 64], strides = [1, 1]} : vector<13x64xbf16> to vector<1x64xbf16>
    %48 = vector.extract_strided_slice %46 {offsets = [2, 0], sizes = [1, 64], strides = [1, 1]} : vector<13x64xbf16> to vector<1x64xbf16>
    %49 = vector.extract_strided_slice %46 {offsets = [4, 0], sizes = [1, 64], strides = [1, 1]} : vector<13x64xbf16> to vector<1x64xbf16>
    %50 = vector.extract_strided_slice %46 {offsets = [6, 0], sizes = [1, 64], strides = [1, 1]} : vector<13x64xbf16> to vector<1x64xbf16>
    %51 = vector.extract_strided_slice %46 {offsets = [8, 0], sizes = [1, 64], strides = [1, 1]} : vector<13x64xbf16> to vector<1x64xbf16>
    %52 = vector.extract_strided_slice %46 {offsets = [10, 0], sizes = [1, 64], strides = [1, 1]} : vector<13x64xbf16> to vector<1x64xbf16>
    %53 = vector.extract_strided_slice %46 {offsets = [12, 0], sizes = [1, 64], strides = [1, 1]} : vector<13x64xbf16> to vector<1x64xbf16>
    %54 = tpu.concatenate %47, %48, %49, %50, %51, %52, %53 in 0 : vector<1x64xbf16>, vector<1x64xbf16>, vector<1x64xbf16>, vector<1x64xbf16>, vector<1x64xbf16>, vector<1x64xbf16>, vector<1x64xbf16> -> vector<7x64xbf16>
    %55 = vector.shape_cast %54 : vector<7x64xbf16> to vector<1x7x64xbf16>
    %56 = vector.extract_strided_slice %11 {offsets = [8, 0, 0], sizes = [1, 13, 64], strides = [1, 1, 1]} : vector<13x13x64xbf16> to vector<1x13x64xbf16>
    %57 = vector.shape_cast %56 : vector<1x13x64xbf16> to vector<13x64xbf16>
    %58 = vector.extract_strided_slice %57 {offsets = [0, 0], sizes = [1, 64], strides = [1, 1]} : vector<13x64xbf16> to vector<1x64xbf16>
    %59 = vector.extract_strided_slice %57 {offsets = [2, 0], sizes = [1, 64], strides = [1, 1]} : vector<13x64xbf16> to vector<1x64xbf16>
    %60 = vector.extract_strided_slice %57 {offsets = [4, 0], sizes = [1, 64], strides = [1, 1]} : vector<13x64xbf16> to vector<1x64xbf16>
    %61 = vector.extract_strided_slice %57 {offsets = [6, 0], sizes = [1, 64], strides = [1, 1]} : vector<13x64xbf16> to vector<1x64xbf16>
    %62 = vector.extract_strided_slice %57 {offsets = [8, 0], sizes = [1, 64], strides = [1, 1]} : vector<13x64xbf16> to vector<1x64xbf16>
    %63 = vector.extract_strided_slice %57 {offsets = [10, 0], sizes = [1, 64], strides = [1, 1]} : vector<13x64xbf16> to vector<1x64xbf16>
    %64 = vector.extract_strided_slice %57 {offsets = [12, 0], sizes = [1, 64], strides = [1, 1]} : vector<13x64xbf16> to vector<1x64xbf16>
    %65 = tpu.concatenate %58, %59, %60, %61, %62, %63, %64 in 0 : vector<1x64xbf16>, vector<1x64xbf16>, vector<1x64xbf16>, vector<1x64xbf16>, vector<1x64xbf16>, vector<1x64xbf16>, vector<1x64xbf16> -> vector<7x64xbf16>
    %66 = vector.shape_cast %65 : vector<7x64xbf16> to vector<1x7x64xbf16>
    %67 = vector.extract_strided_slice %11 {offsets = [10, 0, 0], sizes = [1, 13, 64], strides = [1, 1, 1]} : vector<13x13x64xbf16> to vector<1x13x64xbf16>
    %68 = vector.shape_cast %67 : vector<1x13x64xbf16> to vector<13x64xbf16>
    %69 = vector.extract_strided_slice %68 {offsets = [0, 0], sizes = [1, 64], strides = [1, 1]} : vector<13x64xbf16> to vector<1x64xbf16>
    %70 = vector.extract_strided_slice %68 {offsets = [2, 0], sizes = [1, 64], strides = [1, 1]} : vector<13x64xbf16> to vector<1x64xbf16>
    %71 = vector.extract_strided_slice %68 {offsets = [4, 0], sizes = [1, 64], strides = [1, 1]} : vector<13x64xbf16> to vector<1x64xbf16>
    %72 = vector.extract_strided_slice %68 {offsets = [6, 0], sizes = [1, 64], strides = [1, 1]} : vector<13x64xbf16> to vector<1x64xbf16>
    %73 = vector.extract_strided_slice %68 {offsets = [8, 0], sizes = [1, 64], strides = [1, 1]} : vector<13x64xbf16> to vector<1x64xbf16>
    %74 = vector.extract_strided_slice %68 {offsets = [10, 0], sizes = [1, 64], strides = [1, 1]} : vector<13x64xbf16> to vector<1x64xbf16>
    %75 = vector.extract_strided_slice %68 {offsets = [12, 0], sizes = [1, 64], strides = [1, 1]} : vector<13x64xbf16> to vector<1x64xbf16>
    %76 = tpu.concatenate %69, %70, %71, %72, %73, %74, %75 in 0 : vector<1x64xbf16>, vector<1x64xbf16>, vector<1x64xbf16>, vector<1x64xbf16>, vector<1x64xbf16>, vector<1x64xbf16>, vector<1x64xbf16> -> vector<7x64xbf16>
    %77 = vector.shape_cast %76 : vector<7x64xbf16> to vector<1x7x64xbf16>
    %78 = vector.extract_strided_slice %11 {offsets = [12, 0, 0], sizes = [1, 13, 64], strides = [1, 1, 1]} : vector<13x13x64xbf16> to vector<1x13x64xbf16>
    %79 = vector.shape_cast %78 : vector<1x13x64xbf16> to vector<13x64xbf16>
    %80 = vector.extract_strided_slice %79 {offsets = [0, 0], sizes = [1, 64], strides = [1, 1]} : vector<13x64xbf16> to vector<1x64xbf16>
    %81 = vector.extract_strided_slice %79 {offsets = [2, 0], sizes = [1, 64], strides = [1, 1]} : vector<13x64xbf16> to vector<1x64xbf16>
    %82 = vector.extract_strided_slice %79 {offsets = [4, 0], sizes = [1, 64], strides = [1, 1]} : vector<13x64xbf16> to vector<1x64xbf16>
    %83 = vector.extract_strided_slice %79 {offsets = [6, 0], sizes = [1, 64], strides = [1, 1]} : vector<13x64xbf16> to vector<1x64xbf16>
    %84 = vector.extract_strided_slice %79 {offsets = [8, 0], sizes = [1, 64], strides = [1, 1]} : vector<13x64xbf16> to vector<1x64xbf16>
    %85 = vector.extract_strided_slice %79 {offsets = [10, 0], sizes = [1, 64], strides = [1, 1]} : vector<13x64xbf16> to vector<1x64xbf16>
    %86 = vector.extract_strided_slice %79 {offsets = [12, 0], sizes = [1, 64], strides = [1, 1]} : vector<13x64xbf16> to vector<1x64xbf16>
    %87 = tpu.concatenate %80, %81, %82, %83, %84, %85, %86 in 0 : vector<1x64xbf16>, vector<1x64xbf16>, vector<1x64xbf16>, vector<1x64xbf16>, vector<1x64xbf16>, vector<1x64xbf16>, vector<1x64xbf16> -> vector<7x64xbf16>
    %88 = vector.shape_cast %87 : vector<7x64xbf16> to vector<1x7x64xbf16>
    %89 = tpu.concatenate %22, %33, %44, %55, %66, %77, %88 in 0 : vector<1x7x64xbf16>, vector<1x7x64xbf16>, vector<1x7x64xbf16>, vector<1x7x64xbf16>, vector<1x7x64xbf16>, vector<1x7x64xbf16>, vector<1x7x64xbf16> -> vector<7x7x64xbf16>
    %c0_3 = arith.constant 0 : index
    %c0_4 = arith.constant 0 : index
    %c0_5 = arith.constant 0 : index
    %c0_6 = arith.constant 0 : index
    %90 = vector.load %arg2[%c0_3, %c0_4, %c0_5, %c0_6] : memref<1x7x7x64xbf16, #tpu.memory_space<vmem>>, vector<1x7x7x64xbf16>
    %91 = vector.shape_cast %90 : vector<1x7x7x64xbf16> to vector<7x7x64xbf16>
    %92 = vector.shape_cast %89 : vector<7x7x64xbf16> to vector<1x7x7x64xbf16>
    tpu.vector_store %arg2[%c0_3, %c0_4, %c0_5, %c0_6], %92 {strides = array<i32>} : memref<1x7x7x64xbf16, #tpu.memory_space<vmem>>, vector<1x7x7x64xbf16>,
    return
  }
  func.func @transform_0(%arg0: i32) -> (i32, i32, i32, i32) {
    %c0_i32 = arith.constant 0 : i32
    %c0_i32_0 = arith.constant 0 : i32
    %c0_i32_1 = arith.constant 0 : i32
    %c0_i32_2 = arith.constant 0 : i32
    return %arg0, %c0_i32, %c0_i32_0, %c0_i32_1 : i32, i32, i32, i32
  }
  func.func @transform_1(%arg0: i32) -> (i32, i32, i32, i32) {
    %c0_i32 = arith.constant 0 : i32
    %c0_i32_0 = arith.constant 0 : i32
    %c0_i32_1 = arith.constant 0 : i32
    %c0_i32_2 = arith.constant 0 : i32
    return %arg0, %c0_i32, %c0_i32_0, %c0_i32_1 : i32, i32, i32, i32
  }
}

module attributes {stable_mosaic.version = 11 : i64} {
  func.func @_matmul_bias_relu_kernel(%arg0: i32, %arg1: i32, %arg2: i32, %arg3: memref<128x512xbf16, #tpu.memory_space<vmem>>, %arg4: memref<512x128xbf16, #tpu.memory_space<vmem>>, %arg5: memref<1x128xf32, #tpu.memory_space<vmem>>, %arg6: memref<128x128xbf16, #tpu.memory_space<vmem>>, %arg7: memref<128x128xf32, #tpu.memory_space<vmem>>) attributes {dimension_semantics = [#tpu.dimension_semantics<parallel>, #tpu.dimension_semantics<parallel>, #tpu.dimension_semantics<arbitrary>], iteration_bounds = array<i64: 1, 2, 4>, scalar_prefetch = 0 : i64, scratch_operands = 1 : i64, tpu.core_type = #tpu.core_type<tc>, window_params = [{transform_indices = @transform_0, window_bounds = array<i64: 128, 512>}, {transform_indices = @transform_1, window_bounds = array<i64: 512, 128>}, {transform_indices = @transform_2, window_bounds = array<i64: 1, 128>}, {transform_indices = @transform_3, window_bounds = array<i64: 128, 128>}]} {
    %c0_i32 = arith.constant 0 : i32
    %0 = arith.cmpi eq, %arg2, %c0_i32 : i32
    %1 = arith.extui %0 : i1 to i32
    %c0_i32_0 = arith.constant 0 : i32
    %2 = arith.cmpi ne, %1, %c0_i32_0 : i32
    scf.if %2 {
      %cst_9 = arith.constant 0.000000e+00 : f32
      %12 = vector.broadcast %cst_9 : f32 to vector<128x128xf32>
      %c0_10 = arith.constant 0 : index
      %c0_11 = arith.constant 0 : index
      %13 = vector.load %arg7[%c0_10, %c0_11] : memref<128x128xf32, #tpu.memory_space<vmem>>, vector<128x128xf32>
      tpu.vector_store %arg7[%c0_10, %c0_11], %12 {strides = array<i32>} : memref<128x128xf32, #tpu.memory_space<vmem>>, vector<128x128xf32>,
    } else {
    }
    %c0 = arith.constant 0 : index
    %c0_1 = arith.constant 0 : index
    %3 = vector.load %arg7[%c0, %c0_1] : memref<128x128xf32, #tpu.memory_space<vmem>>, vector<128x128xf32>
    %c0_2 = arith.constant 0 : index
    %c0_3 = arith.constant 0 : index
    %4 = vector.load %arg3[%c0_2, %c0_3] : memref<128x512xbf16, #tpu.memory_space<vmem>>, vector<128x512xbf16>
    %c0_4 = arith.constant 0 : index
    %c0_5 = arith.constant 0 : index
    %5 = vector.load %arg4[%c0_4, %c0_5] : memref<512x128xbf16, #tpu.memory_space<vmem>>, vector<512x128xbf16>
    %cst = arith.constant dense<0.000000e+00> : vector<128x128xf32>
    %6 = tpu.matmul %4, %5, %cst {dimension_numbers = #tpu.dot_dimension_numbers<[1], [0], [0], [1], [0, 0, 1, 1], [], []>} : vector<128x512xbf16>, vector<512x128xbf16>, vector<128x128xf32> -> vector<128x128xf32>
    %7 = arith.addf %3, %6 : vector<128x128xf32>
    %c0_6 = arith.constant 0 : index
    %c0_7 = arith.constant 0 : index
    %8 = vector.load %arg7[%c0_6, %c0_7] : memref<128x128xf32, #tpu.memory_space<vmem>>, vector<128x128xf32>
    tpu.vector_store %arg7[%c0_6, %c0_7], %7 {strides = array<i32>} : memref<128x128xf32, #tpu.memory_space<vmem>>, vector<128x128xf32>,
    %c3_i32 = arith.constant 3 : i32
    %9 = arith.cmpi eq, %arg2, %c3_i32 : i32
    %10 = arith.extui %9 : i1 to i32
    %c0_i32_8 = arith.constant 0 : i32
    %11 = arith.cmpi ne, %10, %c0_i32_8 : i32
    scf.if %11 {
      %c0_9 = arith.constant 0 : index
      %c0_10 = arith.constant 0 : index
      %12 = vector.load %arg7[%c0_9, %c0_10] : memref<128x128xf32, #tpu.memory_space<vmem>>, vector<128x128xf32>
      %c0_11 = arith.constant 0 : index
      %c0_12 = arith.constant 0 : index
      %13 = vector.load %arg5[%c0_11, %c0_12] : memref<1x128xf32, #tpu.memory_space<vmem>>, vector<1x128xf32>
      %14 = vector.broadcast %13 : vector<1x128xf32> to vector<128x128xf32>
      %15 = arith.addf %12, %14 : vector<128x128xf32>
      %cst_13 = arith.constant 0.000000e+00 : f32
      %16 = vector.broadcast %cst_13 : f32 to vector<128x128xf32>
      %17 = arith.maximumf %15, %16 : vector<128x128xf32>
      %18 = arith.truncf %17 : vector<128x128xf32> to vector<128x128xbf16>
      %c0_14 = arith.constant 0 : index
      %c0_15 = arith.constant 0 : index
      %19 = vector.load %arg6[%c0_14, %c0_15] : memref<128x128xbf16, #tpu.memory_space<vmem>>, vector<128x128xbf16>
      tpu.vector_store %arg6[%c0_14, %c0_15], %18 {strides = array<i32>} : memref<128x128xbf16, #tpu.memory_space<vmem>>, vector<128x128xbf16>,
    } else {
    }
    return
  }
  func.func @transform_0(%arg0: i32, %arg1: i32, %arg2: i32) -> (i32, i32) {
    %c0_i32 = arith.constant 0 : i32
    return %arg0, %arg2 : i32, i32
  }
  func.func @transform_1(%arg0: i32, %arg1: i32, %arg2: i32) -> (i32, i32) {
    %c0_i32 = arith.constant 0 : i32
    return %arg2, %arg1 : i32, i32
  }
  func.func @transform_2(%arg0: i32, %arg1: i32, %arg2: i32) -> (i32, i32) {
    %c0_i32 = arith.constant 0 : i32
    %c0_i32_0 = arith.constant 0 : i32
    return %c0_i32, %arg1 : i32, i32
  }
  func.func @transform_3(%arg0: i32, %arg1: i32, %arg2: i32) -> (i32, i32) {
    %c0_i32 = arith.constant 0 : i32
    return %arg0, %arg1 : i32, i32
  }
}

module attributes {stable_mosaic.version = 11 : i64} {
  func.func @_maxpool3x3s2_kernel(%arg0: i32, %arg1: memref<1x7x7x192xbf16, #tpu.memory_space<vmem>>, %arg2: memref<1x3x3x192xbf16, #tpu.memory_space<vmem>>) attributes {dimension_semantics = [#tpu.dimension_semantics<parallel>], iteration_bounds = array<i64: 2>, scalar_prefetch = 0 : i64, scratch_operands = 0 : i64, tpu.core_type = #tpu.core_type<tc>, window_params = [{transform_indices = @transform_0, window_bounds = array<i64: 1, 7, 7, 192>}, {transform_indices = @transform_1, window_bounds = array<i64: 1, 3, 3, 192>}]} {
    %c0 = arith.constant 0 : index
    %c0_0 = arith.constant 0 : index
    %c0_1 = arith.constant 0 : index
    %c0_2 = arith.constant 0 : index
    %0 = vector.load %arg1[%c0, %c0_0, %c0_1, %c0_2] : memref<1x7x7x192xbf16, #tpu.memory_space<vmem>>, vector<1x7x7x192xbf16>
    %1 = vector.shape_cast %0 : vector<1x7x7x192xbf16> to vector<7x7x192xbf16>
    %2 = vector.extract_strided_slice %1 {offsets = [0, 0, 0], sizes = [5, 7, 192], strides = [1, 1, 1]} : vector<7x7x192xbf16> to vector<5x7x192xbf16>
    %3 = vector.extract_strided_slice %1 {offsets = [1, 0, 0], sizes = [5, 7, 192], strides = [1, 1, 1]} : vector<7x7x192xbf16> to vector<5x7x192xbf16>
    %4 = arith.maximumf %2, %3 : vector<5x7x192xbf16>
    %5 = vector.extract_strided_slice %1 {offsets = [2, 0, 0], sizes = [5, 7, 192], strides = [1, 1, 1]} : vector<7x7x192xbf16> to vector<5x7x192xbf16>
    %6 = arith.maximumf %4, %5 : vector<5x7x192xbf16>
    %7 = vector.extract_strided_slice %6 {offsets = [0, 0, 0], sizes = [5, 5, 192], strides = [1, 1, 1]} : vector<5x7x192xbf16> to vector<5x5x192xbf16>
    %8 = vector.extract_strided_slice %6 {offsets = [0, 1, 0], sizes = [5, 5, 192], strides = [1, 1, 1]} : vector<5x7x192xbf16> to vector<5x5x192xbf16>
    %9 = arith.maximumf %7, %8 : vector<5x5x192xbf16>
    %10 = vector.extract_strided_slice %6 {offsets = [0, 2, 0], sizes = [5, 5, 192], strides = [1, 1, 1]} : vector<5x7x192xbf16> to vector<5x5x192xbf16>
    %11 = arith.maximumf %9, %10 : vector<5x5x192xbf16>
    %12 = vector.extract_strided_slice %11 {offsets = [0, 0, 0], sizes = [1, 5, 192], strides = [1, 1, 1]} : vector<5x5x192xbf16> to vector<1x5x192xbf16>
    %13 = vector.shape_cast %12 : vector<1x5x192xbf16> to vector<5x192xbf16>
    %14 = vector.extract_strided_slice %13 {offsets = [0, 0], sizes = [1, 192], strides = [1, 1]} : vector<5x192xbf16> to vector<1x192xbf16>
    %15 = vector.extract_strided_slice %13 {offsets = [2, 0], sizes = [1, 192], strides = [1, 1]} : vector<5x192xbf16> to vector<1x192xbf16>
    %16 = vector.extract_strided_slice %13 {offsets = [4, 0], sizes = [1, 192], strides = [1, 1]} : vector<5x192xbf16> to vector<1x192xbf16>
    %17 = tpu.concatenate %14, %15, %16 in 0 : vector<1x192xbf16>, vector<1x192xbf16>, vector<1x192xbf16> -> vector<3x192xbf16>
    %18 = vector.shape_cast %17 : vector<3x192xbf16> to vector<1x3x192xbf16>
    %19 = vector.extract_strided_slice %11 {offsets = [2, 0, 0], sizes = [1, 5, 192], strides = [1, 1, 1]} : vector<5x5x192xbf16> to vector<1x5x192xbf16>
    %20 = vector.shape_cast %19 : vector<1x5x192xbf16> to vector<5x192xbf16>
    %21 = vector.extract_strided_slice %20 {offsets = [0, 0], sizes = [1, 192], strides = [1, 1]} : vector<5x192xbf16> to vector<1x192xbf16>
    %22 = vector.extract_strided_slice %20 {offsets = [2, 0], sizes = [1, 192], strides = [1, 1]} : vector<5x192xbf16> to vector<1x192xbf16>
    %23 = vector.extract_strided_slice %20 {offsets = [4, 0], sizes = [1, 192], strides = [1, 1]} : vector<5x192xbf16> to vector<1x192xbf16>
    %24 = tpu.concatenate %21, %22, %23 in 0 : vector<1x192xbf16>, vector<1x192xbf16>, vector<1x192xbf16> -> vector<3x192xbf16>
    %25 = vector.shape_cast %24 : vector<3x192xbf16> to vector<1x3x192xbf16>
    %26 = vector.extract_strided_slice %11 {offsets = [4, 0, 0], sizes = [1, 5, 192], strides = [1, 1, 1]} : vector<5x5x192xbf16> to vector<1x5x192xbf16>
    %27 = vector.shape_cast %26 : vector<1x5x192xbf16> to vector<5x192xbf16>
    %28 = vector.extract_strided_slice %27 {offsets = [0, 0], sizes = [1, 192], strides = [1, 1]} : vector<5x192xbf16> to vector<1x192xbf16>
    %29 = vector.extract_strided_slice %27 {offsets = [2, 0], sizes = [1, 192], strides = [1, 1]} : vector<5x192xbf16> to vector<1x192xbf16>
    %30 = vector.extract_strided_slice %27 {offsets = [4, 0], sizes = [1, 192], strides = [1, 1]} : vector<5x192xbf16> to vector<1x192xbf16>
    %31 = tpu.concatenate %28, %29, %30 in 0 : vector<1x192xbf16>, vector<1x192xbf16>, vector<1x192xbf16> -> vector<3x192xbf16>
    %32 = vector.shape_cast %31 : vector<3x192xbf16> to vector<1x3x192xbf16>
    %33 = tpu.concatenate %18, %25, %32 in 0 : vector<1x3x192xbf16>, vector<1x3x192xbf16>, vector<1x3x192xbf16> -> vector<3x3x192xbf16>
    %c0_3 = arith.constant 0 : index
    %c0_4 = arith.constant 0 : index
    %c0_5 = arith.constant 0 : index
    %c0_6 = arith.constant 0 : index
    %34 = vector.load %arg2[%c0_3, %c0_4, %c0_5, %c0_6] : memref<1x3x3x192xbf16, #tpu.memory_space<vmem>>, vector<1x3x3x192xbf16>
    %35 = vector.shape_cast %34 : vector<1x3x3x192xbf16> to vector<3x3x192xbf16>
    %36 = vector.shape_cast %33 : vector<3x3x192xbf16> to vector<1x3x3x192xbf16>
    tpu.vector_store %arg2[%c0_3, %c0_4, %c0_5, %c0_6], %36 {strides = array<i32>} : memref<1x3x3x192xbf16, #tpu.memory_space<vmem>>, vector<1x3x3x192xbf16>,
    return
  }
  func.func @transform_0(%arg0: i32) -> (i32, i32, i32, i32) {
    %c0_i32 = arith.constant 0 : i32
    %c0_i32_0 = arith.constant 0 : i32
    %c0_i32_1 = arith.constant 0 : i32
    %c0_i32_2 = arith.constant 0 : i32
    return %arg0, %c0_i32, %c0_i32_0, %c0_i32_1 : i32, i32, i32, i32
  }
  func.func @transform_1(%arg0: i32) -> (i32, i32, i32, i32) {
    %c0_i32 = arith.constant 0 : i32
    %c0_i32_0 = arith.constant 0 : i32
    %c0_i32_1 = arith.constant 0 : i32
    %c0_i32_2 = arith.constant 0 : i32
    return %arg0, %c0_i32, %c0_i32_0, %c0_i32_1 : i32, i32, i32, i32
  }
}

module attributes {stable_mosaic.version = 11 : i64} {
  func.func @_matmul_bias_relu_kernel(%arg0: i32, %arg1: i32, %arg2: i32, %arg3: memref<128x512xbf16, #tpu.memory_space<vmem>>, %arg4: memref<512x128xbf16, #tpu.memory_space<vmem>>, %arg5: memref<1x128xf32, #tpu.memory_space<vmem>>, %arg6: memref<128x128xbf16, #tpu.memory_space<vmem>>, %arg7: memref<128x128xf32, #tpu.memory_space<vmem>>) attributes {dimension_semantics = [#tpu.dimension_semantics<parallel>, #tpu.dimension_semantics<parallel>, #tpu.dimension_semantics<arbitrary>], iteration_bounds = array<i64: 1, 3, 4>, scalar_prefetch = 0 : i64, scratch_operands = 1 : i64, tpu.core_type = #tpu.core_type<tc>, window_params = [{transform_indices = @transform_0, window_bounds = array<i64: 128, 512>}, {transform_indices = @transform_1, window_bounds = array<i64: 512, 128>}, {transform_indices = @transform_2, window_bounds = array<i64: 1, 128>}, {transform_indices = @transform_3, window_bounds = array<i64: 128, 128>}]} {
    %c0_i32 = arith.constant 0 : i32
    %0 = arith.cmpi eq, %arg2, %c0_i32 : i32
    %1 = arith.extui %0 : i1 to i32
    %c0_i32_0 = arith.constant 0 : i32
    %2 = arith.cmpi ne, %1, %c0_i32_0 : i32
    scf.if %2 {
      %cst_9 = arith.constant 0.000000e+00 : f32
      %12 = vector.broadcast %cst_9 : f32 to vector<128x128xf32>
      %c0_10 = arith.constant 0 : index
      %c0_11 = arith.constant 0 : index
      %13 = vector.load %arg7[%c0_10, %c0_11] : memref<128x128xf32, #tpu.memory_space<vmem>>, vector<128x128xf32>
      tpu.vector_store %arg7[%c0_10, %c0_11], %12 {strides = array<i32>} : memref<128x128xf32, #tpu.memory_space<vmem>>, vector<128x128xf32>,
    } else {
    }
    %c0 = arith.constant 0 : index
    %c0_1 = arith.constant 0 : index
    %3 = vector.load %arg7[%c0, %c0_1] : memref<128x128xf32, #tpu.memory_space<vmem>>, vector<128x128xf32>
    %c0_2 = arith.constant 0 : index
    %c0_3 = arith.constant 0 : index
    %4 = vector.load %arg3[%c0_2, %c0_3] : memref<128x512xbf16, #tpu.memory_space<vmem>>, vector<128x512xbf16>
    %c0_4 = arith.constant 0 : index
    %c0_5 = arith.constant 0 : index
    %5 = vector.load %arg4[%c0_4, %c0_5] : memref<512x128xbf16, #tpu.memory_space<vmem>>, vector<512x128xbf16>
    %cst = arith.constant dense<0.000000e+00> : vector<128x128xf32>
    %6 = tpu.matmul %4, %5, %cst {dimension_numbers = #tpu.dot_dimension_numbers<[1], [0], [0], [1], [0, 0, 1, 1], [], []>} : vector<128x512xbf16>, vector<512x128xbf16>, vector<128x128xf32> -> vector<128x128xf32>
    %7 = arith.addf %3, %6 : vector<128x128xf32>
    %c0_6 = arith.constant 0 : index
    %c0_7 = arith.constant 0 : index
    %8 = vector.load %arg7[%c0_6, %c0_7] : memref<128x128xf32, #tpu.memory_space<vmem>>, vector<128x128xf32>
    tpu.vector_store %arg7[%c0_6, %c0_7], %7 {strides = array<i32>} : memref<128x128xf32, #tpu.memory_space<vmem>>, vector<128x128xf32>,
    %c3_i32 = arith.constant 3 : i32
    %9 = arith.cmpi eq, %arg2, %c3_i32 : i32
    %10 = arith.extui %9 : i1 to i32
    %c0_i32_8 = arith.constant 0 : i32
    %11 = arith.cmpi ne, %10, %c0_i32_8 : i32
    scf.if %11 {
      %c0_9 = arith.constant 0 : index
      %c0_10 = arith.constant 0 : index
      %12 = vector.load %arg7[%c0_9, %c0_10] : memref<128x128xf32, #tpu.memory_space<vmem>>, vector<128x128xf32>
      %c0_11 = arith.constant 0 : index
      %c0_12 = arith.constant 0 : index
      %13 = vector.load %arg5[%c0_11, %c0_12] : memref<1x128xf32, #tpu.memory_space<vmem>>, vector<1x128xf32>
      %14 = vector.broadcast %13 : vector<1x128xf32> to vector<128x128xf32>
      %15 = arith.addf %12, %14 : vector<128x128xf32>
      %cst_13 = arith.constant 0.000000e+00 : f32
      %16 = vector.broadcast %cst_13 : f32 to vector<128x128xf32>
      %17 = arith.maximumf %15, %16 : vector<128x128xf32>
      %18 = arith.truncf %17 : vector<128x128xf32> to vector<128x128xbf16>
      %c0_14 = arith.constant 0 : index
      %c0_15 = arith.constant 0 : index
      %19 = vector.load %arg6[%c0_14, %c0_15] : memref<128x128xbf16, #tpu.memory_space<vmem>>, vector<128x128xbf16>
      tpu.vector_store %arg6[%c0_14, %c0_15], %18 {strides = array<i32>} : memref<128x128xbf16, #tpu.memory_space<vmem>>, vector<128x128xbf16>,
    } else {
    }
    return
  }
  func.func @transform_0(%arg0: i32, %arg1: i32, %arg2: i32) -> (i32, i32) {
    %c0_i32 = arith.constant 0 : i32
    return %arg0, %arg2 : i32, i32
  }
  func.func @transform_1(%arg0: i32, %arg1: i32, %arg2: i32) -> (i32, i32) {
    %c0_i32 = arith.constant 0 : i32
    return %arg2, %arg1 : i32, i32
  }
  func.func @transform_2(%arg0: i32, %arg1: i32, %arg2: i32) -> (i32, i32) {
    %c0_i32 = arith.constant 0 : i32
    %c0_i32_0 = arith.constant 0 : i32
    return %c0_i32, %arg1 : i32, i32
  }
  func.func @transform_3(%arg0: i32, %arg1: i32, %arg2: i32) -> (i32, i32) {
    %c0_i32 = arith.constant 0 : i32
    return %arg0, %arg1 : i32, i32
  }
}

module attributes {stable_mosaic.version = 11 : i64} {
  func.func @_matmul_bias_relu_kernel(%arg0: i32, %arg1: i32, %arg2: i32, %arg3: memref<128x512xbf16, #tpu.memory_space<vmem>>, %arg4: memref<512x128xbf16, #tpu.memory_space<vmem>>, %arg5: memref<1x128xf32, #tpu.memory_space<vmem>>, %arg6: memref<128x128xbf16, #tpu.memory_space<vmem>>, %arg7: memref<128x128xf32, #tpu.memory_space<vmem>>) attributes {dimension_semantics = [#tpu.dimension_semantics<parallel>, #tpu.dimension_semantics<parallel>, #tpu.dimension_semantics<arbitrary>], iteration_bounds = array<i64: 1, 2, 7>, scalar_prefetch = 0 : i64, scratch_operands = 1 : i64, tpu.core_type = #tpu.core_type<tc>, window_params = [{transform_indices = @transform_0, window_bounds = array<i64: 128, 512>}, {transform_indices = @transform_1, window_bounds = array<i64: 512, 128>}, {transform_indices = @transform_2, window_bounds = array<i64: 1, 128>}, {transform_indices = @transform_3, window_bounds = array<i64: 128, 128>}]} {
    %c0_i32 = arith.constant 0 : i32
    %0 = arith.cmpi eq, %arg2, %c0_i32 : i32
    %1 = arith.extui %0 : i1 to i32
    %c0_i32_0 = arith.constant 0 : i32
    %2 = arith.cmpi ne, %1, %c0_i32_0 : i32
    scf.if %2 {
      %cst_9 = arith.constant 0.000000e+00 : f32
      %12 = vector.broadcast %cst_9 : f32 to vector<128x128xf32>
      %c0_10 = arith.constant 0 : index
      %c0_11 = arith.constant 0 : index
      %13 = vector.load %arg7[%c0_10, %c0_11] : memref<128x128xf32, #tpu.memory_space<vmem>>, vector<128x128xf32>
      tpu.vector_store %arg7[%c0_10, %c0_11], %12 {strides = array<i32>} : memref<128x128xf32, #tpu.memory_space<vmem>>, vector<128x128xf32>,
    } else {
    }
    %c0 = arith.constant 0 : index
    %c0_1 = arith.constant 0 : index
    %3 = vector.load %arg7[%c0, %c0_1] : memref<128x128xf32, #tpu.memory_space<vmem>>, vector<128x128xf32>
    %c0_2 = arith.constant 0 : index
    %c0_3 = arith.constant 0 : index
    %4 = vector.load %arg3[%c0_2, %c0_3] : memref<128x512xbf16, #tpu.memory_space<vmem>>, vector<128x512xbf16>
    %c0_4 = arith.constant 0 : index
    %c0_5 = arith.constant 0 : index
    %5 = vector.load %arg4[%c0_4, %c0_5] : memref<512x128xbf16, #tpu.memory_space<vmem>>, vector<512x128xbf16>
    %cst = arith.constant dense<0.000000e+00> : vector<128x128xf32>
    %6 = tpu.matmul %4, %5, %cst {dimension_numbers = #tpu.dot_dimension_numbers<[1], [0], [0], [1], [0, 0, 1, 1], [], []>} : vector<128x512xbf16>, vector<512x128xbf16>, vector<128x128xf32> -> vector<128x128xf32>
    %7 = arith.addf %3, %6 : vector<128x128xf32>
    %c0_6 = arith.constant 0 : index
    %c0_7 = arith.constant 0 : index
    %8 = vector.load %arg7[%c0_6, %c0_7] : memref<128x128xf32, #tpu.memory_space<vmem>>, vector<128x128xf32>
    tpu.vector_store %arg7[%c0_6, %c0_7], %7 {strides = array<i32>} : memref<128x128xf32, #tpu.memory_space<vmem>>, vector<128x128xf32>,
    %c6_i32 = arith.constant 6 : i32
    %9 = arith.cmpi eq, %arg2, %c6_i32 : i32
    %10 = arith.extui %9 : i1 to i32
    %c0_i32_8 = arith.constant 0 : i32
    %11 = arith.cmpi ne, %10, %c0_i32_8 : i32
    scf.if %11 {
      %c0_9 = arith.constant 0 : index
      %c0_10 = arith.constant 0 : index
      %12 = vector.load %arg7[%c0_9, %c0_10] : memref<128x128xf32, #tpu.memory_space<vmem>>, vector<128x128xf32>
      %c0_11 = arith.constant 0 : index
      %c0_12 = arith.constant 0 : index
      %13 = vector.load %arg5[%c0_11, %c0_12] : memref<1x128xf32, #tpu.memory_space<vmem>>, vector<1x128xf32>
      %14 = vector.broadcast %13 : vector<1x128xf32> to vector<128x128xf32>
      %15 = arith.addf %12, %14 : vector<128x128xf32>
      %cst_13 = arith.constant 0.000000e+00 : f32
      %16 = vector.broadcast %cst_13 : f32 to vector<128x128xf32>
      %17 = arith.maximumf %15, %16 : vector<128x128xf32>
      %18 = arith.truncf %17 : vector<128x128xf32> to vector<128x128xbf16>
      %c0_14 = arith.constant 0 : index
      %c0_15 = arith.constant 0 : index
      %19 = vector.load %arg6[%c0_14, %c0_15] : memref<128x128xbf16, #tpu.memory_space<vmem>>, vector<128x128xbf16>
      tpu.vector_store %arg6[%c0_14, %c0_15], %18 {strides = array<i32>} : memref<128x128xbf16, #tpu.memory_space<vmem>>, vector<128x128xbf16>,
    } else {
    }
    return
  }
  func.func @transform_0(%arg0: i32, %arg1: i32, %arg2: i32) -> (i32, i32) {
    %c0_i32 = arith.constant 0 : i32
    return %arg0, %arg2 : i32, i32
  }
  func.func @transform_1(%arg0: i32, %arg1: i32, %arg2: i32) -> (i32, i32) {
    %c0_i32 = arith.constant 0 : i32
    return %arg2, %arg1 : i32, i32
  }
  func.func @transform_2(%arg0: i32, %arg1: i32, %arg2: i32) -> (i32, i32) {
    %c0_i32 = arith.constant 0 : i32
    %c0_i32_0 = arith.constant 0 : i32
    return %c0_i32, %arg1 : i32, i32
  }
  func.func @transform_3(%arg0: i32, %arg1: i32, %arg2: i32) -> (i32, i32) {
    %c0_i32 = arith.constant 0 : i32
    return %arg0, %arg1 : i32, i32
  }
}

module attributes {stable_mosaic.version = 11 : i64} {
  func.func @_matmul_bias_relu_kernel(%arg0: i32, %arg1: i32, %arg2: i32, %arg3: memref<128x512xbf16, #tpu.memory_space<vmem>>, %arg4: memref<512x128xbf16, #tpu.memory_space<vmem>>, %arg5: memref<1x128xf32, #tpu.memory_space<vmem>>, %arg6: memref<128x128xbf16, #tpu.memory_space<vmem>>, %arg7: memref<128x128xf32, #tpu.memory_space<vmem>>) attributes {dimension_semantics = [#tpu.dimension_semantics<parallel>, #tpu.dimension_semantics<parallel>, #tpu.dimension_semantics<arbitrary>], iteration_bounds = array<i64: 1, 2, 5>, scalar_prefetch = 0 : i64, scratch_operands = 1 : i64, tpu.core_type = #tpu.core_type<tc>, window_params = [{transform_indices = @transform_0, window_bounds = array<i64: 128, 512>}, {transform_indices = @transform_1, window_bounds = array<i64: 512, 128>}, {transform_indices = @transform_2, window_bounds = array<i64: 1, 128>}, {transform_indices = @transform_3, window_bounds = array<i64: 128, 128>}]} {
    %c0_i32 = arith.constant 0 : i32
    %0 = arith.cmpi eq, %arg2, %c0_i32 : i32
    %1 = arith.extui %0 : i1 to i32
    %c0_i32_0 = arith.constant 0 : i32
    %2 = arith.cmpi ne, %1, %c0_i32_0 : i32
    scf.if %2 {
      %cst_9 = arith.constant 0.000000e+00 : f32
      %12 = vector.broadcast %cst_9 : f32 to vector<128x128xf32>
      %c0_10 = arith.constant 0 : index
      %c0_11 = arith.constant 0 : index
      %13 = vector.load %arg7[%c0_10, %c0_11] : memref<128x128xf32, #tpu.memory_space<vmem>>, vector<128x128xf32>
      tpu.vector_store %arg7[%c0_10, %c0_11], %12 {strides = array<i32>} : memref<128x128xf32, #tpu.memory_space<vmem>>, vector<128x128xf32>,
    } else {
    }
    %c0 = arith.constant 0 : index
    %c0_1 = arith.constant 0 : index
    %3 = vector.load %arg7[%c0, %c0_1] : memref<128x128xf32, #tpu.memory_space<vmem>>, vector<128x128xf32>
    %c0_2 = arith.constant 0 : index
    %c0_3 = arith.constant 0 : index
    %4 = vector.load %arg3[%c0_2, %c0_3] : memref<128x512xbf16, #tpu.memory_space<vmem>>, vector<128x512xbf16>
    %c0_4 = arith.constant 0 : index
    %c0_5 = arith.constant 0 : index
    %5 = vector.load %arg4[%c0_4, %c0_5] : memref<512x128xbf16, #tpu.memory_space<vmem>>, vector<512x128xbf16>
    %cst = arith.constant dense<0.000000e+00> : vector<128x128xf32>
    %6 = tpu.matmul %4, %5, %cst {dimension_numbers = #tpu.dot_dimension_numbers<[1], [0], [0], [1], [0, 0, 1, 1], [], []>} : vector<128x512xbf16>, vector<512x128xbf16>, vector<128x128xf32> -> vector<128x128xf32>
    %7 = arith.addf %3, %6 : vector<128x128xf32>
    %c0_6 = arith.constant 0 : index
    %c0_7 = arith.constant 0 : index
    %8 = vector.load %arg7[%c0_6, %c0_7] : memref<128x128xf32, #tpu.memory_space<vmem>>, vector<128x128xf32>
    tpu.vector_store %arg7[%c0_6, %c0_7], %7 {strides = array<i32>} : memref<128x128xf32, #tpu.memory_space<vmem>>, vector<128x128xf32>,
    %c4_i32 = arith.constant 4 : i32
    %9 = arith.cmpi eq, %arg2, %c4_i32 : i32
    %10 = arith.extui %9 : i1 to i32
    %c0_i32_8 = arith.constant 0 : i32
    %11 = arith.cmpi ne, %10, %c0_i32_8 : i32
    scf.if %11 {
      %c0_9 = arith.constant 0 : index
      %c0_10 = arith.constant 0 : index
      %12 = vector.load %arg7[%c0_9, %c0_10] : memref<128x128xf32, #tpu.memory_space<vmem>>, vector<128x128xf32>
      %c0_11 = arith.constant 0 : index
      %c0_12 = arith.constant 0 : index
      %13 = vector.load %arg5[%c0_11, %c0_12] : memref<1x128xf32, #tpu.memory_space<vmem>>, vector<1x128xf32>
      %14 = vector.broadcast %13 : vector<1x128xf32> to vector<128x128xf32>
      %15 = arith.addf %12, %14 : vector<128x128xf32>
      %cst_13 = arith.constant 0.000000e+00 : f32
      %16 = vector.broadcast %cst_13 : f32 to vector<128x128xf32>
      %17 = arith.maximumf %15, %16 : vector<128x128xf32>
      %18 = arith.truncf %17 : vector<128x128xf32> to vector<128x128xbf16>
      %c0_14 = arith.constant 0 : index
      %c0_15 = arith.constant 0 : index
      %19 = vector.load %arg6[%c0_14, %c0_15] : memref<128x128xbf16, #tpu.memory_space<vmem>>, vector<128x128xbf16>
      tpu.vector_store %arg6[%c0_14, %c0_15], %18 {strides = array<i32>} : memref<128x128xbf16, #tpu.memory_space<vmem>>, vector<128x128xbf16>,
    } else {
    }
    return
  }
  func.func @transform_0(%arg0: i32, %arg1: i32, %arg2: i32) -> (i32, i32) {
    %c0_i32 = arith.constant 0 : i32
    return %arg0, %arg2 : i32, i32
  }
  func.func @transform_1(%arg0: i32, %arg1: i32, %arg2: i32) -> (i32, i32) {
    %c0_i32 = arith.constant 0 : i32
    return %arg2, %arg1 : i32, i32
  }
  func.func @transform_2(%arg0: i32, %arg1: i32, %arg2: i32) -> (i32, i32) {
    %c0_i32 = arith.constant 0 : i32
    %c0_i32_0 = arith.constant 0 : i32
    return %c0_i32, %arg1 : i32, i32
  }
  func.func @transform_3(%arg0: i32, %arg1: i32, %arg2: i32) -> (i32, i32) {
    %c0_i32 = arith.constant 0 : i32
    return %arg0, %arg1 : i32, i32
  }
}

module attributes {stable_mosaic.version = 11 : i64} {
  func.func @_maxpool3x3s2_kernel(%arg0: i32, %arg1: memref<1x3x3x256xbf16, #tpu.memory_space<vmem>>, %arg2: memref<1x1x1x256xbf16, #tpu.memory_space<vmem>>) attributes {dimension_semantics = [#tpu.dimension_semantics<parallel>], iteration_bounds = array<i64: 2>, scalar_prefetch = 0 : i64, scratch_operands = 0 : i64, tpu.core_type = #tpu.core_type<tc>, window_params = [{transform_indices = @transform_0, window_bounds = array<i64: 1, 3, 3, 256>}, {transform_indices = @transform_1, window_bounds = array<i64: 1, 1, 1, 256>}]} {
    %c0 = arith.constant 0 : index
    %c0_0 = arith.constant 0 : index
    %c0_1 = arith.constant 0 : index
    %c0_2 = arith.constant 0 : index
    %0 = vector.load %arg1[%c0, %c0_0, %c0_1, %c0_2] : memref<1x3x3x256xbf16, #tpu.memory_space<vmem>>, vector<1x3x3x256xbf16>
    %1 = vector.shape_cast %0 : vector<1x3x3x256xbf16> to vector<3x3x256xbf16>
    %2 = vector.extract_strided_slice %1 {offsets = [0, 0, 0], sizes = [1, 3, 256], strides = [1, 1, 1]} : vector<3x3x256xbf16> to vector<1x3x256xbf16>
    %3 = vector.extract_strided_slice %1 {offsets = [1, 0, 0], sizes = [1, 3, 256], strides = [1, 1, 1]} : vector<3x3x256xbf16> to vector<1x3x256xbf16>
    %4 = arith.maximumf %2, %3 : vector<1x3x256xbf16>
    %5 = vector.extract_strided_slice %1 {offsets = [2, 0, 0], sizes = [1, 3, 256], strides = [1, 1, 1]} : vector<3x3x256xbf16> to vector<1x3x256xbf16>
    %6 = arith.maximumf %4, %5 : vector<1x3x256xbf16>
    %7 = vector.extract_strided_slice %6 {offsets = [0, 0, 0], sizes = [1, 1, 256], strides = [1, 1, 1]} : vector<1x3x256xbf16> to vector<1x1x256xbf16>
    %8 = vector.extract_strided_slice %6 {offsets = [0, 1, 0], sizes = [1, 1, 256], strides = [1, 1, 1]} : vector<1x3x256xbf16> to vector<1x1x256xbf16>
    %9 = arith.maximumf %7, %8 : vector<1x1x256xbf16>
    %10 = vector.extract_strided_slice %6 {offsets = [0, 2, 0], sizes = [1, 1, 256], strides = [1, 1, 1]} : vector<1x3x256xbf16> to vector<1x1x256xbf16>
    %11 = arith.maximumf %9, %10 : vector<1x1x256xbf16>
    %12 = vector.shape_cast %11 : vector<1x1x256xbf16> to vector<1x256xbf16>
    %13 = vector.shape_cast %12 : vector<1x256xbf16> to vector<1x1x256xbf16>
    %c0_3 = arith.constant 0 : index
    %c0_4 = arith.constant 0 : index
    %c0_5 = arith.constant 0 : index
    %c0_6 = arith.constant 0 : index
    %14 = vector.load %arg2[%c0_3, %c0_4, %c0_5, %c0_6] : memref<1x1x1x256xbf16, #tpu.memory_space<vmem>>, vector<1x1x1x256xbf16>
    %15 = vector.shape_cast %14 : vector<1x1x1x256xbf16> to vector<1x1x256xbf16>
    %16 = vector.shape_cast %13 : vector<1x1x256xbf16> to vector<1x1x1x256xbf16>
    tpu.vector_store %arg2[%c0_3, %c0_4, %c0_5, %c0_6], %16 {strides = array<i32>} : memref<1x1x1x256xbf16, #tpu.memory_space<vmem>>, vector<1x1x1x256xbf16>,
    return
  }
  func.func @transform_0(%arg0: i32) -> (i32, i32, i32, i32) {
    %c0_i32 = arith.constant 0 : i32
    %c0_i32_0 = arith.constant 0 : i32
    %c0_i32_1 = arith.constant 0 : i32
    %c0_i32_2 = arith.constant 0 : i32
    return %arg0, %c0_i32, %c0_i32_0, %c0_i32_1 : i32, i32, i32, i32
  }
  func.func @transform_1(%arg0: i32) -> (i32, i32, i32, i32) {
    %c0_i32 = arith.constant 0 : i32
    %c0_i32_0 = arith.constant 0 : i32
    %c0_i32_1 = arith.constant 0 : i32
    %c0_i32_2 = arith.constant 0 : i32
    return %arg0, %c0_i32, %c0_i32_0, %c0_i32_1 : i32, i32, i32, i32
  }
}

</mosaic_0001>

<llo_original>
// kernel: _lambda_.9
$region0: #{_lambda_.9}
  #allocation0 [shape = 'u32[]', space=smem, size = 0x4, offset = 0x4, fixed_abs, tag = 'smem constant byte address 0x4 - core index']
  #allocation1 [shape = 'u32[72,128]{1,0:T(1,128)}', space=vmem, size = 0x9000, scoped, tag = 'internal scratch']
  %s0 = inlined_call_operand.vmem [shape: bf16[2,15,15,64], index: 0, kind: input, shape index: {}]
  %s1 = inlined_call_operand.vmem [shape: bf16[2,7,7,64], index: 1, kind: output, shape index: {}]
  %s2 = sld [smem:[#allocation0]]
  $region37: #{_lambda_.9} parent=0
    _
  %s4 = ssub.s32 1, %s2
  %s5 = scalar_select 0, %s4, %s2
  loop: start=0, step=1, limit=4
  $region2: #{_lambda_.9} parent=0 // loop_pre_header
    _
  $region3: #{_lambda_.9} parent=0 // loop_header
    %s7 = sphi 0, %s11
    %p8 = scmp.ge.s32.totalorder %s7, 4
    %s17 = sphi 0, %s19
    %s20 = sphi 0, %s17
    %s21 = sphi 0, %s20
    %s37 = sphi 0, %s21
    %s43 = sphi 0, %s45
    %s46 = sphi 0, %s43
    %s47 = sphi 0, %s46
    %s63 = sphi 0, %s47
  $region4: #{_lambda_.9} parent=0 // loop_header_branch
    %10 = sbr.rel (%p8) target = $region8
  $region5: #{_lambda_.9} parent=0 // loop_body
    %s12 = ssub.s32 %s7, 1
    %s13 = ssub.s32 %s7, 2
    %s14 = sadd.s32 %s7, 1
    %s15 = ssub.s32 %s7, %s14
    %p16 = scmp.eq.s32.totalorder %s15, 0
    %s18 = sadd.s32 %s17, 1
    %s19 = scalar_select %p16, %s17, %s18
    %p22 = pneg %p16
    %p23 = scmp.eq.s32.totalorder %s7, 1
    %p24 = por %p22, %p23
    %p25 = scmp.ne.s32.totalorder %s17, %s20
    %p26 = scmp.eq.s32.totalorder %s7, 0
    %p27 = por %p25, %p26
    %p28 = scmp.ne.s32.totalorder %s17, %s20
    %p29 = scmp.eq.s32.totalorder %s12, 1
    %p30 = por %p28, %p29
    %p31 = scmp.ne.s32.totalorder %s20, %s21
    %p32 = scmp.eq.s32.totalorder %s12, 0
    %p33 = por %p31, %p32
    %p34 = scmp.ne.s32.totalorder %s20, %s21
    %p35 = scmp.eq.s32.totalorder %s13, 1
    %p36 = por %p34, %p35
    %p38 = scmp.ne.s32.totalorder %s21, %s37
    %p39 = scmp.eq.s32.totalorder %s13, 0
    %p40 = por %p38, %p39
    %s41 = ssub.s32 %s7, %s14
    %p42 = scmp.eq.s32.totalorder %s41, 0
    %s44 = sadd.s32 %s43, 1
    %s45 = scalar_select %p42, %s43, %s44
    %p48 = pneg %p42
    %p49 = scmp.eq.s32.totalorder %s7, 1
    %p50 = por %p48, %p49
    %p51 = scmp.ne.s32.totalorder %s43, %s46
    %p52 = scmp.eq.s32.totalorder %s7, 0
    %p53 = por %p51, %p52
    %p54 = scmp.ne.s32.totalorder %s43, %s46
    %p55 = scmp.eq.s32.totalorder %s12, 1
    %p56 = por %p54, %p55
    %p57 = scmp.ne.s32.totalorder %s46, %s47
    %p58 = scmp.eq.s32.totalorder %s12, 0
    %p59 = por %p57, %p58
    %p60 = scmp.ne.s32.totalorder %s46, %s47
    %p61 = scmp.eq.s32.totalorder %s13, 1
    %p62 = por %p60, %p61
    %p64 = scmp.ne.s32.totalorder %s47, %s63
    %p65 = scmp.eq.s32.totalorder %s13, 0
    %p66 = por %p64, %p65
    %p67 = scmp.le.s32.totalorder 1, %s7
    %p68 = scmp.lt.s32.totalorder %s7, 3
    %p69 = pnand %p67, %p68
    %p70 = pneg %p69
    // Predicated region
    $region9: #{_lambda_.9} parent=5 // pred_check
      _
    $region10: #{_lambda_.9} parent=5 // pred_check_branch
      %72 = sbr.rel (%p69) target = $region12
    $region11: #{_lambda_.9} parent=5 // pred_region
      %s73 = ssub.s32 %s7, 1
    $region12: #{_lambda_.9} parent=5 // pred_fallthru
      _
    %p74 = scmp.lt.s32.totalorder %s7, 2
    // Predicated region
    $region13: #{_lambda_.9} parent=5 // pred_check
      %p75 = pneg %p74
    $region14: #{_lambda_.9} parent=5 // pred_check_branch
      %77 = sbr.rel (%p75) target = $region16
    $region15: #{_lambda_.9} parent=5 // pred_region
      // Predicated region
      $region17: #{_lambda_.9} parent=15 // pred_check
        %p78 = pneg %p27
      $region18: #{_lambda_.9} parent=15 // pred_check_branch
        %80 = sbr.rel (%p78) target = $region20
      $region19: #{_lambda_.9} parent=15 // pred_region
        %p81 = scmp.lt.s32.totalorder %s7, 1
        %s82 = scalar_select %p81, %s7, 1
        %s83 = smul.addr %s82, 30
        %s84 = smul.addr %s83, 4
        %s85 = scalar_lea.vmem %s0, %s84
      $region20: #{_lambda_.9} parent=15 // pred_fallthru
        _
    $region16: #{_lambda_.9} parent=5 // pred_fallthru
      _
    %p86 = scmp.le.s32.totalorder 1, %s7
    %p87 = scmp.lt.s32.totalorder %s7, 3
    %p88 = pnand %p86, %p87
    %p89 = pneg %p88
    // Predicated region
    $region21: #{_lambda_.9} parent=5 // pred_check
      _
    $region22: #{_lambda_.9} parent=5 // pred_check_branch
      %91 = sbr.rel (%p88) target = $region24
    $region23: #{_lambda_.9} parent=5 // pred_region
      %s92 = ssub.s32 %s7, 1
      %p93 = scmp.lt.s32.totalorder %s12, 1
      %s94 = scalar_select %p93, %s12, 1
      %s95 = smul.addr %s94, 30
      %s96 = smul.addr %s95, 4
      %s97 = scalar_lea.vmem %s0, %s96
      %p98 = pneg %p33
      %p99 = pneg %p30
      %p100 = pneg %p59
      %p101 = pneg %p56
      %p102 = scmp.lt.s32.totalorder %s12, 1
      %s103 = scalar_select %p102, %s12, 1
      %s104 = smul.addr %s103, 7
      %s105 = smul.addr %s104, 4
      %s106 = scalar_lea.vmem %s1, %s105
      %p107 = scmp.lt.s32.totalorder %s12, 1
      %s108 = scalar_select %p107, %s12, 1
      %s109 = smul.addr %s108, 30
      %s110 = smul.addr %s109, 4
      %s111 = scalar_lea.vmem %s0, %s110
      %p112 = scmp.lt.s32.totalorder %s12, 1
      %s113 = scalar_select %p112, %s12, 1
      %s114 = smul.addr %s113, 7
      %s115 = smul.addr %s114, 4
      %s116 = scalar_lea.vmem %s1, %s115
      %v117 = vld [vmem:[%s111] sm:$0xf]
      %v118 = vld [vmem:[%s111 + $0x4] sm:$0xf]
      %v119 = vld [vmem:[%s111 + $0x8] sm:$0xf]
      %v120 = vld [vmem:[%s111 + $0xc] sm:$0xf]
      %v121 = vld [vmem:[%s111 + $0x10] sm:$0xf]
      %v122 = vld [vmem:[%s111 + $0x14] sm:$0xf]
      %v123 = vld [vmem:[%s111 + $0x18] sm:$0xf]
      %v124 = vld [vmem:[%s111 + $0x1c] sm:$0xf]
      %v125 = vld [vmem:[%s111 + $0x20] sm:$0xf]
      %v126 = vld [vmem:[%s111 + $0x24] sm:$0xf]
      %v127 = vld [vmem:[%s111 + $0x28] sm:$0xf]
      %v128 = vld [vmem:[%s111 + $0x2c] sm:$0xf]
      %v129 = vld [vmem:[%s111 + $0x30] sm:$0xf]
      %v130 = vld [vmem:[%s111 + $0x34] sm:$0xf]
      %v131 = vld [vmem:[%s111 + $0x38] sm:$0xf]
      %v132 = vld [vmem:[%s111 + $0x3c] sm:$0xf]
      %v133 = vld [vmem:[%s111 + $0x40] sm:$0xf]
      %v134 = vld [vmem:[%s111 + $0x44] sm:$0xf]
      %v135 = vld [vmem:[%s111 + $0x48] sm:$0xf]
      %v136 = vld [vmem:[%s111 + $0x4c] sm:$0xf]
      %v137 = vld [vmem:[%s111 + $0x50] sm:$0xf]
      %v138 = vld [vmem:[%s111 + $0x54] sm:$0xf]
      %v139 = vld [vmem:[%s111 + $0x58] sm:$0xf]
      %v140 = vld [vmem:[%s111 + $0x5c] sm:$0xf]
      %v141 = vld [vmem:[%s111 + $0x60] sm:$0xf]
      %v142 = vld [vmem:[%s111 + $0x64] sm:$0xf]
      %v143 = vld [vmem:[%s111 + $0x68] sm:$0xf]
      %v144 = vld [vmem:[%s111 + $0x6c] sm:$0xf]
      %v145 = vld [vmem:[%s111 + $0x70] sm:$0xf]
      %v146 = vld [vmem:[%s111 + $0x74] sm:$0xf]
      %v147 = vunpack.c.l.bf16 %v117
      %v148 = vunpack.c.l.bf16 %v118
      %v149 = vunpack.c.l.bf16 %v121
      %v150 = vunpack.c.l.bf16 %v122
      %v151 = vunpack.c.l.bf16 %v125
      %v152 = vunpack.c.l.bf16 %v126
      %v153 = vunpack.c.l.bf16 %v129
      %v154 = vunpack.c.l.bf16 %v130
      %v155 = vunpack.c.l.bf16 %v133
      %v156 = vunpack.c.l.bf16 %v134
      %v157 = vunpack.c.l.bf16 %v137
      %v158 = vunpack.c.l.bf16 %v138
      %v159 = vunpack.c.l.bf16 %v141
      %v160 = vunpack.c.l.bf16 %v142
      %v161 = vunpack.c.l.bf16 %v119
      %v162 = vunpack.c.l.bf16 %v120
      %v163 = vunpack.c.l.bf16 %v123
      %v164 = vunpack.c.l.bf16 %v124
      %v165 = vunpack.c.l.bf16 %v127
      %v166 = vunpack.c.l.bf16 %v128
      %v167 = vunpack.c.l.bf16 %v131
      %v168 = vunpack.c.l.bf16 %v132
      %v169 = vunpack.c.l.bf16 %v135
      %v170 = vunpack.c.l.bf16 %v136
      %v171 = vunpack.c.l.bf16 %v139
      %v172 = vunpack.c.l.bf16 %v140
      %v173 = vunpack.c.l.bf16 %v143
      %v174 = vunpack.c.l.bf16 %v144
      %v175 = vmax.f32 %v147, %v161
      %v176 = vmax.f32 %v148, %v162
      %v177 = vmax.f32 %v149, %v163
      %v178 = vmax.f32 %v150, %v164
      %v179 = vmax.f32 %v151, %v165
      %v180 = vmax.f32 %v152, %v166
      %v181 = vmax.f32 %v153, %v167
      %v182 = vmax.f32 %v154, %v168
      %v183 = vmax.f32 %v155, %v169
      %v184 = vmax.f32 %v156, %v170
      %v185 = vmax.f32 %v157, %v171
      %v186 = vmax.f32 %v158, %v172
      %v187 = vmax.f32 %v159, %v173
      %v188 = vmax.f32 %v160, %v174
      %v189 = vpack.c.bf16 %v175, %v175
      %v190 = vpack.c.bf16 %v176, %v176
      %v191 = vpack.c.bf16 %v177, %v177
      %v192 = vpack.c.bf16 %v178, %v178
      %v193 = vpack.c.bf16 %v179, %v179
      %v194 = vpack.c.bf16 %v180, %v180
      %v195 = vpack.c.bf16 %v181, %v181
      %v196 = vpack.c.bf16 %v182, %v182
      %v197 = vpack.c.bf16 %v183, %v183
      %v198 = vpack.c.bf16 %v184, %v184
      %v199 = vpack.c.bf16 %v185, %v185
      %v200 = vpack.c.bf16 %v186, %v186
      %v201 = vpack.c.bf16 %v187, %v187
      %v202 = vpack.c.bf16 %v188, %v188
      %v203 = vunpack.c.l.bf16 %v189
      %v204 = vunpack.c.l.bf16 %v190
      %v205 = vunpack.c.l.bf16 %v191
      %v206 = vunpack.c.l.bf16 %v192
      %v207 = vunpack.c.l.bf16 %v193
      %v208 = vunpack.c.l.bf16 %v194
      %v209 = vunpack.c.l.bf16 %v195
      %v210 = vunpack.c.l.bf16 %v196
      %v211 = vunpack.c.l.bf16 %v197
      %v212 = vunpack.c.l.bf16 %v198
      %v213 = vunpack.c.l.bf16 %v199
      %v214 = vunpack.c.l.bf16 %v200
      %v215 = vunpack.c.l.bf16 %v201
      %v216 = vunpack.c.l.bf16 %v202
      %v217 = vunpack.c.l.bf16 %v145
      %v218 = vunpack.c.l.bf16 %v146
      %v219 = vmax.f32 %v203, %v149
      %v220 = vmax.f32 %v204, %v150
      %v221 = vmax.f32 %v205, %v151
      %v222 = vmax.f32 %v206, %v152
      %v223 = vmax.f32 %v207, %v153
      %v224 = vmax.f32 %v208, %v154
      %v225 = vmax.f32 %v209, %v155
      %v226 = vmax.f32 %v210, %v156
      %v227 = vmax.f32 %v211, %v157
      %v228 = vmax.f32 %v212, %v158
      %v229 = vmax.f32 %v213, %v159
      %v230 = vmax.f32 %v214, %v160
      %v231 = vmax.f32 %v215, %v217
      %v232 = vmax.f32 %v216, %v218
      %v233 = vpack.c.bf16 %v219, %v219
      %v234 = vpack.c.bf16 %v220, %v220
      %v235 = vpack.c.bf16 %v221, %v221
      %v236 = vpack.c.bf16 %v222, %v222
      %v237 = vpack.c.bf16 %v223, %v223
      %v238 = vpack.c.bf16 %v224, %v224
      %v239 = vpack.c.bf16 %v225, %v225
      %v240 = vpack.c.bf16 %v226, %v226
      %v241 = vpack.c.bf16 %v227, %v227
      %v242 = vpack.c.bf16 %v228, %v228
      %v243 = vpack.c.bf16 %v229, %v229
      %v244 = vpack.c.bf16 %v230, %v230
      %v245 = vpack.c.bf16 %v231, %v231
      %v246 = vpack.c.bf16 %v232, %v232
      %v247 = vunpack.c.l.bf16 %v233
      %v248 = vunpack.c.l.bf16 %v234
      %v249 = vunpack.c.l.bf16 %v235
      %v250 = vunpack.c.l.bf16 %v236
      %v251 = vunpack.c.l.bf16 %v237
      %v252 = vunpack.c.l.bf16 %v238
      %v253 = vunpack.c.l.bf16 %v239
      %v254 = vunpack.c.l.bf16 %v240
      %v255 = vunpack.c.l.bf16 %v241
      %v256 = vunpack.c.l.bf16 %v242
      %v257 = vunpack.c.l.bf16 %v243
      %v258 = vunpack.c.l.bf16 %v244
      %v259 = vunpack.c.l.bf16 %v245
      %v260 = vunpack.c.l.bf16 %v246
      %vm275 = vcmask 1046528
      %v276 = vrot.slane %v247, 1
      %v277 = vrot.slane %v248, 1
      %v278 = vsel %vm275, %v276, %v277
      %v279 = vrot.slane %v249, 1
      %v280 = vrot.slane %v250, 1
      %v281 = vsel %vm275, %v279, %v280
      %v282 = vrot.slane %v251, 1
      %v283 = vrot.slane %v252, 1
      %v284 = vsel %vm275, %v282, %v283
      %v285 = vrot.slane %v253, 1
      %v286 = vrot.slane %v254, 1
      %v287 = vsel %vm275, %v285, %v286
      %v288 = vrot.slane %v255, 1
      %v289 = vrot.slane %v256, 1
      %v290 = vsel %vm275, %v288, %v289
      %v291 = vrot.slane %v257, 1
      %v292 = vrot.slane %v258, 1
      %v293 = vsel %vm275, %v291, %v292
      %v294 = vrot.slane %v259, 1
      %v295 = vrot.slane %v260, 1
      %v296 = vsel %vm275, %v294, %v295
      %v311 = vmax.f32 %v247, %v278
      %v312 = vmax.f32 %v248, %v277
      %v313 = vmax.f32 %v249, %v281
      %v314 = vmax.f32 %v250, %v280
      %v315 = vmax.f32 %v251, %v284
      %v316 = vmax.f32 %v252, %v283
      %v317 = vmax.f32 %v253, %v287
      %v318 = vmax.f32 %v254, %v286
      %v319 = vmax.f32 %v255, %v290
      %v320 = vmax.f32 %v256, %v289
      %v321 = vmax.f32 %v257, %v293
      %v322 = vmax.f32 %v258, %v292
      %v323 = vmax.f32 %v259, %v296
      %v324 = vmax.f32 %v260, %v295
      %v325 = vpack.c.bf16 %v311, %v311
      %v326 = vpack.c.bf16 %v312, %v312
      %v327 = vpack.c.bf16 %v313, %v313
      %v328 = vpack.c.bf16 %v314, %v314
      %v329 = vpack.c.bf16 %v315, %v315
      %v330 = vpack.c.bf16 %v316, %v316
      %v331 = vpack.c.bf16 %v317, %v317
      %v332 = vpack.c.bf16 %v318, %v318
      %v333 = vpack.c.bf16 %v319, %v319
      %v334 = vpack.c.bf16 %v320, %v320
      %v335 = vpack.c.bf16 %v321, %v321
      %v336 = vpack.c.bf16 %v322, %v322
      %v337 = vpack.c.bf16 %v323, %v323
      %v338 = vpack.c.bf16 %v324, %v324
      %v339 = vunpack.c.l.bf16 %v325
      %v340 = vunpack.c.l.bf16 %v326
      %v341 = vunpack.c.l.bf16 %v327
      %v342 = vunpack.c.l.bf16 %v328
      %v343 = vunpack.c.l.bf16 %v329
      %v344 = vunpack.c.l.bf16 %v330
      %v345 = vunpack.c.l.bf16 %v331
      %v346 = vunpack.c.l.bf16 %v332
      %v347 = vunpack.c.l.bf16 %v333
      %v348 = vunpack.c.l.bf16 %v334
      %v349 = vunpack.c.l.bf16 %v335
      %v350 = vunpack.c.l.bf16 %v336
      %v351 = vunpack.c.l.bf16 %v337
      %v352 = vunpack.c.l.bf16 %v338
      %vm353 = vcmask 1045504
      %v354 = vrot.slane %v247, 2
      %v355 = vrot.slane %v248, 2
      %v356 = vsel %vm353, %v354, %v355
      %v357 = vrot.slane %v249, 2
      %v358 = vrot.slane %v250, 2
      %v359 = vsel %vm353, %v357, %v358
      %v360 = vrot.slane %v251, 2
      %v361 = vrot.slane %v252, 2
      %v362 = vsel %vm353, %v360, %v361
      %v363 = vrot.slane %v253, 2
      %v364 = vrot.slane %v254, 2
      %v365 = vsel %vm353, %v363, %v364
      %v366 = vrot.slane %v255, 2
      %v367 = vrot.slane %v256, 2
      %v368 = vsel %vm353, %v366, %v367
      %v369 = vrot.slane %v257, 2
      %v370 = vrot.slane %v258, 2
      %v371 = vsel %vm353, %v369, %v370
      %v372 = vrot.slane %v259, 2
      %v373 = vrot.slane %v260, 2
      %v374 = vsel %vm353, %v372, %v373
      %v389 = vmax.f32 %v339, %v356
      %v390 = vmax.f32 %v340, %v355
      %v391 = vmax.f32 %v341, %v359
      %v392 = vmax.f32 %v342, %v358
      %v393 = vmax.f32 %v343, %v362
      %v394 = vmax.f32 %v344, %v361
      %v395 = vmax.f32 %v345, %v365
      %v396 = vmax.f32 %v346, %v364
      %v397 = vmax.f32 %v347, %v368
      %v398 = vmax.f32 %v348, %v367
      %v399 = vmax.f32 %v349, %v371
      %v400 = vmax.f32 %v350, %v370
      %v401 = vmax.f32 %v351, %v374
      %v402 = vmax.f32 %v352, %v373
      %v403 = vpack.c.bf16 %v389, %v389
      %v404 = vpack.c.bf16 %v390, %v390
      %v405 = vpack.c.bf16 %v391, %v391
      %v406 = vpack.c.bf16 %v392, %v392
      %v407 = vpack.c.bf16 %v393, %v393
      %v408 = vpack.c.bf16 %v394, %v394
      %v409 = vpack.c.bf16 %v395, %v395
      %v410 = vpack.c.bf16 %v396, %v396
      %v411 = vpack.c.bf16 %v397, %v397
      %v412 = vpack.c.bf16 %v398, %v398
      %v413 = vpack.c.bf16 %v399, %v399
      %v414 = vpack.c.bf16 %v400, %v400
      %v415 = vpack.c.bf16 %v401, %v401
      %v416 = vpack.c.bf16 %v402, %v402
      %v418 = vunpack.c.l.b16 %v403
      %v419 = vpack.c.b16 %v418, %v418
      %v421 = vshll.u32 %v419, 16
      %v423 = vrot.slane %v421, 1
      %v425 = vrot.slane %v419, 1
      %v426 = vrot.slane %v421, 2
      %v429 = vunpack.c.l.b16 %v404
      %v430 = vpack.c.b16 %v429, %v429
      %v431 = vrot.slane %v430, 6
      %v433 = vshll.u32 %v430, 16
      %v435 = vrot.slane %v433, 7
      %v437 = vrot.slane %v430, 7
      %vm438 = vcmask 1040384
      %vm439 = vsmask.f32 256
      %vm440 = vmand %vm438, %vm439
      %v441 = vsel %vm440, %v403, %v423
      %vm442 = vcmask 1040384
      %v445 = vsel %vm442, %v441, %v425
      %vm447 = vcmask 1041408
      %vm448 = vsmask.f32 1280
      %vm449 = vmand %vm447, %vm448
      %v450 = vsel %vm449, %v445, %v426
      %vm451 = vcmask 1041408
      %v454 = vsel %vm451, %v450, %v431
      %vm456 = vcmask 1042432
      %vm457 = vsmask.f32 2304
      %vm458 = vmand %vm456, %vm457
      %v459 = vsel %vm458, %v454, %v435
      %vm460 = vcmask 1042432
      %v463 = vsel %vm460, %v459, %v437
      %v466 = vunpack.c.l.b16 %v405
      %v467 = vpack.c.b16 %v466, %v466
      %v469 = vshll.u32 %v467, 16
      %v471 = vrot.slane %v469, 1
      %v473 = vrot.slane %v467, 1
      %v474 = vrot.slane %v469, 2
      %v477 = vunpack.c.l.b16 %v406
      %v478 = vpack.c.b16 %v477, %v477
      %v479 = vrot.slane %v478, 6
      %v481 = vshll.u32 %v478, 16
      %v483 = vrot.slane %v481, 7
      %v485 = vrot.slane %v478, 7
      %v486 = vsel %vm440, %v405, %v471
      %v489 = vsel %vm442, %v486, %v473
      %v491 = vsel %vm449, %v489, %v474
      %v494 = vsel %vm451, %v491, %v479
      %v496 = vsel %vm458, %v494, %v483
      %v499 = vsel %vm460, %v496, %v485
      %v502 = vunpack.c.l.b16 %v407
      %v503 = vpack.c.b16 %v502, %v502
      %v505 = vshll.u32 %v503, 16
      %v507 = vrot.slane %v505, 1
      %v509 = vrot.slane %v503, 1
      %v510 = vrot.slane %v505, 2
      %v513 = vunpack.c.l.b16 %v408
      %v514 = vpack.c.b16 %v513, %v513
      %v515 = vrot.slane %v514, 6
      %v517 = vshll.u32 %v514, 16
      %v519 = vrot.slane %v517, 7
      %v521 = vrot.slane %v514, 7
      %v522 = vsel %vm440, %v407, %v507
      %v525 = vsel %vm442, %v522, %v509
      %v527 = vsel %vm449, %v525, %v510
      %v530 = vsel %vm451, %v527, %v515
      %v532 = vsel %vm458, %v530, %v519
      %v535 = vsel %vm460, %v532, %v521
      %v538 = vunpack.c.l.b16 %v409
      %v539 = vpack.c.b16 %v538, %v538
      %v541 = vshll.u32 %v539, 16
      %v543 = vrot.slane %v541, 1
      %v545 = vrot.slane %v539, 1
      %v546 = vrot.slane %v541, 2
      %v549 = vunpack.c.l.b16 %v410
      %v550 = vpack.c.b16 %v549, %v549
      %v551 = vrot.slane %v550, 6
      %v553 = vshll.u32 %v550, 16
      %v555 = vrot.slane %v553, 7
      %v557 = vrot.slane %v550, 7
      %v558 = vsel %vm440, %v409, %v543
      %v561 = vsel %vm442, %v558, %v545
      %v563 = vsel %vm449, %v561, %v546
      %v566 = vsel %vm451, %v563, %v551
      %v568 = vsel %vm458, %v566, %v555
      %v571 = vsel %vm460, %v568, %v557
      %v574 = vunpack.c.l.b16 %v411
      %v575 = vpack.c.b16 %v574, %v574
      %v577 = vshll.u32 %v575, 16
      %v579 = vrot.slane %v577, 1
      %v581 = vrot.slane %v575, 1
      %v582 = vrot.slane %v577, 2
      %v585 = vunpack.c.l.b16 %v412
      %v586 = vpack.c.b16 %v585, %v585
      %v587 = vrot.slane %v586, 6
      %v589 = vshll.u32 %v586, 16
      %v591 = vrot.slane %v589, 7
      %v593 = vrot.slane %v586, 7
      %v594 = vsel %vm440, %v411, %v579
      %v597 = vsel %vm442, %v594, %v581
      %v599 = vsel %vm449, %v597, %v582
      %v602 = vsel %vm451, %v599, %v587
      %v604 = vsel %vm458, %v602, %v591
      %v607 = vsel %vm460, %v604, %v593
      %v610 = vunpack.c.l.b16 %v413
      %v611 = vpack.c.b16 %v610, %v610
      %v613 = vshll.u32 %v611, 16
      %v615 = vrot.slane %v613, 1
      %v617 = vrot.slane %v611, 1
      %v618 = vrot.slane %v613, 2
      %v621 = vunpack.c.l.b16 %v414
      %v622 = vpack.c.b16 %v621, %v621
      %v623 = vrot.slane %v622, 6
      %v625 = vshll.u32 %v622, 16
      %v627 = vrot.slane %v625, 7
      %v629 = vrot.slane %v622, 7
      %v630 = vsel %vm440, %v413, %v615
      %v633 = vsel %vm442, %v630, %v617
      %v635 = vsel %vm449, %v633, %v618
      %v638 = vsel %vm451, %v635, %v623
      %v640 = vsel %vm458, %v638, %v627
      %v643 = vsel %vm460, %v640, %v629
      %v646 = vunpack.c.l.b16 %v415
      %v647 = vpack.c.b16 %v646, %v646
      %v649 = vshll.u32 %v647, 16
      %v651 = vrot.slane %v649, 1
      %v653 = vrot.slane %v647, 1
      %v654 = vrot.slane %v649, 2
      %v657 = vunpack.c.l.b16 %v416
      %v658 = vpack.c.b16 %v657, %v657
      %v659 = vrot.slane %v658, 6
      %v661 = vshll.u32 %v658, 16
      %v663 = vrot.slane %v661, 7
      %v665 = vrot.slane %v658, 7
      %v666 = vsel %vm440, %v415, %v651
      %v669 = vsel %vm442, %v666, %v653
      %v671 = vsel %vm449, %v669, %v654
      %v674 = vsel %vm451, %v671, %v659
      %v676 = vsel %vm458, %v674, %v663
      %v679 = vsel %vm460, %v676, %v665
      %vm681 = vcmask 519168
      %vm682 = vsmask.f32 3328
      %vm683 = vmand %vm681, %vm682
      %v684 = vld [vmem:[%s116] sm:$0xf]
      %v685 = vsel %vm683, %v463, %v684
      %686 = vst [vmem:[%s116] sm:$0xf] %v685
      %v687 = vld [vmem:[%s116 + $0x4] sm:$0xf]
      %v688 = vsel %vm683, %v499, %v687
      %689 = vst [vmem:[%s116 + $0x4] sm:$0xf] %v688
      %v690 = vld [vmem:[%s116 + $0x8] sm:$0xf]
      %v691 = vsel %vm683, %v535, %v690
      %692 = vst [vmem:[%s116 + $0x8] sm:$0xf] %v691
      %v693 = vld [vmem:[%s116 + $0xc] sm:$0xf]
      %v694 = vsel %vm683, %v571, %v693
      %695 = vst [vmem:[%s116 + $0xc] sm:$0xf] %v694
      %v696 = vld [vmem:[%s116 + $0x10] sm:$0xf]
      %v697 = vsel %vm683, %v607, %v696
      %698 = vst [vmem:[%s116 + $0x10] sm:$0xf] %v697
      %v699 = vld [vmem:[%s116 + $0x14] sm:$0xf]
      %v700 = vsel %vm683, %v643, %v699
      %701 = vst [vmem:[%s116 + $0x14] sm:$0xf] %v700
      %v702 = vld [vmem:[%s116 + $0x18] sm:$0xf]
      %v703 = vsel %vm683, %v679, %v702
      %704 = vst [vmem:[%s116 + $0x18] sm:$0xf] %v703
      %p705 = scmp.lt.s32.totalorder %s12, 1
      %s706 = scalar_select %p705, %s12, 1
      %s707 = smul.addr %s706, 7
      %s708 = smul.addr %s707, 4
      %s709 = scalar_lea.vmem %s1, %s708
      // Predicated region
      $region25: #{_lambda_.9} parent=23 // pred_check
        %p710 = pneg %p56
      $region26: #{_lambda_.9} parent=23 // pred_check_branch
        %712 = sbr.rel (%p710) target = $region28
      $region27: #{_lambda_.9} parent=23 // pred_region
        _
      $region28: #{_lambda_.9} parent=23 // pred_fallthru
        _
    $region24: #{_lambda_.9} parent=5 // pred_fallthru
      _
    %p713 = scmp.le.s32.totalorder 2, %s7
    // Predicated region
    $region29: #{_lambda_.9} parent=5 // pred_check
      %p714 = pneg %p713
    $region30: #{_lambda_.9} parent=5 // pred_check_branch
      %716 = sbr.rel (%p714) target = $region32
    $region31: #{_lambda_.9} parent=5 // pred_region
      %s717 = ssub.s32 %s7, 2
      // Predicated region
      $region33: #{_lambda_.9} parent=31 // pred_check
        %p718 = pneg %p62
      $region34: #{_lambda_.9} parent=31 // pred_check_branch
        %720 = sbr.rel (%p718) target = $region36
      $region35: #{_lambda_.9} parent=31 // pred_region
        %p721 = scmp.lt.s32.totalorder %s13, 1
        %s722 = scalar_select %p721, %s13, 1
        %s723 = smul.addr %s722, 7
        %s724 = smul.addr %s723, 4
        %s725 = scalar_lea.vmem %s1, %s724
      $region36: #{_lambda_.9} parent=31 // pred_fallthru
        _
    $region32: #{_lambda_.9} parent=5 // pred_fallthru
      _
  $region6: #{_lambda_.9} parent=0 // loop_footer
    %s11 = sadd.s32 1, %s7
  $region7: #{_lambda_.9} parent=0 // loop_footer_branch
    %6 = sbr.rel target = $region3
  $region8: #{_lambda_.9} parent=0 // loop_exit
    _

// kernel: _lambda_.8
$region0: #{_lambda_.8}
  #allocation0 [shape = 'u32[]', space=smem, size = 0x4, offset = 0x4, fixed_abs, tag = 'smem constant byte address 0x4 - core index']
  #allocation1 [shape = 'u32[72,128]{1,0:T(1,128)}', space=vmem, size = 0x9000, scoped, tag = 'internal scratch']
  #allocation2 [shape = 'f32[256,128]{1,0:T(8,128)}', space=vmem, size = 0x20000, scoped, tag = 'scratch operand']
  %s0 = inlined_call_operand.vmem [shape: bf16[512,384], index: 0, kind: input, shape index: {}]
  %s1 = inlined_call_operand.vmem [shape: bf16[384,128], index: 1, kind: input, shape index: {}]
  %s2 = inlined_call_operand.vmem [shape: f32[1,128], index: 2, kind: input, shape index: {}]
  %s3 = inlined_call_operand.vmem [shape: bf16[512,128], index: 3, kind: output, shape index: {}]
  %s4 = sld [smem:[#allocation0]]
  $region53: #{_lambda_.8} parent=0
    _
  %s6 = ssub.s32 1, %s4
  %s7 = scalar_select 0, %s6, %s4
  loop: start=0, step=1, limit=4
  $region2: #{_lambda_.8} parent=0 // loop_pre_header
    _
  $region3: #{_lambda_.8} parent=0 // loop_header
    %s9 = sphi 0, %s13
    %p10 = scmp.ge.s32.totalorder %s9, 4
    %s16 = sphi 0, %s35
    %s17 = sphi 0, %s31
    %s18 = sphi 0, %s27
    %s19 = sphi 0, %s16
    %s20 = sphi 0, %s17
    %s21 = sphi 0, %s18
    %s22 = sphi 0, %s19
    %s23 = sphi 0, %s20
    %s24 = sphi 0, %s21
    %s40 = sphi 0, %s42
    %s43 = sphi 0, %s40
    %s44 = sphi 0, %s43
    %s60 = sphi 0, %s44
    %s68 = sphi 0, %s70
    %s71 = sphi 0, %s68
    %s72 = sphi 0, %s71
    %s88 = sphi 0, %s72
    %s94 = sphi 0, %s96
    %s97 = sphi 0, %s94
    %s98 = sphi 0, %s97
    %s114 = sphi 0, %s98
    %s122 = sphi 0, %s124
    %s125 = sphi 0, %s122
    %s126 = sphi 0, %s125
    %s142 = sphi 0, %s126
  $region4: #{_lambda_.8} parent=0 // loop_header_branch
    %12 = sbr.rel (%p10) target = $region8
  $region5: #{_lambda_.8} parent=0 // loop_body
    %s14 = ssub.s32 %s9, 1
    %s15 = ssub.s32 %s9, 2
    %s25 = sadd.s32 1, %s18
    %p26 = scmp.ge.s32.totalorder %s25, 1
    %s27 = scalar_select %p26, 0, %s25
    %s28 = sadd.s32 1, %s17
    %s29 = scalar_select %p26, %s28, %s17
    %p30 = scmp.ge.s32.totalorder %s29, 1
    %s31 = scalar_select %p30, 0, %s29
    %s32 = sadd.s32 1, %s16
    %s33 = scalar_select %p30, %s32, %s16
    %p34 = scmp.ge.s32.totalorder %s33, 2
    %s35 = scalar_select %p34, 0, %s33
    %s36 = ssub.s32 %s16, %s35
    %s37 = ssub.s32 %s18, %s27
    %s38 = sor.u32 %s36, %s37
    %p39 = scmp.eq.s32.totalorder %s38, 0
    %s41 = sadd.s32 %s40, 1
    %s42 = scalar_select %p39, %s40, %s41
    %p45 = pneg %p39
    %p46 = scmp.eq.s32.totalorder %s9, 1
    %p47 = por %p45, %p46
    %p48 = scmp.ne.s32.totalorder %s40, %s43
    %p49 = scmp.eq.s32.totalorder %s9, 0
    %p50 = por %p48, %p49
    %p51 = scmp.ne.s32.totalorder %s40, %s43
    %p52 = scmp.eq.s32.totalorder %s14, 1
    %p53 = por %p51, %p52
    %p54 = scmp.ne.s32.totalorder %s43, %s44
    %p55 = scmp.eq.s32.totalorder %s14, 0
    %p56 = por %p54, %p55
    %p57 = scmp.ne.s32.totalorder %s43, %s44
    %p58 = scmp.eq.s32.totalorder %s15, 1
    %p59 = por %p57, %p58
    %p61 = scmp.ne.s32.totalorder %s44, %s60
    %p62 = scmp.eq.s32.totalorder %s15, 0
    %p63 = por %p61, %p62
    %s64 = ssub.s32 %s18, %s27
    %s65 = ssub.s32 %s17, %s31
    %s66 = sor.u32 %s64, %s65
    %p67 = scmp.eq.s32.totalorder %s66, 0
    %s69 = sadd.s32 %s68, 1
    %s70 = scalar_select %p67, %s68, %s69
    %p73 = pneg %p67
    %p74 = scmp.eq.s32.totalorder %s9, 1
    %p75 = por %p73, %p74
    %p76 = scmp.ne.s32.totalorder %s68, %s71
    %p77 = scmp.eq.s32.totalorder %s9, 0
    %p78 = por %p76, %p77
    %p79 = scmp.ne.s32.totalorder %s68, %s71
    %p80 = scmp.eq.s32.totalorder %s14, 1
    %p81 = por %p79, %p80
    %p82 = scmp.ne.s32.totalorder %s71, %s72
    %p83 = scmp.eq.s32.totalorder %s14, 0
    %p84 = por %p82, %p83
    %p85 = scmp.ne.s32.totalorder %s71, %s72
    %p86 = scmp.eq.s32.totalorder %s15, 1
    %p87 = por %p85, %p86
    %p89 = scmp.ne.s32.totalorder %s72, %s88
    %p90 = scmp.eq.s32.totalorder %s15, 0
    %p91 = por %p89, %p90
    %s92 = ssub.s32 %s17, %s31
    %p93 = scmp.eq.s32.totalorder %s92, 0
    %s95 = sadd.s32 %s94, 1
    %s96 = scalar_select %p93, %s94, %s95
    %p99 = pneg %p93
    %p100 = scmp.eq.s32.totalorder %s9, 1
    %p101 = por %p99, %p100
    %p102 = scmp.ne.s32.totalorder %s94, %s97
    %p103 = scmp.eq.s32.totalorder %s9, 0
    %p104 = por %p102, %p103
    %p105 = scmp.ne.s32.totalorder %s94, %s97
    %p106 = scmp.eq.s32.totalorder %s14, 1
    %p107 = por %p105, %p106
    %p108 = scmp.ne.s32.totalorder %s97, %s98
    %p109 = scmp.eq.s32.totalorder %s14, 0
    %p110 = por %p108, %p109
    %p111 = scmp.ne.s32.totalorder %s97, %s98
    %p112 = scmp.eq.s32.totalorder %s15, 1
    %p113 = por %p111, %p112
    %p115 = scmp.ne.s32.totalorder %s98, %s114
    %p116 = scmp.eq.s32.totalorder %s15, 0
    %p117 = por %p115, %p116
    %s118 = ssub.s32 %s16, %s35
    %s119 = ssub.s32 %s17, %s31
    %s120 = sor.u32 %s118, %s119
    %p121 = scmp.eq.s32.totalorder %s120, 0
    %s123 = sadd.s32 %s122, 1
    %s124 = scalar_select %p121, %s122, %s123
    %p127 = pneg %p121
    %p128 = scmp.eq.s32.totalorder %s9, 1
    %p129 = por %p127, %p128
    %p130 = scmp.ne.s32.totalorder %s122, %s125
    %p131 = scmp.eq.s32.totalorder %s9, 0
    %p132 = por %p130, %p131
    %p133 = scmp.ne.s32.totalorder %s122, %s125
    %p134 = scmp.eq.s32.totalorder %s14, 1
    %p135 = por %p133, %p134
    %p136 = scmp.ne.s32.totalorder %s125, %s126
    %p137 = scmp.eq.s32.totalorder %s14, 0
    %p138 = por %p136, %p137
    %p139 = scmp.ne.s32.totalorder %s125, %s126
    %p140 = scmp.eq.s32.totalorder %s15, 1
    %p141 = por %p139, %p140
    %p143 = scmp.ne.s32.totalorder %s126, %s142
    %p144 = scmp.eq.s32.totalorder %s15, 0
    %p145 = por %p143, %p144
    %p146 = scmp.le.s32.totalorder 1, %s9
    %p147 = scmp.lt.s32.totalorder %s9, 3
    %p148 = pnand %p146, %p147
    %p149 = pneg %p148
    // Predicated region
    $region9: #{_lambda_.8} parent=5 // pred_check
      _
    $region10: #{_lambda_.8} parent=5 // pred_check_branch
      %151 = sbr.rel (%p148) target = $region12
    $region11: #{_lambda_.8} parent=5 // pred_region
      %s152 = ssub.s32 %s9, 1
      // Predicated region
      $region13: #{_lambda_.8} parent=11 // pred_check
        %p153 = pneg %p84
      $region14: #{_lambda_.8} parent=11 // pred_check_branch
        %155 = sbr.rel (%p153) target = $region16
      $region15: #{_lambda_.8} parent=11 // pred_region
        %s156 = smul.u32 48, %s21
        %p157 = scmp.lt.s32.totalorder %s156, 47
        %s158 = scalar_select %p157, %s156, 47
        %p159 = scmp.lt.s32.totalorder %s20, 0
        %s160 = scalar_select %p159, %s20, 0
        %s161 = sadd.s32 %s160, %s158
        %s162 = smul.addr %s161, 4
        %s163 = scalar_lea.vmem %s1, %s162
        %s164 = smul.u32 48, %s21
      $region16: #{_lambda_.8} parent=11 // pred_fallthru
        _
      // Predicated region
      $region17: #{_lambda_.8} parent=11 // pred_check
        %p165 = pneg %p110
      $region18: #{_lambda_.8} parent=11 // pred_check_branch
        %167 = sbr.rel (%p165) target = $region20
      $region19: #{_lambda_.8} parent=11 // pred_region
        %p168 = scmp.lt.s32.totalorder %s20, 0
        %s169 = scalar_select %p168, %s20, 0
        %s170 = scalar_lea.vmem %s2, %s169
      $region20: #{_lambda_.8} parent=11 // pred_fallthru
        _
    $region12: #{_lambda_.8} parent=5 // pred_fallthru
      _
    %p171 = scmp.lt.s32.totalorder %s9, 2
    // Predicated region
    $region21: #{_lambda_.8} parent=5 // pred_check
      %p172 = pneg %p171
    $region22: #{_lambda_.8} parent=5 // pred_check_branch
      %174 = sbr.rel (%p172) target = $region24
    $region23: #{_lambda_.8} parent=5 // pred_region
      // Predicated region
      $region25: #{_lambda_.8} parent=23 // pred_check
        %p175 = pneg %p50
      $region26: #{_lambda_.8} parent=23 // pred_check_branch
        %177 = sbr.rel (%p175) target = $region28
      $region27: #{_lambda_.8} parent=23 // pred_region
        %s178 = smul.u32 32, %s16
        %s179 = smul.u32 3, %s18
        %p180 = scmp.lt.s32.totalorder %s178, 63
        %s181 = scalar_select %p180, %s178, 63
        %p182 = scmp.lt.s32.totalorder %s179, 2
        %s183 = scalar_select %p182, %s179, 2
        %s184 = smul.addr %s181, 3
        %s185 = sadd.s32 %s183, %s184
        %s186 = smul.addr %s185, 4
        %s187 = scalar_lea.vmem %s0, %s186
        %s188 = smul.u32 32, %s16
        %s189 = smul.u32 3, %s18
      $region28: #{_lambda_.8} parent=23 // pred_fallthru
        _
    $region24: #{_lambda_.8} parent=5 // pred_fallthru
      _
    %p190 = scmp.le.s32.totalorder 1, %s9
    %p191 = scmp.lt.s32.totalorder %s9, 3
    %p192 = pnand %p190, %p191
    %p193 = pneg %p192
    // Predicated region
    $region29: #{_lambda_.8} parent=5 // pred_check
      _
    $region30: #{_lambda_.8} parent=5 // pred_check_branch
      %195 = sbr.rel (%p192) target = $region32
    $region31: #{_lambda_.8} parent=5 // pred_region
      %s196 = ssub.s32 %s9, 1
      %s197 = smul.u32 32, %s19
      %s198 = smul.u32 3, %s21
      %p199 = scmp.lt.s32.totalorder %s197, 63
      %s200 = scalar_select %p199, %s197, 63
      %p201 = scmp.lt.s32.totalorder %s198, 2
      %s202 = scalar_select %p201, %s198, 2
      %s203 = smul.addr %s200, 3
      %s204 = sadd.s32 %s202, %s203
      %s205 = smul.addr %s204, 4
      %s206 = scalar_lea.vmem %s0, %s205
      %p207 = pneg %p56
      %p208 = pneg %p53
      %s209 = smul.u32 48, %s21
      %p210 = scmp.lt.s32.totalorder %s209, 47
      %s211 = scalar_select %p210, %s209, 47
      %p212 = scmp.lt.s32.totalorder %s20, 0
      %s213 = scalar_select %p212, %s20, 0
      %s214 = sadd.s32 %s213, %s211
      %s215 = smul.addr %s214, 4
      %s216 = scalar_lea.vmem %s1, %s215
      %p217 = pneg %p84
      %p218 = pneg %p81
      %p219 = scmp.lt.s32.totalorder %s20, 0
      %s220 = scalar_select %p219, %s20, 0
      %s221 = scalar_lea.vmem %s2, %s220
      %p222 = pneg %p110
      %p223 = pneg %p107
      %p224 = pneg %p138
      %p225 = pneg %p135
      %s226 = smul.u32 32, %s19
      %p227 = scmp.lt.s32.totalorder %s226, 63
      %s228 = scalar_select %p227, %s226, 63
      %p229 = scmp.lt.s32.totalorder %s20, 0
      %s230 = scalar_select %p229, %s20, 0
      %s231 = sadd.s32 %s230, %s228
      %s232 = smul.addr %s231, 4
      %s233 = scalar_lea.vmem %s3, %s232
      %s234 = smul.u32 32, %s19
      %s235 = smul.u32 3, %s21
      %p236 = scmp.lt.s32.totalorder %s234, 63
      %s237 = scalar_select %p236, %s234, 63
      %p238 = scmp.lt.s32.totalorder %s235, 2
      %s239 = scalar_select %p238, %s235, 2
      %s240 = smul.addr %s237, 3
      %s241 = sadd.s32 %s239, %s240
      %s242 = smul.addr %s241, 4
      %s243 = scalar_lea.vmem %s0, %s242
      %s244 = smul.u32 32, %s19
      %s245 = smul.u32 3, %s21
      %s246 = smul.u32 48, %s21
      %p247 = scmp.lt.s32.totalorder %s246, 47
      %s248 = scalar_select %p247, %s246, 47
      %p249 = scmp.lt.s32.totalorder %s20, 0
      %s250 = scalar_select %p249, %s20, 0
      %s251 = sadd.s32 %s250, %s248
      %s252 = smul.addr %s251, 4
      %s253 = scalar_lea.vmem %s1, %s252
      %s254 = smul.u32 48, %s21
      %p255 = scmp.lt.s32.totalorder %s20, 0
      %s256 = scalar_select %p255, %s20, 0
      %s257 = scalar_lea.vmem %s2, %s256
      %s258 = smul.u32 32, %s19
      %p259 = scmp.lt.s32.totalorder %s258, 63
      %s260 = scalar_select %p259, %s258, 63
      %p261 = scmp.lt.s32.totalorder %s20, 0
      %s262 = scalar_select %p261, %s20, 0
      %s263 = sadd.s32 %s262, %s260
      %s264 = smul.addr %s263, 4
      %s265 = scalar_lea.vmem %s3, %s264
      %s266 = smul.u32 32, %s19
      %p267 = scmp.eq.s32.totalorder %s21, 0
      // Predicated region
      $region33: #{_lambda_.8} parent=31 // pred_check
        %p268 = pneg %p267
      $region34: #{_lambda_.8} parent=31 // pred_check_branch
        %270 = sbr.rel (%p268) target = $region36
      $region35: #{_lambda_.8} parent=31 // pred_region
        %271 = vst [vmem:[#allocation2] sm:$0xff] 0.0
        %272 = vst [vmem:[#allocation2 + $0x8] sm:$0xff] 0.0
        %273 = vst [vmem:[#allocation2 + $0x10] sm:$0xff] 0.0
        %274 = vst [vmem:[#allocation2 + $0x18] sm:$0xff] 0.0
        %275 = vst [vmem:[#allocation2 + $0x20] sm:$0xff] 0.0
        %276 = vst [vmem:[#allocation2 + $0x28] sm:$0xff] 0.0
        %277 = vst [vmem:[#allocation2 + $0x30] sm:$0xff] 0.0
        %278 = vst [vmem:[#allocation2 + $0x38] sm:$0xff] 0.0
        %279 = vst [vmem:[#allocation2 + $0x40] sm:$0xff] 0.0
        %280 = vst [vmem:[#allocation2 + $0x48] sm:$0xff] 0.0
        %281 = vst [vmem:[#allocation2 + $0x50] sm:$0xff] 0.0
        %282 = vst [vmem:[#allocation2 + $0x58] sm:$0xff] 0.0
        %283 = vst [vmem:[#allocation2 + $0x60] sm:$0xff] 0.0
        %284 = vst [vmem:[#allocation2 + $0x68] sm:$0xff] 0.0
        %285 = vst [vmem:[#allocation2 + $0x70] sm:$0xff] 0.0
        %286 = vst [vmem:[#allocation2 + $0x78] sm:$0xff] 0.0
        %287 = vst [vmem:[#allocation2 + $0x80] sm:$0xff] 0.0
        %288 = vst [vmem:[#allocation2 + $0x88] sm:$0xff] 0.0
        %289 = vst [vmem:[#allocation2 + $0x90] sm:$0xff] 0.0
        %290 = vst [vmem:[#allocation2 + $0x98] sm:$0xff] 0.0
        %291 = vst [vmem:[#allocation2 + $0xa0] sm:$0xff] 0.0
        %292 = vst [vmem:[#allocation2 + $0xa8] sm:$0xff] 0.0
        %293 = vst [vmem:[#allocation2 + $0xb0] sm:$0xff] 0.0
        %294 = vst [vmem:[#allocation2 + $0xb8] sm:$0xff] 0.0
        %295 = vst [vmem:[#allocation2 + $0xc0] sm:$0xff] 0.0
        %296 = vst [vmem:[#allocation2 + $0xc8] sm:$0xff] 0.0
        %297 = vst [vmem:[#allocation2 + $0xd0] sm:$0xff] 0.0
        %298 = vst [vmem:[#allocation2 + $0xd8] sm:$0xff] 0.0
        %299 = vst [vmem:[#allocation2 + $0xe0] sm:$0xff] 0.0
        %300 = vst [vmem:[#allocation2 + $0xe8] sm:$0xff] 0.0
        %301 = vst [vmem:[#allocation2 + $0xf0] sm:$0xff] 0.0
        %302 = vst [vmem:[#allocation2 + $0xf8] sm:$0xff] 0.0
      $region36: #{_lambda_.8} parent=31 // pred_fallthru
        _
      %v303 = vld [vmem:[#allocation2] sm:$0xff]
      %v304 = vld [vmem:[#allocation2 + $0x8] sm:$0xff]
      %v305 = vld [vmem:[#allocation2 + $0x10] sm:$0xff]
      %v306 = vld [vmem:[#allocation2 + $0x18] sm:$0xff]
      %v307 = vld [vmem:[#allocation2 + $0x20] sm:$0xff]
      %v308 = vld [vmem:[#allocation2 + $0x28] sm:$0xff]
      %v309 = vld [vmem:[#allocation2 + $0x30] sm:$0xff]
      %v310 = vld [vmem:[#allocation2 + $0x38] sm:$0xff]
      %v311 = vld [vmem:[#allocation2 + $0x40] sm:$0xff]
      %v312 = vld [vmem:[#allocation2 + $0x48] sm:$0xff]
      %v313 = vld [vmem:[#allocation2 + $0x50] sm:$0xff]
      %v314 = vld [vmem:[#allocation2 + $0x58] sm:$0xff]
      %v315 = vld [vmem:[#allocation2 + $0x60] sm:$0xff]
      %v316 = vld [vmem:[#allocation2 + $0x68] sm:$0xff]
      %v317 = vld [vmem:[#allocation2 + $0x70] sm:$0xff]
      %v318 = vld [vmem:[#allocation2 + $0x78] sm:$0xff]
      %v319 = vld [vmem:[#allocation2 + $0x80] sm:$0xff]
      %v320 = vld [vmem:[#allocation2 + $0x88] sm:$0xff]
      %v321 = vld [vmem:[#allocation2 + $0x90] sm:$0xff]
      %v322 = vld [vmem:[#allocation2 + $0x98] sm:$0xff]
      %v323 = vld [vmem:[#allocation2 + $0xa0] sm:$0xff]
      %v324 = vld [vmem:[#allocation2 + $0xa8] sm:$0xff]
      %v325 = vld [vmem:[#allocation2 + $0xb0] sm:$0xff]
      %v326 = vld [vmem:[#allocation2 + $0xb8] sm:$0xff]
      %v327 = vld [vmem:[#allocation2 + $0xc0] sm:$0xff]
      %v328 = vld [vmem:[#allocation2 + $0xc8] sm:$0xff]
      %v329 = vld [vmem:[#allocation2 + $0xd0] sm:$0xff]
      %v330 = vld [vmem:[#allocation2 + $0xd8] sm:$0xff]
      %v331 = vld [vmem:[#allocation2 + $0xe0] sm:$0xff]
      %v332 = vld [vmem:[#allocation2 + $0xe8] sm:$0xff]
      %v333 = vld [vmem:[#allocation2 + $0xf0] sm:$0xff]
      %v334 = vld [vmem:[#allocation2 + $0xf8] sm:$0xff]
      %v335 = vld [vmem:[%s243] sm:$0xff]
      %v336 = vld [vmem:[%s243 + $0x8] sm:$0xf]
      %v337 = vld [vmem:[%s243 + $0xc] sm:$0xff]
      %v338 = vld [vmem:[%s243 + $0x14] sm:$0xf]
      %v339 = vld [vmem:[%s243 + $0x18] sm:$0xff]
      %v340 = vld [vmem:[%s243 + $0x20] sm:$0xf]
      %v341 = vld [vmem:[%s243 + $0x24] sm:$0xff]
      %v342 = vld [vmem:[%s243 + $0x2c] sm:$0xf]
      %v343 = vld [vmem:[%s243 + $0x30] sm:$0xff]
      %v344 = vld [vmem:[%s243 + $0x38] sm:$0xf]
      %v345 = vld [vmem:[%s243 + $0x3c] sm:$0xff]
      %v346 = vld [vmem:[%s243 + $0x44] sm:$0xf]
      %v347 = vld [vmem:[%s243 + $0x48] sm:$0xff]
      %v348 = vld [vmem:[%s243 + $0x50] sm:$0xf]
      %v349 = vld [vmem:[%s243 + $0x54] sm:$0xff]
      %v350 = vld [vmem:[%s243 + $0x5c] sm:$0xf]
      %v351 = vld [vmem:[%s243 + $0x60] sm:$0xff]
      %v352 = vld [vmem:[%s243 + $0x68] sm:$0xf]
      %v353 = vld [vmem:[%s243 + $0x6c] sm:$0xff]
      %v354 = vld [vmem:[%s243 + $0x74] sm:$0xf]
      %v355 = vld [vmem:[%s243 + $0x78] sm:$0xff]
      %v356 = vld [vmem:[%s243 + $0x80] sm:$0xf]
      %v357 = vld [vmem:[%s243 + $0x84] sm:$0xff]
      %v358 = vld [vmem:[%s243 + $0x8c] sm:$0xf]
      %v359 = vld [vmem:[%s243 + $0x90] sm:$0xff]
      %v360 = vld [vmem:[%s243 + $0x98] sm:$0xf]
      %v361 = vld [vmem:[%s243 + $0x9c] sm:$0xff]
      %v362 = vld [vmem:[%s243 + $0xa4] sm:$0xf]
      %v363 = vld [vmem:[%s243 + $0xa8] sm:$0xff]
      %v364 = vld [vmem:[%s243 + $0xb0] sm:$0xf]
      %v365 = vld [vmem:[%s243 + $0xb4] sm:$0xff]
      %v366 = vld [vmem:[%s243 + $0xbc] sm:$0xf]
      %v367 = vld [vmem:[%s243 + $0xc0] sm:$0xff]
      %v368 = vld [vmem:[%s243 + $0xc8] sm:$0xf]
      %v369 = vld [vmem:[%s243 + $0xcc] sm:$0xff]
      %v370 = vld [vmem:[%s243 + $0xd4] sm:$0xf]
      %v371 = vld [vmem:[%s243 + $0xd8] sm:$0xff]
      %v372 = vld [vmem:[%s243 + $0xe0] sm:$0xf]
      %v373 = vld [vmem:[%s243 + $0xe4] sm:$0xff]
      %v374 = vld [vmem:[%s243 + $0xec] sm:$0xf]
      %v375 = vld [vmem:[%s243 + $0xf0] sm:$0xff]
      %v376 = vld [vmem:[%s243 + $0xf8] sm:$0xf]
      %v377 = vld [vmem:[%s243 + $0xfc] sm:$0xff]
      %v378 = vld [vmem:[%s243 + $0x104] sm:$0xf]
      %v379 = vld [vmem:[%s243 + $0x108] sm:$0xff]
      %v380 = vld [vmem:[%s243 + $0x110] sm:$0xf]
      %v381 = vld [vmem:[%s243 + $0x114] sm:$0xff]
      %v382 = vld [vmem:[%s243 + $0x11c] sm:$0xf]
      %v383 = vld [vmem:[%s243 + $0x120] sm:$0xff]
      %v384 = vld [vmem:[%s243 + $0x128] sm:$0xf]
      %v385 = vld [vmem:[%s243 + $0x12c] sm:$0xff]
      %v386 = vld [vmem:[%s243 + $0x134] sm:$0xf]
      %v387 = vld [vmem:[%s243 + $0x138] sm:$0xff]
      %v388 = vld [vmem:[%s243 + $0x140] sm:$0xf]
      %v389 = vld [vmem:[%s243 + $0x144] sm:$0xff]
      %v390 = vld [vmem:[%s243 + $0x14c] sm:$0xf]
      %v391 = vld [vmem:[%s243 + $0x150] sm:$0xff]
      %v392 = vld [vmem:[%s243 + $0x158] sm:$0xf]
      %v393 = vld [vmem:[%s243 + $0x15c] sm:$0xff]
      %v394 = vld [vmem:[%s243 + $0x164] sm:$0xf]
      %v395 = vld [vmem:[%s243 + $0x168] sm:$0xff]
      %v396 = vld [vmem:[%s243 + $0x170] sm:$0xf]
      %v397 = vld [vmem:[%s243 + $0x174] sm:$0xff]
      %v398 = vld [vmem:[%s243 + $0x17c] sm:$0xf]
      %v399 = vld [vmem:[%s253] sm:$0xf]
      %v400 = vld [vmem:[%s253 + $0x4] sm:$0xf]
      %v401 = vld [vmem:[%s253 + $0x8] sm:$0xf]
      %v402 = vld [vmem:[%s253 + $0xc] sm:$0xf]
      %v403 = vld [vmem:[%s253 + $0x10] sm:$0xf]
      %v404 = vld [vmem:[%s253 + $0x14] sm:$0xf]
      %v405 = vld [vmem:[%s253 + $0x18] sm:$0xf]
      %v406 = vld [vmem:[%s253 + $0x1c] sm:$0xf]
      %v407 = vld [vmem:[%s253 + $0x20] sm:$0xf]
      %v408 = vld [vmem:[%s253 + $0x24] sm:$0xf]
      %v409 = vld [vmem:[%s253 + $0x28] sm:$0xf]
      %v410 = vld [vmem:[%s253 + $0x2c] sm:$0xf]
      %v411 = vld [vmem:[%s253 + $0x30] sm:$0xf]
      %v412 = vld [vmem:[%s253 + $0x34] sm:$0xf]
      %v413 = vld [vmem:[%s253 + $0x38] sm:$0xf]
      %v414 = vld [vmem:[%s253 + $0x3c] sm:$0xf]
      %v415 = vld [vmem:[%s253 + $0x40] sm:$0xf]
      %v416 = vld [vmem:[%s253 + $0x44] sm:$0xf]
      %v417 = vld [vmem:[%s253 + $0x48] sm:$0xf]
      %v418 = vld [vmem:[%s253 + $0x4c] sm:$0xf]
      %v419 = vld [vmem:[%s253 + $0x50] sm:$0xf]
      %v420 = vld [vmem:[%s253 + $0x54] sm:$0xf]
      %v421 = vld [vmem:[%s253 + $0x58] sm:$0xf]
      %v422 = vld [vmem:[%s253 + $0x5c] sm:$0xf]
      %v423 = vld [vmem:[%s253 + $0x60] sm:$0xf]
      %v424 = vld [vmem:[%s253 + $0x64] sm:$0xf]
      %v425 = vld [vmem:[%s253 + $0x68] sm:$0xf]
      %v426 = vld [vmem:[%s253 + $0x6c] sm:$0xf]
      %v427 = vld [vmem:[%s253 + $0x70] sm:$0xf]
      %v428 = vld [vmem:[%s253 + $0x74] sm:$0xf]
      %v429 = vld [vmem:[%s253 + $0x78] sm:$0xf]
      %v430 = vld [vmem:[%s253 + $0x7c] sm:$0xf]
      %v431 = vld [vmem:[%s253 + $0x80] sm:$0xf]
      %v432 = vld [vmem:[%s253 + $0x84] sm:$0xf]
      %v433 = vld [vmem:[%s253 + $0x88] sm:$0xf]
      %v434 = vld [vmem:[%s253 + $0x8c] sm:$0xf]
      %v435 = vld [vmem:[%s253 + $0x90] sm:$0xf]
      %v436 = vld [vmem:[%s253 + $0x94] sm:$0xf]
      %v437 = vld [vmem:[%s253 + $0x98] sm:$0xf]
      %v438 = vld [vmem:[%s253 + $0x9c] sm:$0xf]
      %v439 = vld [vmem:[%s253 + $0xa0] sm:$0xf]
      %v440 = vld [vmem:[%s253 + $0xa4] sm:$0xf]
      %v441 = vld [vmem:[%s253 + $0xa8] sm:$0xf]
      %v442 = vld [vmem:[%s253 + $0xac] sm:$0xf]
      %v443 = vld [vmem:[%s253 + $0xb0] sm:$0xf]
      %v444 = vld [vmem:[%s253 + $0xb4] sm:$0xf]
      %v445 = vld [vmem:[%s253 + $0xb8] sm:$0xf]
      %v446 = vld [vmem:[%s253 + $0xbc] sm:$0xf]
      %v511 = vunpack.c.l.b16 %v335
      %v512 = vunpack.c.h.b16 %v335
      %v513 = vunpack.c.l.b16 %v336
      %v514 = vunpack.c.l.b16 %v337
      %v515 = vunpack.c.h.b16 %v337
      %v516 = vunpack.c.l.b16 %v338
      %v517 = vunpack.c.l.b16 %v339
      %v518 = vunpack.c.h.b16 %v339
      %v519 = vunpack.c.l.b16 %v340
      %v520 = vunpack.c.l.b16 %v341
      %v521 = vunpack.c.h.b16 %v341
      %v522 = vunpack.c.l.b16 %v342
      %v523 = vunpack.c.l.b16 %v343
      %v524 = vunpack.c.h.b16 %v343
      %v525 = vunpack.c.l.b16 %v344
      %v526 = vunpack.c.l.b16 %v345
      %v527 = vunpack.c.h.b16 %v345
      %v528 = vunpack.c.l.b16 %v346
      %v529 = vunpack.c.l.b16 %v347
      %v530 = vunpack.c.h.b16 %v347
      %v531 = vunpack.c.l.b16 %v348
      %v532 = vunpack.c.l.b16 %v349
      %v533 = vunpack.c.h.b16 %v349
      %v534 = vunpack.c.l.b16 %v350
      %v535 = vunpack.c.l.b16 %v351
      %v536 = vunpack.c.h.b16 %v351
      %v537 = vunpack.c.l.b16 %v352
      %v538 = vunpack.c.l.b16 %v353
      %v539 = vunpack.c.h.b16 %v353
      %v540 = vunpack.c.l.b16 %v354
      %v541 = vunpack.c.l.b16 %v355
      %v542 = vunpack.c.h.b16 %v355
      %v543 = vunpack.c.l.b16 %v356
      %v544 = vunpack.c.l.b16 %v357
      %v545 = vunpack.c.h.b16 %v357
      %v546 = vunpack.c.l.b16 %v358
      %v547 = vunpack.c.l.b16 %v359
      %v548 = vunpack.c.h.b16 %v359
      %v549 = vunpack.c.l.b16 %v360
      %v550 = vunpack.c.l.b16 %v361
      %v551 = vunpack.c.h.b16 %v361
      %v552 = vunpack.c.l.b16 %v362
      %v553 = vunpack.c.l.b16 %v363
      %v554 = vunpack.c.h.b16 %v363
      %v555 = vunpack.c.l.b16 %v364
      %v556 = vunpack.c.l.b16 %v365
      %v557 = vunpack.c.h.b16 %v365
      %v558 = vunpack.c.l.b16 %v366
      %v559 = vunpack.c.l.b16 %v367
      %v560 = vunpack.c.h.b16 %v367
      %v561 = vunpack.c.l.b16 %v368
      %v562 = vunpack.c.l.b16 %v369
      %v563 = vunpack.c.h.b16 %v369
      %v564 = vunpack.c.l.b16 %v370
      %v565 = vunpack.c.l.b16 %v371
      %v566 = vunpack.c.h.b16 %v371
      %v567 = vunpack.c.l.b16 %v372
      %v568 = vunpack.c.l.b16 %v373
      %v569 = vunpack.c.h.b16 %v373
      %v570 = vunpack.c.l.b16 %v374
      %v571 = vunpack.c.l.b16 %v375
      %v572 = vunpack.c.h.b16 %v375
      %v573 = vunpack.c.l.b16 %v376
      %v574 = vunpack.c.l.b16 %v377
      %v575 = vunpack.c.h.b16 %v377
      %v576 = vunpack.c.l.b16 %v378
      %v577 = vunpack.c.l.b16 %v379
      %v578 = vunpack.c.h.b16 %v379
      %v579 = vunpack.c.l.b16 %v380
      %v580 = vunpack.c.l.b16 %v381
      %v581 = vunpack.c.h.b16 %v381
      %v582 = vunpack.c.l.b16 %v382
      %v583 = vunpack.c.l.b16 %v383
      %v584 = vunpack.c.h.b16 %v383
      %v585 = vunpack.c.l.b16 %v384
      %v586 = vunpack.c.l.b16 %v385
      %v587 = vunpack.c.h.b16 %v385
      %v588 = vunpack.c.l.b16 %v386
      %v589 = vunpack.c.l.b16 %v387
      %v590 = vunpack.c.h.b16 %v387
      %v591 = vunpack.c.l.b16 %v388
      %v592 = vunpack.c.l.b16 %v389
      %v593 = vunpack.c.h.b16 %v389
      %v594 = vunpack.c.l.b16 %v390
      %v595 = vunpack.c.l.b16 %v391
      %v596 = vunpack.c.h.b16 %v391
      %v597 = vunpack.c.l.b16 %v392
      %v598 = vunpack.c.l.b16 %v393
      %v599 = vunpack.c.h.b16 %v393
      %v600 = vunpack.c.l.b16 %v394
      %v601 = vunpack.c.l.b16 %v395
      %v602 = vunpack.c.h.b16 %v395
      %v603 = vunpack.c.l.b16 %v396
      %v604 = vunpack.c.l.b16 %v397
      %v605 = vunpack.c.h.b16 %v397
      %v606 = vunpack.c.l.b16 %v398
      %v607 = vpack.c.b16 %v514, %v511
      %v608 = vpack.c.b16 %v515, %v512
      %v609 = vpack.c.b16 %v516, %v513
      %v610 = vpack.c.b16 %v520, %v517
      %v611 = vpack.c.b16 %v521, %v518
      %v612 = vpack.c.b16 %v522, %v519
      %v613 = vpack.c.b16 %v526, %v523
      %v614 = vpack.c.b16 %v527, %v524
      %v615 = vpack.c.b16 %v528, %v525
      %v616 = vpack.c.b16 %v532, %v529
      %v617 = vpack.c.b16 %v533, %v530
      %v618 = vpack.c.b16 %v534, %v531
      %v619 = vpack.c.b16 %v538, %v535
      %v620 = vpack.c.b16 %v539, %v536
      %v621 = vpack.c.b16 %v540, %v537
      %v622 = vpack.c.b16 %v544, %v541
      %v623 = vpack.c.b16 %v545, %v542
      %v624 = vpack.c.b16 %v546, %v543
      %v625 = vpack.c.b16 %v550, %v547
      %v626 = vpack.c.b16 %v551, %v548
      %v627 = vpack.c.b16 %v552, %v549
      %v628 = vpack.c.b16 %v556, %v553
      %v629 = vpack.c.b16 %v557, %v554
      %v630 = vpack.c.b16 %v558, %v555
      %v631 = vpack.c.b16 %v562, %v559
      %v632 = vpack.c.b16 %v563, %v560
      %v633 = vpack.c.b16 %v564, %v561
      %v634 = vpack.c.b16 %v568, %v565
      %v635 = vpack.c.b16 %v569, %v566
      %v636 = vpack.c.b16 %v570, %v567
      %v637 = vpack.c.b16 %v574, %v571
      %v638 = vpack.c.b16 %v575, %v572
      %v639 = vpack.c.b16 %v576, %v573
      %v640 = vpack.c.b16 %v580, %v577
      %v641 = vpack.c.b16 %v581, %v578
      %v642 = vpack.c.b16 %v582, %v579
      %v643 = vpack.c.b16 %v586, %v583
      %v644 = vpack.c.b16 %v587, %v584
      %v645 = vpack.c.b16 %v588, %v585
      %v646 = vpack.c.b16 %v592, %v589
      %v647 = vpack.c.b16 %v593, %v590
      %v648 = vpack.c.b16 %v594, %v591
      %v649 = vpack.c.b16 %v598, %v595
      %v650 = vpack.c.b16 %v599, %v596
      %v651 = vpack.c.b16 %v600, %v597
      %v652 = vpack.c.b16 %v604, %v601
      %v653 = vpack.c.b16 %v605, %v602
      %v654 = vpack.c.b16 %v606, %v603
      %v751 = vunpack.c.l.b16 %v399
      %v752 = vunpack.c.l.b16 %v400
      %v753 = vunpack.c.l.b16 %v401
      %v754 = vunpack.c.l.b16 %v402
      %v755 = vunpack.c.l.b16 %v403
      %v756 = vunpack.c.l.b16 %v404
      %v757 = vunpack.c.l.b16 %v405
      %v758 = vunpack.c.l.b16 %v406
      %v759 = vunpack.c.l.b16 %v407
      %v760 = vunpack.c.l.b16 %v408
      %v761 = vunpack.c.l.b16 %v409
      %v762 = vunpack.c.l.b16 %v410
      %v763 = vunpack.c.l.b16 %v411
      %v764 = vunpack.c.l.b16 %v412
      %v765 = vunpack.c.l.b16 %v413
      %v766 = vunpack.c.l.b16 %v414
      %v767 = vunpack.c.l.b16 %v415
      %v768 = vunpack.c.l.b16 %v416
      %v769 = vunpack.c.l.b16 %v417
      %v770 = vunpack.c.l.b16 %v418
      %v771 = vunpack.c.l.b16 %v419
      %v772 = vunpack.c.l.b16 %v420
      %v773 = vunpack.c.l.b16 %v421
      %v774 = vunpack.c.l.b16 %v422
      %v775 = vunpack.c.l.b16 %v423
      %v776 = vunpack.c.l.b16 %v424
      %v777 = vunpack.c.l.b16 %v425
      %v778 = vunpack.c.l.b16 %v426
      %v779 = vunpack.c.l.b16 %v427
      %v780 = vunpack.c.l.b16 %v428
      %v781 = vunpack.c.l.b16 %v429
      %v782 = vunpack.c.l.b16 %v430
      %v783 = vunpack.c.l.b16 %v431
      %v784 = vunpack.c.l.b16 %v432
      %v785 = vunpack.c.l.b16 %v433
      %v786 = vunpack.c.l.b16 %v434
      %v787 = vunpack.c.l.b16 %v435
      %v788 = vunpack.c.l.b16 %v436
      %v789 = vunpack.c.l.b16 %v437
      %v790 = vunpack.c.l.b16 %v438
      %v791 = vunpack.c.l.b16 %v439
      %v792 = vunpack.c.l.b16 %v440
      %v793 = vunpack.c.l.b16 %v441
      %v794 = vunpack.c.l.b16 %v442
      %v795 = vunpack.c.l.b16 %v443
      %v796 = vunpack.c.l.b16 %v444
      %v797 = vunpack.c.l.b16 %v445
      %v798 = vunpack.c.l.b16 %v446
      %v799 = vpack.c.b16 %v752, %v751
      %v800 = vpack.c.b16 %v754, %v753
      %v801 = vpack.c.b16 %v756, %v755
      %v802 = vpack.c.b16 %v758, %v757
      %v803 = vpack.c.b16 %v760, %v759
      %v804 = vpack.c.b16 %v762, %v761
      %v805 = vpack.c.b16 %v764, %v763
      %v806 = vpack.c.b16 %v766, %v765
      %v807 = vpack.c.b16 %v768, %v767
      %v808 = vpack.c.b16 %v770, %v769
      %v809 = vpack.c.b16 %v772, %v771
      %v810 = vpack.c.b16 %v774, %v773
      %v811 = vpack.c.b16 %v776, %v775
      %v812 = vpack.c.b16 %v778, %v777
      %v813 = vpack.c.b16 %v780, %v779
      %v814 = vpack.c.b16 %v782, %v781
      %v815 = vpack.c.b16 %v784, %v783
      %v816 = vpack.c.b16 %v786, %v785
      %v817 = vpack.c.b16 %v788, %v787
      %v818 = vpack.c.b16 %v790, %v789
      %v819 = vpack.c.b16 %v792, %v791
      %v820 = vpack.c.b16 %v794, %v793
      %v821 = vpack.c.b16 %v796, %v795
      %v822 = vpack.c.b16 %v798, %v797
      %847 = vmatpush.bf16.msra.mxu0 %v806
      %848 = vmatpush.bf16.msra.mxu0 %v805
      %849 = vmatpush.bf16.msra.mxu0 %v804
      %850 = vmatpush.bf16.msra.mxu0 %v803
      %851 = vmatpush.bf16.msra.mxu0 %v802
      %852 = vmatpush.bf16.msra.mxu0 %v801
      %853 = vmatpush.bf16.msra.mxu0 %v800
      %854 = vmatpush.bf16.msra.mxu0 %v799
      %855 = vmatmul.bf16.gmra.mxu0 %v607
      %v856 = vpop.f32.mrf.mxu0
      %v857 = vadd.f32 0.0, %v856
      %v858 = vpop.f32.mrf.mxu0
      %v859 = vadd.f32 0.0, %v858
      %860 = vmatmul.bf16.gmra.mxu0 %v610
      %v861 = vpop.f32.mrf.mxu0
      %v862 = vadd.f32 0.0, %v861
      %v863 = vpop.f32.mrf.mxu0
      %v864 = vadd.f32 0.0, %v863
      %865 = vmatmul.bf16.gmra.mxu0 %v613
      %v866 = vpop.f32.mrf.mxu0
      %v867 = vadd.f32 0.0, %v866
      %v868 = vpop.f32.mrf.mxu0
      %v869 = vadd.f32 0.0, %v868
      %870 = vmatmul.bf16.gmra.mxu0 %v616
      %v871 = vpop.f32.mrf.mxu0
      %v872 = vadd.f32 0.0, %v871
      %v873 = vpop.f32.mrf.mxu0
      %v874 = vadd.f32 0.0, %v873
      %875 = vmatmul.bf16.gmra.mxu0 %v619
      %v876 = vpop.f32.mrf.mxu0
      %v877 = vadd.f32 0.0, %v876
      %v878 = vpop.f32.mrf.mxu0
      %v879 = vadd.f32 0.0, %v878
      %880 = vmatmul.bf16.gmra.mxu0 %v622
      %v881 = vpop.f32.mrf.mxu0
      %v882 = vadd.f32 0.0, %v881
      %v883 = vpop.f32.mrf.mxu0
      %v884 = vadd.f32 0.0, %v883
      %885 = vmatmul.bf16.gmra.mxu0 %v625
      %v886 = vpop.f32.mrf.mxu0
      %v887 = vadd.f32 0.0, %v886
      %v888 = vpop.f32.mrf.mxu0
      %v889 = vadd.f32 0.0, %v888
      %890 = vmatmul.bf16.gmra.mxu0 %v628
      %v891 = vpop.f32.mrf.mxu0
      %v892 = vadd.f32 0.0, %v891
      %v893 = vpop.f32.mrf.mxu0
      %v894 = vadd.f32 0.0, %v893
      %895 = vmatmul.bf16.gmra.mxu0 %v631
      %v896 = vpop.f32.mrf.mxu0
      %v897 = vadd.f32 0.0, %v896
      %v898 = vpop.f32.mrf.mxu0
      %v899 = vadd.f32 0.0, %v898
      %900 = vmatmul.bf16.gmra.mxu0 %v634
      %v901 = vpop.f32.mrf.mxu0
      %v902 = vadd.f32 0.0, %v901
      %v903 = vpop.f32.mrf.mxu0
      %v904 = vadd.f32 0.0, %v903
      %905 = vmatmul.bf16.gmra.mxu0 %v637
      %v906 = vpop.f32.mrf.mxu0
      %v907 = vadd.f32 0.0, %v906
      %v908 = vpop.f32.mrf.mxu0
      %v909 = vadd.f32 0.0, %v908
      %910 = vmatmul.bf16.gmra.mxu0 %v640
      %v911 = vpop.f32.mrf.mxu0
      %v912 = vadd.f32 0.0, %v911
      %v913 = vpop.f32.mrf.mxu0
      %v914 = vadd.f32 0.0, %v913
      %915 = vmatmul.bf16.gmra.mxu0 %v643
      %v916 = vpop.f32.mrf.mxu0
      %v917 = vadd.f32 0.0, %v916
      %v918 = vpop.f32.mrf.mxu0
      %v919 = vadd.f32 0.0, %v918
      %920 = vmatmul.bf16.gmra.mxu0 %v646
      %v921 = vpop.f32.mrf.mxu0
      %v922 = vadd.f32 0.0, %v921
      %v923 = vpop.f32.mrf.mxu0
      %v924 = vadd.f32 0.0, %v923
      %925 = vmatmul.bf16.gmra.mxu0 %v649
      %v926 = vpop.f32.mrf.mxu0
      %v927 = vadd.f32 0.0, %v926
      %v928 = vpop.f32.mrf.mxu0
      %v929 = vadd.f32 0.0, %v928
      %930 = vmatmul.bf16.gmra.mxu0 %v652
      %v931 = vpop.f32.mrf.mxu0
      %v932 = vadd.f32 0.0, %v931
      %v933 = vpop.f32.mrf.mxu0
      %v934 = vadd.f32 0.0, %v933
      %935 = vdwg.mxu0
      %936 = vmatpush.bf16.msra.mxu0 %v814
      %937 = vmatpush.bf16.msra.mxu0 %v813
      %938 = vmatpush.bf16.msra.mxu0 %v812
      %939 = vmatpush.bf16.msra.mxu0 %v811
      %940 = vmatpush.bf16.msra.mxu0 %v810
      %941 = vmatpush.bf16.msra.mxu0 %v809
      %942 = vmatpush.bf16.msra.mxu0 %v808
      %943 = vmatpush.bf16.msra.mxu0 %v807
      %944 = vmatmul.bf16.gmra.mxu0 %v608
      %v945 = vpop.f32.mrf.mxu0
      %v946 = vadd.f32 %v857, %v945
      %v947 = vpop.f32.mrf.mxu0
      %v948 = vadd.f32 %v859, %v947
      %949 = vmatmul.bf16.gmra.mxu0 %v611
      %v950 = vpop.f32.mrf.mxu0
      %v951 = vadd.f32 %v862, %v950
      %v952 = vpop.f32.mrf.mxu0
      %v953 = vadd.f32 %v864, %v952
      %954 = vmatmul.bf16.gmra.mxu0 %v614
      %v955 = vpop.f32.mrf.mxu0
      %v956 = vadd.f32 %v867, %v955
      %v957 = vpop.f32.mrf.mxu0
      %v958 = vadd.f32 %v869, %v957
      %959 = vmatmul.bf16.gmra.mxu0 %v617
      %v960 = vpop.f32.mrf.mxu0
      %v961 = vadd.f32 %v872, %v960
      %v962 = vpop.f32.mrf.mxu0
      %v963 = vadd.f32 %v874, %v962
      %964 = vmatmul.bf16.gmra.mxu0 %v620
      %v965 = vpop.f32.mrf.mxu0
      %v966 = vadd.f32 %v877, %v965
      %v967 = vpop.f32.mrf.mxu0
      %v968 = vadd.f32 %v879, %v967
      %969 = vmatmul.bf16.gmra.mxu0 %v623
      %v970 = vpop.f32.mrf.mxu0
      %v971 = vadd.f32 %v882, %v970
      %v972 = vpop.f32.mrf.mxu0
      %v973 = vadd.f32 %v884, %v972
      %974 = vmatmul.bf16.gmra.mxu0 %v626
      %v975 = vpop.f32.mrf.mxu0
      %v976 = vadd.f32 %v887, %v975
      %v977 = vpop.f32.mrf.mxu0
      %v978 = vadd.f32 %v889, %v977
      %979 = vmatmul.bf16.gmra.mxu0 %v629
      %v980 = vpop.f32.mrf.mxu0
      %v981 = vadd.f32 %v892, %v980
      %v982 = vpop.f32.mrf.mxu0
      %v983 = vadd.f32 %v894, %v982
      %984 = vmatmul.bf16.gmra.mxu0 %v632
      %v985 = vpop.f32.mrf.mxu0
      %v986 = vadd.f32 %v897, %v985
      %v987 = vpop.f32.mrf.mxu0
      %v988 = vadd.f32 %v899, %v987
      %989 = vmatmul.bf16.gmra.mxu0 %v635
      %v990 = vpop.f32.mrf.mxu0
      %v991 = vadd.f32 %v902, %v990
      %v992 = vpop.f32.mrf.mxu0
      %v993 = vadd.f32 %v904, %v992
      %994 = vmatmul.bf16.gmra.mxu0 %v638
      %v995 = vpop.f32.mrf.mxu0
      %v996 = vadd.f32 %v907, %v995
      %v997 = vpop.f32.mrf.mxu0
      %v998 = vadd.f32 %v909, %v997
      %999 = vmatmul.bf16.gmra.mxu0 %v641
      %v1000 = vpop.f32.mrf.mxu0
      %v1001 = vadd.f32 %v912, %v1000
      %v1002 = vpop.f32.mrf.mxu0
      %v1003 = vadd.f32 %v914, %v1002
      %1004 = vmatmul.bf16.gmra.mxu0 %v644
      %v1005 = vpop.f32.mrf.mxu0
      %v1006 = vadd.f32 %v917, %v1005
      %v1007 = vpop.f32.mrf.mxu0
      %v1008 = vadd.f32 %v919, %v1007
      %1009 = vmatmul.bf16.gmra.mxu0 %v647
      %v1010 = vpop.f32.mrf.mxu0
      %v1011 = vadd.f32 %v922, %v1010
      %v1012 = vpop.f32.mrf.mxu0
      %v1013 = vadd.f32 %v924, %v1012
      %1014 = vmatmul.bf16.gmra.mxu0 %v650
      %v1015 = vpop.f32.mrf.mxu0
      %v1016 = vadd.f32 %v927, %v1015
      %v1017 = vpop.f32.mrf.mxu0
      %v1018 = vadd.f32 %v929, %v1017
      %1019 = vmatmul.bf16.gmra.mxu0 %v653
      %v1020 = vpop.f32.mrf.mxu0
      %v1021 = vadd.f32 %v932, %v1020
      %v1022 = vpop.f32.mrf.mxu0
      %v1023 = vadd.f32 %v934, %v1022
      %1024 = vdwg.mxu0
      %1025 = vmatpush.bf16.msra.mxu0 %v822
      %1026 = vmatpush.bf16.msra.mxu0 %v821
      %1027 = vmatpush.bf16.msra.mxu0 %v820
      %1028 = vmatpush.bf16.msra.mxu0 %v819
      %1029 = vmatpush.bf16.msra.mxu0 %v818
      %1030 = vmatpush.bf16.msra.mxu0 %v817
      %1031 = vmatpush.bf16.msra.mxu0 %v816
      %1032 = vmatpush.bf16.msra.mxu0 %v815
      %1033 = vmatmul.bf16.gmra.mxu0 %v609
      %v1034 = vpop.f32.mrf.mxu0
      %v1035 = vadd.f32 %v946, %v1034
      %v1036 = vpop.f32.mrf.mxu0
      %v1037 = vadd.f32 %v948, %v1036
      %1038 = vmatmul.bf16.gmra.mxu0 %v612
      %v1039 = vpop.f32.mrf.mxu0
      %v1040 = vadd.f32 %v951, %v1039
      %v1041 = vpop.f32.mrf.mxu0
      %v1042 = vadd.f32 %v953, %v1041
      %1043 = vmatmul.bf16.gmra.mxu0 %v615
      %v1044 = vpop.f32.mrf.mxu0
      %v1045 = vadd.f32 %v956, %v1044
      %v1046 = vpop.f32.mrf.mxu0
      %v1047 = vadd.f32 %v958, %v1046
      %1048 = vmatmul.bf16.gmra.mxu0 %v618
      %v1049 = vpop.f32.mrf.mxu0
      %v1050 = vadd.f32 %v961, %v1049
      %v1051 = vpop.f32.mrf.mxu0
      %v1052 = vadd.f32 %v963, %v1051
      %1053 = vmatmul.bf16.gmra.mxu0 %v621
      %v1054 = vpop.f32.mrf.mxu0
      %v1055 = vadd.f32 %v966, %v1054
      %v1056 = vpop.f32.mrf.mxu0
      %v1057 = vadd.f32 %v968, %v1056
      %1058 = vmatmul.bf16.gmra.mxu0 %v624
      %v1059 = vpop.f32.mrf.mxu0
      %v1060 = vadd.f32 %v971, %v1059
      %v1061 = vpop.f32.mrf.mxu0
      %v1062 = vadd.f32 %v973, %v1061
      %1063 = vmatmul.bf16.gmra.mxu0 %v627
      %v1064 = vpop.f32.mrf.mxu0
      %v1065 = vadd.f32 %v976, %v1064
      %v1066 = vpop.f32.mrf.mxu0
      %v1067 = vadd.f32 %v978, %v1066
      %1068 = vmatmul.bf16.gmra.mxu0 %v630
      %v1069 = vpop.f32.mrf.mxu0
      %v1070 = vadd.f32 %v981, %v1069
      %v1071 = vpop.f32.mrf.mxu0
      %v1072 = vadd.f32 %v983, %v1071
      %1073 = vmatmul.bf16.gmra.mxu0 %v633
      %v1074 = vpop.f32.mrf.mxu0
      %v1075 = vadd.f32 %v986, %v1074
      %v1076 = vpop.f32.mrf.mxu0
      %v1077 = vadd.f32 %v988, %v1076
      %1078 = vmatmul.bf16.gmra.mxu0 %v636
      %v1079 = vpop.f32.mrf.mxu0
      %v1080 = vadd.f32 %v991, %v1079
      %v1081 = vpop.f32.mrf.mxu0
      %v1082 = vadd.f32 %v993, %v1081
      %1083 = vmatmul.bf16.gmra.mxu0 %v639
      %v1084 = vpop.f32.mrf.mxu0
      %v1085 = vadd.f32 %v996, %v1084
      %v1086 = vpop.f32.mrf.mxu0
      %v1087 = vadd.f32 %v998, %v1086
      %1088 = vmatmul.bf16.gmra.mxu0 %v642
      %v1089 = vpop.f32.mrf.mxu0
      %v1090 = vadd.f32 %v1001, %v1089
      %v1091 = vpop.f32.mrf.mxu0
      %v1092 = vadd.f32 %v1003, %v1091
      %1093 = vmatmul.bf16.gmra.mxu0 %v645
      %v1094 = vpop.f32.mrf.mxu0
      %v1095 = vadd.f32 %v1006, %v1094
      %v1096 = vpop.f32.mrf.mxu0
      %v1097 = vadd.f32 %v1008, %v1096
      %1098 = vmatmul.bf16.gmra.mxu0 %v648
      %v1099 = vpop.f32.mrf.mxu0
      %v1100 = vadd.f32 %v1011, %v1099
      %v1101 = vpop.f32.mrf.mxu0
      %v1102 = vadd.f32 %v1013, %v1101
      %1103 = vmatmul.bf16.gmra.mxu0 %v651
      %v1104 = vpop.f32.mrf.mxu0
      %v1105 = vadd.f32 %v1016, %v1104
      %v1106 = vpop.f32.mrf.mxu0
      %v1107 = vadd.f32 %v1018, %v1106
      %1108 = vmatmul.bf16.gmra.mxu0 %v654
      %v1109 = vpop.f32.mrf.mxu0
      %v1110 = vadd.f32 %v1021, %v1109
      %v1111 = vpop.f32.mrf.mxu0
      %v1112 = vadd.f32 %v1023, %v1111
      %1113 = vdwg.mxu0
      %v1114 = vadd.f32 %v303, %v1035
      %v1115 = vadd.f32 %v304, %v1037
      %v1116 = vadd.f32 %v305, %v1040
      %v1117 = vadd.f32 %v306, %v1042
      %v1118 = vadd.f32 %v307, %v1045
      %v1119 = vadd.f32 %v308, %v1047
      %v1120 = vadd.f32 %v309, %v1050
      %v1121 = vadd.f32 %v310, %v1052
      %v1122 = vadd.f32 %v311, %v1055
      %v1123 = vadd.f32 %v312, %v1057
      %v1124 = vadd.f32 %v313, %v1060
      %v1125 = vadd.f32 %v314, %v1062
      %v1126 = vadd.f32 %v315, %v1065
      %v1127 = vadd.f32 %v316, %v1067
      %v1128 = vadd.f32 %v317, %v1070
      %v1129 = vadd.f32 %v318, %v1072
      %v1130 = vadd.f32 %v319, %v1075
      %v1131 = vadd.f32 %v320, %v1077
      %v1132 = vadd.f32 %v321, %v1080
      %v1133 = vadd.f32 %v322, %v1082
      %v1134 = vadd.f32 %v323, %v1085
      %v1135 = vadd.f32 %v324, %v1087
      %v1136 = vadd.f32 %v325, %v1090
      %v1137 = vadd.f32 %v326, %v1092
      %v1138 = vadd.f32 %v327, %v1095
      %v1139 = vadd.f32 %v328, %v1097
      %v1140 = vadd.f32 %v329, %v1100
      %v1141 = vadd.f32 %v330, %v1102
      %v1142 = vadd.f32 %v331, %v1105
      %v1143 = vadd.f32 %v332, %v1107
      %v1144 = vadd.f32 %v333, %v1110
      %v1145 = vadd.f32 %v334, %v1112
      %1146 = vst [vmem:[#allocation2] sm:$0xff] %v1114
      %1147 = vst [vmem:[#allocation2 + $0x8] sm:$0xff] %v1115
      %1148 = vst [vmem:[#allocation2 + $0x10] sm:$0xff] %v1116
      %1149 = vst [vmem:[#allocation2 + $0x18] sm:$0xff] %v1117
      %1150 = vst [vmem:[#allocation2 + $0x20] sm:$0xff] %v1118
      %1151 = vst [vmem:[#allocation2 + $0x28] sm:$0xff] %v1119
      %1152 = vst [vmem:[#allocation2 + $0x30] sm:$0xff] %v1120
      %1153 = vst [vmem:[#allocation2 + $0x38] sm:$0xff] %v1121
      %1154 = vst [vmem:[#allocation2 + $0x40] sm:$0xff] %v1122
      %1155 = vst [vmem:[#allocation2 + $0x48] sm:$0xff] %v1123
      %1156 = vst [vmem:[#allocation2 + $0x50] sm:$0xff] %v1124
      %1157 = vst [vmem:[#allocation2 + $0x58] sm:$0xff] %v1125
      %1158 = vst [vmem:[#allocation2 + $0x60] sm:$0xff] %v1126
      %1159 = vst [vmem:[#allocation2 + $0x68] sm:$0xff] %v1127
      %1160 = vst [vmem:[#allocation2 + $0x70] sm:$0xff] %v1128
      %1161 = vst [vmem:[#allocation2 + $0x78] sm:$0xff] %v1129
      %1162 = vst [vmem:[#allocation2 + $0x80] sm:$0xff] %v1130
      %1163 = vst [vmem:[#allocation2 + $0x88] sm:$0xff] %v1131
      %1164 = vst [vmem:[#allocation2 + $0x90] sm:$0xff] %v1132
      %1165 = vst [vmem:[#allocation2 + $0x98] sm:$0xff] %v1133
      %1166 = vst [vmem:[#allocation2 + $0xa0] sm:$0xff] %v1134
      %1167 = vst [vmem:[#allocation2 + $0xa8] sm:$0xff] %v1135
      %1168 = vst [vmem:[#allocation2 + $0xb0] sm:$0xff] %v1136
      %1169 = vst [vmem:[#allocation2 + $0xb8] sm:$0xff] %v1137
      %1170 = vst [vmem:[#allocation2 + $0xc0] sm:$0xff] %v1138
      %1171 = vst [vmem:[#allocation2 + $0xc8] sm:$0xff] %v1139
      %1172 = vst [vmem:[#allocation2 + $0xd0] sm:$0xff] %v1140
      %1173 = vst [vmem:[#allocation2 + $0xd8] sm:$0xff] %v1141
      %1174 = vst [vmem:[#allocation2 + $0xe0] sm:$0xff] %v1142
      %1175 = vst [vmem:[#allocation2 + $0xe8] sm:$0xff] %v1143
      %1176 = vst [vmem:[#allocation2 + $0xf0] sm:$0xff] %v1144
      %1177 = vst [vmem:[#allocation2 + $0xf8] sm:$0xff] %v1145
      // Predicated region
      $region37: #{_lambda_.8} parent=31 // pred_check
        %p1178 = pneg %p267
      $region38: #{_lambda_.8} parent=31 // pred_check_branch
        %1180 = sbr.rel (%p1178) target = $region40
      $region39: #{_lambda_.8} parent=31 // pred_region
        %v1181 = vld [vmem:[#allocation2] sm:$0xff]
        %v1182 = vld [vmem:[#allocation2 + $0x8] sm:$0xff]
        %v1183 = vld [vmem:[#allocation2 + $0x10] sm:$0xff]
        %v1184 = vld [vmem:[#allocation2 + $0x18] sm:$0xff]
        %v1185 = vld [vmem:[#allocation2 + $0x20] sm:$0xff]
        %v1186 = vld [vmem:[#allocation2 + $0x28] sm:$0xff]
        %v1187 = vld [vmem:[#allocation2 + $0x30] sm:$0xff]
        %v1188 = vld [vmem:[#allocation2 + $0x38] sm:$0xff]
        %v1189 = vld [vmem:[#allocation2 + $0x40] sm:$0xff]
        %v1190 = vld [vmem:[#allocation2 + $0x48] sm:$0xff]
        %v1191 = vld [vmem:[#allocation2 + $0x50] sm:$0xff]
        %v1192 = vld [vmem:[#allocation2 + $0x58] sm:$0xff]
        %v1193 = vld [vmem:[#allocation2 + $0x60] sm:$0xff]
        %v1194 = vld [vmem:[#allocation2 + $0x68] sm:$0xff]
        %v1195 = vld [vmem:[#allocation2 + $0x70] sm:$0xff]
        %v1196 = vld [vmem:[#allocation2 + $0x78] sm:$0xff]
        %v1197 = vld [vmem:[#allocation2 + $0x80] sm:$0xff]
        %v1198 = vld [vmem:[#allocation2 + $0x88] sm:$0xff]
        %v1199 = vld [vmem:[#allocation2 + $0x90] sm:$0xff]
        %v1200 = vld [vmem:[#allocation2 + $0x98] sm:$0xff]
        %v1201 = vld [vmem:[#allocation2 + $0xa0] sm:$0xff]
        %v1202 = vld [vmem:[#allocation2 + $0xa8] sm:$0xff]
        %v1203 = vld [vmem:[#allocation2 + $0xb0] sm:$0xff]
        %v1204 = vld [vmem:[#allocation2 + $0xb8] sm:$0xff]
        %v1205 = vld [vmem:[#allocation2 + $0xc0] sm:$0xff]
        %v1206 = vld [vmem:[#allocation2 + $0xc8] sm:$0xff]
        %v1207 = vld [vmem:[#allocation2 + $0xd0] sm:$0xff]
        %v1208 = vld [vmem:[#allocation2 + $0xd8] sm:$0xff]
        %v1209 = vld [vmem:[#allocation2 + $0xe0] sm:$0xff]
        %v1210 = vld [vmem:[#allocation2 + $0xe8] sm:$0xff]
        %v1211 = vld [vmem:[#allocation2 + $0xf0] sm:$0xff]
        %v1212 = vld [vmem:[#allocation2 + $0xf8] sm:$0xff]
        %v1213 = vld [vmem:[%s257] sm:$0x1]
        %v1215 = vperm.slane %v1213, 0
        %v1217 = vadd.f32 %v1181, %v1215
        %v1218 = vadd.f32 %v1182, %v1215
        %v1219 = vadd.f32 %v1183, %v1215
        %v1220 = vadd.f32 %v1184, %v1215
        %v1221 = vadd.f32 %v1185, %v1215
        %v1222 = vadd.f32 %v1186, %v1215
        %v1223 = vadd.f32 %v1187, %v1215
        %v1224 = vadd.f32 %v1188, %v1215
        %v1225 = vadd.f32 %v1189, %v1215
        %v1226 = vadd.f32 %v1190, %v1215
        %v1227 = vadd.f32 %v1191, %v1215
        %v1228 = vadd.f32 %v1192, %v1215
        %v1229 = vadd.f32 %v1193, %v1215
        %v1230 = vadd.f32 %v1194, %v1215
        %v1231 = vadd.f32 %v1195, %v1215
        %v1232 = vadd.f32 %v1196, %v1215
        %v1233 = vadd.f32 %v1197, %v1215
        %v1234 = vadd.f32 %v1198, %v1215
        %v1235 = vadd.f32 %v1199, %v1215
        %v1236 = vadd.f32 %v1200, %v1215
        %v1237 = vadd.f32 %v1201, %v1215
        %v1238 = vadd.f32 %v1202, %v1215
        %v1239 = vadd.f32 %v1203, %v1215
        %v1240 = vadd.f32 %v1204, %v1215
        %v1241 = vadd.f32 %v1205, %v1215
        %v1242 = vadd.f32 %v1206, %v1215
        %v1243 = vadd.f32 %v1207, %v1215
        %v1244 = vadd.f32 %v1208, %v1215
        %v1245 = vadd.f32 %v1209, %v1215
        %v1246 = vadd.f32 %v1210, %v1215
        %v1247 = vadd.f32 %v1211, %v1215
        %v1248 = vadd.f32 %v1212, %v1215
        %v1249 = vmax.f32 %v1217, 0.0
        %v1250 = vmax.f32 %v1218, 0.0
        %v1251 = vmax.f32 %v1219, 0.0
        %v1252 = vmax.f32 %v1220, 0.0
        %v1253 = vmax.f32 %v1221, 0.0
        %v1254 = vmax.f32 %v1222, 0.0
        %v1255 = vmax.f32 %v1223, 0.0
        %v1256 = vmax.f32 %v1224, 0.0
        %v1257 = vmax.f32 %v1225, 0.0
        %v1258 = vmax.f32 %v1226, 0.0
        %v1259 = vmax.f32 %v1227, 0.0
        %v1260 = vmax.f32 %v1228, 0.0
        %v1261 = vmax.f32 %v1229, 0.0
        %v1262 = vmax.f32 %v1230, 0.0
        %v1263 = vmax.f32 %v1231, 0.0
        %v1264 = vmax.f32 %v1232, 0.0
        %v1265 = vmax.f32 %v1233, 0.0
        %v1266 = vmax.f32 %v1234, 0.0
        %v1267 = vmax.f32 %v1235, 0.0
        %v1268 = vmax.f32 %v1236, 0.0
        %v1269 = vmax.f32 %v1237, 0.0
        %v1270 = vmax.f32 %v1238, 0.0
        %v1271 = vmax.f32 %v1239, 0.0
        %v1272 = vmax.f32 %v1240, 0.0
        %v1273 = vmax.f32 %v1241, 0.0
        %v1274 = vmax.f32 %v1242, 0.0
        %v1275 = vmax.f32 %v1243, 0.0
        %v1276 = vmax.f32 %v1244, 0.0
        %v1277 = vmax.f32 %v1245, 0.0
        %v1278 = vmax.f32 %v1246, 0.0
        %v1279 = vmax.f32 %v1247, 0.0
        %v1280 = vmax.f32 %v1248, 0.0
        %v1281 = vpack.c.bf16 %v1249, %v1249
        %v1282 = vpack.c.bf16 %v1250, %v1250
        %v1283 = vpack.c.bf16 %v1251, %v1251
        %v1284 = vpack.c.bf16 %v1252, %v1252
        %v1285 = vpack.c.bf16 %v1253, %v1253
        %v1286 = vpack.c.bf16 %v1254, %v1254
        %v1287 = vpack.c.bf16 %v1255, %v1255
        %v1288 = vpack.c.bf16 %v1256, %v1256
        %v1289 = vpack.c.bf16 %v1257, %v1257
        %v1290 = vpack.c.bf16 %v1258, %v1258
        %v1291 = vpack.c.bf16 %v1259, %v1259
        %v1292 = vpack.c.bf16 %v1260, %v1260
        %v1293 = vpack.c.bf16 %v1261, %v1261
        %v1294 = vpack.c.bf16 %v1262, %v1262
        %v1295 = vpack.c.bf16 %v1263, %v1263
        %v1296 = vpack.c.bf16 %v1264, %v1264
        %v1297 = vpack.c.bf16 %v1265, %v1265
        %v1298 = vpack.c.bf16 %v1266, %v1266
        %v1299 = vpack.c.bf16 %v1267, %v1267
        %v1300 = vpack.c.bf16 %v1268, %v1268
        %v1301 = vpack.c.bf16 %v1269, %v1269
        %v1302 = vpack.c.bf16 %v1270, %v1270
        %v1303 = vpack.c.bf16 %v1271, %v1271
        %v1304 = vpack.c.bf16 %v1272, %v1272
        %v1305 = vpack.c.bf16 %v1273, %v1273
        %v1306 = vpack.c.bf16 %v1274, %v1274
        %v1307 = vpack.c.bf16 %v1275, %v1275
        %v1308 = vpack.c.bf16 %v1276, %v1276
        %v1309 = vpack.c.bf16 %v1277, %v1277
        %v1310 = vpack.c.bf16 %v1278, %v1278
        %v1311 = vpack.c.bf16 %v1279, %v1279
        %v1312 = vpack.c.bf16 %v1280, %v1280
        %1313 = vst [vmem:[%s265] sm:$0xf] %v1281
        %1314 = vst [vmem:[%s265 + $0x4] sm:$0xf] %v1282
        %1315 = vst [vmem:[%s265 + $0x8] sm:$0xf] %v1283
        %1316 = vst [vmem:[%s265 + $0xc] sm:$0xf] %v1284
        %1317 = vst [vmem:[%s265 + $0x10] sm:$0xf] %v1285
        %1318 = vst [vmem:[%s265 + $0x14] sm:$0xf] %v1286
        %1319 = vst [vmem:[%s265 + $0x18] sm:$0xf] %v1287
        %1320 = vst [vmem:[%s265 + $0x1c] sm:$0xf] %v1288
        %1321 = vst [vmem:[%s265 + $0x20] sm:$0xf] %v1289
        %1322 = vst [vmem:[%s265 + $0x24] sm:$0xf] %v1290
        %1323 = vst [vmem:[%s265 + $0x28] sm:$0xf] %v1291
        %1324 = vst [vmem:[%s265 + $0x2c] sm:$0xf] %v1292
        %1325 = vst [vmem:[%s265 + $0x30] sm:$0xf] %v1293
        %1326 = vst [vmem:[%s265 + $0x34] sm:$0xf] %v1294
        %1327 = vst [vmem:[%s265 + $0x38] sm:$0xf] %v1295
        %1328 = vst [vmem:[%s265 + $0x3c] sm:$0xf] %v1296
        %1329 = vst [vmem:[%s265 + $0x40] sm:$0xf] %v1297
        %1330 = vst [vmem:[%s265 + $0x44] sm:$0xf] %v1298
        %1331 = vst [vmem:[%s265 + $0x48] sm:$0xf] %v1299
        %1332 = vst [vmem:[%s265 + $0x4c] sm:$0xf] %v1300
        %1333 = vst [vmem:[%s265 + $0x50] sm:$0xf] %v1301
        %1334 = vst [vmem:[%s265 + $0x54] sm:$0xf] %v1302
        %1335 = vst [vmem:[%s265 + $0x58] sm:$0xf] %v1303
        %1336 = vst [vmem:[%s265 + $0x5c] sm:$0xf] %v1304
        %1337 = vst [vmem:[%s265 + $0x60] sm:$0xf] %v1305
        %1338 = vst [vmem:[%s265 + $0x64] sm:$0xf] %v1306
        %1339 = vst [vmem:[%s265 + $0x68] sm:$0xf] %v1307
        %1340 = vst [vmem:[%s265 + $0x6c] sm:$0xf] %v1308
        %1341 = vst [vmem:[%s265 + $0x70] sm:$0xf] %v1309
        %1342 = vst [vmem:[%s265 + $0x74] sm:$0xf] %v1310
        %1343 = vst [vmem:[%s265 + $0x78] sm:$0xf] %v1311
        %1344 = vst [vmem:[%s265 + $0x7c] sm:$0xf] %v1312
      $region40: #{_lambda_.8} parent=31 // pred_fallthru
        _
      %s1345 = smul.u32 32, %s19
      %p1346 = scmp.lt.s32.totalorder %s1345, 63
      %s1347 = scalar_select %p1346, %s1345, 63
      %p1348 = scmp.lt.s32.totalorder %s20, 0
      %s1349 = scalar_select %p1348, %s20, 0
      %s1350 = sadd.s32 %s1349, %s1347
      %s1351 = smul.addr %s1350, 4
      %s1352 = scalar_lea.vmem %s3, %s1351
      // Predicated region
      $region41: #{_lambda_.8} parent=31 // pred_check
        %p1353 = pneg %p135
      $region42: #{_lambda_.8} parent=31 // pred_check_branch
        %1355 = sbr.rel (%p1353) target = $region44
      $region43: #{_lambda_.8} parent=31 // pred_region
        %s1356 = smul.u32 32, %s19
      $region44: #{_lambda_.8} parent=31 // pred_fallthru
        _
    $region32: #{_lambda_.8} parent=5 // pred_fallthru
      _
    %p1357 = scmp.le.s32.totalorder 2, %s9
    // Predicated region
    $region45: #{_lambda_.8} parent=5 // pred_check
      %p1358 = pneg %p1357
    $region46: #{_lambda_.8} parent=5 // pred_check_branch
      %1360 = sbr.rel (%p1358) target = $region48
    $region47: #{_lambda_.8} parent=5 // pred_region
      %s1361 = ssub.s32 %s9, 2
      // Predicated region
      $region49: #{_lambda_.8} parent=47 // pred_check
        %p1362 = pneg %p141
      $region50: #{_lambda_.8} parent=47 // pred_check_branch
        %1364 = sbr.rel (%p1362) target = $region52
      $region51: #{_lambda_.8} parent=47 // pred_region
        %s1365 = smul.u32 32, %s22
        %p1366 = scmp.lt.s32.totalorder %s1365, 63
        %s1367 = scalar_select %p1366, %s1365, 63
        %p1368 = scmp.lt.s32.totalorder %s23, 0
        %s1369 = scalar_select %p1368, %s23, 0
        %s1370 = sadd.s32 %s1369, %s1367
        %s1371 = smul.addr %s1370, 4
        %s1372 = scalar_lea.vmem %s3, %s1371
      $region52: #{_lambda_.8} parent=47 // pred_fallthru
        _
    $region48: #{_lambda_.8} parent=5 // pred_fallthru
      _
  $region6: #{_lambda_.8} parent=0 // loop_footer
    %s13 = sadd.s32 1, %s9
  $region7: #{_lambda_.8} parent=0 // loop_footer_branch
    %8 = sbr.rel target = $region3
  $region8: #{_lambda_.8} parent=0 // loop_exit
    _

// kernel: _lambda_.10
$region0: #{_lambda_.10}
  #allocation0 [shape = 'u32[]', space=smem, size = 0x4, offset = 0x4, fixed_abs, tag = 'smem constant byte address 0x4 - core index']
  #allocation1 [shape = 'u32[72,128]{1,0:T(1,128)}', space=vmem, size = 0x9000, scoped, tag = 'internal scratch']
  #allocation2 [shape = 'f32[128,128]{1,0:T(8,128)}', space=vmem, size = 0x10000, scoped, tag = 'scratch operand']
  %s0 = inlined_call_operand.vmem [shape: bf16[128,2048], index: 0, kind: input, shape index: {}]
  %s1 = inlined_call_operand.vmem [shape: bf16[2048,256], index: 1, kind: input, shape index: {}]
  %s2 = inlined_call_operand.vmem [shape: f32[1,256], index: 2, kind: input, shape index: {}]
  %s3 = inlined_call_operand.vmem [shape: bf16[128,256], index: 3, kind: output, shape index: {}]
  %s4 = sld [smem:[#allocation0]]
  $region154: #{_lambda_.10} parent=0
    _
  %s6 = ssub.s32 1, %s4
  %s7 = scalar_select 0, %s6, %s4
  $region1: #{_lambda_.10} parent=0
    #allocation3 [shape = 'u8[262144]{0}', space=vmem, size = 0x40000, scoped, tag = 'input window, operand 0']
    #allocation4 [shape = 'u8[262144]{0}', space=vmem, size = 0x40000, scoped, tag = 'input window, operand 1']
    #allocation5 [shape = 'u8[65536]{0}', space=vmem, size = 0x10000, scoped, tag = 'output window, operand 0']
    loop: start=0, step=1, limit=10
    $region2: #{_lambda_.10} parent=1 // loop_pre_header
      _
    $region3: #{_lambda_.10} parent=1 // loop_header
      %s9 = sphi 0, %s13
      %p10 = scmp.ge.s32.totalorder %s9, 10
      %s16 = sphi 0, %s35
      %s17 = sphi 0, %s31
      %s18 = sphi 0, %s27
      %s19 = sphi 0, %s16
      %s20 = sphi 0, %s17
      %s21 = sphi 0, %s18
      %s22 = sphi 0, %s19
      %s23 = sphi 0, %s20
      %s24 = sphi 0, %s21
      %s40 = sphi 0, %s42
      %s43 = sphi 0, %s40
      %s44 = sphi 0, %s43
      %s60 = sphi 0, %s44
      %s68 = sphi 0, %s70
      %s71 = sphi 0, %s68
      %s72 = sphi 0, %s71
      %s88 = sphi 0, %s72
      %s94 = sphi 0, %s96
      %s97 = sphi 0, %s94
      %s98 = sphi 0, %s97
      %s114 = sphi 0, %s98
      %s122 = sphi 0, %s124
      %s125 = sphi 0, %s122
      %s126 = sphi 0, %s125
      %s142 = sphi 0, %s126
    $region4: #{_lambda_.10} parent=1 // loop_header_branch
      %12 = sbr.rel (%p10) target = $region8
    $region5: #{_lambda_.10} parent=1 // loop_body
      %s14 = ssub.s32 %s9, 1
      %s15 = ssub.s32 %s9, 2
      %s25 = sadd.s32 1, %s18
      %p26 = scmp.ge.s32.totalorder %s25, 4
      %s27 = scalar_select %p26, 0, %s25
      %s28 = sadd.s32 1, %s17
      %s29 = scalar_select %p26, %s28, %s17
      %p30 = scmp.ge.s32.totalorder %s29, 2
      %s31 = scalar_select %p30, 0, %s29
      %s32 = sadd.s32 1, %s16
      %s33 = scalar_select %p30, %s32, %s16
      %p34 = scmp.ge.s32.totalorder %s33, 1
      %s35 = scalar_select %p34, 0, %s33
      %s36 = ssub.s32 %s16, %s35
      %s37 = ssub.s32 %s18, %s27
      %s38 = sor.u32 %s36, %s37
      %p39 = scmp.eq.s32.totalorder %s38, 0
      %s41 = sadd.s32 %s40, 1
      %s42 = scalar_select %p39, %s40, %s41
      %p45 = pneg %p39
      %p46 = scmp.eq.s32.totalorder %s9, 7
      %p47 = por %p45, %p46
      %p48 = scmp.ne.s32.totalorder %s40, %s43
      %p49 = scmp.eq.s32.totalorder %s9, 0
      %p50 = por %p48, %p49
      %p51 = scmp.ne.s32.totalorder %s40, %s43
      %p52 = scmp.eq.s32.totalorder %s14, 7
      %p53 = por %p51, %p52
      %p54 = scmp.ne.s32.totalorder %s43, %s44
      %p55 = scmp.eq.s32.totalorder %s14, 0
      %p56 = por %p54, %p55
      %p57 = scmp.ne.s32.totalorder %s43, %s44
      %p58 = scmp.eq.s32.totalorder %s15, 7
      %p59 = por %p57, %p58
      %p61 = scmp.ne.s32.totalorder %s44, %s60
      %p62 = scmp.eq.s32.totalorder %s15, 0
      %p63 = por %p61, %p62
      %s64 = ssub.s32 %s18, %s27
      %s65 = ssub.s32 %s17, %s31
      %s66 = sor.u32 %s64, %s65
      %p67 = scmp.eq.s32.totalorder %s66, 0
      %s69 = sadd.s32 %s68, 1
      %s70 = scalar_select %p67, %s68, %s69
      %p73 = pneg %p67
      %p74 = scmp.eq.s32.totalorder %s9, 7
      %p75 = por %p73, %p74
      %p76 = scmp.ne.s32.totalorder %s68, %s71
      %p77 = scmp.eq.s32.totalorder %s9, 0
      %p78 = por %p76, %p77
      %p79 = scmp.ne.s32.totalorder %s68, %s71
      %p80 = scmp.eq.s32.totalorder %s14, 7
      %p81 = por %p79, %p80
      %p82 = scmp.ne.s32.totalorder %s71, %s72
      %p83 = scmp.eq.s32.totalorder %s14, 0
      %p84 = por %p82, %p83
      %p85 = scmp.ne.s32.totalorder %s71, %s72
      %p86 = scmp.eq.s32.totalorder %s15, 7
      %p87 = por %p85, %p86
      %p89 = scmp.ne.s32.totalorder %s72, %s88
      %p90 = scmp.eq.s32.totalorder %s15, 0
      %p91 = por %p89, %p90
      %s92 = ssub.s32 %s17, %s31
      %p93 = scmp.eq.s32.totalorder %s92, 0
      %s95 = sadd.s32 %s94, 1
      %s96 = scalar_select %p93, %s94, %s95
      %p99 = pneg %p93
      %p100 = scmp.eq.s32.totalorder %s9, 7
      %p101 = por %p99, %p100
      %p102 = scmp.ne.s32.totalorder %s94, %s97
      %p103 = scmp.eq.s32.totalorder %s9, 0
      %p104 = por %p102, %p103
      %p105 = scmp.ne.s32.totalorder %s94, %s97
      %p106 = scmp.eq.s32.totalorder %s14, 7
      %p107 = por %p105, %p106
      %p108 = scmp.ne.s32.totalorder %s97, %s98
      %p109 = scmp.eq.s32.totalorder %s14, 0
      %p110 = por %p108, %p109
      %p111 = scmp.ne.s32.totalorder %s97, %s98
      %p112 = scmp.eq.s32.totalorder %s15, 7
      %p113 = por %p111, %p112
      %p115 = scmp.ne.s32.totalorder %s98, %s114
      %p116 = scmp.eq.s32.totalorder %s15, 0
      %p117 = por %p115, %p116
      %s118 = ssub.s32 %s16, %s35
      %s119 = ssub.s32 %s17, %s31
      %s120 = sor.u32 %s118, %s119
      %p121 = scmp.eq.s32.totalorder %s120, 0
      %s123 = sadd.s32 %s122, 1
      %s124 = scalar_select %p121, %s122, %s123
      %p127 = pneg %p121
      %p128 = scmp.eq.s32.totalorder %s9, 7
      %p129 = por %p127, %p128
      %p130 = scmp.ne.s32.totalorder %s122, %s125
      %p131 = scmp.eq.s32.totalorder %s9, 0
      %p132 = por %p130, %p131
      %p133 = scmp.ne.s32.totalorder %s122, %s125
      %p134 = scmp.eq.s32.totalorder %s14, 7
      %p135 = por %p133, %p134
      %p136 = scmp.ne.s32.totalorder %s125, %s126
      %p137 = scmp.eq.s32.totalorder %s14, 0
      %p138 = por %p136, %p137
      %p139 = scmp.ne.s32.totalorder %s125, %s126
      %p140 = scmp.eq.s32.totalorder %s15, 7
      %p141 = por %p139, %p140
      %p143 = scmp.ne.s32.totalorder %s126, %s142
      %p144 = scmp.eq.s32.totalorder %s15, 0
      %p145 = por %p143, %p144
      %p146 = scmp.le.s32.totalorder 1, %s9
      %p147 = scmp.lt.s32.totalorder %s9, 9
      %p148 = pnand %p146, %p147
      %p149 = pneg %p148
      // Predicated region
      $region9: #{_lambda_.10} parent=5 // pred_check
        _
      $region10: #{_lambda_.10} parent=5 // pred_check_branch
        %151 = sbr.rel (%p148) target = $region12
      $region11: #{_lambda_.10} parent=5 // pred_region
        %s152 = ssub.s32 %s9, 1
      $region12: #{_lambda_.10} parent=5 // pred_fallthru
        _
      %p153 = scmp.lt.s32.totalorder %s9, 8
      // Predicated region
      $region13: #{_lambda_.10} parent=5 // pred_check
        %p154 = pneg %p153
      $region14: #{_lambda_.10} parent=5 // pred_check_branch
        %156 = sbr.rel (%p154) target = $region16
      $region15: #{_lambda_.10} parent=5 // pred_region
        // Predicated region
        $region17: #{_lambda_.10} parent=15 // pred_check
          %p157 = pneg %p50
        $region18: #{_lambda_.10} parent=15 // pred_check_branch
          %159 = sbr.rel (%p157) target = $region20
        $region19: #{_lambda_.10} parent=15 // pred_region
          %s160 = sand.u32 %s40, 1
          %s161 = sand.u32 %s40, 1
          %s162 = smul.addr %s161, 256
          %s163 = scalar_lea.vmem [#allocation3], %s162
          %s164 = smul.u32 16, %s16
          %s165 = smul.u32 4, %s18
          %s166 = smul.addr %s164, 16
          %s167 = sadd.s32 %s165, %s166
          %s168 = smul.addr %s167, 4
          %s169 = scalar_lea.vmem %s0, %s168
          // Predicated region
          $region21: #{_lambda_.10} parent=19 // pred_check
            _
          $region22: #{_lambda_.10} parent=19 // pred_check_branch
            %171 = sbr.rel (0) target = $region24
          $region23: #{_lambda_.10} parent=19 // pred_region
            // Predicated region
            $region25: #{_lambda_.10} parent=23 // pred_check
              _
            $region26: #{_lambda_.10} parent=23 // pred_check_branch
              %173 = sbr.rel (0) target = $region28
            $region27: #{_lambda_.10} parent=23 // pred_region
              loop: start=0, step=1, limit=1
              $region29: #{_lambda_.10} parent=27 // loop_pre_header
                _
              $region30: #{_lambda_.10} parent=27 // loop_header
                %s175 = sphi 0, %s179
                %p176 = scmp.ge.s32.totalorder %s175, 1
                %s180 = sphi %s169, %s169
                %s181 = sphi %s163, %s163
              $region31: #{_lambda_.10} parent=27 // loop_header_branch
                %178 = sbr.rel (%p176) target = $region35
              $region32: #{_lambda_.10} parent=27 // loop_body
                %v182 = vld [vmem:[%s180] sm:$0xff]
                %183 = vst [vmem:[%s181] sm:$0xff] %v182
                %v184 = vld [vmem:[%s180 + $0x8] sm:$0xff]
                %185 = vst [vmem:[%s181 + $0x8] sm:$0xff] %v184
                %v186 = vld [vmem:[%s180 + $0x40] sm:$0xff]
                %187 = vst [vmem:[%s181 + $0x10] sm:$0xff] %v186
                %v188 = vld [vmem:[%s180 + $0x48] sm:$0xff]
                %189 = vst [vmem:[%s181 + $0x18] sm:$0xff] %v188
                %v190 = vld [vmem:[%s180 + $0x80] sm:$0xff]
                %191 = vst [vmem:[%s181 + $0x20] sm:$0xff] %v190
                %v192 = vld [vmem:[%s180 + $0x88] sm:$0xff]
                %193 = vst [vmem:[%s181 + $0x28] sm:$0xff] %v192
                %v194 = vld [vmem:[%s180 + $0xc0] sm:$0xff]
                %195 = vst [vmem:[%s181 + $0x30] sm:$0xff] %v194
                %v196 = vld [vmem:[%s180 + $0xc8] sm:$0xff]
                %197 = vst [vmem:[%s181 + $0x38] sm:$0xff] %v196
                %v198 = vld [vmem:[%s180 + $0x100] sm:$0xff]
                %199 = vst [vmem:[%s181 + $0x40] sm:$0xff] %v198
                %v200 = vld [vmem:[%s180 + $0x108] sm:$0xff]
                %201 = vst [vmem:[%s181 + $0x48] sm:$0xff] %v200
                %v202 = vld [vmem:[%s180 + $0x140] sm:$0xff]
                %203 = vst [vmem:[%s181 + $0x50] sm:$0xff] %v202
                %v204 = vld [vmem:[%s180 + $0x148] sm:$0xff]
                %205 = vst [vmem:[%s181 + $0x58] sm:$0xff] %v204
                %v206 = vld [vmem:[%s180 + $0x180] sm:$0xff]
                %207 = vst [vmem:[%s181 + $0x60] sm:$0xff] %v206
                %v208 = vld [vmem:[%s180 + $0x188] sm:$0xff]
                %209 = vst [vmem:[%s181 + $0x68] sm:$0xff] %v208
                %v210 = vld [vmem:[%s180 + $0x1c0] sm:$0xff]
                %211 = vst [vmem:[%s181 + $0x70] sm:$0xff] %v210
                %v212 = vld [vmem:[%s180 + $0x1c8] sm:$0xff]
                %213 = vst [vmem:[%s181 + $0x78] sm:$0xff] %v212
                %v214 = vld [vmem:[%s180 + $0x200] sm:$0xff]
                %215 = vst [vmem:[%s181 + $0x80] sm:$0xff] %v214
                %v216 = vld [vmem:[%s180 + $0x208] sm:$0xff]
                %217 = vst [vmem:[%s181 + $0x88] sm:$0xff] %v216
                %v218 = vld [vmem:[%s180 + $0x240] sm:$0xff]
                %219 = vst [vmem:[%s181 + $0x90] sm:$0xff] %v218
                %v220 = vld [vmem:[%s180 + $0x248] sm:$0xff]
                %221 = vst [vmem:[%s181 + $0x98] sm:$0xff] %v220
                %v222 = vld [vmem:[%s180 + $0x280] sm:$0xff]
                %223 = vst [vmem:[%s181 + $0xa0] sm:$0xff] %v222
                %v224 = vld [vmem:[%s180 + $0x288] sm:$0xff]
                %225 = vst [vmem:[%s181 + $0xa8] sm:$0xff] %v224
                %v226 = vld [vmem:[%s180 + $0x2c0] sm:$0xff]
                %227 = vst [vmem:[%s181 + $0xb0] sm:$0xff] %v226
                %v228 = vld [vmem:[%s180 + $0x2c8] sm:$0xff]
                %229 = vst [vmem:[%s181 + $0xb8] sm:$0xff] %v228
                %v230 = vld [vmem:[%s180 + $0x300] sm:$0xff]
                %231 = vst [vmem:[%s181 + $0xc0] sm:$0xff] %v230
                %v232 = vld [vmem:[%s180 + $0x308] sm:$0xff]
                %233 = vst [vmem:[%s181 + $0xc8] sm:$0xff] %v232
                %v234 = vld [vmem:[%s180 + $0x340] sm:$0xff]
                %235 = vst [vmem:[%s181 + $0xd0] sm:$0xff] %v234
                %v236 = vld [vmem:[%s180 + $0x348] sm:$0xff]
                %237 = vst [vmem:[%s181 + $0xd8] sm:$0xff] %v236
                %v238 = vld [vmem:[%s180 + $0x380] sm:$0xff]
                %239 = vst [vmem:[%s181 + $0xe0] sm:$0xff] %v238
                %v240 = vld [vmem:[%s180 + $0x388] sm:$0xff]
                %241 = vst [vmem:[%s181 + $0xe8] sm:$0xff] %v240
                %v242 = vld [vmem:[%s180 + $0x3c0] sm:$0xff]
                %243 = vst [vmem:[%s181 + $0xf0] sm:$0xff] %v242
                %v244 = vld [vmem:[%s180 + $0x3c8] sm:$0xff]
                %245 = vst [vmem:[%s181 + $0xf8] sm:$0xff] %v244
              $region33: #{_lambda_.10} parent=27 // loop_footer
                %s179 = sadd.s32 1, %s175
              $region34: #{_lambda_.10} parent=27 // loop_footer_branch
                %174 = sbr.rel target = $region30
              $region35: #{_lambda_.10} parent=27 // loop_exit
                _
            $region28: #{_lambda_.10} parent=23 // pred_fallthru
              _
            // Predicated region
            $region36: #{_lambda_.10} parent=23 // pred_check
              _
            $region37: #{_lambda_.10} parent=23 // pred_check_branch
              %247 = sbr.rel target = $region39
            $region38: #{_lambda_.10} parent=23 // pred_region
              _
            $region39: #{_lambda_.10} parent=23 // pred_fallthru
              _
          $region24: #{_lambda_.10} parent=19 // pred_fallthru
            _
          %248 = vnop
        $region20: #{_lambda_.10} parent=15 // pred_fallthru
          _
        // Predicated region
        $region40: #{_lambda_.10} parent=15 // pred_check
          %p249 = pneg %p78
        $region41: #{_lambda_.10} parent=15 // pred_check_branch
          %251 = sbr.rel (%p249) target = $region43
        $region42: #{_lambda_.10} parent=15 // pred_region
          %s252 = sand.u32 %s68, 1
          %s253 = sand.u32 %s68, 1
          %s254 = smul.addr %s253, 256
          %s255 = scalar_lea.vmem [#allocation4], %s254
          %s256 = smul.u32 64, %s18
          %s257 = smul.addr %s256, 2
          %s258 = sadd.s32 %s17, %s257
          %s259 = smul.addr %s258, 4
          %s260 = scalar_lea.vmem %s1, %s259
          // Predicated region
          $region44: #{_lambda_.10} parent=42 // pred_check
            _
          $region45: #{_lambda_.10} parent=42 // pred_check_branch
            %262 = sbr.rel (0) target = $region47
          $region46: #{_lambda_.10} parent=42 // pred_region
            // Predicated region
            $region48: #{_lambda_.10} parent=46 // pred_check
              _
            $region49: #{_lambda_.10} parent=46 // pred_check_branch
              %264 = sbr.rel target = $region51
            $region50: #{_lambda_.10} parent=46 // pred_region
              // Predicated region
              $region63: #{_lambda_.10} parent=50 // pred_check
                _
              $region64: #{_lambda_.10} parent=50 // pred_check_branch
                %406 = sbr.rel (0) target = $region66
              $region65: #{_lambda_.10} parent=50 // pred_region
                loop: start=0, step=1, limit=1
                $region67: #{_lambda_.10} parent=65 // loop_pre_header
                  _
                $region68: #{_lambda_.10} parent=65 // loop_header
                  %s408 = sphi 0, %s412
                  %p409 = scmp.ge.s32.totalorder %s408, 1
                  %s413 = sphi %s260, %s260
                  %s414 = sphi %s255, %s255
                $region69: #{_lambda_.10} parent=65 // loop_header_branch
                  %411 = sbr.rel (%p409) target = $region73
                $region70: #{_lambda_.10} parent=65 // loop_body
                  _
                $region71: #{_lambda_.10} parent=65 // loop_footer
                  %s412 = sadd.s32 1, %s408
                $region72: #{_lambda_.10} parent=65 // loop_footer_branch
                  %407 = sbr.rel target = $region68
                $region73: #{_lambda_.10} parent=65 // loop_exit
                  _
                %s416 = ssub.s32 16, 1
                loop: start=0, step=1, limit=1
                $region74: #{_lambda_.10} parent=65 // loop_pre_header
                  _
                $region75: #{_lambda_.10} parent=65 // loop_header
                  %s418 = sphi 0, %s422
                  %p419 = scmp.ge.s32.totalorder %s418, 1
                  %s423 = sphi %s260, %s260
                  %s424 = sphi %s255, %s255
                $region76: #{_lambda_.10} parent=65 // loop_header_branch
                  %421 = sbr.rel (%p419) target = $region80
                $region77: #{_lambda_.10} parent=65 // loop_body
                  %v425 = vld [vmem:[%s423] sm:%s416]
                  %426 = vst [vmem:[%s424] sm:%s416] %v425
                  %v427 = vld [vmem:[%s423 + $0x8] sm:%s416]
                  %428 = vst [vmem:[%s424 + $0x4] sm:%s416] %v427
                  %v429 = vld [vmem:[%s423 + $0x10] sm:%s416]
                  %430 = vst [vmem:[%s424 + $0x8] sm:%s416] %v429
                  %v431 = vld [vmem:[%s423 + $0x18] sm:%s416]
                  %432 = vst [vmem:[%s424 + $0xc] sm:%s416] %v431
                  %v433 = vld [vmem:[%s423 + $0x20] sm:%s416]
                  %434 = vst [vmem:[%s424 + $0x10] sm:%s416] %v433
                  %v435 = vld [vmem:[%s423 + $0x28] sm:%s416]
                  %436 = vst [vmem:[%s424 + $0x14] sm:%s416] %v435
                  %v437 = vld [vmem:[%s423 + $0x30] sm:%s416]
                  %438 = vst [vmem:[%s424 + $0x18] sm:%s416] %v437
                  %v439 = vld [vmem:[%s423 + $0x38] sm:%s416]
                  %440 = vst [vmem:[%s424 + $0x1c] sm:%s416] %v439
                  %v441 = vld [vmem:[%s423 + $0x40] sm:%s416]
                  %442 = vst [vmem:[%s424 + $0x20] sm:%s416] %v441
                  %v443 = vld [vmem:[%s423 + $0x48] sm:%s416]
                  %444 = vst [vmem:[%s424 + $0x24] sm:%s416] %v443
                  %v445 = vld [vmem:[%s423 + $0x50] sm:%s416]
                  %446 = vst [vmem:[%s424 + $0x28] sm:%s416] %v445
                  %v447 = vld [vmem:[%s423 + $0x58] sm:%s416]
                  %448 = vst [vmem:[%s424 + $0x2c] sm:%s416] %v447
                  %v449 = vld [vmem:[%s423 + $0x60] sm:%s416]
                  %450 = vst [vmem:[%s424 + $0x30] sm:%s416] %v449
                  %v451 = vld [vmem:[%s423 + $0x68] sm:%s416]
                  %452 = vst [vmem:[%s424 + $0x34] sm:%s416] %v451
                  %v453 = vld [vmem:[%s423 + $0x70] sm:%s416]
                  %454 = vst [vmem:[%s424 + $0x38] sm:%s416] %v453
                  %v455 = vld [vmem:[%s423 + $0x78] sm:%s416]
                  %456 = vst [vmem:[%s424 + $0x3c] sm:%s416] %v455
                  %v457 = vld [vmem:[%s423 + $0x80] sm:%s416]
                  %458 = vst [vmem:[%s424 + $0x40] sm:%s416] %v457
                  %v459 = vld [vmem:[%s423 + $0x88] sm:%s416]
                  %460 = vst [vmem:[%s424 + $0x44] sm:%s416] %v459
                  %v461 = vld [vmem:[%s423 + $0x90] sm:%s416]
                  %462 = vst [vmem:[%s424 + $0x48] sm:%s416] %v461
                  %v463 = vld [vmem:[%s423 + $0x98] sm:%s416]
                  %464 = vst [vmem:[%s424 + $0x4c] sm:%s416] %v463
                  %v465 = vld [vmem:[%s423 + $0xa0] sm:%s416]
                  %466 = vst [vmem:[%s424 + $0x50] sm:%s416] %v465
                  %v467 = vld [vmem:[%s423 + $0xa8] sm:%s416]
                  %468 = vst [vmem:[%s424 + $0x54] sm:%s416] %v467
                  %v469 = vld [vmem:[%s423 + $0xb0] sm:%s416]
                  %470 = vst [vmem:[%s424 + $0x58] sm:%s416] %v469
                  %v471 = vld [vmem:[%s423 + $0xb8] sm:%s416]
                  %472 = vst [vmem:[%s424 + $0x5c] sm:%s416] %v471
                  %v473 = vld [vmem:[%s423 + $0xc0] sm:%s416]
                  %474 = vst [vmem:[%s424 + $0x60] sm:%s416] %v473
                  %v475 = vld [vmem:[%s423 + $0xc8] sm:%s416]
                  %476 = vst [vmem:[%s424 + $0x64] sm:%s416] %v475
                  %v477 = vld [vmem:[%s423 + $0xd0] sm:%s416]
                  %478 = vst [vmem:[%s424 + $0x68] sm:%s416] %v477
                  %v479 = vld [vmem:[%s423 + $0xd8] sm:%s416]
                  %480 = vst [vmem:[%s424 + $0x6c] sm:%s416] %v479
                  %v481 = vld [vmem:[%s423 + $0xe0] sm:%s416]
                  %482 = vst [vmem:[%s424 + $0x70] sm:%s416] %v481
                  %v483 = vld [vmem:[%s423 + $0xe8] sm:%s416]
                  %484 = vst [vmem:[%s424 + $0x74] sm:%s416] %v483
                  %v485 = vld [vmem:[%s423 + $0xf0] sm:%s416]
                  %486 = vst [vmem:[%s424 + $0x78] sm:%s416] %v485
                  %v487 = vld [vmem:[%s423 + $0xf8] sm:%s416]
                  %488 = vst [vmem:[%s424 + $0x7c] sm:%s416] %v487
                  %v489 = vld [vmem:[%s423 + $0x100] sm:%s416]
                  %490 = vst [vmem:[%s424 + $0x80] sm:%s416] %v489
                  %v491 = vld [vmem:[%s423 + $0x108] sm:%s416]
                  %492 = vst [vmem:[%s424 + $0x84] sm:%s416] %v491
                  %v493 = vld [vmem:[%s423 + $0x110] sm:%s416]
                  %494 = vst [vmem:[%s424 + $0x88] sm:%s416] %v493
                  %v495 = vld [vmem:[%s423 + $0x118] sm:%s416]
                  %496 = vst [vmem:[%s424 + $0x8c] sm:%s416] %v495
                  %v497 = vld [vmem:[%s423 + $0x120] sm:%s416]
                  %498 = vst [vmem:[%s424 + $0x90] sm:%s416] %v497
                  %v499 = vld [vmem:[%s423 + $0x128] sm:%s416]
                  %500 = vst [vmem:[%s424 + $0x94] sm:%s416] %v499
                  %v501 = vld [vmem:[%s423 + $0x130] sm:%s416]
                  %502 = vst [vmem:[%s424 + $0x98] sm:%s416] %v501
                  %v503 = vld [vmem:[%s423 + $0x138] sm:%s416]
                  %504 = vst [vmem:[%s424 + $0x9c] sm:%s416] %v503
                  %v505 = vld [vmem:[%s423 + $0x140] sm:%s416]
                  %506 = vst [vmem:[%s424 + $0xa0] sm:%s416] %v505
                  %v507 = vld [vmem:[%s423 + $0x148] sm:%s416]
                  %508 = vst [vmem:[%s424 + $0xa4] sm:%s416] %v507
                  %v509 = vld [vmem:[%s423 + $0x150] sm:%s416]
                  %510 = vst [vmem:[%s424 + $0xa8] sm:%s416] %v509
                  %v511 = vld [vmem:[%s423 + $0x158] sm:%s416]
                  %512 = vst [vmem:[%s424 + $0xac] sm:%s416] %v511
                  %v513 = vld [vmem:[%s423 + $0x160] sm:%s416]
                  %514 = vst [vmem:[%s424 + $0xb0] sm:%s416] %v513
                  %v515 = vld [vmem:[%s423 + $0x168] sm:%s416]
                  %516 = vst [vmem:[%s424 + $0xb4] sm:%s416] %v515
                  %v517 = vld [vmem:[%s423 + $0x170] sm:%s416]
                  %518 = vst [vmem:[%s424 + $0xb8] sm:%s416] %v517
                  %v519 = vld [vmem:[%s423 + $0x178] sm:%s416]
                  %520 = vst [vmem:[%s424 + $0xbc] sm:%s416] %v519
                  %v521 = vld [vmem:[%s423 + $0x180] sm:%s416]
                  %522 = vst [vmem:[%s424 + $0xc0] sm:%s416] %v521
                  %v523 = vld [vmem:[%s423 + $0x188] sm:%s416]
                  %524 = vst [vmem:[%s424 + $0xc4] sm:%s416] %v523
                  %v525 = vld [vmem:[%s423 + $0x190] sm:%s416]
                  %526 = vst [vmem:[%s424 + $0xc8] sm:%s416] %v525
                  %v527 = vld [vmem:[%s423 + $0x198] sm:%s416]
                  %528 = vst [vmem:[%s424 + $0xcc] sm:%s416] %v527
                  %v529 = vld [vmem:[%s423 + $0x1a0] sm:%s416]
                  %530 = vst [vmem:[%s424 + $0xd0] sm:%s416] %v529
                  %v531 = vld [vmem:[%s423 + $0x1a8] sm:%s416]
                  %532 = vst [vmem:[%s424 + $0xd4] sm:%s416] %v531
                  %v533 = vld [vmem:[%s423 + $0x1b0] sm:%s416]
                  %534 = vst [vmem:[%s424 + $0xd8] sm:%s416] %v533
                  %v535 = vld [vmem:[%s423 + $0x1b8] sm:%s416]
                  %536 = vst [vmem:[%s424 + $0xdc] sm:%s416] %v535
                  %v537 = vld [vmem:[%s423 + $0x1c0] sm:%s416]
                  %538 = vst [vmem:[%s424 + $0xe0] sm:%s416] %v537
                  %v539 = vld [vmem:[%s423 + $0x1c8] sm:%s416]
                  %540 = vst [vmem:[%s424 + $0xe4] sm:%s416] %v539
                  %v541 = vld [vmem:[%s423 + $0x1d0] sm:%s416]
                  %542 = vst [vmem:[%s424 + $0xe8] sm:%s416] %v541
                  %v543 = vld [vmem:[%s423 + $0x1d8] sm:%s416]
                  %544 = vst [vmem:[%s424 + $0xec] sm:%s416] %v543
                  %v545 = vld [vmem:[%s423 + $0x1e0] sm:%s416]
                  %546 = vst [vmem:[%s424 + $0xf0] sm:%s416] %v545
                  %v547 = vld [vmem:[%s423 + $0x1e8] sm:%s416]
                  %548 = vst [vmem:[%s424 + $0xf4] sm:%s416] %v547
                  %v549 = vld [vmem:[%s423 + $0x1f0] sm:%s416]
                  %550 = vst [vmem:[%s424 + $0xf8] sm:%s416] %v549
                  %v551 = vld [vmem:[%s423 + $0x1f8] sm:%s416]
                  %552 = vst [vmem:[%s424 + $0xfc] sm:%s416] %v551
                $region78: #{_lambda_.10} parent=65 // loop_footer
                  %s422 = sadd.s32 1, %s418
                $region79: #{_lambda_.10} parent=65 // loop_footer_branch
                  %417 = sbr.rel target = $region75
                $region80: #{_lambda_.10} parent=65 // loop_exit
                  _
              $region66: #{_lambda_.10} parent=50 // pred_fallthru
                _
            $region51: #{_lambda_.10} parent=46 // pred_fallthru
              _
            // Predicated region
            $region52: #{_lambda_.10} parent=46 // pred_check
              _
            $region53: #{_lambda_.10} parent=46 // pred_check_branch
              %266 = sbr.rel (0) target = $region55
            $region54: #{_lambda_.10} parent=46 // pred_region
              %s268 = ssub.s32 16, 1
              loop: start=0, step=1, limit=1
              $region56: #{_lambda_.10} parent=54 // loop_pre_header
                _
              $region57: #{_lambda_.10} parent=54 // loop_header
                %s270 = sphi 0, %s274
                %p271 = scmp.ge.s32.totalorder %s270, 1
                %s275 = sphi %s260, %s260
                %s276 = sphi %s255, %s255
              $region58: #{_lambda_.10} parent=54 // loop_header_branch
                %273 = sbr.rel (%p271) target = $region62
              $region59: #{_lambda_.10} parent=54 // loop_body
                %v277 = vld [vmem:[%s275] sm:%s268]
                %278 = vst [vmem:[%s276] sm:%s268] %v277
                %v279 = vld [vmem:[%s275 + $0x8] sm:%s268]
                %280 = vst [vmem:[%s276 + $0x4] sm:%s268] %v279
                %v281 = vld [vmem:[%s275 + $0x10] sm:%s268]
                %282 = vst [vmem:[%s276 + $0x8] sm:%s268] %v281
                %v283 = vld [vmem:[%s275 + $0x18] sm:%s268]
                %284 = vst [vmem:[%s276 + $0xc] sm:%s268] %v283
                %v285 = vld [vmem:[%s275 + $0x20] sm:%s268]
                %286 = vst [vmem:[%s276 + $0x10] sm:%s268] %v285
                %v287 = vld [vmem:[%s275 + $0x28] sm:%s268]
                %288 = vst [vmem:[%s276 + $0x14] sm:%s268] %v287
                %v289 = vld [vmem:[%s275 + $0x30] sm:%s268]
                %290 = vst [vmem:[%s276 + $0x18] sm:%s268] %v289
                %v291 = vld [vmem:[%s275 + $0x38] sm:%s268]
                %292 = vst [vmem:[%s276 + $0x1c] sm:%s268] %v291
                %v293 = vld [vmem:[%s275 + $0x40] sm:%s268]
                %294 = vst [vmem:[%s276 + $0x20] sm:%s268] %v293
                %v295 = vld [vmem:[%s275 + $0x48] sm:%s268]
                %296 = vst [vmem:[%s276 + $0x24] sm:%s268] %v295
                %v297 = vld [vmem:[%s275 + $0x50] sm:%s268]
                %298 = vst [vmem:[%s276 + $0x28] sm:%s268] %v297
                %v299 = vld [vmem:[%s275 + $0x58] sm:%s268]
                %300 = vst [vmem:[%s276 + $0x2c] sm:%s268] %v299
                %v301 = vld [vmem:[%s275 + $0x60] sm:%s268]
                %302 = vst [vmem:[%s276 + $0x30] sm:%s268] %v301
                %v303 = vld [vmem:[%s275 + $0x68] sm:%s268]
                %304 = vst [vmem:[%s276 + $0x34] sm:%s268] %v303
                %v305 = vld [vmem:[%s275 + $0x70] sm:%s268]
                %306 = vst [vmem:[%s276 + $0x38] sm:%s268] %v305
                %v307 = vld [vmem:[%s275 + $0x78] sm:%s268]
                %308 = vst [vmem:[%s276 + $0x3c] sm:%s268] %v307
                %v309 = vld [vmem:[%s275 + $0x80] sm:%s268]
                %310 = vst [vmem:[%s276 + $0x40] sm:%s268] %v309
                %v311 = vld [vmem:[%s275 + $0x88] sm:%s268]
                %312 = vst [vmem:[%s276 + $0x44] sm:%s268] %v311
                %v313 = vld [vmem:[%s275 + $0x90] sm:%s268]
                %314 = vst [vmem:[%s276 + $0x48] sm:%s268] %v313
                %v315 = vld [vmem:[%s275 + $0x98] sm:%s268]
                %316 = vst [vmem:[%s276 + $0x4c] sm:%s268] %v315
                %v317 = vld [vmem:[%s275 + $0xa0] sm:%s268]
                %318 = vst [vmem:[%s276 + $0x50] sm:%s268] %v317
                %v319 = vld [vmem:[%s275 + $0xa8] sm:%s268]
                %320 = vst [vmem:[%s276 + $0x54] sm:%s268] %v319
                %v321 = vld [vmem:[%s275 + $0xb0] sm:%s268]
                %322 = vst [vmem:[%s276 + $0x58] sm:%s268] %v321
                %v323 = vld [vmem:[%s275 + $0xb8] sm:%s268]
                %324 = vst [vmem:[%s276 + $0x5c] sm:%s268] %v323
                %v325 = vld [vmem:[%s275 + $0xc0] sm:%s268]
                %326 = vst [vmem:[%s276 + $0x60] sm:%s268] %v325
                %v327 = vld [vmem:[%s275 + $0xc8] sm:%s268]
                %328 = vst [vmem:[%s276 + $0x64] sm:%s268] %v327
                %v329 = vld [vmem:[%s275 + $0xd0] sm:%s268]
                %330 = vst [vmem:[%s276 + $0x68] sm:%s268] %v329
                %v331 = vld [vmem:[%s275 + $0xd8] sm:%s268]
                %332 = vst [vmem:[%s276 + $0x6c] sm:%s268] %v331
                %v333 = vld [vmem:[%s275 + $0xe0] sm:%s268]
                %334 = vst [vmem:[%s276 + $0x70] sm:%s268] %v333
                %v335 = vld [vmem:[%s275 + $0xe8] sm:%s268]
                %336 = vst [vmem:[%s276 + $0x74] sm:%s268] %v335
                %v337 = vld [vmem:[%s275 + $0xf0] sm:%s268]
                %338 = vst [vmem:[%s276 + $0x78] sm:%s268] %v337
                %v339 = vld [vmem:[%s275 + $0xf8] sm:%s268]
                %340 = vst [vmem:[%s276 + $0x7c] sm:%s268] %v339
                %v341 = vld [vmem:[%s275 + $0x100] sm:%s268]
                %342 = vst [vmem:[%s276 + $0x80] sm:%s268] %v341
                %v343 = vld [vmem:[%s275 + $0x108] sm:%s268]
                %344 = vst [vmem:[%s276 + $0x84] sm:%s268] %v343
                %v345 = vld [vmem:[%s275 + $0x110] sm:%s268]
                %346 = vst [vmem:[%s276 + $0x88] sm:%s268] %v345
                %v347 = vld [vmem:[%s275 + $0x118] sm:%s268]
                %348 = vst [vmem:[%s276 + $0x8c] sm:%s268] %v347
                %v349 = vld [vmem:[%s275 + $0x120] sm:%s268]
                %350 = vst [vmem:[%s276 + $0x90] sm:%s268] %v349
                %v351 = vld [vmem:[%s275 + $0x128] sm:%s268]
                %352 = vst [vmem:[%s276 + $0x94] sm:%s268] %v351
                %v353 = vld [vmem:[%s275 + $0x130] sm:%s268]
                %354 = vst [vmem:[%s276 + $0x98] sm:%s268] %v353
                %v355 = vld [vmem:[%s275 + $0x138] sm:%s268]
                %356 = vst [vmem:[%s276 + $0x9c] sm:%s268] %v355
                %v357 = vld [vmem:[%s275 + $0x140] sm:%s268]
                %358 = vst [vmem:[%s276 + $0xa0] sm:%s268] %v357
                %v359 = vld [vmem:[%s275 + $0x148] sm:%s268]
                %360 = vst [vmem:[%s276 + $0xa4] sm:%s268] %v359
                %v361 = vld [vmem:[%s275 + $0x150] sm:%s268]
                %362 = vst [vmem:[%s276 + $0xa8] sm:%s268] %v361
                %v363 = vld [vmem:[%s275 + $0x158] sm:%s268]
                %364 = vst [vmem:[%s276 + $0xac] sm:%s268] %v363
                %v365 = vld [vmem:[%s275 + $0x160] sm:%s268]
                %366 = vst [vmem:[%s276 + $0xb0] sm:%s268] %v365
                %v367 = vld [vmem:[%s275 + $0x168] sm:%s268]
                %368 = vst [vmem:[%s276 + $0xb4] sm:%s268] %v367
                %v369 = vld [vmem:[%s275 + $0x170] sm:%s268]
                %370 = vst [vmem:[%s276 + $0xb8] sm:%s268] %v369
                %v371 = vld [vmem:[%s275 + $0x178] sm:%s268]
                %372 = vst [vmem:[%s276 + $0xbc] sm:%s268] %v371
                %v373 = vld [vmem:[%s275 + $0x180] sm:%s268]
                %374 = vst [vmem:[%s276 + $0xc0] sm:%s268] %v373
                %v375 = vld [vmem:[%s275 + $0x188] sm:%s268]
                %376 = vst [vmem:[%s276 + $0xc4] sm:%s268] %v375
                %v377 = vld [vmem:[%s275 + $0x190] sm:%s268]
                %378 = vst [vmem:[%s276 + $0xc8] sm:%s268] %v377
                %v379 = vld [vmem:[%s275 + $0x198] sm:%s268]
                %380 = vst [vmem:[%s276 + $0xcc] sm:%s268] %v379
                %v381 = vld [vmem:[%s275 + $0x1a0] sm:%s268]
                %382 = vst [vmem:[%s276 + $0xd0] sm:%s268] %v381
                %v383 = vld [vmem:[%s275 + $0x1a8] sm:%s268]
                %384 = vst [vmem:[%s276 + $0xd4] sm:%s268] %v383
                %v385 = vld [vmem:[%s275 + $0x1b0] sm:%s268]
                %386 = vst [vmem:[%s276 + $0xd8] sm:%s268] %v385
                %v387 = vld [vmem:[%s275 + $0x1b8] sm:%s268]
                %388 = vst [vmem:[%s276 + $0xdc] sm:%s268] %v387
                %v389 = vld [vmem:[%s275 + $0x1c0] sm:%s268]
                %390 = vst [vmem:[%s276 + $0xe0] sm:%s268] %v389
                %v391 = vld [vmem:[%s275 + $0x1c8] sm:%s268]
                %392 = vst [vmem:[%s276 + $0xe4] sm:%s268] %v391
                %v393 = vld [vmem:[%s275 + $0x1d0] sm:%s268]
                %394 = vst [vmem:[%s276 + $0xe8] sm:%s268] %v393
                %v395 = vld [vmem:[%s275 + $0x1d8] sm:%s268]
                %396 = vst [vmem:[%s276 + $0xec] sm:%s268] %v395
                %v397 = vld [vmem:[%s275 + $0x1e0] sm:%s268]
                %398 = vst [vmem:[%s276 + $0xf0] sm:%s268] %v397
                %v399 = vld [vmem:[%s275 + $0x1e8] sm:%s268]
                %400 = vst [vmem:[%s276 + $0xf4] sm:%s268] %v399
                %v401 = vld [vmem:[%s275 + $0x1f0] sm:%s268]
                %402 = vst [vmem:[%s276 + $0xf8] sm:%s268] %v401
                %v403 = vld [vmem:[%s275 + $0x1f8] sm:%s268]
                %404 = vst [vmem:[%s276 + $0xfc] sm:%s268] %v403
              $region60: #{_lambda_.10} parent=54 // loop_footer
                %s274 = sadd.s32 1, %s270
              $region61: #{_lambda_.10} parent=54 // loop_footer_branch
                %269 = sbr.rel target = $region57
              $region62: #{_lambda_.10} parent=54 // loop_exit
                _
            $region55: #{_lambda_.10} parent=46 // pred_fallthru
              _
          $region47: #{_lambda_.10} parent=42 // pred_fallthru
            _
          %553 = vnop
        $region43: #{_lambda_.10} parent=15 // pred_fallthru
          _
        // Predicated region
        $region81: #{_lambda_.10} parent=15 // pred_check
          %p554 = pneg %p104
        $region82: #{_lambda_.10} parent=15 // pred_check_branch
          %556 = sbr.rel (%p554) target = $region84
        $region83: #{_lambda_.10} parent=15 // pred_region
          %p557 = scmp.lt.s32.totalorder %s17, 1
          %s558 = scalar_select %p557, %s17, 1
          %s559 = scalar_lea.vmem %s2, %s558
        $region84: #{_lambda_.10} parent=15 // pred_fallthru
          _
      $region16: #{_lambda_.10} parent=5 // pred_fallthru
        _
      %p560 = scmp.le.s32.totalorder 1, %s9
      %p561 = scmp.lt.s32.totalorder %s9, 9
      %p562 = pnand %p560, %p561
      %p563 = pneg %p562
      // Predicated region
      $region85: #{_lambda_.10} parent=5 // pred_check
        _
      $region86: #{_lambda_.10} parent=5 // pred_check_branch
        %565 = sbr.rel (%p562) target = $region88
      $region87: #{_lambda_.10} parent=5 // pred_region
        %s566 = ssub.s32 %s9, 1
        %s567 = sand.u32 %s43, 1
        %s568 = sand.u32 %s43, 1
        %s569 = smul.addr %s568, 256
        %s570 = scalar_lea.vmem [#allocation3], %s569
        // Predicated region
        $region89: #{_lambda_.10} parent=87 // pred_check
          %p571 = pneg %p56
        $region90: #{_lambda_.10} parent=87 // pred_check_branch
          %573 = sbr.rel (%p571) target = $region92
        $region91: #{_lambda_.10} parent=87 // pred_region
          _
        $region92: #{_lambda_.10} parent=87 // pred_fallthru
          _
        %s574 = sand.u32 %s71, 1
        %s575 = sand.u32 %s71, 1
        %s576 = smul.addr %s575, 256
        %s577 = scalar_lea.vmem [#allocation4], %s576
        // Predicated region
        $region93: #{_lambda_.10} parent=87 // pred_check
          %p578 = pneg %p84
        $region94: #{_lambda_.10} parent=87 // pred_check_branch
          %580 = sbr.rel (%p578) target = $region96
        $region95: #{_lambda_.10} parent=87 // pred_region
          _
        $region96: #{_lambda_.10} parent=87 // pred_fallthru
          _
        %s581 = sand.u32 %s43, 1
        %s582 = sand.u32 %s43, 1
        %s583 = smul.addr %s582, 256
        %s584 = scalar_lea.vmem [#allocation3], %s583
        %p585 = pneg %p56
        %p586 = pneg %p53
        %s587 = sand.u32 %s71, 1
        %s588 = sand.u32 %s71, 1
        %s589 = smul.addr %s588, 256
        %s590 = scalar_lea.vmem [#allocation4], %s589
        %p591 = pneg %p84
        %p592 = pneg %p81
        %p593 = scmp.lt.s32.totalorder %s20, 1
        %s594 = scalar_select %p593, %s20, 1
        %s595 = scalar_lea.vmem %s2, %s594
        %p596 = pneg %p110
        %p597 = pneg %p107
        %p598 = pneg %p138
        %p599 = pneg %p135
        %s600 = sand.u32 %s125, 1
        %s601 = sand.u32 %s125, 1
        %s602 = smul.addr %s601, 64
        %s603 = scalar_lea.vmem [#allocation5], %s602
        %s604 = smul.u32 16, %s19
        %s605 = smul.u32 4, %s21
        %s606 = smul.u32 64, %s21
        %p607 = scmp.lt.s32.totalorder %s20, 1
        %s608 = scalar_select %p607, %s20, 1
        %s609 = scalar_lea.vmem %s2, %s608
        %s610 = smul.u32 16, %s19
        %p611 = scmp.eq.s32.totalorder %s21, 0
        // Predicated region
        $region97: #{_lambda_.10} parent=87 // pred_check
          %p612 = pneg %p611
        $region98: #{_lambda_.10} parent=87 // pred_check_branch
          %614 = sbr.rel (%p612) target = $region100
        $region99: #{_lambda_.10} parent=87 // pred_region
          %615 = vst [vmem:[#allocation2] sm:$0xff] 0.0
          %616 = vst [vmem:[#allocation2 + $0x8] sm:$0xff] 0.0
          %617 = vst [vmem:[#allocation2 + $0x10] sm:$0xff] 0.0
          %618 = vst [vmem:[#allocation2 + $0x18] sm:$0xff] 0.0
          %619 = vst [vmem:[#allocation2 + $0x20] sm:$0xff] 0.0
          %620 = vst [vmem:[#allocation2 + $0x28] sm:$0xff] 0.0
          %621 = vst [vmem:[#allocation2 + $0x30] sm:$0xff] 0.0
          %622 = vst [vmem:[#allocation2 + $0x38] sm:$0xff] 0.0
          %623 = vst [vmem:[#allocation2 + $0x40] sm:$0xff] 0.0
          %624 = vst [vmem:[#allocation2 + $0x48] sm:$0xff] 0.0
          %625 = vst [vmem:[#allocation2 + $0x50] sm:$0xff] 0.0
          %626 = vst [vmem:[#allocation2 + $0x58] sm:$0xff] 0.0
          %627 = vst [vmem:[#allocation2 + $0x60] sm:$0xff] 0.0
          %628 = vst [vmem:[#allocation2 + $0x68] sm:$0xff] 0.0
          %629 = vst [vmem:[#allocation2 + $0x70] sm:$0xff] 0.0
          %630 = vst [vmem:[#allocation2 + $0x78] sm:$0xff] 0.0
        $region100: #{_lambda_.10} parent=87 // pred_fallthru
          _
        %v631 = vld [vmem:[#allocation2] sm:$0xff]
        %v632 = vld [vmem:[#allocation2 + $0x8] sm:$0xff]
        %v633 = vld [vmem:[#allocation2 + $0x10] sm:$0xff]
        %v634 = vld [vmem:[#allocation2 + $0x18] sm:$0xff]
        %v635 = vld [vmem:[#allocation2 + $0x20] sm:$0xff]
        %v636 = vld [vmem:[#allocation2 + $0x28] sm:$0xff]
        %v637 = vld [vmem:[#allocation2 + $0x30] sm:$0xff]
        %v638 = vld [vmem:[#allocation2 + $0x38] sm:$0xff]
        %v639 = vld [vmem:[#allocation2 + $0x40] sm:$0xff]
        %v640 = vld [vmem:[#allocation2 + $0x48] sm:$0xff]
        %v641 = vld [vmem:[#allocation2 + $0x50] sm:$0xff]
        %v642 = vld [vmem:[#allocation2 + $0x58] sm:$0xff]
        %v643 = vld [vmem:[#allocation2 + $0x60] sm:$0xff]
        %v644 = vld [vmem:[#allocation2 + $0x68] sm:$0xff]
        %v645 = vld [vmem:[#allocation2 + $0x70] sm:$0xff]
        %v646 = vld [vmem:[#allocation2 + $0x78] sm:$0xff]
        %v647 = vld [vmem:[%s570] sm:$0xff]
        %v648 = vld [vmem:[%s570 + $0x8] sm:$0xff]
        %v649 = vld [vmem:[%s570 + $0x10] sm:$0xff]
        %v650 = vld [vmem:[%s570 + $0x18] sm:$0xff]
        %v651 = vld [vmem:[%s570 + $0x20] sm:$0xff]
        %v652 = vld [vmem:[%s570 + $0x28] sm:$0xff]
        %v653 = vld [vmem:[%s570 + $0x30] sm:$0xff]
        %v654 = vld [vmem:[%s570 + $0x38] sm:$0xff]
        %v655 = vld [vmem:[%s570 + $0x40] sm:$0xff]
        %v656 = vld [vmem:[%s570 + $0x48] sm:$0xff]
        %v657 = vld [vmem:[%s570 + $0x50] sm:$0xff]
        %v658 = vld [vmem:[%s570 + $0x58] sm:$0xff]
        %v659 = vld [vmem:[%s570 + $0x60] sm:$0xff]
        %v660 = vld [vmem:[%s570 + $0x68] sm:$0xff]
        %v661 = vld [vmem:[%s570 + $0x70] sm:$0xff]
        %v662 = vld [vmem:[%s570 + $0x78] sm:$0xff]
        %v663 = vld [vmem:[%s570 + $0x80] sm:$0xff]
        %v664 = vld [vmem:[%s570 + $0x88] sm:$0xff]
        %v665 = vld [vmem:[%s570 + $0x90] sm:$0xff]
        %v666 = vld [vmem:[%s570 + $0x98] sm:$0xff]
        %v667 = vld [vmem:[%s570 + $0xa0] sm:$0xff]
        %v668 = vld [vmem:[%s570 + $0xa8] sm:$0xff]
        %v669 = vld [vmem:[%s570 + $0xb0] sm:$0xff]
        %v670 = vld [vmem:[%s570 + $0xb8] sm:$0xff]
        %v671 = vld [vmem:[%s570 + $0xc0] sm:$0xff]
        %v672 = vld [vmem:[%s570 + $0xc8] sm:$0xff]
        %v673 = vld [vmem:[%s570 + $0xd0] sm:$0xff]
        %v674 = vld [vmem:[%s570 + $0xd8] sm:$0xff]
        %v675 = vld [vmem:[%s570 + $0xe0] sm:$0xff]
        %v676 = vld [vmem:[%s570 + $0xe8] sm:$0xff]
        %v677 = vld [vmem:[%s570 + $0xf0] sm:$0xff]
        %v678 = vld [vmem:[%s570 + $0xf8] sm:$0xff]
        %v679 = vld [vmem:[%s577] sm:$0xf]
        %v680 = vld [vmem:[%s577 + $0x4] sm:$0xf]
        %v681 = vld [vmem:[%s577 + $0x8] sm:$0xf]
        %v682 = vld [vmem:[%s577 + $0xc] sm:$0xf]
        %v683 = vld [vmem:[%s577 + $0x10] sm:$0xf]
        %v684 = vld [vmem:[%s577 + $0x14] sm:$0xf]
        %v685 = vld [vmem:[%s577 + $0x18] sm:$0xf]
        %v686 = vld [vmem:[%s577 + $0x1c] sm:$0xf]
        %v687 = vld [vmem:[%s577 + $0x20] sm:$0xf]
        %v688 = vld [vmem:[%s577 + $0x24] sm:$0xf]
        %v689 = vld [vmem:[%s577 + $0x28] sm:$0xf]
        %v690 = vld [vmem:[%s577 + $0x2c] sm:$0xf]
        %v691 = vld [vmem:[%s577 + $0x30] sm:$0xf]
        %v692 = vld [vmem:[%s577 + $0x34] sm:$0xf]
        %v693 = vld [vmem:[%s577 + $0x38] sm:$0xf]
        %v694 = vld [vmem:[%s577 + $0x3c] sm:$0xf]
        %v695 = vld [vmem:[%s577 + $0x40] sm:$0xf]
        %v696 = vld [vmem:[%s577 + $0x44] sm:$0xf]
        %v697 = vld [vmem:[%s577 + $0x48] sm:$0xf]
        %v698 = vld [vmem:[%s577 + $0x4c] sm:$0xf]
        %v699 = vld [vmem:[%s577 + $0x50] sm:$0xf]
        %v700 = vld [vmem:[%s577 + $0x54] sm:$0xf]
        %v701 = vld [vmem:[%s577 + $0x58] sm:$0xf]
        %v702 = vld [vmem:[%s577 + $0x5c] sm:$0xf]
        %v703 = vld [vmem:[%s577 + $0x60] sm:$0xf]
        %v704 = vld [vmem:[%s577 + $0x64] sm:$0xf]
        %v705 = vld [vmem:[%s577 + $0x68] sm:$0xf]
        %v706 = vld [vmem:[%s577 + $0x6c] sm:$0xf]
        %v707 = vld [vmem:[%s577 + $0x70] sm:$0xf]
        %v708 = vld [vmem:[%s577 + $0x74] sm:$0xf]
        %v709 = vld [vmem:[%s577 + $0x78] sm:$0xf]
        %v710 = vld [vmem:[%s577 + $0x7c] sm:$0xf]
        %v711 = vld [vmem:[%s577 + $0x80] sm:$0xf]
        %v712 = vld [vmem:[%s577 + $0x84] sm:$0xf]
        %v713 = vld [vmem:[%s577 + $0x88] sm:$0xf]
        %v714 = vld [vmem:[%s577 + $0x8c] sm:$0xf]
        %v715 = vld [vmem:[%s577 + $0x90] sm:$0xf]
        %v716 = vld [vmem:[%s577 + $0x94] sm:$0xf]
        %v717 = vld [vmem:[%s577 + $0x98] sm:$0xf]
        %v718 = vld [vmem:[%s577 + $0x9c] sm:$0xf]
        %v719 = vld [vmem:[%s577 + $0xa0] sm:$0xf]
        %v720 = vld [vmem:[%s577 + $0xa4] sm:$0xf]
        %v721 = vld [vmem:[%s577 + $0xa8] sm:$0xf]
        %v722 = vld [vmem:[%s577 + $0xac] sm:$0xf]
        %v723 = vld [vmem:[%s577 + $0xb0] sm:$0xf]
        %v724 = vld [vmem:[%s577 + $0xb4] sm:$0xf]
        %v725 = vld [vmem:[%s577 + $0xb8] sm:$0xf]
        %v726 = vld [vmem:[%s577 + $0xbc] sm:$0xf]
        %v727 = vld [vmem:[%s577 + $0xc0] sm:$0xf]
        %v728 = vld [vmem:[%s577 + $0xc4] sm:$0xf]
        %v729 = vld [vmem:[%s577 + $0xc8] sm:$0xf]
        %v730 = vld [vmem:[%s577 + $0xcc] sm:$0xf]
        %v731 = vld [vmem:[%s577 + $0xd0] sm:$0xf]
        %v732 = vld [vmem:[%s577 + $0xd4] sm:$0xf]
        %v733 = vld [vmem:[%s577 + $0xd8] sm:$0xf]
        %v734 = vld [vmem:[%s577 + $0xdc] sm:$0xf]
        %v735 = vld [vmem:[%s577 + $0xe0] sm:$0xf]
        %v736 = vld [vmem:[%s577 + $0xe4] sm:$0xf]
        %v737 = vld [vmem:[%s577 + $0xe8] sm:$0xf]
        %v738 = vld [vmem:[%s577 + $0xec] sm:$0xf]
        %v739 = vld [vmem:[%s577 + $0xf0] sm:$0xf]
        %v740 = vld [vmem:[%s577 + $0xf4] sm:$0xf]
        %v741 = vld [vmem:[%s577 + $0xf8] sm:$0xf]
        %v742 = vld [vmem:[%s577 + $0xfc] sm:$0xf]
        %v775 = vunpack.c.l.b16 %v647
        %v776 = vunpack.c.h.b16 %v647
        %v777 = vunpack.c.l.b16 %v648
        %v778 = vunpack.c.h.b16 %v648
        %v779 = vunpack.c.l.b16 %v649
        %v780 = vunpack.c.h.b16 %v649
        %v781 = vunpack.c.l.b16 %v650
        %v782 = vunpack.c.h.b16 %v650
        %v783 = vunpack.c.l.b16 %v651
        %v784 = vunpack.c.h.b16 %v651
        %v785 = vunpack.c.l.b16 %v652
        %v786 = vunpack.c.h.b16 %v652
        %v787 = vunpack.c.l.b16 %v653
        %v788 = vunpack.c.h.b16 %v653
        %v789 = vunpack.c.l.b16 %v654
        %v790 = vunpack.c.h.b16 %v654
        %v791 = vunpack.c.l.b16 %v655
        %v792 = vunpack.c.h.b16 %v655
        %v793 = vunpack.c.l.b16 %v656
        %v794 = vunpack.c.h.b16 %v656
        %v795 = vunpack.c.l.b16 %v657
        %v796 = vunpack.c.h.b16 %v657
        %v797 = vunpack.c.l.b16 %v658
        %v798 = vunpack.c.h.b16 %v658
        %v799 = vunpack.c.l.b16 %v659
        %v800 = vunpack.c.h.b16 %v659
        %v801 = vunpack.c.l.b16 %v660
        %v802 = vunpack.c.h.b16 %v660
        %v803 = vunpack.c.l.b16 %v661
        %v804 = vunpack.c.h.b16 %v661
        %v805 = vunpack.c.l.b16 %v662
        %v806 = vunpack.c.h.b16 %v662
        %v807 = vunpack.c.l.b16 %v663
        %v808 = vunpack.c.h.b16 %v663
        %v809 = vunpack.c.l.b16 %v664
        %v810 = vunpack.c.h.b16 %v664
        %v811 = vunpack.c.l.b16 %v665
        %v812 = vunpack.c.h.b16 %v665
        %v813 = vunpack.c.l.b16 %v666
        %v814 = vunpack.c.h.b16 %v666
        %v815 = vunpack.c.l.b16 %v667
        %v816 = vunpack.c.h.b16 %v667
        %v817 = vunpack.c.l.b16 %v668
        %v818 = vunpack.c.h.b16 %v668
        %v819 = vunpack.c.l.b16 %v669
        %v820 = vunpack.c.h.b16 %v669
        %v821 = vunpack.c.l.b16 %v670
        %v822 = vunpack.c.h.b16 %v670
        %v823 = vunpack.c.l.b16 %v671
        %v824 = vunpack.c.h.b16 %v671
        %v825 = vunpack.c.l.b16 %v672
        %v826 = vunpack.c.h.b16 %v672
        %v827 = vunpack.c.l.b16 %v673
        %v828 = vunpack.c.h.b16 %v673
        %v829 = vunpack.c.l.b16 %v674
        %v830 = vunpack.c.h.b16 %v674
        %v831 = vunpack.c.l.b16 %v675
        %v832 = vunpack.c.h.b16 %v675
        %v833 = vunpack.c.l.b16 %v676
        %v834 = vunpack.c.h.b16 %v676
        %v835 = vunpack.c.l.b16 %v677
        %v836 = vunpack.c.h.b16 %v677
        %v837 = vunpack.c.l.b16 %v678
        %v838 = vunpack.c.h.b16 %v678
        %v839 = vpack.c.b16 %v779, %v775
        %v840 = vpack.c.b16 %v780, %v776
        %v841 = vpack.c.b16 %v781, %v777
        %v842 = vpack.c.b16 %v782, %v778
        %v843 = vpack.c.b16 %v787, %v783
        %v844 = vpack.c.b16 %v788, %v784
        %v845 = vpack.c.b16 %v789, %v785
        %v846 = vpack.c.b16 %v790, %v786
        %v847 = vpack.c.b16 %v795, %v791
        %v848 = vpack.c.b16 %v796, %v792
        %v849 = vpack.c.b16 %v797, %v793
        %v850 = vpack.c.b16 %v798, %v794
        %v851 = vpack.c.b16 %v803, %v799
        %v852 = vpack.c.b16 %v804, %v800
        %v853 = vpack.c.b16 %v805, %v801
        %v854 = vpack.c.b16 %v806, %v802
        %v855 = vpack.c.b16 %v811, %v807
        %v856 = vpack.c.b16 %v812, %v808
        %v857 = vpack.c.b16 %v813, %v809
        %v858 = vpack.c.b16 %v814, %v810
        %v859 = vpack.c.b16 %v819, %v815
        %v860 = vpack.c.b16 %v820, %v816
        %v861 = vpack.c.b16 %v821, %v817
        %v862 = vpack.c.b16 %v822, %v818
        %v863 = vpack.c.b16 %v827, %v823
        %v864 = vpack.c.b16 %v828, %v824
        %v865 = vpack.c.b16 %v829, %v825
        %v866 = vpack.c.b16 %v830, %v826
        %v867 = vpack.c.b16 %v835, %v831
        %v868 = vpack.c.b16 %v836, %v832
        %v869 = vpack.c.b16 %v837, %v833
        %v870 = vpack.c.b16 %v838, %v834
        %v967 = vunpack.c.l.b16 %v679
        %v968 = vunpack.c.l.b16 %v680
        %v969 = vunpack.c.l.b16 %v681
        %v970 = vunpack.c.l.b16 %v682
        %v971 = vunpack.c.l.b16 %v683
        %v972 = vunpack.c.l.b16 %v684
        %v973 = vunpack.c.l.b16 %v685
        %v974 = vunpack.c.l.b16 %v686
        %v975 = vunpack.c.l.b16 %v687
        %v976 = vunpack.c.l.b16 %v688
        %v977 = vunpack.c.l.b16 %v689
        %v978 = vunpack.c.l.b16 %v690
        %v979 = vunpack.c.l.b16 %v691
        %v980 = vunpack.c.l.b16 %v692
        %v981 = vunpack.c.l.b16 %v693
        %v982 = vunpack.c.l.b16 %v694
        %v983 = vunpack.c.l.b16 %v695
        %v984 = vunpack.c.l.b16 %v696
        %v985 = vunpack.c.l.b16 %v697
        %v986 = vunpack.c.l.b16 %v698
        %v987 = vunpack.c.l.b16 %v699
        %v988 = vunpack.c.l.b16 %v700
        %v989 = vunpack.c.l.b16 %v701
        %v990 = vunpack.c.l.b16 %v702
        %v991 = vunpack.c.l.b16 %v703
        %v992 = vunpack.c.l.b16 %v704
        %v993 = vunpack.c.l.b16 %v705
        %v994 = vunpack.c.l.b16 %v706
        %v995 = vunpack.c.l.b16 %v707
        %v996 = vunpack.c.l.b16 %v708
        %v997 = vunpack.c.l.b16 %v709
        %v998 = vunpack.c.l.b16 %v710
        %v999 = vunpack.c.l.b16 %v711
        %v1000 = vunpack.c.l.b16 %v712
        %v1001 = vunpack.c.l.b16 %v713
        %v1002 = vunpack.c.l.b16 %v714
        %v1003 = vunpack.c.l.b16 %v715
        %v1004 = vunpack.c.l.b16 %v716
        %v1005 = vunpack.c.l.b16 %v717
        %v1006 = vunpack.c.l.b16 %v718
        %v1007 = vunpack.c.l.b16 %v719
        %v1008 = vunpack.c.l.b16 %v720
        %v1009 = vunpack.c.l.b16 %v721
        %v1010 = vunpack.c.l.b16 %v722
        %v1011 = vunpack.c.l.b16 %v723
        %v1012 = vunpack.c.l.b16 %v724
        %v1013 = vunpack.c.l.b16 %v725
        %v1014 = vunpack.c.l.b16 %v726
        %v1015 = vunpack.c.l.b16 %v727
        %v1016 = vunpack.c.l.b16 %v728
        %v1017 = vunpack.c.l.b16 %v729
        %v1018 = vunpack.c.l.b16 %v730
        %v1019 = vunpack.c.l.b16 %v731
        %v1020 = vunpack.c.l.b16 %v732
        %v1021 = vunpack.c.l.b16 %v733
        %v1022 = vunpack.c.l.b16 %v734
        %v1023 = vunpack.c.l.b16 %v735
        %v1024 = vunpack.c.l.b16 %v736
        %v1025 = vunpack.c.l.b16 %v737
        %v1026 = vunpack.c.l.b16 %v738
        %v1027 = vunpack.c.l.b16 %v739
        %v1028 = vunpack.c.l.b16 %v740
        %v1029 = vunpack.c.l.b16 %v741
        %v1030 = vunpack.c.l.b16 %v742
        %v1031 = vpack.c.b16 %v968, %v967
        %v1032 = vpack.c.b16 %v970, %v969
        %v1033 = vpack.c.b16 %v972, %v971
        %v1034 = vpack.c.b16 %v974, %v973
        %v1035 = vpack.c.b16 %v976, %v975
        %v1036 = vpack.c.b16 %v978, %v977
        %v1037 = vpack.c.b16 %v980, %v979
        %v1038 = vpack.c.b16 %v982, %v981
        %v1039 = vpack.c.b16 %v984, %v983
        %v1040 = vpack.c.b16 %v986, %v985
        %v1041 = vpack.c.b16 %v988, %v987
        %v1042 = vpack.c.b16 %v990, %v989
        %v1043 = vpack.c.b16 %v992, %v991
        %v1044 = vpack.c.b16 %v994, %v993
        %v1045 = vpack.c.b16 %v996, %v995
        %v1046 = vpack.c.b16 %v998, %v997
        %v1047 = vpack.c.b16 %v1000, %v999
        %v1048 = vpack.c.b16 %v1002, %v1001
        %v1049 = vpack.c.b16 %v1004, %v1003
        %v1050 = vpack.c.b16 %v1006, %v1005
        %v1051 = vpack.c.b16 %v1008, %v1007
        %v1052 = vpack.c.b16 %v1010, %v1009
        %v1053 = vpack.c.b16 %v1012, %v1011
        %v1054 = vpack.c.b16 %v1014, %v1013
        %v1055 = vpack.c.b16 %v1016, %v1015
        %v1056 = vpack.c.b16 %v1018, %v1017
        %v1057 = vpack.c.b16 %v1020, %v1019
        %v1058 = vpack.c.b16 %v1022, %v1021
        %v1059 = vpack.c.b16 %v1024, %v1023
        %v1060 = vpack.c.b16 %v1026, %v1025
        %v1061 = vpack.c.b16 %v1028, %v1027
        %v1062 = vpack.c.b16 %v1030, %v1029
        %1095 = vmatpush.bf16.msra.mxu0 %v1038
        %1096 = vmatpush.bf16.msra.mxu0 %v1037
        %1097 = vmatpush.bf16.msra.mxu0 %v1036
        %1098 = vmatpush.bf16.msra.mxu0 %v1035
        %1099 = vmatpush.bf16.msra.mxu0 %v1034
        %1100 = vmatpush.bf16.msra.mxu0 %v1033
        %1101 = vmatpush.bf16.msra.mxu0 %v1032
        %1102 = vmatpush.bf16.msra.mxu0 %v1031
        %1103 = vmatmul.bf16.gmra.mxu0 %v839
        %v1104 = vpop.f32.mrf.mxu0
        %v1105 = vadd.f32 0.0, %v1104
        %v1106 = vpop.f32.mrf.mxu0
        %v1107 = vadd.f32 0.0, %v1106
        %1108 = vmatmul.bf16.gmra.mxu0 %v843
        %v1109 = vpop.f32.mrf.mxu0
        %v1110 = vadd.f32 0.0, %v1109
        %v1111 = vpop.f32.mrf.mxu0
        %v1112 = vadd.f32 0.0, %v1111
        %1113 = vmatmul.bf16.gmra.mxu0 %v847
        %v1114 = vpop.f32.mrf.mxu0
        %v1115 = vadd.f32 0.0, %v1114
        %v1116 = vpop.f32.mrf.mxu0
        %v1117 = vadd.f32 0.0, %v1116
        %1118 = vmatmul.bf16.gmra.mxu0 %v851
        %v1119 = vpop.f32.mrf.mxu0
        %v1120 = vadd.f32 0.0, %v1119
        %v1121 = vpop.f32.mrf.mxu0
        %v1122 = vadd.f32 0.0, %v1121
        %1123 = vmatmul.bf16.gmra.mxu0 %v855
        %v1124 = vpop.f32.mrf.mxu0
        %v1125 = vadd.f32 0.0, %v1124
        %v1126 = vpop.f32.mrf.mxu0
        %v1127 = vadd.f32 0.0, %v1126
        %1128 = vmatmul.bf16.gmra.mxu0 %v859
        %v1129 = vpop.f32.mrf.mxu0
        %v1130 = vadd.f32 0.0, %v1129
        %v1131 = vpop.f32.mrf.mxu0
        %v1132 = vadd.f32 0.0, %v1131
        %1133 = vmatmul.bf16.gmra.mxu0 %v863
        %v1134 = vpop.f32.mrf.mxu0
        %v1135 = vadd.f32 0.0, %v1134
        %v1136 = vpop.f32.mrf.mxu0
        %v1137 = vadd.f32 0.0, %v1136
        %1138 = vmatmul.bf16.gmra.mxu0 %v867
        %v1139 = vpop.f32.mrf.mxu0
        %v1140 = vadd.f32 0.0, %v1139
        %v1141 = vpop.f32.mrf.mxu0
        %v1142 = vadd.f32 0.0, %v1141
        %1143 = vdwg.mxu0
        %1144 = vmatpush.bf16.msra.mxu0 %v1046
        %1145 = vmatpush.bf16.msra.mxu0 %v1045
        %1146 = vmatpush.bf16.msra.mxu0 %v1044
        %1147 = vmatpush.bf16.msra.mxu0 %v1043
        %1148 = vmatpush.bf16.msra.mxu0 %v1042
        %1149 = vmatpush.bf16.msra.mxu0 %v1041
        %1150 = vmatpush.bf16.msra.mxu0 %v1040
        %1151 = vmatpush.bf16.msra.mxu0 %v1039
        %1152 = vmatmul.bf16.gmra.mxu0 %v840
        %v1153 = vpop.f32.mrf.mxu0
        %v1154 = vadd.f32 %v1105, %v1153
        %v1155 = vpop.f32.mrf.mxu0
        %v1156 = vadd.f32 %v1107, %v1155
        %1157 = vmatmul.bf16.gmra.mxu0 %v844
        %v1158 = vpop.f32.mrf.mxu0
        %v1159 = vadd.f32 %v1110, %v1158
        %v1160 = vpop.f32.mrf.mxu0
        %v1161 = vadd.f32 %v1112, %v1160
        %1162 = vmatmul.bf16.gmra.mxu0 %v848
        %v1163 = vpop.f32.mrf.mxu0
        %v1164 = vadd.f32 %v1115, %v1163
        %v1165 = vpop.f32.mrf.mxu0
        %v1166 = vadd.f32 %v1117, %v1165
        %1167 = vmatmul.bf16.gmra.mxu0 %v852
        %v1168 = vpop.f32.mrf.mxu0
        %v1169 = vadd.f32 %v1120, %v1168
        %v1170 = vpop.f32.mrf.mxu0
        %v1171 = vadd.f32 %v1122, %v1170
        %1172 = vmatmul.bf16.gmra.mxu0 %v856
        %v1173 = vpop.f32.mrf.mxu0
        %v1174 = vadd.f32 %v1125, %v1173
        %v1175 = vpop.f32.mrf.mxu0
        %v1176 = vadd.f32 %v1127, %v1175
        %1177 = vmatmul.bf16.gmra.mxu0 %v860
        %v1178 = vpop.f32.mrf.mxu0
        %v1179 = vadd.f32 %v1130, %v1178
        %v1180 = vpop.f32.mrf.mxu0
        %v1181 = vadd.f32 %v1132, %v1180
        %1182 = vmatmul.bf16.gmra.mxu0 %v864
        %v1183 = vpop.f32.mrf.mxu0
        %v1184 = vadd.f32 %v1135, %v1183
        %v1185 = vpop.f32.mrf.mxu0
        %v1186 = vadd.f32 %v1137, %v1185
        %1187 = vmatmul.bf16.gmra.mxu0 %v868
        %v1188 = vpop.f32.mrf.mxu0
        %v1189 = vadd.f32 %v1140, %v1188
        %v1190 = vpop.f32.mrf.mxu0
        %v1191 = vadd.f32 %v1142, %v1190
        %1192 = vdwg.mxu0
        %1193 = vmatpush.bf16.msra.mxu0 %v1054
        %1194 = vmatpush.bf16.msra.mxu0 %v1053
        %1195 = vmatpush.bf16.msra.mxu0 %v1052
        %1196 = vmatpush.bf16.msra.mxu0 %v1051
        %1197 = vmatpush.bf16.msra.mxu0 %v1050
        %1198 = vmatpush.bf16.msra.mxu0 %v1049
        %1199 = vmatpush.bf16.msra.mxu0 %v1048
        %1200 = vmatpush.bf16.msra.mxu0 %v1047
        %1201 = vmatmul.bf16.gmra.mxu0 %v841
        %v1202 = vpop.f32.mrf.mxu0
        %v1203 = vadd.f32 %v1154, %v1202
        %v1204 = vpop.f32.mrf.mxu0
        %v1205 = vadd.f32 %v1156, %v1204
        %1206 = vmatmul.bf16.gmra.mxu0 %v845
        %v1207 = vpop.f32.mrf.mxu0
        %v1208 = vadd.f32 %v1159, %v1207
        %v1209 = vpop.f32.mrf.mxu0
        %v1210 = vadd.f32 %v1161, %v1209
        %1211 = vmatmul.bf16.gmra.mxu0 %v849
        %v1212 = vpop.f32.mrf.mxu0
        %v1213 = vadd.f32 %v1164, %v1212
        %v1214 = vpop.f32.mrf.mxu0
        %v1215 = vadd.f32 %v1166, %v1214
        %1216 = vmatmul.bf16.gmra.mxu0 %v853
        %v1217 = vpop.f32.mrf.mxu0
        %v1218 = vadd.f32 %v1169, %v1217
        %v1219 = vpop.f32.mrf.mxu0
        %v1220 = vadd.f32 %v1171, %v1219
        %1221 = vmatmul.bf16.gmra.mxu0 %v857
        %v1222 = vpop.f32.mrf.mxu0
        %v1223 = vadd.f32 %v1174, %v1222
        %v1224 = vpop.f32.mrf.mxu0
        %v1225 = vadd.f32 %v1176, %v1224
        %1226 = vmatmul.bf16.gmra.mxu0 %v861
        %v1227 = vpop.f32.mrf.mxu0
        %v1228 = vadd.f32 %v1179, %v1227
        %v1229 = vpop.f32.mrf.mxu0
        %v1230 = vadd.f32 %v1181, %v1229
        %1231 = vmatmul.bf16.gmra.mxu0 %v865
        %v1232 = vpop.f32.mrf.mxu0
        %v1233 = vadd.f32 %v1184, %v1232
        %v1234 = vpop.f32.mrf.mxu0
        %v1235 = vadd.f32 %v1186, %v1234
        %1236 = vmatmul.bf16.gmra.mxu0 %v869
        %v1237 = vpop.f32.mrf.mxu0
        %v1238 = vadd.f32 %v1189, %v1237
        %v1239 = vpop.f32.mrf.mxu0
        %v1240 = vadd.f32 %v1191, %v1239
        %1241 = vdwg.mxu0
        %1242 = vmatpush.bf16.msra.mxu0 %v1062
        %1243 = vmatpush.bf16.msra.mxu0 %v1061
        %1244 = vmatpush.bf16.msra.mxu0 %v1060
        %1245 = vmatpush.bf16.msra.mxu0 %v1059
        %1246 = vmatpush.bf16.msra.mxu0 %v1058
        %1247 = vmatpush.bf16.msra.mxu0 %v1057
        %1248 = vmatpush.bf16.msra.mxu0 %v1056
        %1249 = vmatpush.bf16.msra.mxu0 %v1055
        %1250 = vmatmul.bf16.gmra.mxu0 %v842
        %v1251 = vpop.f32.mrf.mxu0
        %v1252 = vadd.f32 %v1203, %v1251
        %v1253 = vpop.f32.mrf.mxu0
        %v1254 = vadd.f32 %v1205, %v1253
        %1255 = vmatmul.bf16.gmra.mxu0 %v846
        %v1256 = vpop.f32.mrf.mxu0
        %v1257 = vadd.f32 %v1208, %v1256
        %v1258 = vpop.f32.mrf.mxu0
        %v1259 = vadd.f32 %v1210, %v1258
        %1260 = vmatmul.bf16.gmra.mxu0 %v850
        %v1261 = vpop.f32.mrf.mxu0
        %v1262 = vadd.f32 %v1213, %v1261
        %v1263 = vpop.f32.mrf.mxu0
        %v1264 = vadd.f32 %v1215, %v1263
        %1265 = vmatmul.bf16.gmra.mxu0 %v854
        %v1266 = vpop.f32.mrf.mxu0
        %v1267 = vadd.f32 %v1218, %v1266
        %v1268 = vpop.f32.mrf.mxu0
        %v1269 = vadd.f32 %v1220, %v1268
        %1270 = vmatmul.bf16.gmra.mxu0 %v858
        %v1271 = vpop.f32.mrf.mxu0
        %v1272 = vadd.f32 %v1223, %v1271
        %v1273 = vpop.f32.mrf.mxu0
        %v1274 = vadd.f32 %v1225, %v1273
        %1275 = vmatmul.bf16.gmra.mxu0 %v862
        %v1276 = vpop.f32.mrf.mxu0
        %v1277 = vadd.f32 %v1228, %v1276
        %v1278 = vpop.f32.mrf.mxu0
        %v1279 = vadd.f32 %v1230, %v1278
        %1280 = vmatmul.bf16.gmra.mxu0 %v866
        %v1281 = vpop.f32.mrf.mxu0
        %v1282 = vadd.f32 %v1233, %v1281
        %v1283 = vpop.f32.mrf.mxu0
        %v1284 = vadd.f32 %v1235, %v1283
        %1285 = vmatmul.bf16.gmra.mxu0 %v870
        %v1286 = vpop.f32.mrf.mxu0
        %v1287 = vadd.f32 %v1238, %v1286
        %v1288 = vpop.f32.mrf.mxu0
        %v1289 = vadd.f32 %v1240, %v1288
        %1290 = vdwg.mxu0
        %v1291 = vadd.f32 %v631, %v1252
        %v1292 = vadd.f32 %v632, %v1254
        %v1293 = vadd.f32 %v633, %v1257
        %v1294 = vadd.f32 %v634, %v1259
        %v1295 = vadd.f32 %v635, %v1262
        %v1296 = vadd.f32 %v636, %v1264
        %v1297 = vadd.f32 %v637, %v1267
        %v1298 = vadd.f32 %v638, %v1269
        %v1299 = vadd.f32 %v639, %v1272
        %v1300 = vadd.f32 %v640, %v1274
        %v1301 = vadd.f32 %v641, %v1277
        %v1302 = vadd.f32 %v642, %v1279
        %v1303 = vadd.f32 %v643, %v1282
        %v1304 = vadd.f32 %v644, %v1284
        %v1305 = vadd.f32 %v645, %v1287
        %v1306 = vadd.f32 %v646, %v1289
        %1307 = vst [vmem:[#allocation2] sm:$0xff] %v1291
        %1308 = vst [vmem:[#allocation2 + $0x8] sm:$0xff] %v1292
        %1309 = vst [vmem:[#allocation2 + $0x10] sm:$0xff] %v1293
        %1310 = vst [vmem:[#allocation2 + $0x18] sm:$0xff] %v1294
        %1311 = vst [vmem:[#allocation2 + $0x20] sm:$0xff] %v1295
        %1312 = vst [vmem:[#allocation2 + $0x28] sm:$0xff] %v1296
        %1313 = vst [vmem:[#allocation2 + $0x30] sm:$0xff] %v1297
        %1314 = vst [vmem:[#allocation2 + $0x38] sm:$0xff] %v1298
        %1315 = vst [vmem:[#allocation2 + $0x40] sm:$0xff] %v1299
        %1316 = vst [vmem:[#allocation2 + $0x48] sm:$0xff] %v1300
        %1317 = vst [vmem:[#allocation2 + $0x50] sm:$0xff] %v1301
        %1318 = vst [vmem:[#allocation2 + $0x58] sm:$0xff] %v1302
        %1319 = vst [vmem:[#allocation2 + $0x60] sm:$0xff] %v1303
        %1320 = vst [vmem:[#allocation2 + $0x68] sm:$0xff] %v1304
        %1321 = vst [vmem:[#allocation2 + $0x70] sm:$0xff] %v1305
        %1322 = vst [vmem:[#allocation2 + $0x78] sm:$0xff] %v1306
        %p1323 = scmp.eq.s32.totalorder %s21, 3
        // Predicated region
        $region101: #{_lambda_.10} parent=87 // pred_check
          %p1324 = pneg %p1323
        $region102: #{_lambda_.10} parent=87 // pred_check_branch
          %1326 = sbr.rel (%p1324) target = $region104
        $region103: #{_lambda_.10} parent=87 // pred_region
          %v1327 = vld [vmem:[#allocation2] sm:$0xff]
          %v1328 = vld [vmem:[#allocation2 + $0x8] sm:$0xff]
          %v1329 = vld [vmem:[#allocation2 + $0x10] sm:$0xff]
          %v1330 = vld [vmem:[#allocation2 + $0x18] sm:$0xff]
          %v1331 = vld [vmem:[#allocation2 + $0x20] sm:$0xff]
          %v1332 = vld [vmem:[#allocation2 + $0x28] sm:$0xff]
          %v1333 = vld [vmem:[#allocation2 + $0x30] sm:$0xff]
          %v1334 = vld [vmem:[#allocation2 + $0x38] sm:$0xff]
          %v1335 = vld [vmem:[#allocation2 + $0x40] sm:$0xff]
          %v1336 = vld [vmem:[#allocation2 + $0x48] sm:$0xff]
          %v1337 = vld [vmem:[#allocation2 + $0x50] sm:$0xff]
          %v1338 = vld [vmem:[#allocation2 + $0x58] sm:$0xff]
          %v1339 = vld [vmem:[#allocation2 + $0x60] sm:$0xff]
          %v1340 = vld [vmem:[#allocation2 + $0x68] sm:$0xff]
          %v1341 = vld [vmem:[#allocation2 + $0x70] sm:$0xff]
          %v1342 = vld [vmem:[#allocation2 + $0x78] sm:$0xff]
          %v1343 = vld [vmem:[%s609] sm:$0x1]
          %v1345 = vperm.slane %v1343, 0
          %v1347 = vadd.f32 %v1327, %v1345
          %v1348 = vadd.f32 %v1328, %v1345
          %v1349 = vadd.f32 %v1329, %v1345
          %v1350 = vadd.f32 %v1330, %v1345
          %v1351 = vadd.f32 %v1331, %v1345
          %v1352 = vadd.f32 %v1332, %v1345
          %v1353 = vadd.f32 %v1333, %v1345
          %v1354 = vadd.f32 %v1334, %v1345
          %v1355 = vadd.f32 %v1335, %v1345
          %v1356 = vadd.f32 %v1336, %v1345
          %v1357 = vadd.f32 %v1337, %v1345
          %v1358 = vadd.f32 %v1338, %v1345
          %v1359 = vadd.f32 %v1339, %v1345
          %v1360 = vadd.f32 %v1340, %v1345
          %v1361 = vadd.f32 %v1341, %v1345
          %v1362 = vadd.f32 %v1342, %v1345
          %v1363 = vmax.f32 %v1347, 0.0
          %v1364 = vmax.f32 %v1348, 0.0
          %v1365 = vmax.f32 %v1349, 0.0
          %v1366 = vmax.f32 %v1350, 0.0
          %v1367 = vmax.f32 %v1351, 0.0
          %v1368 = vmax.f32 %v1352, 0.0
          %v1369 = vmax.f32 %v1353, 0.0
          %v1370 = vmax.f32 %v1354, 0.0
          %v1371 = vmax.f32 %v1355, 0.0
          %v1372 = vmax.f32 %v1356, 0.0
          %v1373 = vmax.f32 %v1357, 0.0
          %v1374 = vmax.f32 %v1358, 0.0
          %v1375 = vmax.f32 %v1359, 0.0
          %v1376 = vmax.f32 %v1360, 0.0
          %v1377 = vmax.f32 %v1361, 0.0
          %v1378 = vmax.f32 %v1362, 0.0
          %v1379 = vpack.c.bf16 %v1363, %v1363
          %v1380 = vpack.c.bf16 %v1364, %v1364
          %v1381 = vpack.c.bf16 %v1365, %v1365
          %v1382 = vpack.c.bf16 %v1366, %v1366
          %v1383 = vpack.c.bf16 %v1367, %v1367
          %v1384 = vpack.c.bf16 %v1368, %v1368
          %v1385 = vpack.c.bf16 %v1369, %v1369
          %v1386 = vpack.c.bf16 %v1370, %v1370
          %v1387 = vpack.c.bf16 %v1371, %v1371
          %v1388 = vpack.c.bf16 %v1372, %v1372
          %v1389 = vpack.c.bf16 %v1373, %v1373
          %v1390 = vpack.c.bf16 %v1374, %v1374
          %v1391 = vpack.c.bf16 %v1375, %v1375
          %v1392 = vpack.c.bf16 %v1376, %v1376
          %v1393 = vpack.c.bf16 %v1377, %v1377
          %v1394 = vpack.c.bf16 %v1378, %v1378
          %1395 = vst [vmem:[%s603] sm:$0xf] %v1379
          %1396 = vst [vmem:[%s603 + $0x4] sm:$0xf] %v1380
          %1397 = vst [vmem:[%s603 + $0x8] sm:$0xf] %v1381
          %1398 = vst [vmem:[%s603 + $0xc] sm:$0xf] %v1382
          %1399 = vst [vmem:[%s603 + $0x10] sm:$0xf] %v1383
          %1400 = vst [vmem:[%s603 + $0x14] sm:$0xf] %v1384
          %1401 = vst [vmem:[%s603 + $0x18] sm:$0xf] %v1385
          %1402 = vst [vmem:[%s603 + $0x1c] sm:$0xf] %v1386
          %1403 = vst [vmem:[%s603 + $0x20] sm:$0xf] %v1387
          %1404 = vst [vmem:[%s603 + $0x24] sm:$0xf] %v1388
          %1405 = vst [vmem:[%s603 + $0x28] sm:$0xf] %v1389
          %1406 = vst [vmem:[%s603 + $0x2c] sm:$0xf] %v1390
          %1407 = vst [vmem:[%s603 + $0x30] sm:$0xf] %v1391
          %1408 = vst [vmem:[%s603 + $0x34] sm:$0xf] %v1392
          %1409 = vst [vmem:[%s603 + $0x38] sm:$0xf] %v1393
          %1410 = vst [vmem:[%s603 + $0x3c] sm:$0xf] %v1394
        $region104: #{_lambda_.10} parent=87 // pred_fallthru
          _
        %s1411 = sand.u32 %s125, 1
        %s1412 = sand.u32 %s125, 1
        %s1413 = smul.addr %s1412, 64
        %s1414 = scalar_lea.vmem [#allocation5], %s1413
        // Predicated region
        $region105: #{_lambda_.10} parent=87 // pred_check
          %p1415 = pneg %p135
        $region106: #{_lambda_.10} parent=87 // pred_check_branch
          %1417 = sbr.rel (%p1415) target = $region108
        $region107: #{_lambda_.10} parent=87 // pred_region
          %s1418 = smul.u32 16, %s19
          %s1419 = smul.addr %s1418, 2
          %s1420 = sadd.s32 %s20, %s1419
          %s1421 = smul.addr %s1420, 4
          %s1422 = scalar_lea.vmem %s3, %s1421
          // Predicated region
          $region109: #{_lambda_.10} parent=107 // pred_check
            _
          $region110: #{_lambda_.10} parent=107 // pred_check_branch
            %1424 = sbr.rel (0) target = $region112
          $region111: #{_lambda_.10} parent=107 // pred_region
            // Predicated region
            $region113: #{_lambda_.10} parent=111 // pred_check
              _
            $region114: #{_lambda_.10} parent=111 // pred_check_branch
              %1426 = sbr.rel target = $region116
            $region115: #{_lambda_.10} parent=111 // pred_region
              // Predicated region
              $region128: #{_lambda_.10} parent=115 // pred_check
                _
              $region129: #{_lambda_.10} parent=115 // pred_check_branch
                %1472 = sbr.rel (0) target = $region131
              $region130: #{_lambda_.10} parent=115 // pred_region
                loop: start=0, step=1, limit=1
                $region132: #{_lambda_.10} parent=130 // loop_pre_header
                  _
                $region133: #{_lambda_.10} parent=130 // loop_header
                  %s1474 = sphi 0, %s1478
                  %p1475 = scmp.ge.s32.totalorder %s1474, 1
                  %s1479 = sphi %s1414, %s1414
                  %s1480 = sphi %s1422, %s1422
                $region134: #{_lambda_.10} parent=130 // loop_header_branch
                  %1477 = sbr.rel (%p1475) target = $region138
                $region135: #{_lambda_.10} parent=130 // loop_body
                  _
                $region136: #{_lambda_.10} parent=130 // loop_footer
                  %s1478 = sadd.s32 1, %s1474
                $region137: #{_lambda_.10} parent=130 // loop_footer_branch
                  %1473 = sbr.rel target = $region133
                $region138: #{_lambda_.10} parent=130 // loop_exit
                  _
                %s1482 = ssub.s32 16, 1
                loop: start=0, step=1, limit=1
                $region139: #{_lambda_.10} parent=130 // loop_pre_header
                  _
                $region140: #{_lambda_.10} parent=130 // loop_header
                  %s1484 = sphi 0, %s1488
                  %p1485 = scmp.ge.s32.totalorder %s1484, 1
                  %s1489 = sphi %s1414, %s1414
                  %s1490 = sphi %s1422, %s1422
                $region141: #{_lambda_.10} parent=130 // loop_header_branch
                  %1487 = sbr.rel (%p1485) target = $region145
                $region142: #{_lambda_.10} parent=130 // loop_body
                  %v1491 = vld [vmem:[%s1489] sm:%s1482]
                  %1492 = vst [vmem:[%s1490] sm:%s1482] %v1491
                  %v1493 = vld [vmem:[%s1489 + $0x4] sm:%s1482]
                  %1494 = vst [vmem:[%s1490 + $0x8] sm:%s1482] %v1493
                  %v1495 = vld [vmem:[%s1489 + $0x8] sm:%s1482]
                  %1496 = vst [vmem:[%s1490 + $0x10] sm:%s1482] %v1495
                  %v1497 = vld [vmem:[%s1489 + $0xc] sm:%s1482]
                  %1498 = vst [vmem:[%s1490 + $0x18] sm:%s1482] %v1497
                  %v1499 = vld [vmem:[%s1489 + $0x10] sm:%s1482]
                  %1500 = vst [vmem:[%s1490 + $0x20] sm:%s1482] %v1499
                  %v1501 = vld [vmem:[%s1489 + $0x14] sm:%s1482]
                  %1502 = vst [vmem:[%s1490 + $0x28] sm:%s1482] %v1501
                  %v1503 = vld [vmem:[%s1489 + $0x18] sm:%s1482]
                  %1504 = vst [vmem:[%s1490 + $0x30] sm:%s1482] %v1503
                  %v1505 = vld [vmem:[%s1489 + $0x1c] sm:%s1482]
                  %1506 = vst [vmem:[%s1490 + $0x38] sm:%s1482] %v1505
                  %v1507 = vld [vmem:[%s1489 + $0x20] sm:%s1482]
                  %1508 = vst [vmem:[%s1490 + $0x40] sm:%s1482] %v1507
                  %v1509 = vld [vmem:[%s1489 + $0x24] sm:%s1482]
                  %1510 = vst [vmem:[%s1490 + $0x48] sm:%s1482] %v1509
                  %v1511 = vld [vmem:[%s1489 + $0x28] sm:%s1482]
                  %1512 = vst [vmem:[%s1490 + $0x50] sm:%s1482] %v1511
                  %v1513 = vld [vmem:[%s1489 + $0x2c] sm:%s1482]
                  %1514 = vst [vmem:[%s1490 + $0x58] sm:%s1482] %v1513
                  %v1515 = vld [vmem:[%s1489 + $0x30] sm:%s1482]
                  %1516 = vst [vmem:[%s1490 + $0x60] sm:%s1482] %v1515
                  %v1517 = vld [vmem:[%s1489 + $0x34] sm:%s1482]
                  %1518 = vst [vmem:[%s1490 + $0x68] sm:%s1482] %v1517
                  %v1519 = vld [vmem:[%s1489 + $0x38] sm:%s1482]
                  %1520 = vst [vmem:[%s1490 + $0x70] sm:%s1482] %v1519
                  %v1521 = vld [vmem:[%s1489 + $0x3c] sm:%s1482]
                  %1522 = vst [vmem:[%s1490 + $0x78] sm:%s1482] %v1521
                $region143: #{_lambda_.10} parent=130 // loop_footer
                  %s1488 = sadd.s32 1, %s1484
                $region144: #{_lambda_.10} parent=130 // loop_footer_branch
                  %1483 = sbr.rel target = $region140
                $region145: #{_lambda_.10} parent=130 // loop_exit
                  _
              $region131: #{_lambda_.10} parent=115 // pred_fallthru
                _
            $region116: #{_lambda_.10} parent=111 // pred_fallthru
              _
            // Predicated region
            $region117: #{_lambda_.10} parent=111 // pred_check
              _
            $region118: #{_lambda_.10} parent=111 // pred_check_branch
              %1428 = sbr.rel (0) target = $region120
            $region119: #{_lambda_.10} parent=111 // pred_region
              %s1430 = ssub.s32 16, 1
              loop: start=0, step=1, limit=1
              $region121: #{_lambda_.10} parent=119 // loop_pre_header
                _
              $region122: #{_lambda_.10} parent=119 // loop_header
                %s1432 = sphi 0, %s1436
                %p1433 = scmp.ge.s32.totalorder %s1432, 1
                %s1437 = sphi %s1414, %s1414
                %s1438 = sphi %s1422, %s1422
              $region123: #{_lambda_.10} parent=119 // loop_header_branch
                %1435 = sbr.rel (%p1433) target = $region127
              $region124: #{_lambda_.10} parent=119 // loop_body
                %v1439 = vld [vmem:[%s1437] sm:%s1430]
                %1440 = vst [vmem:[%s1438] sm:%s1430] %v1439
                %v1441 = vld [vmem:[%s1437 + $0x4] sm:%s1430]
                %1442 = vst [vmem:[%s1438 + $0x8] sm:%s1430] %v1441
                %v1443 = vld [vmem:[%s1437 + $0x8] sm:%s1430]
                %1444 = vst [vmem:[%s1438 + $0x10] sm:%s1430] %v1443
                %v1445 = vld [vmem:[%s1437 + $0xc] sm:%s1430]
                %1446 = vst [vmem:[%s1438 + $0x18] sm:%s1430] %v1445
                %v1447 = vld [vmem:[%s1437 + $0x10] sm:%s1430]
                %1448 = vst [vmem:[%s1438 + $0x20] sm:%s1430] %v1447
                %v1449 = vld [vmem:[%s1437 + $0x14] sm:%s1430]
                %1450 = vst [vmem:[%s1438 + $0x28] sm:%s1430] %v1449
                %v1451 = vld [vmem:[%s1437 + $0x18] sm:%s1430]
                %1452 = vst [vmem:[%s1438 + $0x30] sm:%s1430] %v1451
                %v1453 = vld [vmem:[%s1437 + $0x1c] sm:%s1430]
                %1454 = vst [vmem:[%s1438 + $0x38] sm:%s1430] %v1453
                %v1455 = vld [vmem:[%s1437 + $0x20] sm:%s1430]
                %1456 = vst [vmem:[%s1438 + $0x40] sm:%s1430] %v1455
                %v1457 = vld [vmem:[%s1437 + $0x24] sm:%s1430]
                %1458 = vst [vmem:[%s1438 + $0x48] sm:%s1430] %v1457
                %v1459 = vld [vmem:[%s1437 + $0x28] sm:%s1430]
                %1460 = vst [vmem:[%s1438 + $0x50] sm:%s1430] %v1459
                %v1461 = vld [vmem:[%s1437 + $0x2c] sm:%s1430]
                %1462 = vst [vmem:[%s1438 + $0x58] sm:%s1430] %v1461
                %v1463 = vld [vmem:[%s1437 + $0x30] sm:%s1430]
                %1464 = vst [vmem:[%s1438 + $0x60] sm:%s1430] %v1463
                %v1465 = vld [vmem:[%s1437 + $0x34] sm:%s1430]
                %1466 = vst [vmem:[%s1438 + $0x68] sm:%s1430] %v1465
                %v1467 = vld [vmem:[%s1437 + $0x38] sm:%s1430]
                %1468 = vst [vmem:[%s1438 + $0x70] sm:%s1430] %v1467
                %v1469 = vld [vmem:[%s1437 + $0x3c] sm:%s1430]
                %1470 = vst [vmem:[%s1438 + $0x78] sm:%s1430] %v1469
              $region125: #{_lambda_.10} parent=119 // loop_footer
                %s1436 = sadd.s32 1, %s1432
              $region126: #{_lambda_.10} parent=119 // loop_footer_branch
                %1431 = sbr.rel target = $region122
              $region127: #{_lambda_.10} parent=119 // loop_exit
                _
            $region120: #{_lambda_.10} parent=111 // pred_fallthru
              _
          $region112: #{_lambda_.10} parent=107 // pred_fallthru
            _
          %1523 = vnop
        $region108: #{_lambda_.10} parent=87 // pred_fallthru
          _
      $region88: #{_lambda_.10} parent=5 // pred_fallthru
        _
      %p1524 = scmp.le.s32.totalorder 2, %s9
      // Predicated region
      $region146: #{_lambda_.10} parent=5 // pred_check
        %p1525 = pneg %p1524
      $region147: #{_lambda_.10} parent=5 // pred_check_branch
        %1527 = sbr.rel (%p1525) target = $region149
      $region148: #{_lambda_.10} parent=5 // pred_region
        %s1528 = ssub.s32 %s9, 2
        // Predicated region
        $region150: #{_lambda_.10} parent=148 // pred_check
          %p1529 = pneg %p141
        $region151: #{_lambda_.10} parent=148 // pred_check_branch
          %1531 = sbr.rel (%p1529) target = $region153
        $region152: #{_lambda_.10} parent=148 // pred_region
          %s1532 = sand.u32 %s126, 1
          %s1533 = sand.u32 %s126, 1
          %s1534 = smul.addr %s1533, 64
          %s1535 = scalar_lea.vmem [#allocation5], %s1534
        $region153: #{_lambda_.10} parent=148 // pred_fallthru
          _
      $region149: #{_lambda_.10} parent=5 // pred_fallthru
        _
    $region6: #{_lambda_.10} parent=1 // loop_footer
      %s13 = sadd.s32 1, %s9
    $region7: #{_lambda_.10} parent=1 // loop_footer_branch
      %8 = sbr.rel target = $region3
    $region8: #{_lambda_.10} parent=1 // loop_exit
      _

// kernel: _lambda_.11
$region0: #{_lambda_.11}
  #allocation0 [shape = 'u32[]', space=smem, size = 0x4, offset = 0x4, fixed_abs, tag = 'smem constant byte address 0x4 - core index']
  #allocation1 [shape = 'u32[72,128]{1,0:T(1,128)}', space=vmem, size = 0x9000, scoped, tag = 'internal scratch']
  %s0 = inlined_call_operand.vmem [shape: bf16[2,7,7,192], index: 0, kind: input, shape index: {}]
  %s1 = inlined_call_operand.vmem [shape: bf16[2,3,3,192], index: 1, kind: output, shape index: {}]
  %s2 = sld [smem:[#allocation0]]
  $region37: #{_lambda_.11} parent=0
    _
  %s4 = ssub.s32 1, %s2
  %s5 = scalar_select 0, %s4, %s2
  loop: start=0, step=1, limit=4
  $region2: #{_lambda_.11} parent=0 // loop_pre_header
    _
  $region3: #{_lambda_.11} parent=0 // loop_header
    %s7 = sphi 0, %s11
    %p8 = scmp.ge.s32.totalorder %s7, 4
    %s17 = sphi 0, %s19
    %s20 = sphi 0, %s17
    %s21 = sphi 0, %s20
    %s37 = sphi 0, %s21
    %s43 = sphi 0, %s45
    %s46 = sphi 0, %s43
    %s47 = sphi 0, %s46
    %s63 = sphi 0, %s47
  $region4: #{_lambda_.11} parent=0 // loop_header_branch
    %10 = sbr.rel (%p8) target = $region8
  $region5: #{_lambda_.11} parent=0 // loop_body
    %s12 = ssub.s32 %s7, 1
    %s13 = ssub.s32 %s7, 2
    %s14 = sadd.s32 %s7, 1
    %s15 = ssub.s32 %s7, %s14
    %p16 = scmp.eq.s32.totalorder %s15, 0
    %s18 = sadd.s32 %s17, 1
    %s19 = scalar_select %p16, %s17, %s18
    %p22 = pneg %p16
    %p23 = scmp.eq.s32.totalorder %s7, 1
    %p24 = por %p22, %p23
    %p25 = scmp.ne.s32.totalorder %s17, %s20
    %p26 = scmp.eq.s32.totalorder %s7, 0
    %p27 = por %p25, %p26
    %p28 = scmp.ne.s32.totalorder %s17, %s20
    %p29 = scmp.eq.s32.totalorder %s12, 1
    %p30 = por %p28, %p29
    %p31 = scmp.ne.s32.totalorder %s20, %s21
    %p32 = scmp.eq.s32.totalorder %s12, 0
    %p33 = por %p31, %p32
    %p34 = scmp.ne.s32.totalorder %s20, %s21
    %p35 = scmp.eq.s32.totalorder %s13, 1
    %p36 = por %p34, %p35
    %p38 = scmp.ne.s32.totalorder %s21, %s37
    %p39 = scmp.eq.s32.totalorder %s13, 0
    %p40 = por %p38, %p39
    %s41 = ssub.s32 %s7, %s14
    %p42 = scmp.eq.s32.totalorder %s41, 0
    %s44 = sadd.s32 %s43, 1
    %s45 = scalar_select %p42, %s43, %s44
    %p48 = pneg %p42
    %p49 = scmp.eq.s32.totalorder %s7, 1
    %p50 = por %p48, %p49
    %p51 = scmp.ne.s32.totalorder %s43, %s46
    %p52 = scmp.eq.s32.totalorder %s7, 0
    %p53 = por %p51, %p52
    %p54 = scmp.ne.s32.totalorder %s43, %s46
    %p55 = scmp.eq.s32.totalorder %s12, 1
    %p56 = por %p54, %p55
    %p57 = scmp.ne.s32.totalorder %s46, %s47
    %p58 = scmp.eq.s32.totalorder %s12, 0
    %p59 = por %p57, %p58
    %p60 = scmp.ne.s32.totalorder %s46, %s47
    %p61 = scmp.eq.s32.totalorder %s13, 1
    %p62 = por %p60, %p61
    %p64 = scmp.ne.s32.totalorder %s47, %s63
    %p65 = scmp.eq.s32.totalorder %s13, 0
    %p66 = por %p64, %p65
    %p67 = scmp.le.s32.totalorder 1, %s7
    %p68 = scmp.lt.s32.totalorder %s7, 3
    %p69 = pnand %p67, %p68
    %p70 = pneg %p69
    // Predicated region
    $region9: #{_lambda_.11} parent=5 // pred_check
      _
    $region10: #{_lambda_.11} parent=5 // pred_check_branch
      %72 = sbr.rel (%p69) target = $region12
    $region11: #{_lambda_.11} parent=5 // pred_region
      %s73 = ssub.s32 %s7, 1
    $region12: #{_lambda_.11} parent=5 // pred_fallthru
      _
    %p74 = scmp.lt.s32.totalorder %s7, 2
    // Predicated region
    $region13: #{_lambda_.11} parent=5 // pred_check
      %p75 = pneg %p74
    $region14: #{_lambda_.11} parent=5 // pred_check_branch
      %77 = sbr.rel (%p75) target = $region16
    $region15: #{_lambda_.11} parent=5 // pred_region
      // Predicated region
      $region17: #{_lambda_.11} parent=15 // pred_check
        %p78 = pneg %p27
      $region18: #{_lambda_.11} parent=15 // pred_check_branch
        %80 = sbr.rel (%p78) target = $region20
      $region19: #{_lambda_.11} parent=15 // pred_region
        %p81 = scmp.lt.s32.totalorder %s7, 1
        %s82 = scalar_select %p81, %s7, 1
        %s83 = smul.addr %s82, 14
        %s84 = smul.addr %s83, 4
        %s85 = scalar_lea.vmem %s0, %s84
      $region20: #{_lambda_.11} parent=15 // pred_fallthru
        _
    $region16: #{_lambda_.11} parent=5 // pred_fallthru
      _
    %p86 = scmp.le.s32.totalorder 1, %s7
    %p87 = scmp.lt.s32.totalorder %s7, 3
    %p88 = pnand %p86, %p87
    %p89 = pneg %p88
    // Predicated region
    $region21: #{_lambda_.11} parent=5 // pred_check
      _
    $region22: #{_lambda_.11} parent=5 // pred_check_branch
      %91 = sbr.rel (%p88) target = $region24
    $region23: #{_lambda_.11} parent=5 // pred_region
      %s92 = ssub.s32 %s7, 1
      %p93 = scmp.lt.s32.totalorder %s12, 1
      %s94 = scalar_select %p93, %s12, 1
      %s95 = smul.addr %s94, 14
      %s96 = smul.addr %s95, 4
      %s97 = scalar_lea.vmem %s0, %s96
      %p98 = pneg %p33
      %p99 = pneg %p30
      %p100 = pneg %p59
      %p101 = pneg %p56
      %p102 = scmp.lt.s32.totalorder %s12, 1
      %s103 = scalar_select %p102, %s12, 1
      %s104 = smul.addr %s103, 6
      %s105 = smul.addr %s104, 2
      %s106 = scalar_lea.vmem %s1, %s105
      %p107 = scmp.lt.s32.totalorder %s12, 1
      %s108 = scalar_select %p107, %s12, 1
      %s109 = smul.addr %s108, 14
      %s110 = smul.addr %s109, 4
      %s111 = scalar_lea.vmem %s0, %s110
      %p112 = scmp.lt.s32.totalorder %s12, 1
      %s113 = scalar_select %p112, %s12, 1
      %s114 = smul.addr %s113, 6
      %s115 = smul.addr %s114, 2
      %s116 = scalar_lea.vmem %s1, %s115
      %v117 = vld [vmem:[%s111] sm:$0xff]
      %v118 = vld [vmem:[%s111 + $0x8] sm:$0xff]
      %v119 = vld [vmem:[%s111 + $0x10] sm:$0xff]
      %v120 = vld [vmem:[%s111 + $0x18] sm:$0xff]
      %v121 = vld [vmem:[%s111 + $0x20] sm:$0xff]
      %v122 = vld [vmem:[%s111 + $0x28] sm:$0xff]
      %v123 = vld [vmem:[%s111 + $0x30] sm:$0xff]
      %v124 = vunpack.c.l.bf16 %v117
      %v125 = vunpack.c.h.bf16 %v117
      %v126 = vunpack.c.l.bf16 %v119
      %v127 = vunpack.c.h.bf16 %v119
      %v128 = vunpack.c.l.bf16 %v121
      %v129 = vunpack.c.h.bf16 %v121
      %v130 = vunpack.c.l.bf16 %v118
      %v131 = vunpack.c.h.bf16 %v118
      %v132 = vunpack.c.l.bf16 %v120
      %v133 = vunpack.c.h.bf16 %v120
      %v134 = vunpack.c.l.bf16 %v122
      %v135 = vunpack.c.h.bf16 %v122
      %v136 = vmax.f32 %v124, %v130
      %v137 = vmax.f32 %v125, %v131
      %v138 = vmax.f32 %v126, %v132
      %v139 = vmax.f32 %v127, %v133
      %v140 = vmax.f32 %v128, %v134
      %v141 = vmax.f32 %v129, %v135
      %v142 = vpack.c.bf16 %v137, %v136
      %v143 = vpack.c.bf16 %v139, %v138
      %v144 = vpack.c.bf16 %v141, %v140
      %v145 = vunpack.c.l.bf16 %v142
      %v146 = vunpack.c.h.bf16 %v142
      %v147 = vunpack.c.l.bf16 %v143
      %v148 = vunpack.c.h.bf16 %v143
      %v149 = vunpack.c.l.bf16 %v144
      %v150 = vunpack.c.h.bf16 %v144
      %v151 = vunpack.c.l.bf16 %v123
      %v152 = vunpack.c.h.bf16 %v123
      %v153 = vmax.f32 %v145, %v126
      %v154 = vmax.f32 %v146, %v127
      %v155 = vmax.f32 %v147, %v128
      %v156 = vmax.f32 %v148, %v129
      %v157 = vmax.f32 %v149, %v151
      %v158 = vmax.f32 %v150, %v152
      %v159 = vpack.c.bf16 %v154, %v153
      %v160 = vpack.c.bf16 %v156, %v155
      %v161 = vpack.c.bf16 %v158, %v157
      %v162 = vunpack.c.l.bf16 %v159
      %v163 = vunpack.c.h.bf16 %v159
      %v164 = vunpack.c.l.bf16 %v160
      %v165 = vunpack.c.h.bf16 %v160
      %v166 = vunpack.c.l.bf16 %v161
      %v167 = vunpack.c.h.bf16 %v161
      %v174 = vrot.slane %v162, 1
      %v175 = vrot.slane %v163, 1
      %v176 = vrot.slane %v164, 1
      %v177 = vrot.slane %v165, 1
      %v178 = vrot.slane %v166, 1
      %v179 = vrot.slane %v167, 1
      %v186 = vmax.f32 %v162, %v174
      %v187 = vmax.f32 %v163, %v175
      %v188 = vmax.f32 %v164, %v176
      %v189 = vmax.f32 %v165, %v177
      %v190 = vmax.f32 %v166, %v178
      %v191 = vmax.f32 %v167, %v179
      %v192 = vpack.c.bf16 %v187, %v186
      %v193 = vpack.c.bf16 %v189, %v188
      %v194 = vpack.c.bf16 %v191, %v190
      %v195 = vunpack.c.l.bf16 %v192
      %v196 = vunpack.c.h.bf16 %v192
      %v197 = vunpack.c.l.bf16 %v193
      %v198 = vunpack.c.h.bf16 %v193
      %v199 = vunpack.c.l.bf16 %v194
      %v200 = vunpack.c.h.bf16 %v194
      %v201 = vrot.slane %v162, 2
      %v202 = vrot.slane %v163, 2
      %v203 = vrot.slane %v164, 2
      %v204 = vrot.slane %v165, 2
      %v205 = vrot.slane %v166, 2
      %v206 = vrot.slane %v167, 2
      %v213 = vmax.f32 %v195, %v201
      %v214 = vmax.f32 %v196, %v202
      %v215 = vmax.f32 %v197, %v203
      %v216 = vmax.f32 %v198, %v204
      %v217 = vmax.f32 %v199, %v205
      %v218 = vmax.f32 %v200, %v206
      %v219 = vpack.c.bf16 %v214, %v213
      %v220 = vpack.c.bf16 %v216, %v215
      %v221 = vpack.c.bf16 %v218, %v217
      %v223 = vunpack.c.l.b16 %v219
      %v224 = vunpack.c.h.b16 %v219
      %v225 = vpack.c.b16 %v223, %v223
      %v226 = vpack.c.b16 %v224, %v224
      %v230 = vshll.u32 %v225, 16
      %v232 = vrot.slane %v230, 1
      %v234 = vshll.u32 %v226, 16
      %v236 = vrot.slane %v234, 1
      %v239 = vrot.slane %v225, 1
      %v240 = vrot.slane %v226, 1
      %vm241 = vcmask 1040384
      %vm242 = vsmask.f32 256
      %vm243 = vmand %vm241, %vm242
      %v244 = vsel %vm243, %v225, %v232
      %v245 = vsel %vm243, %v226, %v236
      %vm246 = vcmask 1040384
      %v249 = vsel %vm246, %v244, %v239
      %v252 = vsel %vm246, %v245, %v240
      %v254 = vunpack.c.l.b16 %v220
      %v255 = vunpack.c.h.b16 %v220
      %v256 = vpack.c.b16 %v254, %v254
      %v257 = vpack.c.b16 %v255, %v255
      %v261 = vshll.u32 %v256, 16
      %v263 = vrot.slane %v261, 1
      %v265 = vshll.u32 %v257, 16
      %v267 = vrot.slane %v265, 1
      %v270 = vrot.slane %v256, 1
      %v271 = vrot.slane %v257, 1
      %v272 = vsel %vm243, %v256, %v263
      %v273 = vsel %vm243, %v257, %v267
      %v276 = vsel %vm246, %v272, %v270
      %v279 = vsel %vm246, %v273, %v271
      %v281 = vunpack.c.l.b16 %v221
      %v282 = vunpack.c.h.b16 %v221
      %v283 = vpack.c.b16 %v281, %v281
      %v284 = vpack.c.b16 %v282, %v282
      %v288 = vshll.u32 %v283, 16
      %v290 = vrot.slane %v288, 1
      %v292 = vshll.u32 %v284, 16
      %v294 = vrot.slane %v292, 1
      %v297 = vrot.slane %v283, 1
      %v298 = vrot.slane %v284, 1
      %v299 = vsel %vm243, %v283, %v290
      %v300 = vsel %vm243, %v284, %v294
      %v303 = vsel %vm246, %v299, %v297
      %v306 = vsel %vm246, %v300, %v298
      %v310 = vrot.slane %v252, 6
      %v311 = vrot.slane %v279, 6
      %v312 = vrot.slane %v306, 6
      %vm313 = vcmask 1041408
      %v315 = vsel %vm313, %v249, %v310
      %v317 = vsel %vm313, %v276, %v311
      %v319 = vsel %vm313, %v303, %v312
      %vm323 = vcmask 1041408
      %vm324 = vsmask.f32 1280
      %vm325 = vmand %vm323, %vm324
      %vm326 = vcmask 519170
      %vm327 = vsmask.f32 3328
      %vm328 = vmand %vm326, %vm327
      %vm329 = vmor %vm328, %vm325
      %v330 = vld [vmem:[%s116] sm:$0xf]
      %v331 = vsel %vm329, %v315, %v330
      %332 = vst [vmem:[%s116] sm:$0xf] %v331
      %v333 = vld [vmem:[%s116 + $0x4] sm:$0xf]
      %v334 = vsel %vm329, %v317, %v333
      %335 = vst [vmem:[%s116 + $0x4] sm:$0xf] %v334
      %v336 = vld [vmem:[%s116 + $0x8] sm:$0xf]
      %v337 = vsel %vm329, %v319, %v336
      %338 = vst [vmem:[%s116 + $0x8] sm:$0xf] %v337
      %p339 = scmp.lt.s32.totalorder %s12, 1
      %s340 = scalar_select %p339, %s12, 1
      %s341 = smul.addr %s340, 6
      %s342 = smul.addr %s341, 2
      %s343 = scalar_lea.vmem %s1, %s342
      // Predicated region
      $region25: #{_lambda_.11} parent=23 // pred_check
        %p344 = pneg %p56
      $region26: #{_lambda_.11} parent=23 // pred_check_branch
        %346 = sbr.rel (%p344) target = $region28
      $region27: #{_lambda_.11} parent=23 // pred_region
        _
      $region28: #{_lambda_.11} parent=23 // pred_fallthru
        _
    $region24: #{_lambda_.11} parent=5 // pred_fallthru
      _
    %p347 = scmp.le.s32.totalorder 2, %s7
    // Predicated region
    $region29: #{_lambda_.11} parent=5 // pred_check
      %p348 = pneg %p347
    $region30: #{_lambda_.11} parent=5 // pred_check_branch
      %350 = sbr.rel (%p348) target = $region32
    $region31: #{_lambda_.11} parent=5 // pred_region
      %s351 = ssub.s32 %s7, 2
      // Predicated region
      $region33: #{_lambda_.11} parent=31 // pred_check
        %p352 = pneg %p62
      $region34: #{_lambda_.11} parent=31 // pred_check_branch
        %354 = sbr.rel (%p352) target = $region36
      $region35: #{_lambda_.11} parent=31 // pred_region
        %p355 = scmp.lt.s32.totalorder %s13, 1
        %s356 = scalar_select %p355, %s13, 1
        %s357 = smul.addr %s356, 6
        %s358 = smul.addr %s357, 2
        %s359 = scalar_lea.vmem %s1, %s358
      $region36: #{_lambda_.11} parent=31 // pred_fallthru
        _
    $region32: #{_lambda_.11} parent=5 // pred_fallthru
      _
  $region6: #{_lambda_.11} parent=0 // loop_footer
    %s11 = sadd.s32 1, %s7
  $region7: #{_lambda_.11} parent=0 // loop_footer_branch
    %6 = sbr.rel target = $region3
  $region8: #{_lambda_.11} parent=0 // loop_exit
    _

// kernel: _lambda_.12
$region0: #{_lambda_.12}
  #allocation0 [shape = 'u32[]', space=smem, size = 0x4, offset = 0x4, fixed_abs, tag = 'smem constant byte address 0x4 - core index']
  #allocation1 [shape = 'u32[72,128]{1,0:T(1,128)}', space=vmem, size = 0x9000, scoped, tag = 'internal scratch']
  #allocation2 [shape = 'f32[128,128]{1,0:T(8,128)}', space=vmem, size = 0x10000, scoped, tag = 'scratch operand']
  %s0 = inlined_call_operand.vmem [shape: bf16[128,2048], index: 0, kind: input, shape index: {}]
  %s1 = inlined_call_operand.vmem [shape: bf16[2048,384], index: 1, kind: input, shape index: {}]
  %s2 = inlined_call_operand.vmem [shape: f32[1,384], index: 2, kind: input, shape index: {}]
  %s3 = inlined_call_operand.vmem [shape: bf16[128,384], index: 3, kind: output, shape index: {}]
  %s4 = sld [smem:[#allocation0]]
  $region154: #{_lambda_.12} parent=0
    _
  %s6 = ssub.s32 1, %s4
  %s7 = scalar_select 0, %s6, %s4
  $region1: #{_lambda_.12} parent=0
    #allocation3 [shape = 'u8[262144]{0}', space=vmem, size = 0x40000, scoped, tag = 'input window, operand 0']
    #allocation4 [shape = 'u8[262144]{0}', space=vmem, size = 0x40000, scoped, tag = 'input window, operand 1']
    #allocation5 [shape = 'u8[65536]{0}', space=vmem, size = 0x10000, scoped, tag = 'output window, operand 0']
    loop: start=0, step=1, limit=14
    $region2: #{_lambda_.12} parent=1 // loop_pre_header
      _
    $region3: #{_lambda_.12} parent=1 // loop_header
      %s9 = sphi 0, %s13
      %p10 = scmp.ge.s32.totalorder %s9, 14
      %s16 = sphi 0, %s35
      %s17 = sphi 0, %s31
      %s18 = sphi 0, %s27
      %s19 = sphi 0, %s16
      %s20 = sphi 0, %s17
      %s21 = sphi 0, %s18
      %s22 = sphi 0, %s19
      %s23 = sphi 0, %s20
      %s24 = sphi 0, %s21
      %s40 = sphi 0, %s42
      %s43 = sphi 0, %s40
      %s44 = sphi 0, %s43
      %s60 = sphi 0, %s44
      %s68 = sphi 0, %s70
      %s71 = sphi 0, %s68
      %s72 = sphi 0, %s71
      %s88 = sphi 0, %s72
      %s94 = sphi 0, %s96
      %s97 = sphi 0, %s94
      %s98 = sphi 0, %s97
      %s114 = sphi 0, %s98
      %s122 = sphi 0, %s124
      %s125 = sphi 0, %s122
      %s126 = sphi 0, %s125
      %s142 = sphi 0, %s126
    $region4: #{_lambda_.12} parent=1 // loop_header_branch
      %12 = sbr.rel (%p10) target = $region8
    $region5: #{_lambda_.12} parent=1 // loop_body
      %s14 = ssub.s32 %s9, 1
      %s15 = ssub.s32 %s9, 2
      %s25 = sadd.s32 1, %s18
      %p26 = scmp.ge.s32.totalorder %s25, 4
      %s27 = scalar_select %p26, 0, %s25
      %s28 = sadd.s32 1, %s17
      %s29 = scalar_select %p26, %s28, %s17
      %p30 = scmp.ge.s32.totalorder %s29, 3
      %s31 = scalar_select %p30, 0, %s29
      %s32 = sadd.s32 1, %s16
      %s33 = scalar_select %p30, %s32, %s16
      %p34 = scmp.ge.s32.totalorder %s33, 1
      %s35 = scalar_select %p34, 0, %s33
      %s36 = ssub.s32 %s16, %s35
      %s37 = ssub.s32 %s18, %s27
      %s38 = sor.u32 %s36, %s37
      %p39 = scmp.eq.s32.totalorder %s38, 0
      %s41 = sadd.s32 %s40, 1
      %s42 = scalar_select %p39, %s40, %s41
      %p45 = pneg %p39
      %p46 = scmp.eq.s32.totalorder %s9, 11
      %p47 = por %p45, %p46
      %p48 = scmp.ne.s32.totalorder %s40, %s43
      %p49 = scmp.eq.s32.totalorder %s9, 0
      %p50 = por %p48, %p49
      %p51 = scmp.ne.s32.totalorder %s40, %s43
      %p52 = scmp.eq.s32.totalorder %s14, 11
      %p53 = por %p51, %p52
      %p54 = scmp.ne.s32.totalorder %s43, %s44
      %p55 = scmp.eq.s32.totalorder %s14, 0
      %p56 = por %p54, %p55
      %p57 = scmp.ne.s32.totalorder %s43, %s44
      %p58 = scmp.eq.s32.totalorder %s15, 11
      %p59 = por %p57, %p58
      %p61 = scmp.ne.s32.totalorder %s44, %s60
      %p62 = scmp.eq.s32.totalorder %s15, 0
      %p63 = por %p61, %p62
      %s64 = ssub.s32 %s18, %s27
      %s65 = ssub.s32 %s17, %s31
      %s66 = sor.u32 %s64, %s65
      %p67 = scmp.eq.s32.totalorder %s66, 0
      %s69 = sadd.s32 %s68, 1
      %s70 = scalar_select %p67, %s68, %s69
      %p73 = pneg %p67
      %p74 = scmp.eq.s32.totalorder %s9, 11
      %p75 = por %p73, %p74
      %p76 = scmp.ne.s32.totalorder %s68, %s71
      %p77 = scmp.eq.s32.totalorder %s9, 0
      %p78 = por %p76, %p77
      %p79 = scmp.ne.s32.totalorder %s68, %s71
      %p80 = scmp.eq.s32.totalorder %s14, 11
      %p81 = por %p79, %p80
      %p82 = scmp.ne.s32.totalorder %s71, %s72
      %p83 = scmp.eq.s32.totalorder %s14, 0
      %p84 = por %p82, %p83
      %p85 = scmp.ne.s32.totalorder %s71, %s72
      %p86 = scmp.eq.s32.totalorder %s15, 11
      %p87 = por %p85, %p86
      %p89 = scmp.ne.s32.totalorder %s72, %s88
      %p90 = scmp.eq.s32.totalorder %s15, 0
      %p91 = por %p89, %p90
      %s92 = ssub.s32 %s17, %s31
      %p93 = scmp.eq.s32.totalorder %s92, 0
      %s95 = sadd.s32 %s94, 1
      %s96 = scalar_select %p93, %s94, %s95
      %p99 = pneg %p93
      %p100 = scmp.eq.s32.totalorder %s9, 11
      %p101 = por %p99, %p100
      %p102 = scmp.ne.s32.totalorder %s94, %s97
      %p103 = scmp.eq.s32.totalorder %s9, 0
      %p104 = por %p102, %p103
      %p105 = scmp.ne.s32.totalorder %s94, %s97
      %p106 = scmp.eq.s32.totalorder %s14, 11
      %p107 = por %p105, %p106
      %p108 = scmp.ne.s32.totalorder %s97, %s98
      %p109 = scmp.eq.s32.totalorder %s14, 0
      %p110 = por %p108, %p109
      %p111 = scmp.ne.s32.totalorder %s97, %s98
      %p112 = scmp.eq.s32.totalorder %s15, 11
      %p113 = por %p111, %p112
      %p115 = scmp.ne.s32.totalorder %s98, %s114
      %p116 = scmp.eq.s32.totalorder %s15, 0
      %p117 = por %p115, %p116
      %s118 = ssub.s32 %s16, %s35
      %s119 = ssub.s32 %s17, %s31
      %s120 = sor.u32 %s118, %s119
      %p121 = scmp.eq.s32.totalorder %s120, 0
      %s123 = sadd.s32 %s122, 1
      %s124 = scalar_select %p121, %s122, %s123
      %p127 = pneg %p121
      %p128 = scmp.eq.s32.totalorder %s9, 11
      %p129 = por %p127, %p128
      %p130 = scmp.ne.s32.totalorder %s122, %s125
      %p131 = scmp.eq.s32.totalorder %s9, 0
      %p132 = por %p130, %p131
      %p133 = scmp.ne.s32.totalorder %s122, %s125
      %p134 = scmp.eq.s32.totalorder %s14, 11
      %p135 = por %p133, %p134
      %p136 = scmp.ne.s32.totalorder %s125, %s126
      %p137 = scmp.eq.s32.totalorder %s14, 0
      %p138 = por %p136, %p137
      %p139 = scmp.ne.s32.totalorder %s125, %s126
      %p140 = scmp.eq.s32.totalorder %s15, 11
      %p141 = por %p139, %p140
      %p143 = scmp.ne.s32.totalorder %s126, %s142
      %p144 = scmp.eq.s32.totalorder %s15, 0
      %p145 = por %p143, %p144
      %p146 = scmp.le.s32.totalorder 1, %s9
      %p147 = scmp.lt.s32.totalorder %s9, 13
      %p148 = pnand %p146, %p147
      %p149 = pneg %p148
      // Predicated region
      $region9: #{_lambda_.12} parent=5 // pred_check
        _
      $region10: #{_lambda_.12} parent=5 // pred_check_branch
        %151 = sbr.rel (%p148) target = $region12
      $region11: #{_lambda_.12} parent=5 // pred_region
        %s152 = ssub.s32 %s9, 1
      $region12: #{_lambda_.12} parent=5 // pred_fallthru
        _
      %p153 = scmp.lt.s32.totalorder %s9, 12
      // Predicated region
      $region13: #{_lambda_.12} parent=5 // pred_check
        %p154 = pneg %p153
      $region14: #{_lambda_.12} parent=5 // pred_check_branch
        %156 = sbr.rel (%p154) target = $region16
      $region15: #{_lambda_.12} parent=5 // pred_region
        // Predicated region
        $region17: #{_lambda_.12} parent=15 // pred_check
          %p157 = pneg %p50
        $region18: #{_lambda_.12} parent=15 // pred_check_branch
          %159 = sbr.rel (%p157) target = $region20
        $region19: #{_lambda_.12} parent=15 // pred_region
          %s160 = sand.u32 %s40, 1
          %s161 = sand.u32 %s40, 1
          %s162 = smul.addr %s161, 256
          %s163 = scalar_lea.vmem [#allocation3], %s162
          %s164 = smul.u32 16, %s16
          %s165 = smul.u32 4, %s18
          %s166 = smul.addr %s164, 16
          %s167 = sadd.s32 %s165, %s166
          %s168 = smul.addr %s167, 4
          %s169 = scalar_lea.vmem %s0, %s168
          // Predicated region
          $region21: #{_lambda_.12} parent=19 // pred_check
            _
          $region22: #{_lambda_.12} parent=19 // pred_check_branch
            %171 = sbr.rel (0) target = $region24
          $region23: #{_lambda_.12} parent=19 // pred_region
            // Predicated region
            $region25: #{_lambda_.12} parent=23 // pred_check
              _
            $region26: #{_lambda_.12} parent=23 // pred_check_branch
              %173 = sbr.rel (0) target = $region28
            $region27: #{_lambda_.12} parent=23 // pred_region
              loop: start=0, step=1, limit=1
              $region29: #{_lambda_.12} parent=27 // loop_pre_header
                _
              $region30: #{_lambda_.12} parent=27 // loop_header
                %s175 = sphi 0, %s179
                %p176 = scmp.ge.s32.totalorder %s175, 1
                %s180 = sphi %s169, %s169
                %s181 = sphi %s163, %s163
              $region31: #{_lambda_.12} parent=27 // loop_header_branch
                %178 = sbr.rel (%p176) target = $region35
              $region32: #{_lambda_.12} parent=27 // loop_body
                %v182 = vld [vmem:[%s180] sm:$0xff]
                %183 = vst [vmem:[%s181] sm:$0xff] %v182
                %v184 = vld [vmem:[%s180 + $0x8] sm:$0xff]
                %185 = vst [vmem:[%s181 + $0x8] sm:$0xff] %v184
                %v186 = vld [vmem:[%s180 + $0x40] sm:$0xff]
                %187 = vst [vmem:[%s181 + $0x10] sm:$0xff] %v186
                %v188 = vld [vmem:[%s180 + $0x48] sm:$0xff]
                %189 = vst [vmem:[%s181 + $0x18] sm:$0xff] %v188
                %v190 = vld [vmem:[%s180 + $0x80] sm:$0xff]
                %191 = vst [vmem:[%s181 + $0x20] sm:$0xff] %v190
                %v192 = vld [vmem:[%s180 + $0x88] sm:$0xff]
                %193 = vst [vmem:[%s181 + $0x28] sm:$0xff] %v192
                %v194 = vld [vmem:[%s180 + $0xc0] sm:$0xff]
                %195 = vst [vmem:[%s181 + $0x30] sm:$0xff] %v194
                %v196 = vld [vmem:[%s180 + $0xc8] sm:$0xff]
                %197 = vst [vmem:[%s181 + $0x38] sm:$0xff] %v196
                %v198 = vld [vmem:[%s180 + $0x100] sm:$0xff]
                %199 = vst [vmem:[%s181 + $0x40] sm:$0xff] %v198
                %v200 = vld [vmem:[%s180 + $0x108] sm:$0xff]
                %201 = vst [vmem:[%s181 + $0x48] sm:$0xff] %v200
                %v202 = vld [vmem:[%s180 + $0x140] sm:$0xff]
                %203 = vst [vmem:[%s181 + $0x50] sm:$0xff] %v202
                %v204 = vld [vmem:[%s180 + $0x148] sm:$0xff]
                %205 = vst [vmem:[%s181 + $0x58] sm:$0xff] %v204
                %v206 = vld [vmem:[%s180 + $0x180] sm:$0xff]
                %207 = vst [vmem:[%s181 + $0x60] sm:$0xff] %v206
                %v208 = vld [vmem:[%s180 + $0x188] sm:$0xff]
                %209 = vst [vmem:[%s181 + $0x68] sm:$0xff] %v208
                %v210 = vld [vmem:[%s180 + $0x1c0] sm:$0xff]
                %211 = vst [vmem:[%s181 + $0x70] sm:$0xff] %v210
                %v212 = vld [vmem:[%s180 + $0x1c8] sm:$0xff]
                %213 = vst [vmem:[%s181 + $0x78] sm:$0xff] %v212
                %v214 = vld [vmem:[%s180 + $0x200] sm:$0xff]
                %215 = vst [vmem:[%s181 + $0x80] sm:$0xff] %v214
                %v216 = vld [vmem:[%s180 + $0x208] sm:$0xff]
                %217 = vst [vmem:[%s181 + $0x88] sm:$0xff] %v216
                %v218 = vld [vmem:[%s180 + $0x240] sm:$0xff]
                %219 = vst [vmem:[%s181 + $0x90] sm:$0xff] %v218
                %v220 = vld [vmem:[%s180 + $0x248] sm:$0xff]
                %221 = vst [vmem:[%s181 + $0x98] sm:$0xff] %v220
                %v222 = vld [vmem:[%s180 + $0x280] sm:$0xff]
                %223 = vst [vmem:[%s181 + $0xa0] sm:$0xff] %v222
                %v224 = vld [vmem:[%s180 + $0x288] sm:$0xff]
                %225 = vst [vmem:[%s181 + $0xa8] sm:$0xff] %v224
                %v226 = vld [vmem:[%s180 + $0x2c0] sm:$0xff]
                %227 = vst [vmem:[%s181 + $0xb0] sm:$0xff] %v226
                %v228 = vld [vmem:[%s180 + $0x2c8] sm:$0xff]
                %229 = vst [vmem:[%s181 + $0xb8] sm:$0xff] %v228
                %v230 = vld [vmem:[%s180 + $0x300] sm:$0xff]
                %231 = vst [vmem:[%s181 + $0xc0] sm:$0xff] %v230
                %v232 = vld [vmem:[%s180 + $0x308] sm:$0xff]
                %233 = vst [vmem:[%s181 + $0xc8] sm:$0xff] %v232
                %v234 = vld [vmem:[%s180 + $0x340] sm:$0xff]
                %235 = vst [vmem:[%s181 + $0xd0] sm:$0xff] %v234
                %v236 = vld [vmem:[%s180 + $0x348] sm:$0xff]
                %237 = vst [vmem:[%s181 + $0xd8] sm:$0xff] %v236
                %v238 = vld [vmem:[%s180 + $0x380] sm:$0xff]
                %239 = vst [vmem:[%s181 + $0xe0] sm:$0xff] %v238
                %v240 = vld [vmem:[%s180 + $0x388] sm:$0xff]
                %241 = vst [vmem:[%s181 + $0xe8] sm:$0xff] %v240
                %v242 = vld [vmem:[%s180 + $0x3c0] sm:$0xff]
                %243 = vst [vmem:[%s181 + $0xf0] sm:$0xff] %v242
                %v244 = vld [vmem:[%s180 + $0x3c8] sm:$0xff]
                %245 = vst [vmem:[%s181 + $0xf8] sm:$0xff] %v244
              $region33: #{_lambda_.12} parent=27 // loop_footer
                %s179 = sadd.s32 1, %s175
              $region34: #{_lambda_.12} parent=27 // loop_footer_branch
                %174 = sbr.rel target = $region30
              $region35: #{_lambda_.12} parent=27 // loop_exit
                _
            $region28: #{_lambda_.12} parent=23 // pred_fallthru
              _
            // Predicated region
            $region36: #{_lambda_.12} parent=23 // pred_check
              _
            $region37: #{_lambda_.12} parent=23 // pred_check_branch
              %247 = sbr.rel target = $region39
            $region38: #{_lambda_.12} parent=23 // pred_region
              _
            $region39: #{_lambda_.12} parent=23 // pred_fallthru
              _
          $region24: #{_lambda_.12} parent=19 // pred_fallthru
            _
          %248 = vnop
        $region20: #{_lambda_.12} parent=15 // pred_fallthru
          _
        // Predicated region
        $region40: #{_lambda_.12} parent=15 // pred_check
          %p249 = pneg %p78
        $region41: #{_lambda_.12} parent=15 // pred_check_branch
          %251 = sbr.rel (%p249) target = $region43
        $region42: #{_lambda_.12} parent=15 // pred_region
          %s252 = sand.u32 %s68, 1
          %s253 = sand.u32 %s68, 1
          %s254 = smul.addr %s253, 256
          %s255 = scalar_lea.vmem [#allocation4], %s254
          %s256 = smul.u32 64, %s18
          %s257 = smul.addr %s256, 3
          %s258 = sadd.s32 %s17, %s257
          %s259 = smul.addr %s258, 4
          %s260 = scalar_lea.vmem %s1, %s259
          // Predicated region
          $region44: #{_lambda_.12} parent=42 // pred_check
            _
          $region45: #{_lambda_.12} parent=42 // pred_check_branch
            %262 = sbr.rel (0) target = $region47
          $region46: #{_lambda_.12} parent=42 // pred_region
            // Predicated region
            $region48: #{_lambda_.12} parent=46 // pred_check
              _
            $region49: #{_lambda_.12} parent=46 // pred_check_branch
              %264 = sbr.rel target = $region51
            $region50: #{_lambda_.12} parent=46 // pred_region
              // Predicated region
              $region63: #{_lambda_.12} parent=50 // pred_check
                _
              $region64: #{_lambda_.12} parent=50 // pred_check_branch
                %406 = sbr.rel (0) target = $region66
              $region65: #{_lambda_.12} parent=50 // pred_region
                loop: start=0, step=1, limit=1
                $region67: #{_lambda_.12} parent=65 // loop_pre_header
                  _
                $region68: #{_lambda_.12} parent=65 // loop_header
                  %s408 = sphi 0, %s412
                  %p409 = scmp.ge.s32.totalorder %s408, 1
                  %s413 = sphi %s260, %s260
                  %s414 = sphi %s255, %s255
                $region69: #{_lambda_.12} parent=65 // loop_header_branch
                  %411 = sbr.rel (%p409) target = $region73
                $region70: #{_lambda_.12} parent=65 // loop_body
                  _
                $region71: #{_lambda_.12} parent=65 // loop_footer
                  %s412 = sadd.s32 1, %s408
                $region72: #{_lambda_.12} parent=65 // loop_footer_branch
                  %407 = sbr.rel target = $region68
                $region73: #{_lambda_.12} parent=65 // loop_exit
                  _
                %s416 = ssub.s32 16, 1
                loop: start=0, step=1, limit=1
                $region74: #{_lambda_.12} parent=65 // loop_pre_header
                  _
                $region75: #{_lambda_.12} parent=65 // loop_header
                  %s418 = sphi 0, %s422
                  %p419 = scmp.ge.s32.totalorder %s418, 1
                  %s423 = sphi %s260, %s260
                  %s424 = sphi %s255, %s255
                $region76: #{_lambda_.12} parent=65 // loop_header_branch
                  %421 = sbr.rel (%p419) target = $region80
                $region77: #{_lambda_.12} parent=65 // loop_body
                  %v425 = vld [vmem:[%s423] sm:%s416]
                  %426 = vst [vmem:[%s424] sm:%s416] %v425
                  %v427 = vld [vmem:[%s423 + $0xc] sm:%s416]
                  %428 = vst [vmem:[%s424 + $0x4] sm:%s416] %v427
                  %v429 = vld [vmem:[%s423 + $0x18] sm:%s416]
                  %430 = vst [vmem:[%s424 + $0x8] sm:%s416] %v429
                  %v431 = vld [vmem:[%s423 + $0x24] sm:%s416]
                  %432 = vst [vmem:[%s424 + $0xc] sm:%s416] %v431
                  %v433 = vld [vmem:[%s423 + $0x30] sm:%s416]
                  %434 = vst [vmem:[%s424 + $0x10] sm:%s416] %v433
                  %v435 = vld [vmem:[%s423 + $0x3c] sm:%s416]
                  %436 = vst [vmem:[%s424 + $0x14] sm:%s416] %v435
                  %v437 = vld [vmem:[%s423 + $0x48] sm:%s416]
                  %438 = vst [vmem:[%s424 + $0x18] sm:%s416] %v437
                  %v439 = vld [vmem:[%s423 + $0x54] sm:%s416]
                  %440 = vst [vmem:[%s424 + $0x1c] sm:%s416] %v439
                  %v441 = vld [vmem:[%s423 + $0x60] sm:%s416]
                  %442 = vst [vmem:[%s424 + $0x20] sm:%s416] %v441
                  %v443 = vld [vmem:[%s423 + $0x6c] sm:%s416]
                  %444 = vst [vmem:[%s424 + $0x24] sm:%s416] %v443
                  %v445 = vld [vmem:[%s423 + $0x78] sm:%s416]
                  %446 = vst [vmem:[%s424 + $0x28] sm:%s416] %v445
                  %v447 = vld [vmem:[%s423 + $0x84] sm:%s416]
                  %448 = vst [vmem:[%s424 + $0x2c] sm:%s416] %v447
                  %v449 = vld [vmem:[%s423 + $0x90] sm:%s416]
                  %450 = vst [vmem:[%s424 + $0x30] sm:%s416] %v449
                  %v451 = vld [vmem:[%s423 + $0x9c] sm:%s416]
                  %452 = vst [vmem:[%s424 + $0x34] sm:%s416] %v451
                  %v453 = vld [vmem:[%s423 + $0xa8] sm:%s416]
                  %454 = vst [vmem:[%s424 + $0x38] sm:%s416] %v453
                  %v455 = vld [vmem:[%s423 + $0xb4] sm:%s416]
                  %456 = vst [vmem:[%s424 + $0x3c] sm:%s416] %v455
                  %v457 = vld [vmem:[%s423 + $0xc0] sm:%s416]
                  %458 = vst [vmem:[%s424 + $0x40] sm:%s416] %v457
                  %v459 = vld [vmem:[%s423 + $0xcc] sm:%s416]
                  %460 = vst [vmem:[%s424 + $0x44] sm:%s416] %v459
                  %v461 = vld [vmem:[%s423 + $0xd8] sm:%s416]
                  %462 = vst [vmem:[%s424 + $0x48] sm:%s416] %v461
                  %v463 = vld [vmem:[%s423 + $0xe4] sm:%s416]
                  %464 = vst [vmem:[%s424 + $0x4c] sm:%s416] %v463
                  %v465 = vld [vmem:[%s423 + $0xf0] sm:%s416]
                  %466 = vst [vmem:[%s424 + $0x50] sm:%s416] %v465
                  %v467 = vld [vmem:[%s423 + $0xfc] sm:%s416]
                  %468 = vst [vmem:[%s424 + $0x54] sm:%s416] %v467
                  %v469 = vld [vmem:[%s423 + $0x108] sm:%s416]
                  %470 = vst [vmem:[%s424 + $0x58] sm:%s416] %v469
                  %v471 = vld [vmem:[%s423 + $0x114] sm:%s416]
                  %472 = vst [vmem:[%s424 + $0x5c] sm:%s416] %v471
                  %v473 = vld [vmem:[%s423 + $0x120] sm:%s416]
                  %474 = vst [vmem:[%s424 + $0x60] sm:%s416] %v473
                  %v475 = vld [vmem:[%s423 + $0x12c] sm:%s416]
                  %476 = vst [vmem:[%s424 + $0x64] sm:%s416] %v475
                  %v477 = vld [vmem:[%s423 + $0x138] sm:%s416]
                  %478 = vst [vmem:[%s424 + $0x68] sm:%s416] %v477
                  %v479 = vld [vmem:[%s423 + $0x144] sm:%s416]
                  %480 = vst [vmem:[%s424 + $0x6c] sm:%s416] %v479
                  %v481 = vld [vmem:[%s423 + $0x150] sm:%s416]
                  %482 = vst [vmem:[%s424 + $0x70] sm:%s416] %v481
                  %v483 = vld [vmem:[%s423 + $0x15c] sm:%s416]
                  %484 = vst [vmem:[%s424 + $0x74] sm:%s416] %v483
                  %v485 = vld [vmem:[%s423 + $0x168] sm:%s416]
                  %486 = vst [vmem:[%s424 + $0x78] sm:%s416] %v485
                  %v487 = vld [vmem:[%s423 + $0x174] sm:%s416]
                  %488 = vst [vmem:[%s424 + $0x7c] sm:%s416] %v487
                  %v489 = vld [vmem:[%s423 + $0x180] sm:%s416]
                  %490 = vst [vmem:[%s424 + $0x80] sm:%s416] %v489
                  %v491 = vld [vmem:[%s423 + $0x18c] sm:%s416]
                  %492 = vst [vmem:[%s424 + $0x84] sm:%s416] %v491
                  %v493 = vld [vmem:[%s423 + $0x198] sm:%s416]
                  %494 = vst [vmem:[%s424 + $0x88] sm:%s416] %v493
                  %v495 = vld [vmem:[%s423 + $0x1a4] sm:%s416]
                  %496 = vst [vmem:[%s424 + $0x8c] sm:%s416] %v495
                  %v497 = vld [vmem:[%s423 + $0x1b0] sm:%s416]
                  %498 = vst [vmem:[%s424 + $0x90] sm:%s416] %v497
                  %v499 = vld [vmem:[%s423 + $0x1bc] sm:%s416]
                  %500 = vst [vmem:[%s424 + $0x94] sm:%s416] %v499
                  %v501 = vld [vmem:[%s423 + $0x1c8] sm:%s416]
                  %502 = vst [vmem:[%s424 + $0x98] sm:%s416] %v501
                  %v503 = vld [vmem:[%s423 + $0x1d4] sm:%s416]
                  %504 = vst [vmem:[%s424 + $0x9c] sm:%s416] %v503
                  %v505 = vld [vmem:[%s423 + $0x1e0] sm:%s416]
                  %506 = vst [vmem:[%s424 + $0xa0] sm:%s416] %v505
                  %v507 = vld [vmem:[%s423 + $0x1ec] sm:%s416]
                  %508 = vst [vmem:[%s424 + $0xa4] sm:%s416] %v507
                  %v509 = vld [vmem:[%s423 + $0x1f8] sm:%s416]
                  %510 = vst [vmem:[%s424 + $0xa8] sm:%s416] %v509
                  %v511 = vld [vmem:[%s423 + $0x204] sm:%s416]
                  %512 = vst [vmem:[%s424 + $0xac] sm:%s416] %v511
                  %v513 = vld [vmem:[%s423 + $0x210] sm:%s416]
                  %514 = vst [vmem:[%s424 + $0xb0] sm:%s416] %v513
                  %v515 = vld [vmem:[%s423 + $0x21c] sm:%s416]
                  %516 = vst [vmem:[%s424 + $0xb4] sm:%s416] %v515
                  %v517 = vld [vmem:[%s423 + $0x228] sm:%s416]
                  %518 = vst [vmem:[%s424 + $0xb8] sm:%s416] %v517
                  %v519 = vld [vmem:[%s423 + $0x234] sm:%s416]
                  %520 = vst [vmem:[%s424 + $0xbc] sm:%s416] %v519
                  %v521 = vld [vmem:[%s423 + $0x240] sm:%s416]
                  %522 = vst [vmem:[%s424 + $0xc0] sm:%s416] %v521
                  %v523 = vld [vmem:[%s423 + $0x24c] sm:%s416]
                  %524 = vst [vmem:[%s424 + $0xc4] sm:%s416] %v523
                  %v525 = vld [vmem:[%s423 + $0x258] sm:%s416]
                  %526 = vst [vmem:[%s424 + $0xc8] sm:%s416] %v525
                  %v527 = vld [vmem:[%s423 + $0x264] sm:%s416]
                  %528 = vst [vmem:[%s424 + $0xcc] sm:%s416] %v527
                  %v529 = vld [vmem:[%s423 + $0x270] sm:%s416]
                  %530 = vst [vmem:[%s424 + $0xd0] sm:%s416] %v529
                  %v531 = vld [vmem:[%s423 + $0x27c] sm:%s416]
                  %532 = vst [vmem:[%s424 + $0xd4] sm:%s416] %v531
                  %v533 = vld [vmem:[%s423 + $0x288] sm:%s416]
                  %534 = vst [vmem:[%s424 + $0xd8] sm:%s416] %v533
                  %v535 = vld [vmem:[%s423 + $0x294] sm:%s416]
                  %536 = vst [vmem:[%s424 + $0xdc] sm:%s416] %v535
                  %v537 = vld [vmem:[%s423 + $0x2a0] sm:%s416]
                  %538 = vst [vmem:[%s424 + $0xe0] sm:%s416] %v537
                  %v539 = vld [vmem:[%s423 + $0x2ac] sm:%s416]
                  %540 = vst [vmem:[%s424 + $0xe4] sm:%s416] %v539
                  %v541 = vld [vmem:[%s423 + $0x2b8] sm:%s416]
                  %542 = vst [vmem:[%s424 + $0xe8] sm:%s416] %v541
                  %v543 = vld [vmem:[%s423 + $0x2c4] sm:%s416]
                  %544 = vst [vmem:[%s424 + $0xec] sm:%s416] %v543
                  %v545 = vld [vmem:[%s423 + $0x2d0] sm:%s416]
                  %546 = vst [vmem:[%s424 + $0xf0] sm:%s416] %v545
                  %v547 = vld [vmem:[%s423 + $0x2dc] sm:%s416]
                  %548 = vst [vmem:[%s424 + $0xf4] sm:%s416] %v547
                  %v549 = vld [vmem:[%s423 + $0x2e8] sm:%s416]
                  %550 = vst [vmem:[%s424 + $0xf8] sm:%s416] %v549
                  %v551 = vld [vmem:[%s423 + $0x2f4] sm:%s416]
                  %552 = vst [vmem:[%s424 + $0xfc] sm:%s416] %v551
                $region78: #{_lambda_.12} parent=65 // loop_footer
                  %s422 = sadd.s32 1, %s418
                $region79: #{_lambda_.12} parent=65 // loop_footer_branch
                  %417 = sbr.rel target = $region75
                $region80: #{_lambda_.12} parent=65 // loop_exit
                  _
              $region66: #{_lambda_.12} parent=50 // pred_fallthru
                _
            $region51: #{_lambda_.12} parent=46 // pred_fallthru
              _
            // Predicated region
            $region52: #{_lambda_.12} parent=46 // pred_check
              _
            $region53: #{_lambda_.12} parent=46 // pred_check_branch
              %266 = sbr.rel (0) target = $region55
            $region54: #{_lambda_.12} parent=46 // pred_region
              %s268 = ssub.s32 16, 1
              loop: start=0, step=1, limit=1
              $region56: #{_lambda_.12} parent=54 // loop_pre_header
                _
              $region57: #{_lambda_.12} parent=54 // loop_header
                %s270 = sphi 0, %s274
                %p271 = scmp.ge.s32.totalorder %s270, 1
                %s275 = sphi %s260, %s260
                %s276 = sphi %s255, %s255
              $region58: #{_lambda_.12} parent=54 // loop_header_branch
                %273 = sbr.rel (%p271) target = $region62
              $region59: #{_lambda_.12} parent=54 // loop_body
                %v277 = vld [vmem:[%s275] sm:%s268]
                %278 = vst [vmem:[%s276] sm:%s268] %v277
                %v279 = vld [vmem:[%s275 + $0xc] sm:%s268]
                %280 = vst [vmem:[%s276 + $0x4] sm:%s268] %v279
                %v281 = vld [vmem:[%s275 + $0x18] sm:%s268]
                %282 = vst [vmem:[%s276 + $0x8] sm:%s268] %v281
                %v283 = vld [vmem:[%s275 + $0x24] sm:%s268]
                %284 = vst [vmem:[%s276 + $0xc] sm:%s268] %v283
                %v285 = vld [vmem:[%s275 + $0x30] sm:%s268]
                %286 = vst [vmem:[%s276 + $0x10] sm:%s268] %v285
                %v287 = vld [vmem:[%s275 + $0x3c] sm:%s268]
                %288 = vst [vmem:[%s276 + $0x14] sm:%s268] %v287
                %v289 = vld [vmem:[%s275 + $0x48] sm:%s268]
                %290 = vst [vmem:[%s276 + $0x18] sm:%s268] %v289
                %v291 = vld [vmem:[%s275 + $0x54] sm:%s268]
                %292 = vst [vmem:[%s276 + $0x1c] sm:%s268] %v291
                %v293 = vld [vmem:[%s275 + $0x60] sm:%s268]
                %294 = vst [vmem:[%s276 + $0x20] sm:%s268] %v293
                %v295 = vld [vmem:[%s275 + $0x6c] sm:%s268]
                %296 = vst [vmem:[%s276 + $0x24] sm:%s268] %v295
                %v297 = vld [vmem:[%s275 + $0x78] sm:%s268]
                %298 = vst [vmem:[%s276 + $0x28] sm:%s268] %v297
                %v299 = vld [vmem:[%s275 + $0x84] sm:%s268]
                %300 = vst [vmem:[%s276 + $0x2c] sm:%s268] %v299
                %v301 = vld [vmem:[%s275 + $0x90] sm:%s268]
                %302 = vst [vmem:[%s276 + $0x30] sm:%s268] %v301
                %v303 = vld [vmem:[%s275 + $0x9c] sm:%s268]
                %304 = vst [vmem:[%s276 + $0x34] sm:%s268] %v303
                %v305 = vld [vmem:[%s275 + $0xa8] sm:%s268]
                %306 = vst [vmem:[%s276 + $0x38] sm:%s268] %v305
                %v307 = vld [vmem:[%s275 + $0xb4] sm:%s268]
                %308 = vst [vmem:[%s276 + $0x3c] sm:%s268] %v307
                %v309 = vld [vmem:[%s275 + $0xc0] sm:%s268]
                %310 = vst [vmem:[%s276 + $0x40] sm:%s268] %v309
                %v311 = vld [vmem:[%s275 + $0xcc] sm:%s268]
                %312 = vst [vmem:[%s276 + $0x44] sm:%s268] %v311
                %v313 = vld [vmem:[%s275 + $0xd8] sm:%s268]
                %314 = vst [vmem:[%s276 + $0x48] sm:%s268] %v313
                %v315 = vld [vmem:[%s275 + $0xe4] sm:%s268]
                %316 = vst [vmem:[%s276 + $0x4c] sm:%s268] %v315
                %v317 = vld [vmem:[%s275 + $0xf0] sm:%s268]
                %318 = vst [vmem:[%s276 + $0x50] sm:%s268] %v317
                %v319 = vld [vmem:[%s275 + $0xfc] sm:%s268]
                %320 = vst [vmem:[%s276 + $0x54] sm:%s268] %v319
                %v321 = vld [vmem:[%s275 + $0x108] sm:%s268]
                %322 = vst [vmem:[%s276 + $0x58] sm:%s268] %v321
                %v323 = vld [vmem:[%s275 + $0x114] sm:%s268]
                %324 = vst [vmem:[%s276 + $0x5c] sm:%s268] %v323
                %v325 = vld [vmem:[%s275 + $0x120] sm:%s268]
                %326 = vst [vmem:[%s276 + $0x60] sm:%s268] %v325
                %v327 = vld [vmem:[%s275 + $0x12c] sm:%s268]
                %328 = vst [vmem:[%s276 + $0x64] sm:%s268] %v327
                %v329 = vld [vmem:[%s275 + $0x138] sm:%s268]
                %330 = vst [vmem:[%s276 + $0x68] sm:%s268] %v329
                %v331 = vld [vmem:[%s275 + $0x144] sm:%s268]
                %332 = vst [vmem:[%s276 + $0x6c] sm:%s268] %v331
                %v333 = vld [vmem:[%s275 + $0x150] sm:%s268]
                %334 = vst [vmem:[%s276 + $0x70] sm:%s268] %v333
                %v335 = vld [vmem:[%s275 + $0x15c] sm:%s268]
                %336 = vst [vmem:[%s276 + $0x74] sm:%s268] %v335
                %v337 = vld [vmem:[%s275 + $0x168] sm:%s268]
                %338 = vst [vmem:[%s276 + $0x78] sm:%s268] %v337
                %v339 = vld [vmem:[%s275 + $0x174] sm:%s268]
                %340 = vst [vmem:[%s276 + $0x7c] sm:%s268] %v339
                %v341 = vld [vmem:[%s275 + $0x180] sm:%s268]
                %342 = vst [vmem:[%s276 + $0x80] sm:%s268] %v341
                %v343 = vld [vmem:[%s275 + $0x18c] sm:%s268]
                %344 = vst [vmem:[%s276 + $0x84] sm:%s268] %v343
                %v345 = vld [vmem:[%s275 + $0x198] sm:%s268]
                %346 = vst [vmem:[%s276 + $0x88] sm:%s268] %v345
                %v347 = vld [vmem:[%s275 + $0x1a4] sm:%s268]
                %348 = vst [vmem:[%s276 + $0x8c] sm:%s268] %v347
                %v349 = vld [vmem:[%s275 + $0x1b0] sm:%s268]
                %350 = vst [vmem:[%s276 + $0x90] sm:%s268] %v349
                %v351 = vld [vmem:[%s275 + $0x1bc] sm:%s268]
                %352 = vst [vmem:[%s276 + $0x94] sm:%s268] %v351
                %v353 = vld [vmem:[%s275 + $0x1c8] sm:%s268]
                %354 = vst [vmem:[%s276 + $0x98] sm:%s268] %v353
                %v355 = vld [vmem:[%s275 + $0x1d4] sm:%s268]
                %356 = vst [vmem:[%s276 + $0x9c] sm:%s268] %v355
                %v357 = vld [vmem:[%s275 + $0x1e0] sm:%s268]
                %358 = vst [vmem:[%s276 + $0xa0] sm:%s268] %v357
                %v359 = vld [vmem:[%s275 + $0x1ec] sm:%s268]
                %360 = vst [vmem:[%s276 + $0xa4] sm:%s268] %v359
                %v361 = vld [vmem:[%s275 + $0x1f8] sm:%s268]
                %362 = vst [vmem:[%s276 + $0xa8] sm:%s268] %v361
                %v363 = vld [vmem:[%s275 + $0x204] sm:%s268]
                %364 = vst [vmem:[%s276 + $0xac] sm:%s268] %v363
                %v365 = vld [vmem:[%s275 + $0x210] sm:%s268]
                %366 = vst [vmem:[%s276 + $0xb0] sm:%s268] %v365
                %v367 = vld [vmem:[%s275 + $0x21c] sm:%s268]
                %368 = vst [vmem:[%s276 + $0xb4] sm:%s268] %v367
                %v369 = vld [vmem:[%s275 + $0x228] sm:%s268]
                %370 = vst [vmem:[%s276 + $0xb8] sm:%s268] %v369
                %v371 = vld [vmem:[%s275 + $0x234] sm:%s268]
                %372 = vst [vmem:[%s276 + $0xbc] sm:%s268] %v371
                %v373 = vld [vmem:[%s275 + $0x240] sm:%s268]
                %374 = vst [vmem:[%s276 + $0xc0] sm:%s268] %v373
                %v375 = vld [vmem:[%s275 + $0x24c] sm:%s268]
                %376 = vst [vmem:[%s276 + $0xc4] sm:%s268] %v375
                %v377 = vld [vmem:[%s275 + $0x258] sm:%s268]
                %378 = vst [vmem:[%s276 + $0xc8] sm:%s268] %v377
                %v379 = vld [vmem:[%s275 + $0x264] sm:%s268]
                %380 = vst [vmem:[%s276 + $0xcc] sm:%s268] %v379
                %v381 = vld [vmem:[%s275 + $0x270] sm:%s268]
                %382 = vst [vmem:[%s276 + $0xd0] sm:%s268] %v381
                %v383 = vld [vmem:[%s275 + $0x27c] sm:%s268]
                %384 = vst [vmem:[%s276 + $0xd4] sm:%s268] %v383
                %v385 = vld [vmem:[%s275 + $0x288] sm:%s268]
                %386 = vst [vmem:[%s276 + $0xd8] sm:%s268] %v385
                %v387 = vld [vmem:[%s275 + $0x294] sm:%s268]
                %388 = vst [vmem:[%s276 + $0xdc] sm:%s268] %v387
                %v389 = vld [vmem:[%s275 + $0x2a0] sm:%s268]
                %390 = vst [vmem:[%s276 + $0xe0] sm:%s268] %v389
                %v391 = vld [vmem:[%s275 + $0x2ac] sm:%s268]
                %392 = vst [vmem:[%s276 + $0xe4] sm:%s268] %v391
                %v393 = vld [vmem:[%s275 + $0x2b8] sm:%s268]
                %394 = vst [vmem:[%s276 + $0xe8] sm:%s268] %v393
                %v395 = vld [vmem:[%s275 + $0x2c4] sm:%s268]
                %396 = vst [vmem:[%s276 + $0xec] sm:%s268] %v395
                %v397 = vld [vmem:[%s275 + $0x2d0] sm:%s268]
                %398 = vst [vmem:[%s276 + $0xf0] sm:%s268] %v397
                %v399 = vld [vmem:[%s275 + $0x2dc] sm:%s268]
                %400 = vst [vmem:[%s276 + $0xf4] sm:%s268] %v399
                %v401 = vld [vmem:[%s275 + $0x2e8] sm:%s268]
                %402 = vst [vmem:[%s276 + $0xf8] sm:%s268] %v401
                %v403 = vld [vmem:[%s275 + $0x2f4] sm:%s268]
                %404 = vst [vmem:[%s276 + $0xfc] sm:%s268] %v403
              $region60: #{_lambda_.12} parent=54 // loop_footer
                %s274 = sadd.s32 1, %s270
              $region61: #{_lambda_.12} parent=54 // loop_footer_branch
                %269 = sbr.rel target = $region57
              $region62: #{_lambda_.12} parent=54 // loop_exit
                _
            $region55: #{_lambda_.12} parent=46 // pred_fallthru
              _
          $region47: #{_lambda_.12} parent=42 // pred_fallthru
            _
          %553 = vnop
        $region43: #{_lambda_.12} parent=15 // pred_fallthru
          _
        // Predicated region
        $region81: #{_lambda_.12} parent=15 // pred_check
          %p554 = pneg %p104
        $region82: #{_lambda_.12} parent=15 // pred_check_branch
          %556 = sbr.rel (%p554) target = $region84
        $region83: #{_lambda_.12} parent=15 // pred_region
          %p557 = scmp.lt.s32.totalorder %s17, 2
          %s558 = scalar_select %p557, %s17, 2
          %s559 = scalar_lea.vmem %s2, %s558
        $region84: #{_lambda_.12} parent=15 // pred_fallthru
          _
      $region16: #{_lambda_.12} parent=5 // pred_fallthru
        _
      %p560 = scmp.le.s32.totalorder 1, %s9
      %p561 = scmp.lt.s32.totalorder %s9, 13
      %p562 = pnand %p560, %p561
      %p563 = pneg %p562
      // Predicated region
      $region85: #{_lambda_.12} parent=5 // pred_check
        _
      $region86: #{_lambda_.12} parent=5 // pred_check_branch
        %565 = sbr.rel (%p562) target = $region88
      $region87: #{_lambda_.12} parent=5 // pred_region
        %s566 = ssub.s32 %s9, 1
        %s567 = sand.u32 %s43, 1
        %s568 = sand.u32 %s43, 1
        %s569 = smul.addr %s568, 256
        %s570 = scalar_lea.vmem [#allocation3], %s569
        // Predicated region
        $region89: #{_lambda_.12} parent=87 // pred_check
          %p571 = pneg %p56
        $region90: #{_lambda_.12} parent=87 // pred_check_branch
          %573 = sbr.rel (%p571) target = $region92
        $region91: #{_lambda_.12} parent=87 // pred_region
          _
        $region92: #{_lambda_.12} parent=87 // pred_fallthru
          _
        %s574 = sand.u32 %s71, 1
        %s575 = sand.u32 %s71, 1
        %s576 = smul.addr %s575, 256
        %s577 = scalar_lea.vmem [#allocation4], %s576
        // Predicated region
        $region93: #{_lambda_.12} parent=87 // pred_check
          %p578 = pneg %p84
        $region94: #{_lambda_.12} parent=87 // pred_check_branch
          %580 = sbr.rel (%p578) target = $region96
        $region95: #{_lambda_.12} parent=87 // pred_region
          _
        $region96: #{_lambda_.12} parent=87 // pred_fallthru
          _
        %s581 = sand.u32 %s43, 1
        %s582 = sand.u32 %s43, 1
        %s583 = smul.addr %s582, 256
        %s584 = scalar_lea.vmem [#allocation3], %s583
        %p585 = pneg %p56
        %p586 = pneg %p53
        %s587 = sand.u32 %s71, 1
        %s588 = sand.u32 %s71, 1
        %s589 = smul.addr %s588, 256
        %s590 = scalar_lea.vmem [#allocation4], %s589
        %p591 = pneg %p84
        %p592 = pneg %p81
        %p593 = scmp.lt.s32.totalorder %s20, 2
        %s594 = scalar_select %p593, %s20, 2
        %s595 = scalar_lea.vmem %s2, %s594
        %p596 = pneg %p110
        %p597 = pneg %p107
        %p598 = pneg %p138
        %p599 = pneg %p135
        %s600 = sand.u32 %s125, 1
        %s601 = sand.u32 %s125, 1
        %s602 = smul.addr %s601, 64
        %s603 = scalar_lea.vmem [#allocation5], %s602
        %s604 = smul.u32 16, %s19
        %s605 = smul.u32 4, %s21
        %s606 = smul.u32 64, %s21
        %p607 = scmp.lt.s32.totalorder %s20, 2
        %s608 = scalar_select %p607, %s20, 2
        %s609 = scalar_lea.vmem %s2, %s608
        %s610 = smul.u32 16, %s19
        %p611 = scmp.eq.s32.totalorder %s21, 0
        // Predicated region
        $region97: #{_lambda_.12} parent=87 // pred_check
          %p612 = pneg %p611
        $region98: #{_lambda_.12} parent=87 // pred_check_branch
          %614 = sbr.rel (%p612) target = $region100
        $region99: #{_lambda_.12} parent=87 // pred_region
          %615 = vst [vmem:[#allocation2] sm:$0xff] 0.0
          %616 = vst [vmem:[#allocation2 + $0x8] sm:$0xff] 0.0
          %617 = vst [vmem:[#allocation2 + $0x10] sm:$0xff] 0.0
          %618 = vst [vmem:[#allocation2 + $0x18] sm:$0xff] 0.0
          %619 = vst [vmem:[#allocation2 + $0x20] sm:$0xff] 0.0
          %620 = vst [vmem:[#allocation2 + $0x28] sm:$0xff] 0.0
          %621 = vst [vmem:[#allocation2 + $0x30] sm:$0xff] 0.0
          %622 = vst [vmem:[#allocation2 + $0x38] sm:$0xff] 0.0
          %623 = vst [vmem:[#allocation2 + $0x40] sm:$0xff] 0.0
          %624 = vst [vmem:[#allocation2 + $0x48] sm:$0xff] 0.0
          %625 = vst [vmem:[#allocation2 + $0x50] sm:$0xff] 0.0
          %626 = vst [vmem:[#allocation2 + $0x58] sm:$0xff] 0.0
          %627 = vst [vmem:[#allocation2 + $0x60] sm:$0xff] 0.0
          %628 = vst [vmem:[#allocation2 + $0x68] sm:$0xff] 0.0
          %629 = vst [vmem:[#allocation2 + $0x70] sm:$0xff] 0.0
          %630 = vst [vmem:[#allocation2 + $0x78] sm:$0xff] 0.0
        $region100: #{_lambda_.12} parent=87 // pred_fallthru
          _
        %v631 = vld [vmem:[#allocation2] sm:$0xff]
        %v632 = vld [vmem:[#allocation2 + $0x8] sm:$0xff]
        %v633 = vld [vmem:[#allocation2 + $0x10] sm:$0xff]
        %v634 = vld [vmem:[#allocation2 + $0x18] sm:$0xff]
        %v635 = vld [vmem:[#allocation2 + $0x20] sm:$0xff]
        %v636 = vld [vmem:[#allocation2 + $0x28] sm:$0xff]
        %v637 = vld [vmem:[#allocation2 + $0x30] sm:$0xff]
        %v638 = vld [vmem:[#allocation2 + $0x38] sm:$0xff]
        %v639 = vld [vmem:[#allocation2 + $0x40] sm:$0xff]
        %v640 = vld [vmem:[#allocation2 + $0x48] sm:$0xff]
        %v641 = vld [vmem:[#allocation2 + $0x50] sm:$0xff]
        %v642 = vld [vmem:[#allocation2 + $0x58] sm:$0xff]
        %v643 = vld [vmem:[#allocation2 + $0x60] sm:$0xff]
        %v644 = vld [vmem:[#allocation2 + $0x68] sm:$0xff]
        %v645 = vld [vmem:[#allocation2 + $0x70] sm:$0xff]
        %v646 = vld [vmem:[#allocation2 + $0x78] sm:$0xff]
        %v647 = vld [vmem:[%s570] sm:$0xff]
        %v648 = vld [vmem:[%s570 + $0x8] sm:$0xff]
        %v649 = vld [vmem:[%s570 + $0x10] sm:$0xff]
        %v650 = vld [vmem:[%s570 + $0x18] sm:$0xff]
        %v651 = vld [vmem:[%s570 + $0x20] sm:$0xff]
        %v652 = vld [vmem:[%s570 + $0x28] sm:$0xff]
        %v653 = vld [vmem:[%s570 + $0x30] sm:$0xff]
        %v654 = vld [vmem:[%s570 + $0x38] sm:$0xff]
        %v655 = vld [vmem:[%s570 + $0x40] sm:$0xff]
        %v656 = vld [vmem:[%s570 + $0x48] sm:$0xff]
        %v657 = vld [vmem:[%s570 + $0x50] sm:$0xff]
        %v658 = vld [vmem:[%s570 + $0x58] sm:$0xff]
        %v659 = vld [vmem:[%s570 + $0x60] sm:$0xff]
        %v660 = vld [vmem:[%s570 + $0x68] sm:$0xff]
        %v661 = vld [vmem:[%s570 + $0x70] sm:$0xff]
        %v662 = vld [vmem:[%s570 + $0x78] sm:$0xff]
        %v663 = vld [vmem:[%s570 + $0x80] sm:$0xff]
        %v664 = vld [vmem:[%s570 + $0x88] sm:$0xff]
        %v665 = vld [vmem:[%s570 + $0x90] sm:$0xff]
        %v666 = vld [vmem:[%s570 + $0x98] sm:$0xff]
        %v667 = vld [vmem:[%s570 + $0xa0] sm:$0xff]
        %v668 = vld [vmem:[%s570 + $0xa8] sm:$0xff]
        %v669 = vld [vmem:[%s570 + $0xb0] sm:$0xff]
        %v670 = vld [vmem:[%s570 + $0xb8] sm:$0xff]
        %v671 = vld [vmem:[%s570 + $0xc0] sm:$0xff]
        %v672 = vld [vmem:[%s570 + $0xc8] sm:$0xff]
        %v673 = vld [vmem:[%s570 + $0xd0] sm:$0xff]
        %v674 = vld [vmem:[%s570 + $0xd8] sm:$0xff]
        %v675 = vld [vmem:[%s570 + $0xe0] sm:$0xff]
        %v676 = vld [vmem:[%s570 + $0xe8] sm:$0xff]
        %v677 = vld [vmem:[%s570 + $0xf0] sm:$0xff]
        %v678 = vld [vmem:[%s570 + $0xf8] sm:$0xff]
        %v679 = vld [vmem:[%s577] sm:$0xf]
        %v680 = vld [vmem:[%s577 + $0x4] sm:$0xf]
        %v681 = vld [vmem:[%s577 + $0x8] sm:$0xf]
        %v682 = vld [vmem:[%s577 + $0xc] sm:$0xf]
        %v683 = vld [vmem:[%s577 + $0x10] sm:$0xf]
        %v684 = vld [vmem:[%s577 + $0x14] sm:$0xf]
        %v685 = vld [vmem:[%s577 + $0x18] sm:$0xf]
        %v686 = vld [vmem:[%s577 + $0x1c] sm:$0xf]
        %v687 = vld [vmem:[%s577 + $0x20] sm:$0xf]
        %v688 = vld [vmem:[%s577 + $0x24] sm:$0xf]
        %v689 = vld [vmem:[%s577 + $0x28] sm:$0xf]
        %v690 = vld [vmem:[%s577 + $0x2c] sm:$0xf]
        %v691 = vld [vmem:[%s577 + $0x30] sm:$0xf]
        %v692 = vld [vmem:[%s577 + $0x34] sm:$0xf]
        %v693 = vld [vmem:[%s577 + $0x38] sm:$0xf]
        %v694 = vld [vmem:[%s577 + $0x3c] sm:$0xf]
        %v695 = vld [vmem:[%s577 + $0x40] sm:$0xf]
        %v696 = vld [vmem:[%s577 + $0x44] sm:$0xf]
        %v697 = vld [vmem:[%s577 + $0x48] sm:$0xf]
        %v698 = vld [vmem:[%s577 + $0x4c] sm:$0xf]
        %v699 = vld [vmem:[%s577 + $0x50] sm:$0xf]
        %v700 = vld [vmem:[%s577 + $0x54] sm:$0xf]
        %v701 = vld [vmem:[%s577 + $0x58] sm:$0xf]
        %v702 = vld [vmem:[%s577 + $0x5c] sm:$0xf]
        %v703 = vld [vmem:[%s577 + $0x60] sm:$0xf]
        %v704 = vld [vmem:[%s577 + $0x64] sm:$0xf]
        %v705 = vld [vmem:[%s577 + $0x68] sm:$0xf]
        %v706 = vld [vmem:[%s577 + $0x6c] sm:$0xf]
        %v707 = vld [vmem:[%s577 + $0x70] sm:$0xf]
        %v708 = vld [vmem:[%s577 + $0x74] sm:$0xf]
        %v709 = vld [vmem:[%s577 + $0x78] sm:$0xf]
        %v710 = vld [vmem:[%s577 + $0x7c] sm:$0xf]
        %v711 = vld [vmem:[%s577 + $0x80] sm:$0xf]
        %v712 = vld [vmem:[%s577 + $0x84] sm:$0xf]
        %v713 = vld [vmem:[%s577 + $0x88] sm:$0xf]
        %v714 = vld [vmem:[%s577 + $0x8c] sm:$0xf]
        %v715 = vld [vmem:[%s577 + $0x90] sm:$0xf]
        %v716 = vld [vmem:[%s577 + $0x94] sm:$0xf]
        %v717 = vld [vmem:[%s577 + $0x98] sm:$0xf]
        %v718 = vld [vmem:[%s577 + $0x9c] sm:$0xf]
        %v719 = vld [vmem:[%s577 + $0xa0] sm:$0xf]
        %v720 = vld [vmem:[%s577 + $0xa4] sm:$0xf]
        %v721 = vld [vmem:[%s577 + $0xa8] sm:$0xf]
        %v722 = vld [vmem:[%s577 + $0xac] sm:$0xf]
        %v723 = vld [vmem:[%s577 + $0xb0] sm:$0xf]
        %v724 = vld [vmem:[%s577 + $0xb4] sm:$0xf]
        %v725 = vld [vmem:[%s577 + $0xb8] sm:$0xf]
        %v726 = vld [vmem:[%s577 + $0xbc] sm:$0xf]
        %v727 = vld [vmem:[%s577 + $0xc0] sm:$0xf]
        %v728 = vld [vmem:[%s577 + $0xc4] sm:$0xf]
        %v729 = vld [vmem:[%s577 + $0xc8] sm:$0xf]
        %v730 = vld [vmem:[%s577 + $0xcc] sm:$0xf]
        %v731 = vld [vmem:[%s577 + $0xd0] sm:$0xf]
        %v732 = vld [vmem:[%s577 + $0xd4] sm:$0xf]
        %v733 = vld [vmem:[%s577 + $0xd8] sm:$0xf]
        %v734 = vld [vmem:[%s577 + $0xdc] sm:$0xf]
        %v735 = vld [vmem:[%s577 + $0xe0] sm:$0xf]
        %v736 = vld [vmem:[%s577 + $0xe4] sm:$0xf]
        %v737 = vld [vmem:[%s577 + $0xe8] sm:$0xf]
        %v738 = vld [vmem:[%s577 + $0xec] sm:$0xf]
        %v739 = vld [vmem:[%s577 + $0xf0] sm:$0xf]
        %v740 = vld [vmem:[%s577 + $0xf4] sm:$0xf]
        %v741 = vld [vmem:[%s577 + $0xf8] sm:$0xf]
        %v742 = vld [vmem:[%s577 + $0xfc] sm:$0xf]
        %v775 = vunpack.c.l.b16 %v647
        %v776 = vunpack.c.h.b16 %v647
        %v777 = vunpack.c.l.b16 %v648
        %v778 = vunpack.c.h.b16 %v648
        %v779 = vunpack.c.l.b16 %v649
        %v780 = vunpack.c.h.b16 %v649
        %v781 = vunpack.c.l.b16 %v650
        %v782 = vunpack.c.h.b16 %v650
        %v783 = vunpack.c.l.b16 %v651
        %v784 = vunpack.c.h.b16 %v651
        %v785 = vunpack.c.l.b16 %v652
        %v786 = vunpack.c.h.b16 %v652
        %v787 = vunpack.c.l.b16 %v653
        %v788 = vunpack.c.h.b16 %v653
        %v789 = vunpack.c.l.b16 %v654
        %v790 = vunpack.c.h.b16 %v654
        %v791 = vunpack.c.l.b16 %v655
        %v792 = vunpack.c.h.b16 %v655
        %v793 = vunpack.c.l.b16 %v656
        %v794 = vunpack.c.h.b16 %v656
        %v795 = vunpack.c.l.b16 %v657
        %v796 = vunpack.c.h.b16 %v657
        %v797 = vunpack.c.l.b16 %v658
        %v798 = vunpack.c.h.b16 %v658
        %v799 = vunpack.c.l.b16 %v659
        %v800 = vunpack.c.h.b16 %v659
        %v801 = vunpack.c.l.b16 %v660
        %v802 = vunpack.c.h.b16 %v660
        %v803 = vunpack.c.l.b16 %v661
        %v804 = vunpack.c.h.b16 %v661
        %v805 = vunpack.c.l.b16 %v662
        %v806 = vunpack.c.h.b16 %v662
        %v807 = vunpack.c.l.b16 %v663
        %v808 = vunpack.c.h.b16 %v663
        %v809 = vunpack.c.l.b16 %v664
        %v810 = vunpack.c.h.b16 %v664
        %v811 = vunpack.c.l.b16 %v665
        %v812 = vunpack.c.h.b16 %v665
        %v813 = vunpack.c.l.b16 %v666
        %v814 = vunpack.c.h.b16 %v666
        %v815 = vunpack.c.l.b16 %v667
        %v816 = vunpack.c.h.b16 %v667
        %v817 = vunpack.c.l.b16 %v668
        %v818 = vunpack.c.h.b16 %v668
        %v819 = vunpack.c.l.b16 %v669
        %v820 = vunpack.c.h.b16 %v669
        %v821 = vunpack.c.l.b16 %v670
        %v822 = vunpack.c.h.b16 %v670
        %v823 = vunpack.c.l.b16 %v671
        %v824 = vunpack.c.h.b16 %v671
        %v825 = vunpack.c.l.b16 %v672
        %v826 = vunpack.c.h.b16 %v672
        %v827 = vunpack.c.l.b16 %v673
        %v828 = vunpack.c.h.b16 %v673
        %v829 = vunpack.c.l.b16 %v674
        %v830 = vunpack.c.h.b16 %v674
        %v831 = vunpack.c.l.b16 %v675
        %v832 = vunpack.c.h.b16 %v675
        %v833 = vunpack.c.l.b16 %v676
        %v834 = vunpack.c.h.b16 %v676
        %v835 = vunpack.c.l.b16 %v677
        %v836 = vunpack.c.h.b16 %v677
        %v837 = vunpack.c.l.b16 %v678
        %v838 = vunpack.c.h.b16 %v678
        %v839 = vpack.c.b16 %v779, %v775
        %v840 = vpack.c.b16 %v780, %v776
        %v841 = vpack.c.b16 %v781, %v777
        %v842 = vpack.c.b16 %v782, %v778
        %v843 = vpack.c.b16 %v787, %v783
        %v844 = vpack.c.b16 %v788, %v784
        %v845 = vpack.c.b16 %v789, %v785
        %v846 = vpack.c.b16 %v790, %v786
        %v847 = vpack.c.b16 %v795, %v791
        %v848 = vpack.c.b16 %v796, %v792
        %v849 = vpack.c.b16 %v797, %v793
        %v850 = vpack.c.b16 %v798, %v794
        %v851 = vpack.c.b16 %v803, %v799
        %v852 = vpack.c.b16 %v804, %v800
        %v853 = vpack.c.b16 %v805, %v801
        %v854 = vpack.c.b16 %v806, %v802
        %v855 = vpack.c.b16 %v811, %v807
        %v856 = vpack.c.b16 %v812, %v808
        %v857 = vpack.c.b16 %v813, %v809
        %v858 = vpack.c.b16 %v814, %v810
        %v859 = vpack.c.b16 %v819, %v815
        %v860 = vpack.c.b16 %v820, %v816
        %v861 = vpack.c.b16 %v821, %v817
        %v862 = vpack.c.b16 %v822, %v818
        %v863 = vpack.c.b16 %v827, %v823
        %v864 = vpack.c.b16 %v828, %v824
        %v865 = vpack.c.b16 %v829, %v825
        %v866 = vpack.c.b16 %v830, %v826
        %v867 = vpack.c.b16 %v835, %v831
        %v868 = vpack.c.b16 %v836, %v832
        %v869 = vpack.c.b16 %v837, %v833
        %v870 = vpack.c.b16 %v838, %v834
        %v967 = vunpack.c.l.b16 %v679
        %v968 = vunpack.c.l.b16 %v680
        %v969 = vunpack.c.l.b16 %v681
        %v970 = vunpack.c.l.b16 %v682
        %v971 = vunpack.c.l.b16 %v683
        %v972 = vunpack.c.l.b16 %v684
        %v973 = vunpack.c.l.b16 %v685
        %v974 = vunpack.c.l.b16 %v686
        %v975 = vunpack.c.l.b16 %v687
        %v976 = vunpack.c.l.b16 %v688
        %v977 = vunpack.c.l.b16 %v689
        %v978 = vunpack.c.l.b16 %v690
        %v979 = vunpack.c.l.b16 %v691
        %v980 = vunpack.c.l.b16 %v692
        %v981 = vunpack.c.l.b16 %v693
        %v982 = vunpack.c.l.b16 %v694
        %v983 = vunpack.c.l.b16 %v695
        %v984 = vunpack.c.l.b16 %v696
        %v985 = vunpack.c.l.b16 %v697
        %v986 = vunpack.c.l.b16 %v698
        %v987 = vunpack.c.l.b16 %v699
        %v988 = vunpack.c.l.b16 %v700
        %v989 = vunpack.c.l.b16 %v701
        %v990 = vunpack.c.l.b16 %v702
        %v991 = vunpack.c.l.b16 %v703
        %v992 = vunpack.c.l.b16 %v704
        %v993 = vunpack.c.l.b16 %v705
        %v994 = vunpack.c.l.b16 %v706
        %v995 = vunpack.c.l.b16 %v707
        %v996 = vunpack.c.l.b16 %v708
        %v997 = vunpack.c.l.b16 %v709
        %v998 = vunpack.c.l.b16 %v710
        %v999 = vunpack.c.l.b16 %v711
        %v1000 = vunpack.c.l.b16 %v712
        %v1001 = vunpack.c.l.b16 %v713
        %v1002 = vunpack.c.l.b16 %v714
        %v1003 = vunpack.c.l.b16 %v715
        %v1004 = vunpack.c.l.b16 %v716
        %v1005 = vunpack.c.l.b16 %v717
        %v1006 = vunpack.c.l.b16 %v718
        %v1007 = vunpack.c.l.b16 %v719
        %v1008 = vunpack.c.l.b16 %v720
        %v1009 = vunpack.c.l.b16 %v721
        %v1010 = vunpack.c.l.b16 %v722
        %v1011 = vunpack.c.l.b16 %v723
        %v1012 = vunpack.c.l.b16 %v724
        %v1013 = vunpack.c.l.b16 %v725
        %v1014 = vunpack.c.l.b16 %v726
        %v1015 = vunpack.c.l.b16 %v727
        %v1016 = vunpack.c.l.b16 %v728
        %v1017 = vunpack.c.l.b16 %v729
        %v1018 = vunpack.c.l.b16 %v730
        %v1019 = vunpack.c.l.b16 %v731
        %v1020 = vunpack.c.l.b16 %v732
        %v1021 = vunpack.c.l.b16 %v733
        %v1022 = vunpack.c.l.b16 %v734
        %v1023 = vunpack.c.l.b16 %v735
        %v1024 = vunpack.c.l.b16 %v736
        %v1025 = vunpack.c.l.b16 %v737
        %v1026 = vunpack.c.l.b16 %v738
        %v1027 = vunpack.c.l.b16 %v739
        %v1028 = vunpack.c.l.b16 %v740
        %v1029 = vunpack.c.l.b16 %v741
        %v1030 = vunpack.c.l.b16 %v742
        %v1031 = vpack.c.b16 %v968, %v967
        %v1032 = vpack.c.b16 %v970, %v969
        %v1033 = vpack.c.b16 %v972, %v971
        %v1034 = vpack.c.b16 %v974, %v973
        %v1035 = vpack.c.b16 %v976, %v975
        %v1036 = vpack.c.b16 %v978, %v977
        %v1037 = vpack.c.b16 %v980, %v979
        %v1038 = vpack.c.b16 %v982, %v981
        %v1039 = vpack.c.b16 %v984, %v983
        %v1040 = vpack.c.b16 %v986, %v985
        %v1041 = vpack.c.b16 %v988, %v987
        %v1042 = vpack.c.b16 %v990, %v989
        %v1043 = vpack.c.b16 %v992, %v991
        %v1044 = vpack.c.b16 %v994, %v993
        %v1045 = vpack.c.b16 %v996, %v995
        %v1046 = vpack.c.b16 %v998, %v997
        %v1047 = vpack.c.b16 %v1000, %v999
        %v1048 = vpack.c.b16 %v1002, %v1001
        %v1049 = vpack.c.b16 %v1004, %v1003
        %v1050 = vpack.c.b16 %v1006, %v1005
        %v1051 = vpack.c.b16 %v1008, %v1007
        %v1052 = vpack.c.b16 %v1010, %v1009
        %v1053 = vpack.c.b16 %v1012, %v1011
        %v1054 = vpack.c.b16 %v1014, %v1013
        %v1055 = vpack.c.b16 %v1016, %v1015
        %v1056 = vpack.c.b16 %v1018, %v1017
        %v1057 = vpack.c.b16 %v1020, %v1019
        %v1058 = vpack.c.b16 %v1022, %v1021
        %v1059 = vpack.c.b16 %v1024, %v1023
        %v1060 = vpack.c.b16 %v1026, %v1025
        %v1061 = vpack.c.b16 %v1028, %v1027
        %v1062 = vpack.c.b16 %v1030, %v1029
        %1095 = vmatpush.bf16.msra.mxu0 %v1038
        %1096 = vmatpush.bf16.msra.mxu0 %v1037
        %1097 = vmatpush.bf16.msra.mxu0 %v1036
        %1098 = vmatpush.bf16.msra.mxu0 %v1035
        %1099 = vmatpush.bf16.msra.mxu0 %v1034
        %1100 = vmatpush.bf16.msra.mxu0 %v1033
        %1101 = vmatpush.bf16.msra.mxu0 %v1032
        %1102 = vmatpush.bf16.msra.mxu0 %v1031
        %1103 = vmatmul.bf16.gmra.mxu0 %v839
        %v1104 = vpop.f32.mrf.mxu0
        %v1105 = vadd.f32 0.0, %v1104
        %v1106 = vpop.f32.mrf.mxu0
        %v1107 = vadd.f32 0.0, %v1106
        %1108 = vmatmul.bf16.gmra.mxu0 %v843
        %v1109 = vpop.f32.mrf.mxu0
        %v1110 = vadd.f32 0.0, %v1109
        %v1111 = vpop.f32.mrf.mxu0
        %v1112 = vadd.f32 0.0, %v1111
        %1113 = vmatmul.bf16.gmra.mxu0 %v847
        %v1114 = vpop.f32.mrf.mxu0
        %v1115 = vadd.f32 0.0, %v1114
        %v1116 = vpop.f32.mrf.mxu0
        %v1117 = vadd.f32 0.0, %v1116
        %1118 = vmatmul.bf16.gmra.mxu0 %v851
        %v1119 = vpop.f32.mrf.mxu0
        %v1120 = vadd.f32 0.0, %v1119
        %v1121 = vpop.f32.mrf.mxu0
        %v1122 = vadd.f32 0.0, %v1121
        %1123 = vmatmul.bf16.gmra.mxu0 %v855
        %v1124 = vpop.f32.mrf.mxu0
        %v1125 = vadd.f32 0.0, %v1124
        %v1126 = vpop.f32.mrf.mxu0
        %v1127 = vadd.f32 0.0, %v1126
        %1128 = vmatmul.bf16.gmra.mxu0 %v859
        %v1129 = vpop.f32.mrf.mxu0
        %v1130 = vadd.f32 0.0, %v1129
        %v1131 = vpop.f32.mrf.mxu0
        %v1132 = vadd.f32 0.0, %v1131
        %1133 = vmatmul.bf16.gmra.mxu0 %v863
        %v1134 = vpop.f32.mrf.mxu0
        %v1135 = vadd.f32 0.0, %v1134
        %v1136 = vpop.f32.mrf.mxu0
        %v1137 = vadd.f32 0.0, %v1136
        %1138 = vmatmul.bf16.gmra.mxu0 %v867
        %v1139 = vpop.f32.mrf.mxu0
        %v1140 = vadd.f32 0.0, %v1139
        %v1141 = vpop.f32.mrf.mxu0
        %v1142 = vadd.f32 0.0, %v1141
        %1143 = vdwg.mxu0
        %1144 = vmatpush.bf16.msra.mxu0 %v1046
        %1145 = vmatpush.bf16.msra.mxu0 %v1045
        %1146 = vmatpush.bf16.msra.mxu0 %v1044
        %1147 = vmatpush.bf16.msra.mxu0 %v1043
        %1148 = vmatpush.bf16.msra.mxu0 %v1042
        %1149 = vmatpush.bf16.msra.mxu0 %v1041
        %1150 = vmatpush.bf16.msra.mxu0 %v1040
        %1151 = vmatpush.bf16.msra.mxu0 %v1039
        %1152 = vmatmul.bf16.gmra.mxu0 %v840
        %v1153 = vpop.f32.mrf.mxu0
        %v1154 = vadd.f32 %v1105, %v1153
        %v1155 = vpop.f32.mrf.mxu0
        %v1156 = vadd.f32 %v1107, %v1155
        %1157 = vmatmul.bf16.gmra.mxu0 %v844
        %v1158 = vpop.f32.mrf.mxu0
        %v1159 = vadd.f32 %v1110, %v1158
        %v1160 = vpop.f32.mrf.mxu0
        %v1161 = vadd.f32 %v1112, %v1160
        %1162 = vmatmul.bf16.gmra.mxu0 %v848
        %v1163 = vpop.f32.mrf.mxu0
        %v1164 = vadd.f32 %v1115, %v1163
        %v1165 = vpop.f32.mrf.mxu0
        %v1166 = vadd.f32 %v1117, %v1165
        %1167 = vmatmul.bf16.gmra.mxu0 %v852
        %v1168 = vpop.f32.mrf.mxu0
        %v1169 = vadd.f32 %v1120, %v1168
        %v1170 = vpop.f32.mrf.mxu0
        %v1171 = vadd.f32 %v1122, %v1170
        %1172 = vmatmul.bf16.gmra.mxu0 %v856
        %v1173 = vpop.f32.mrf.mxu0
        %v1174 = vadd.f32 %v1125, %v1173
        %v1175 = vpop.f32.mrf.mxu0
        %v1176 = vadd.f32 %v1127, %v1175
        %1177 = vmatmul.bf16.gmra.mxu0 %v860
        %v1178 = vpop.f32.mrf.mxu0
        %v1179 = vadd.f32 %v1130, %v1178
        %v1180 = vpop.f32.mrf.mxu0
        %v1181 = vadd.f32 %v1132, %v1180
        %1182 = vmatmul.bf16.gmra.mxu0 %v864
        %v1183 = vpop.f32.mrf.mxu0
        %v1184 = vadd.f32 %v1135, %v1183
        %v1185 = vpop.f32.mrf.mxu0
        %v1186 = vadd.f32 %v1137, %v1185
        %1187 = vmatmul.bf16.gmra.mxu0 %v868
        %v1188 = vpop.f32.mrf.mxu0
        %v1189 = vadd.f32 %v1140, %v1188
        %v1190 = vpop.f32.mrf.mxu0
        %v1191 = vadd.f32 %v1142, %v1190
        %1192 = vdwg.mxu0
        %1193 = vmatpush.bf16.msra.mxu0 %v1054
        %1194 = vmatpush.bf16.msra.mxu0 %v1053
        %1195 = vmatpush.bf16.msra.mxu0 %v1052
        %1196 = vmatpush.bf16.msra.mxu0 %v1051
        %1197 = vmatpush.bf16.msra.mxu0 %v1050
        %1198 = vmatpush.bf16.msra.mxu0 %v1049
        %1199 = vmatpush.bf16.msra.mxu0 %v1048
        %1200 = vmatpush.bf16.msra.mxu0 %v1047
        %1201 = vmatmul.bf16.gmra.mxu0 %v841
        %v1202 = vpop.f32.mrf.mxu0
        %v1203 = vadd.f32 %v1154, %v1202
        %v1204 = vpop.f32.mrf.mxu0
        %v1205 = vadd.f32 %v1156, %v1204
        %1206 = vmatmul.bf16.gmra.mxu0 %v845
        %v1207 = vpop.f32.mrf.mxu0
        %v1208 = vadd.f32 %v1159, %v1207
        %v1209 = vpop.f32.mrf.mxu0
        %v1210 = vadd.f32 %v1161, %v1209
        %1211 = vmatmul.bf16.gmra.mxu0 %v849
        %v1212 = vpop.f32.mrf.mxu0
        %v1213 = vadd.f32 %v1164, %v1212
        %v1214 = vpop.f32.mrf.mxu0
        %v1215 = vadd.f32 %v1166, %v1214
        %1216 = vmatmul.bf16.gmra.mxu0 %v853
        %v1217 = vpop.f32.mrf.mxu0
        %v1218 = vadd.f32 %v1169, %v1217
        %v1219 = vpop.f32.mrf.mxu0
        %v1220 = vadd.f32 %v1171, %v1219
        %1221 = vmatmul.bf16.gmra.mxu0 %v857
        %v1222 = vpop.f32.mrf.mxu0
        %v1223 = vadd.f32 %v1174, %v1222
        %v1224 = vpop.f32.mrf.mxu0
        %v1225 = vadd.f32 %v1176, %v1224
        %1226 = vmatmul.bf16.gmra.mxu0 %v861
        %v1227 = vpop.f32.mrf.mxu0
        %v1228 = vadd.f32 %v1179, %v1227
        %v1229 = vpop.f32.mrf.mxu0
        %v1230 = vadd.f32 %v1181, %v1229
        %1231 = vmatmul.bf16.gmra.mxu0 %v865
        %v1232 = vpop.f32.mrf.mxu0
        %v1233 = vadd.f32 %v1184, %v1232
        %v1234 = vpop.f32.mrf.mxu0
        %v1235 = vadd.f32 %v1186, %v1234
        %1236 = vmatmul.bf16.gmra.mxu0 %v869
        %v1237 = vpop.f32.mrf.mxu0
        %v1238 = vadd.f32 %v1189, %v1237
        %v1239 = vpop.f32.mrf.mxu0
        %v1240 = vadd.f32 %v1191, %v1239
        %1241 = vdwg.mxu0
        %1242 = vmatpush.bf16.msra.mxu0 %v1062
        %1243 = vmatpush.bf16.msra.mxu0 %v1061
        %1244 = vmatpush.bf16.msra.mxu0 %v1060
        %1245 = vmatpush.bf16.msra.mxu0 %v1059
        %1246 = vmatpush.bf16.msra.mxu0 %v1058
        %1247 = vmatpush.bf16.msra.mxu0 %v1057
        %1248 = vmatpush.bf16.msra.mxu0 %v1056
        %1249 = vmatpush.bf16.msra.mxu0 %v1055
        %1250 = vmatmul.bf16.gmra.mxu0 %v842
        %v1251 = vpop.f32.mrf.mxu0
        %v1252 = vadd.f32 %v1203, %v1251
        %v1253 = vpop.f32.mrf.mxu0
        %v1254 = vadd.f32 %v1205, %v1253
        %1255 = vmatmul.bf16.gmra.mxu0 %v846
        %v1256 = vpop.f32.mrf.mxu0
        %v1257 = vadd.f32 %v1208, %v1256
        %v1258 = vpop.f32.mrf.mxu0
        %v1259 = vadd.f32 %v1210, %v1258
        %1260 = vmatmul.bf16.gmra.mxu0 %v850
        %v1261 = vpop.f32.mrf.mxu0
        %v1262 = vadd.f32 %v1213, %v1261
        %v1263 = vpop.f32.mrf.mxu0
        %v1264 = vadd.f32 %v1215, %v1263
        %1265 = vmatmul.bf16.gmra.mxu0 %v854
        %v1266 = vpop.f32.mrf.mxu0
        %v1267 = vadd.f32 %v1218, %v1266
        %v1268 = vpop.f32.mrf.mxu0
        %v1269 = vadd.f32 %v1220, %v1268
        %1270 = vmatmul.bf16.gmra.mxu0 %v858
        %v1271 = vpop.f32.mrf.mxu0
        %v1272 = vadd.f32 %v1223, %v1271
        %v1273 = vpop.f32.mrf.mxu0
        %v1274 = vadd.f32 %v1225, %v1273
        %1275 = vmatmul.bf16.gmra.mxu0 %v862
        %v1276 = vpop.f32.mrf.mxu0
        %v1277 = vadd.f32 %v1228, %v1276
        %v1278 = vpop.f32.mrf.mxu0
        %v1279 = vadd.f32 %v1230, %v1278
        %1280 = vmatmul.bf16.gmra.mxu0 %v866
        %v1281 = vpop.f32.mrf.mxu0
        %v1282 = vadd.f32 %v1233, %v1281
        %v1283 = vpop.f32.mrf.mxu0
        %v1284 = vadd.f32 %v1235, %v1283
        %1285 = vmatmul.bf16.gmra.mxu0 %v870
        %v1286 = vpop.f32.mrf.mxu0
        %v1287 = vadd.f32 %v1238, %v1286
        %v1288 = vpop.f32.mrf.mxu0
        %v1289 = vadd.f32 %v1240, %v1288
        %1290 = vdwg.mxu0
        %v1291 = vadd.f32 %v631, %v1252
        %v1292 = vadd.f32 %v632, %v1254
        %v1293 = vadd.f32 %v633, %v1257
        %v1294 = vadd.f32 %v634, %v1259
        %v1295 = vadd.f32 %v635, %v1262
        %v1296 = vadd.f32 %v636, %v1264
        %v1297 = vadd.f32 %v637, %v1267
        %v1298 = vadd.f32 %v638, %v1269
        %v1299 = vadd.f32 %v639, %v1272
        %v1300 = vadd.f32 %v640, %v1274
        %v1301 = vadd.f32 %v641, %v1277
        %v1302 = vadd.f32 %v642, %v1279
        %v1303 = vadd.f32 %v643, %v1282
        %v1304 = vadd.f32 %v644, %v1284
        %v1305 = vadd.f32 %v645, %v1287
        %v1306 = vadd.f32 %v646, %v1289
        %1307 = vst [vmem:[#allocation2] sm:$0xff] %v1291
        %1308 = vst [vmem:[#allocation2 + $0x8] sm:$0xff] %v1292
        %1309 = vst [vmem:[#allocation2 + $0x10] sm:$0xff] %v1293
        %1310 = vst [vmem:[#allocation2 + $0x18] sm:$0xff] %v1294
        %1311 = vst [vmem:[#allocation2 + $0x20] sm:$0xff] %v1295
        %1312 = vst [vmem:[#allocation2 + $0x28] sm:$0xff] %v1296
        %1313 = vst [vmem:[#allocation2 + $0x30] sm:$0xff] %v1297
        %1314 = vst [vmem:[#allocation2 + $0x38] sm:$0xff] %v1298
        %1315 = vst [vmem:[#allocation2 + $0x40] sm:$0xff] %v1299
        %1316 = vst [vmem:[#allocation2 + $0x48] sm:$0xff] %v1300
        %1317 = vst [vmem:[#allocation2 + $0x50] sm:$0xff] %v1301
        %1318 = vst [vmem:[#allocation2 + $0x58] sm:$0xff] %v1302
        %1319 = vst [vmem:[#allocation2 + $0x60] sm:$0xff] %v1303
        %1320 = vst [vmem:[#allocation2 + $0x68] sm:$0xff] %v1304
        %1321 = vst [vmem:[#allocation2 + $0x70] sm:$0xff] %v1305
        %1322 = vst [vmem:[#allocation2 + $0x78] sm:$0xff] %v1306
        %p1323 = scmp.eq.s32.totalorder %s21, 3
        // Predicated region
        $region101: #{_lambda_.12} parent=87 // pred_check
          %p1324 = pneg %p1323
        $region102: #{_lambda_.12} parent=87 // pred_check_branch
          %1326 = sbr.rel (%p1324) target = $region104
        $region103: #{_lambda_.12} parent=87 // pred_region
          %v1327 = vld [vmem:[#allocation2] sm:$0xff]
          %v1328 = vld [vmem:[#allocation2 + $0x8] sm:$0xff]
          %v1329 = vld [vmem:[#allocation2 + $0x10] sm:$0xff]
          %v1330 = vld [vmem:[#allocation2 + $0x18] sm:$0xff]
          %v1331 = vld [vmem:[#allocation2 + $0x20] sm:$0xff]
          %v1332 = vld [vmem:[#allocation2 + $0x28] sm:$0xff]
          %v1333 = vld [vmem:[#allocation2 + $0x30] sm:$0xff]
          %v1334 = vld [vmem:[#allocation2 + $0x38] sm:$0xff]
          %v1335 = vld [vmem:[#allocation2 + $0x40] sm:$0xff]
          %v1336 = vld [vmem:[#allocation2 + $0x48] sm:$0xff]
          %v1337 = vld [vmem:[#allocation2 + $0x50] sm:$0xff]
          %v1338 = vld [vmem:[#allocation2 + $0x58] sm:$0xff]
          %v1339 = vld [vmem:[#allocation2 + $0x60] sm:$0xff]
          %v1340 = vld [vmem:[#allocation2 + $0x68] sm:$0xff]
          %v1341 = vld [vmem:[#allocation2 + $0x70] sm:$0xff]
          %v1342 = vld [vmem:[#allocation2 + $0x78] sm:$0xff]
          %v1343 = vld [vmem:[%s609] sm:$0x1]
          %v1345 = vperm.slane %v1343, 0
          %v1347 = vadd.f32 %v1327, %v1345
          %v1348 = vadd.f32 %v1328, %v1345
          %v1349 = vadd.f32 %v1329, %v1345
          %v1350 = vadd.f32 %v1330, %v1345
          %v1351 = vadd.f32 %v1331, %v1345
          %v1352 = vadd.f32 %v1332, %v1345
          %v1353 = vadd.f32 %v1333, %v1345
          %v1354 = vadd.f32 %v1334, %v1345
          %v1355 = vadd.f32 %v1335, %v1345
          %v1356 = vadd.f32 %v1336, %v1345
          %v1357 = vadd.f32 %v1337, %v1345
          %v1358 = vadd.f32 %v1338, %v1345
          %v1359 = vadd.f32 %v1339, %v1345
          %v1360 = vadd.f32 %v1340, %v1345
          %v1361 = vadd.f32 %v1341, %v1345
          %v1362 = vadd.f32 %v1342, %v1345
          %v1363 = vmax.f32 %v1347, 0.0
          %v1364 = vmax.f32 %v1348, 0.0
          %v1365 = vmax.f32 %v1349, 0.0
          %v1366 = vmax.f32 %v1350, 0.0
          %v1367 = vmax.f32 %v1351, 0.0
          %v1368 = vmax.f32 %v1352, 0.0
          %v1369 = vmax.f32 %v1353, 0.0
          %v1370 = vmax.f32 %v1354, 0.0
          %v1371 = vmax.f32 %v1355, 0.0
          %v1372 = vmax.f32 %v1356, 0.0
          %v1373 = vmax.f32 %v1357, 0.0
          %v1374 = vmax.f32 %v1358, 0.0
          %v1375 = vmax.f32 %v1359, 0.0
          %v1376 = vmax.f32 %v1360, 0.0
          %v1377 = vmax.f32 %v1361, 0.0
          %v1378 = vmax.f32 %v1362, 0.0
          %v1379 = vpack.c.bf16 %v1363, %v1363
          %v1380 = vpack.c.bf16 %v1364, %v1364
          %v1381 = vpack.c.bf16 %v1365, %v1365
          %v1382 = vpack.c.bf16 %v1366, %v1366
          %v1383 = vpack.c.bf16 %v1367, %v1367
          %v1384 = vpack.c.bf16 %v1368, %v1368
          %v1385 = vpack.c.bf16 %v1369, %v1369
          %v1386 = vpack.c.bf16 %v1370, %v1370
          %v1387 = vpack.c.bf16 %v1371, %v1371
          %v1388 = vpack.c.bf16 %v1372, %v1372
          %v1389 = vpack.c.bf16 %v1373, %v1373
          %v1390 = vpack.c.bf16 %v1374, %v1374
          %v1391 = vpack.c.bf16 %v1375, %v1375
          %v1392 = vpack.c.bf16 %v1376, %v1376
          %v1393 = vpack.c.bf16 %v1377, %v1377
          %v1394 = vpack.c.bf16 %v1378, %v1378
          %1395 = vst [vmem:[%s603] sm:$0xf] %v1379
          %1396 = vst [vmem:[%s603 + $0x4] sm:$0xf] %v1380
          %1397 = vst [vmem:[%s603 + $0x8] sm:$0xf] %v1381
          %1398 = vst [vmem:[%s603 + $0xc] sm:$0xf] %v1382
          %1399 = vst [vmem:[%s603 + $0x10] sm:$0xf] %v1383
          %1400 = vst [vmem:[%s603 + $0x14] sm:$0xf] %v1384
          %1401 = vst [vmem:[%s603 + $0x18] sm:$0xf] %v1385
          %1402 = vst [vmem:[%s603 + $0x1c] sm:$0xf] %v1386
          %1403 = vst [vmem:[%s603 + $0x20] sm:$0xf] %v1387
          %1404 = vst [vmem:[%s603 + $0x24] sm:$0xf] %v1388
          %1405 = vst [vmem:[%s603 + $0x28] sm:$0xf] %v1389
          %1406 = vst [vmem:[%s603 + $0x2c] sm:$0xf] %v1390
          %1407 = vst [vmem:[%s603 + $0x30] sm:$0xf] %v1391
          %1408 = vst [vmem:[%s603 + $0x34] sm:$0xf] %v1392
          %1409 = vst [vmem:[%s603 + $0x38] sm:$0xf] %v1393
          %1410 = vst [vmem:[%s603 + $0x3c] sm:$0xf] %v1394
        $region104: #{_lambda_.12} parent=87 // pred_fallthru
          _
        %s1411 = sand.u32 %s125, 1
        %s1412 = sand.u32 %s125, 1
        %s1413 = smul.addr %s1412, 64
        %s1414 = scalar_lea.vmem [#allocation5], %s1413
        // Predicated region
        $region105: #{_lambda_.12} parent=87 // pred_check
          %p1415 = pneg %p135
        $region106: #{_lambda_.12} parent=87 // pred_check_branch
          %1417 = sbr.rel (%p1415) target = $region108
        $region107: #{_lambda_.12} parent=87 // pred_region
          %s1418 = smul.u32 16, %s19
          %s1419 = smul.addr %s1418, 3
          %s1420 = sadd.s32 %s20, %s1419
          %s1421 = smul.addr %s1420, 4
          %s1422 = scalar_lea.vmem %s3, %s1421
          // Predicated region
          $region109: #{_lambda_.12} parent=107 // pred_check
            _
          $region110: #{_lambda_.12} parent=107 // pred_check_branch
            %1424 = sbr.rel (0) target = $region112
          $region111: #{_lambda_.12} parent=107 // pred_region
            // Predicated region
            $region113: #{_lambda_.12} parent=111 // pred_check
              _
            $region114: #{_lambda_.12} parent=111 // pred_check_branch
              %1426 = sbr.rel target = $region116
            $region115: #{_lambda_.12} parent=111 // pred_region
              // Predicated region
              $region128: #{_lambda_.12} parent=115 // pred_check
                _
              $region129: #{_lambda_.12} parent=115 // pred_check_branch
                %1472 = sbr.rel (0) target = $region131
              $region130: #{_lambda_.12} parent=115 // pred_region
                loop: start=0, step=1, limit=1
                $region132: #{_lambda_.12} parent=130 // loop_pre_header
                  _
                $region133: #{_lambda_.12} parent=130 // loop_header
                  %s1474 = sphi 0, %s1478
                  %p1475 = scmp.ge.s32.totalorder %s1474, 1
                  %s1479 = sphi %s1414, %s1414
                  %s1480 = sphi %s1422, %s1422
                $region134: #{_lambda_.12} parent=130 // loop_header_branch
                  %1477 = sbr.rel (%p1475) target = $region138
                $region135: #{_lambda_.12} parent=130 // loop_body
                  _
                $region136: #{_lambda_.12} parent=130 // loop_footer
                  %s1478 = sadd.s32 1, %s1474
                $region137: #{_lambda_.12} parent=130 // loop_footer_branch
                  %1473 = sbr.rel target = $region133
                $region138: #{_lambda_.12} parent=130 // loop_exit
                  _
                %s1482 = ssub.s32 16, 1
                loop: start=0, step=1, limit=1
                $region139: #{_lambda_.12} parent=130 // loop_pre_header
                  _
                $region140: #{_lambda_.12} parent=130 // loop_header
                  %s1484 = sphi 0, %s1488
                  %p1485 = scmp.ge.s32.totalorder %s1484, 1
                  %s1489 = sphi %s1414, %s1414
                  %s1490 = sphi %s1422, %s1422
                $region141: #{_lambda_.12} parent=130 // loop_header_branch
                  %1487 = sbr.rel (%p1485) target = $region145
                $region142: #{_lambda_.12} parent=130 // loop_body
                  %v1491 = vld [vmem:[%s1489] sm:%s1482]
                  %1492 = vst [vmem:[%s1490] sm:%s1482] %v1491
                  %v1493 = vld [vmem:[%s1489 + $0x4] sm:%s1482]
                  %1494 = vst [vmem:[%s1490 + $0xc] sm:%s1482] %v1493
                  %v1495 = vld [vmem:[%s1489 + $0x8] sm:%s1482]
                  %1496 = vst [vmem:[%s1490 + $0x18] sm:%s1482] %v1495
                  %v1497 = vld [vmem:[%s1489 + $0xc] sm:%s1482]
                  %1498 = vst [vmem:[%s1490 + $0x24] sm:%s1482] %v1497
                  %v1499 = vld [vmem:[%s1489 + $0x10] sm:%s1482]
                  %1500 = vst [vmem:[%s1490 + $0x30] sm:%s1482] %v1499
                  %v1501 = vld [vmem:[%s1489 + $0x14] sm:%s1482]
                  %1502 = vst [vmem:[%s1490 + $0x3c] sm:%s1482] %v1501
                  %v1503 = vld [vmem:[%s1489 + $0x18] sm:%s1482]
                  %1504 = vst [vmem:[%s1490 + $0x48] sm:%s1482] %v1503
                  %v1505 = vld [vmem:[%s1489 + $0x1c] sm:%s1482]
                  %1506 = vst [vmem:[%s1490 + $0x54] sm:%s1482] %v1505
                  %v1507 = vld [vmem:[%s1489 + $0x20] sm:%s1482]
                  %1508 = vst [vmem:[%s1490 + $0x60] sm:%s1482] %v1507
                  %v1509 = vld [vmem:[%s1489 + $0x24] sm:%s1482]
                  %1510 = vst [vmem:[%s1490 + $0x6c] sm:%s1482] %v1509
                  %v1511 = vld [vmem:[%s1489 + $0x28] sm:%s1482]
                  %1512 = vst [vmem:[%s1490 + $0x78] sm:%s1482] %v1511
                  %v1513 = vld [vmem:[%s1489 + $0x2c] sm:%s1482]
                  %1514 = vst [vmem:[%s1490 + $0x84] sm:%s1482] %v1513
                  %v1515 = vld [vmem:[%s1489 + $0x30] sm:%s1482]
                  %1516 = vst [vmem:[%s1490 + $0x90] sm:%s1482] %v1515
                  %v1517 = vld [vmem:[%s1489 + $0x34] sm:%s1482]
                  %1518 = vst [vmem:[%s1490 + $0x9c] sm:%s1482] %v1517
                  %v1519 = vld [vmem:[%s1489 + $0x38] sm:%s1482]
                  %1520 = vst [vmem:[%s1490 + $0xa8] sm:%s1482] %v1519
                  %v1521 = vld [vmem:[%s1489 + $0x3c] sm:%s1482]
                  %1522 = vst [vmem:[%s1490 + $0xb4] sm:%s1482] %v1521
                $region143: #{_lambda_.12} parent=130 // loop_footer
                  %s1488 = sadd.s32 1, %s1484
                $region144: #{_lambda_.12} parent=130 // loop_footer_branch
                  %1483 = sbr.rel target = $region140
                $region145: #{_lambda_.12} parent=130 // loop_exit
                  _
              $region131: #{_lambda_.12} parent=115 // pred_fallthru
                _
            $region116: #{_lambda_.12} parent=111 // pred_fallthru
              _
            // Predicated region
            $region117: #{_lambda_.12} parent=111 // pred_check
              _
            $region118: #{_lambda_.12} parent=111 // pred_check_branch
              %1428 = sbr.rel (0) target = $region120
            $region119: #{_lambda_.12} parent=111 // pred_region
              %s1430 = ssub.s32 16, 1
              loop: start=0, step=1, limit=1
              $region121: #{_lambda_.12} parent=119 // loop_pre_header
                _
              $region122: #{_lambda_.12} parent=119 // loop_header
                %s1432 = sphi 0, %s1436
                %p1433 = scmp.ge.s32.totalorder %s1432, 1
                %s1437 = sphi %s1414, %s1414
                %s1438 = sphi %s1422, %s1422
              $region123: #{_lambda_.12} parent=119 // loop_header_branch
                %1435 = sbr.rel (%p1433) target = $region127
              $region124: #{_lambda_.12} parent=119 // loop_body
                %v1439 = vld [vmem:[%s1437] sm:%s1430]
                %1440 = vst [vmem:[%s1438] sm:%s1430] %v1439
                %v1441 = vld [vmem:[%s1437 + $0x4] sm:%s1430]
                %1442 = vst [vmem:[%s1438 + $0xc] sm:%s1430] %v1441
                %v1443 = vld [vmem:[%s1437 + $0x8] sm:%s1430]
                %1444 = vst [vmem:[%s1438 + $0x18] sm:%s1430] %v1443
                %v1445 = vld [vmem:[%s1437 + $0xc] sm:%s1430]
                %1446 = vst [vmem:[%s1438 + $0x24] sm:%s1430] %v1445
                %v1447 = vld [vmem:[%s1437 + $0x10] sm:%s1430]
                %1448 = vst [vmem:[%s1438 + $0x30] sm:%s1430] %v1447
                %v1449 = vld [vmem:[%s1437 + $0x14] sm:%s1430]
                %1450 = vst [vmem:[%s1438 + $0x3c] sm:%s1430] %v1449
                %v1451 = vld [vmem:[%s1437 + $0x18] sm:%s1430]
                %1452 = vst [vmem:[%s1438 + $0x48] sm:%s1430] %v1451
                %v1453 = vld [vmem:[%s1437 + $0x1c] sm:%s1430]
                %1454 = vst [vmem:[%s1438 + $0x54] sm:%s1430] %v1453
                %v1455 = vld [vmem:[%s1437 + $0x20] sm:%s1430]
                %1456 = vst [vmem:[%s1438 + $0x60] sm:%s1430] %v1455
                %v1457 = vld [vmem:[%s1437 + $0x24] sm:%s1430]
                %1458 = vst [vmem:[%s1438 + $0x6c] sm:%s1430] %v1457
                %v1459 = vld [vmem:[%s1437 + $0x28] sm:%s1430]
                %1460 = vst [vmem:[%s1438 + $0x78] sm:%s1430] %v1459
                %v1461 = vld [vmem:[%s1437 + $0x2c] sm:%s1430]
                %1462 = vst [vmem:[%s1438 + $0x84] sm:%s1430] %v1461
                %v1463 = vld [vmem:[%s1437 + $0x30] sm:%s1430]
                %1464 = vst [vmem:[%s1438 + $0x90] sm:%s1430] %v1463
                %v1465 = vld [vmem:[%s1437 + $0x34] sm:%s1430]
                %1466 = vst [vmem:[%s1438 + $0x9c] sm:%s1430] %v1465
                %v1467 = vld [vmem:[%s1437 + $0x38] sm:%s1430]
                %1468 = vst [vmem:[%s1438 + $0xa8] sm:%s1430] %v1467
                %v1469 = vld [vmem:[%s1437 + $0x3c] sm:%s1430]
                %1470 = vst [vmem:[%s1438 + $0xb4] sm:%s1430] %v1469
              $region125: #{_lambda_.12} parent=119 // loop_footer
                %s1436 = sadd.s32 1, %s1432
              $region126: #{_lambda_.12} parent=119 // loop_footer_branch
                %1431 = sbr.rel target = $region122
              $region127: #{_lambda_.12} parent=119 // loop_exit
                _
            $region120: #{_lambda_.12} parent=111 // pred_fallthru
              _
          $region112: #{_lambda_.12} parent=107 // pred_fallthru
            _
          %1523 = vnop
        $region108: #{_lambda_.12} parent=87 // pred_fallthru
          _
      $region88: #{_lambda_.12} parent=5 // pred_fallthru
        _
      %p1524 = scmp.le.s32.totalorder 2, %s9
      // Predicated region
      $region146: #{_lambda_.12} parent=5 // pred_check
        %p1525 = pneg %p1524
      $region147: #{_lambda_.12} parent=5 // pred_check_branch
        %1527 = sbr.rel (%p1525) target = $region149
      $region148: #{_lambda_.12} parent=5 // pred_region
        %s1528 = ssub.s32 %s9, 2
        // Predicated region
        $region150: #{_lambda_.12} parent=148 // pred_check
          %p1529 = pneg %p141
        $region151: #{_lambda_.12} parent=148 // pred_check_branch
          %1531 = sbr.rel (%p1529) target = $region153
        $region152: #{_lambda_.12} parent=148 // pred_region
          %s1532 = sand.u32 %s126, 1
          %s1533 = sand.u32 %s126, 1
          %s1534 = smul.addr %s1533, 64
          %s1535 = scalar_lea.vmem [#allocation5], %s1534
        $region153: #{_lambda_.12} parent=148 // pred_fallthru
          _
      $region149: #{_lambda_.12} parent=5 // pred_fallthru
        _
    $region6: #{_lambda_.12} parent=1 // loop_footer
      %s13 = sadd.s32 1, %s9
    $region7: #{_lambda_.12} parent=1 // loop_footer_branch
      %8 = sbr.rel target = $region3
    $region8: #{_lambda_.12} parent=1 // loop_exit
      _

// kernel: _lambda_.13
$region0: #{_lambda_.13}
  #allocation0 [shape = 'u32[]', space=smem, size = 0x4, offset = 0x4, fixed_abs, tag = 'smem constant byte address 0x4 - core index']
  #allocation1 [shape = 'u32[72,128]{1,0:T(1,128)}', space=vmem, size = 0x9000, scoped, tag = 'internal scratch']
  #allocation2 [shape = 'f32[128,128]{1,0:T(8,128)}', space=vmem, size = 0x10000, scoped, tag = 'scratch operand']
  %s0 = inlined_call_operand.vmem [shape: bf16[128,3584], index: 0, kind: input, shape index: {}]
  %s1 = inlined_call_operand.vmem [shape: bf16[3584,256], index: 1, kind: input, shape index: {}]
  %s2 = inlined_call_operand.vmem [shape: f32[1,256], index: 2, kind: input, shape index: {}]
  %s3 = inlined_call_operand.vmem [shape: bf16[128,256], index: 3, kind: output, shape index: {}]
  %s4 = sld [smem:[#allocation0]]
  $region154: #{_lambda_.13} parent=0
    _
  %s6 = ssub.s32 1, %s4
  %s7 = scalar_select 0, %s6, %s4
  $region1: #{_lambda_.13} parent=0
    #allocation3 [shape = 'u8[262144]{0}', space=vmem, size = 0x40000, scoped, tag = 'input window, operand 0']
    #allocation4 [shape = 'u8[262144]{0}', space=vmem, size = 0x40000, scoped, tag = 'input window, operand 1']
    #allocation5 [shape = 'u8[65536]{0}', space=vmem, size = 0x10000, scoped, tag = 'output window, operand 0']
    loop: start=0, step=1, limit=16
    $region2: #{_lambda_.13} parent=1 // loop_pre_header
      _
    $region3: #{_lambda_.13} parent=1 // loop_header
      %s9 = sphi 0, %s13
      %p10 = scmp.ge.s32.totalorder %s9, 16
      %s16 = sphi 0, %s35
      %s17 = sphi 0, %s31
      %s18 = sphi 0, %s27
      %s19 = sphi 0, %s16
      %s20 = sphi 0, %s17
      %s21 = sphi 0, %s18
      %s22 = sphi 0, %s19
      %s23 = sphi 0, %s20
      %s24 = sphi 0, %s21
      %s40 = sphi 0, %s42
      %s43 = sphi 0, %s40
      %s44 = sphi 0, %s43
      %s60 = sphi 0, %s44
      %s68 = sphi 0, %s70
      %s71 = sphi 0, %s68
      %s72 = sphi 0, %s71
      %s88 = sphi 0, %s72
      %s94 = sphi 0, %s96
      %s97 = sphi 0, %s94
      %s98 = sphi 0, %s97
      %s114 = sphi 0, %s98
      %s122 = sphi 0, %s124
      %s125 = sphi 0, %s122
      %s126 = sphi 0, %s125
      %s142 = sphi 0, %s126
    $region4: #{_lambda_.13} parent=1 // loop_header_branch
      %12 = sbr.rel (%p10) target = $region8
    $region5: #{_lambda_.13} parent=1 // loop_body
      %s14 = ssub.s32 %s9, 1
      %s15 = ssub.s32 %s9, 2
      %s25 = sadd.s32 1, %s18
      %p26 = scmp.ge.s32.totalorder %s25, 7
      %s27 = scalar_select %p26, 0, %s25
      %s28 = sadd.s32 1, %s17
      %s29 = scalar_select %p26, %s28, %s17
      %p30 = scmp.ge.s32.totalorder %s29, 2
      %s31 = scalar_select %p30, 0, %s29
      %s32 = sadd.s32 1, %s16
      %s33 = scalar_select %p30, %s32, %s16
      %p34 = scmp.ge.s32.totalorder %s33, 1
      %s35 = scalar_select %p34, 0, %s33
      %s36 = ssub.s32 %s16, %s35
      %s37 = ssub.s32 %s18, %s27
      %s38 = sor.u32 %s36, %s37
      %p39 = scmp.eq.s32.totalorder %s38, 0
      %s41 = sadd.s32 %s40, 1
      %s42 = scalar_select %p39, %s40, %s41
      %p45 = pneg %p39
      %p46 = scmp.eq.s32.totalorder %s9, 13
      %p47 = por %p45, %p46
      %p48 = scmp.ne.s32.totalorder %s40, %s43
      %p49 = scmp.eq.s32.totalorder %s9, 0
      %p50 = por %p48, %p49
      %p51 = scmp.ne.s32.totalorder %s40, %s43
      %p52 = scmp.eq.s32.totalorder %s14, 13
      %p53 = por %p51, %p52
      %p54 = scmp.ne.s32.totalorder %s43, %s44
      %p55 = scmp.eq.s32.totalorder %s14, 0
      %p56 = por %p54, %p55
      %p57 = scmp.ne.s32.totalorder %s43, %s44
      %p58 = scmp.eq.s32.totalorder %s15, 13
      %p59 = por %p57, %p58
      %p61 = scmp.ne.s32.totalorder %s44, %s60
      %p62 = scmp.eq.s32.totalorder %s15, 0
      %p63 = por %p61, %p62
      %s64 = ssub.s32 %s18, %s27
      %s65 = ssub.s32 %s17, %s31
      %s66 = sor.u32 %s64, %s65
      %p67 = scmp.eq.s32.totalorder %s66, 0
      %s69 = sadd.s32 %s68, 1
      %s70 = scalar_select %p67, %s68, %s69
      %p73 = pneg %p67
      %p74 = scmp.eq.s32.totalorder %s9, 13
      %p75 = por %p73, %p74
      %p76 = scmp.ne.s32.totalorder %s68, %s71
      %p77 = scmp.eq.s32.totalorder %s9, 0
      %p78 = por %p76, %p77
      %p79 = scmp.ne.s32.totalorder %s68, %s71
      %p80 = scmp.eq.s32.totalorder %s14, 13
      %p81 = por %p79, %p80
      %p82 = scmp.ne.s32.totalorder %s71, %s72
      %p83 = scmp.eq.s32.totalorder %s14, 0
      %p84 = por %p82, %p83
      %p85 = scmp.ne.s32.totalorder %s71, %s72
      %p86 = scmp.eq.s32.totalorder %s15, 13
      %p87 = por %p85, %p86
      %p89 = scmp.ne.s32.totalorder %s72, %s88
      %p90 = scmp.eq.s32.totalorder %s15, 0
      %p91 = por %p89, %p90
      %s92 = ssub.s32 %s17, %s31
      %p93 = scmp.eq.s32.totalorder %s92, 0
      %s95 = sadd.s32 %s94, 1
      %s96 = scalar_select %p93, %s94, %s95
      %p99 = pneg %p93
      %p100 = scmp.eq.s32.totalorder %s9, 13
      %p101 = por %p99, %p100
      %p102 = scmp.ne.s32.totalorder %s94, %s97
      %p103 = scmp.eq.s32.totalorder %s9, 0
      %p104 = por %p102, %p103
      %p105 = scmp.ne.s32.totalorder %s94, %s97
      %p106 = scmp.eq.s32.totalorder %s14, 13
      %p107 = por %p105, %p106
      %p108 = scmp.ne.s32.totalorder %s97, %s98
      %p109 = scmp.eq.s32.totalorder %s14, 0
      %p110 = por %p108, %p109
      %p111 = scmp.ne.s32.totalorder %s97, %s98
      %p112 = scmp.eq.s32.totalorder %s15, 13
      %p113 = por %p111, %p112
      %p115 = scmp.ne.s32.totalorder %s98, %s114
      %p116 = scmp.eq.s32.totalorder %s15, 0
      %p117 = por %p115, %p116
      %s118 = ssub.s32 %s16, %s35
      %s119 = ssub.s32 %s17, %s31
      %s120 = sor.u32 %s118, %s119
      %p121 = scmp.eq.s32.totalorder %s120, 0
      %s123 = sadd.s32 %s122, 1
      %s124 = scalar_select %p121, %s122, %s123
      %p127 = pneg %p121
      %p128 = scmp.eq.s32.totalorder %s9, 13
      %p129 = por %p127, %p128
      %p130 = scmp.ne.s32.totalorder %s122, %s125
      %p131 = scmp.eq.s32.totalorder %s9, 0
      %p132 = por %p130, %p131
      %p133 = scmp.ne.s32.totalorder %s122, %s125
      %p134 = scmp.eq.s32.totalorder %s14, 13
      %p135 = por %p133, %p134
      %p136 = scmp.ne.s32.totalorder %s125, %s126
      %p137 = scmp.eq.s32.totalorder %s14, 0
      %p138 = por %p136, %p137
      %p139 = scmp.ne.s32.totalorder %s125, %s126
      %p140 = scmp.eq.s32.totalorder %s15, 13
      %p141 = por %p139, %p140
      %p143 = scmp.ne.s32.totalorder %s126, %s142
      %p144 = scmp.eq.s32.totalorder %s15, 0
      %p145 = por %p143, %p144
      %p146 = scmp.le.s32.totalorder 1, %s9
      %p147 = scmp.lt.s32.totalorder %s9, 15
      %p148 = pnand %p146, %p147
      %p149 = pneg %p148
      // Predicated region
      $region9: #{_lambda_.13} parent=5 // pred_check
        _
      $region10: #{_lambda_.13} parent=5 // pred_check_branch
        %151 = sbr.rel (%p148) target = $region12
      $region11: #{_lambda_.13} parent=5 // pred_region
        %s152 = ssub.s32 %s9, 1
      $region12: #{_lambda_.13} parent=5 // pred_fallthru
        _
      %p153 = scmp.lt.s32.totalorder %s9, 14
      // Predicated region
      $region13: #{_lambda_.13} parent=5 // pred_check
        %p154 = pneg %p153
      $region14: #{_lambda_.13} parent=5 // pred_check_branch
        %156 = sbr.rel (%p154) target = $region16
      $region15: #{_lambda_.13} parent=5 // pred_region
        // Predicated region
        $region17: #{_lambda_.13} parent=15 // pred_check
          %p157 = pneg %p50
        $region18: #{_lambda_.13} parent=15 // pred_check_branch
          %159 = sbr.rel (%p157) target = $region20
        $region19: #{_lambda_.13} parent=15 // pred_region
          %s160 = sand.u32 %s40, 1
          %s161 = sand.u32 %s40, 1
          %s162 = smul.addr %s161, 256
          %s163 = scalar_lea.vmem [#allocation3], %s162
          %s164 = smul.u32 16, %s16
          %s165 = smul.u32 4, %s18
          %s166 = smul.addr %s164, 28
          %s167 = sadd.s32 %s165, %s166
          %s168 = smul.addr %s167, 4
          %s169 = scalar_lea.vmem %s0, %s168
          // Predicated region
          $region21: #{_lambda_.13} parent=19 // pred_check
            _
          $region22: #{_lambda_.13} parent=19 // pred_check_branch
            %171 = sbr.rel (0) target = $region24
          $region23: #{_lambda_.13} parent=19 // pred_region
            // Predicated region
            $region25: #{_lambda_.13} parent=23 // pred_check
              _
            $region26: #{_lambda_.13} parent=23 // pred_check_branch
              %173 = sbr.rel (0) target = $region28
            $region27: #{_lambda_.13} parent=23 // pred_region
              loop: start=0, step=1, limit=1
              $region29: #{_lambda_.13} parent=27 // loop_pre_header
                _
              $region30: #{_lambda_.13} parent=27 // loop_header
                %s175 = sphi 0, %s179
                %p176 = scmp.ge.s32.totalorder %s175, 1
                %s180 = sphi %s169, %s169
                %s181 = sphi %s163, %s163
              $region31: #{_lambda_.13} parent=27 // loop_header_branch
                %178 = sbr.rel (%p176) target = $region35
              $region32: #{_lambda_.13} parent=27 // loop_body
                %v182 = vld [vmem:[%s180] sm:$0xff]
                %183 = vst [vmem:[%s181] sm:$0xff] %v182
                %v184 = vld [vmem:[%s180 + $0x8] sm:$0xff]
                %185 = vst [vmem:[%s181 + $0x8] sm:$0xff] %v184
                %v186 = vld [vmem:[%s180 + $0x70] sm:$0xff]
                %187 = vst [vmem:[%s181 + $0x10] sm:$0xff] %v186
                %v188 = vld [vmem:[%s180 + $0x78] sm:$0xff]
                %189 = vst [vmem:[%s181 + $0x18] sm:$0xff] %v188
                %v190 = vld [vmem:[%s180 + $0xe0] sm:$0xff]
                %191 = vst [vmem:[%s181 + $0x20] sm:$0xff] %v190
                %v192 = vld [vmem:[%s180 + $0xe8] sm:$0xff]
                %193 = vst [vmem:[%s181 + $0x28] sm:$0xff] %v192
                %v194 = vld [vmem:[%s180 + $0x150] sm:$0xff]
                %195 = vst [vmem:[%s181 + $0x30] sm:$0xff] %v194
                %v196 = vld [vmem:[%s180 + $0x158] sm:$0xff]
                %197 = vst [vmem:[%s181 + $0x38] sm:$0xff] %v196
                %v198 = vld [vmem:[%s180 + $0x1c0] sm:$0xff]
                %199 = vst [vmem:[%s181 + $0x40] sm:$0xff] %v198
                %v200 = vld [vmem:[%s180 + $0x1c8] sm:$0xff]
                %201 = vst [vmem:[%s181 + $0x48] sm:$0xff] %v200
                %v202 = vld [vmem:[%s180 + $0x230] sm:$0xff]
                %203 = vst [vmem:[%s181 + $0x50] sm:$0xff] %v202
                %v204 = vld [vmem:[%s180 + $0x238] sm:$0xff]
                %205 = vst [vmem:[%s181 + $0x58] sm:$0xff] %v204
                %v206 = vld [vmem:[%s180 + $0x2a0] sm:$0xff]
                %207 = vst [vmem:[%s181 + $0x60] sm:$0xff] %v206
                %v208 = vld [vmem:[%s180 + $0x2a8] sm:$0xff]
                %209 = vst [vmem:[%s181 + $0x68] sm:$0xff] %v208
                %v210 = vld [vmem:[%s180 + $0x310] sm:$0xff]
                %211 = vst [vmem:[%s181 + $0x70] sm:$0xff] %v210
                %v212 = vld [vmem:[%s180 + $0x318] sm:$0xff]
                %213 = vst [vmem:[%s181 + $0x78] sm:$0xff] %v212
                %v214 = vld [vmem:[%s180 + $0x380] sm:$0xff]
                %215 = vst [vmem:[%s181 + $0x80] sm:$0xff] %v214
                %v216 = vld [vmem:[%s180 + $0x388] sm:$0xff]
                %217 = vst [vmem:[%s181 + $0x88] sm:$0xff] %v216
                %v218 = vld [vmem:[%s180 + $0x3f0] sm:$0xff]
                %219 = vst [vmem:[%s181 + $0x90] sm:$0xff] %v218
                %v220 = vld [vmem:[%s180 + $0x3f8] sm:$0xff]
                %221 = vst [vmem:[%s181 + $0x98] sm:$0xff] %v220
                %v222 = vld [vmem:[%s180 + $0x460] sm:$0xff]
                %223 = vst [vmem:[%s181 + $0xa0] sm:$0xff] %v222
                %v224 = vld [vmem:[%s180 + $0x468] sm:$0xff]
                %225 = vst [vmem:[%s181 + $0xa8] sm:$0xff] %v224
                %v226 = vld [vmem:[%s180 + $0x4d0] sm:$0xff]
                %227 = vst [vmem:[%s181 + $0xb0] sm:$0xff] %v226
                %v228 = vld [vmem:[%s180 + $0x4d8] sm:$0xff]
                %229 = vst [vmem:[%s181 + $0xb8] sm:$0xff] %v228
                %v230 = vld [vmem:[%s180 + $0x540] sm:$0xff]
                %231 = vst [vmem:[%s181 + $0xc0] sm:$0xff] %v230
                %v232 = vld [vmem:[%s180 + $0x548] sm:$0xff]
                %233 = vst [vmem:[%s181 + $0xc8] sm:$0xff] %v232
                %v234 = vld [vmem:[%s180 + $0x5b0] sm:$0xff]
                %235 = vst [vmem:[%s181 + $0xd0] sm:$0xff] %v234
                %v236 = vld [vmem:[%s180 + $0x5b8] sm:$0xff]
                %237 = vst [vmem:[%s181 + $0xd8] sm:$0xff] %v236
                %v238 = vld [vmem:[%s180 + $0x620] sm:$0xff]
                %239 = vst [vmem:[%s181 + $0xe0] sm:$0xff] %v238
                %v240 = vld [vmem:[%s180 + $0x628] sm:$0xff]
                %241 = vst [vmem:[%s181 + $0xe8] sm:$0xff] %v240
                %v242 = vld [vmem:[%s180 + $0x690] sm:$0xff]
                %243 = vst [vmem:[%s181 + $0xf0] sm:$0xff] %v242
                %v244 = vld [vmem:[%s180 + $0x698] sm:$0xff]
                %245 = vst [vmem:[%s181 + $0xf8] sm:$0xff] %v244
              $region33: #{_lambda_.13} parent=27 // loop_footer
                %s179 = sadd.s32 1, %s175
              $region34: #{_lambda_.13} parent=27 // loop_footer_branch
                %174 = sbr.rel target = $region30
              $region35: #{_lambda_.13} parent=27 // loop_exit
                _
            $region28: #{_lambda_.13} parent=23 // pred_fallthru
              _
            // Predicated region
            $region36: #{_lambda_.13} parent=23 // pred_check
              _
            $region37: #{_lambda_.13} parent=23 // pred_check_branch
              %247 = sbr.rel target = $region39
            $region38: #{_lambda_.13} parent=23 // pred_region
              _
            $region39: #{_lambda_.13} parent=23 // pred_fallthru
              _
          $region24: #{_lambda_.13} parent=19 // pred_fallthru
            _
          %248 = vnop
        $region20: #{_lambda_.13} parent=15 // pred_fallthru
          _
        // Predicated region
        $region40: #{_lambda_.13} parent=15 // pred_check
          %p249 = pneg %p78
        $region41: #{_lambda_.13} parent=15 // pred_check_branch
          %251 = sbr.rel (%p249) target = $region43
        $region42: #{_lambda_.13} parent=15 // pred_region
          %s252 = sand.u32 %s68, 1
          %s253 = sand.u32 %s68, 1
          %s254 = smul.addr %s253, 256
          %s255 = scalar_lea.vmem [#allocation4], %s254
          %s256 = smul.u32 64, %s18
          %s257 = smul.addr %s256, 2
          %s258 = sadd.s32 %s17, %s257
          %s259 = smul.addr %s258, 4
          %s260 = scalar_lea.vmem %s1, %s259
          // Predicated region
          $region44: #{_lambda_.13} parent=42 // pred_check
            _
          $region45: #{_lambda_.13} parent=42 // pred_check_branch
            %262 = sbr.rel (0) target = $region47
          $region46: #{_lambda_.13} parent=42 // pred_region
            // Predicated region
            $region48: #{_lambda_.13} parent=46 // pred_check
              _
            $region49: #{_lambda_.13} parent=46 // pred_check_branch
              %264 = sbr.rel target = $region51
            $region50: #{_lambda_.13} parent=46 // pred_region
              // Predicated region
              $region63: #{_lambda_.13} parent=50 // pred_check
                _
              $region64: #{_lambda_.13} parent=50 // pred_check_branch
                %406 = sbr.rel (0) target = $region66
              $region65: #{_lambda_.13} parent=50 // pred_region
                loop: start=0, step=1, limit=1
                $region67: #{_lambda_.13} parent=65 // loop_pre_header
                  _
                $region68: #{_lambda_.13} parent=65 // loop_header
                  %s408 = sphi 0, %s412
                  %p409 = scmp.ge.s32.totalorder %s408, 1
                  %s413 = sphi %s260, %s260
                  %s414 = sphi %s255, %s255
                $region69: #{_lambda_.13} parent=65 // loop_header_branch
                  %411 = sbr.rel (%p409) target = $region73
                $region70: #{_lambda_.13} parent=65 // loop_body
                  _
                $region71: #{_lambda_.13} parent=65 // loop_footer
                  %s412 = sadd.s32 1, %s408
                $region72: #{_lambda_.13} parent=65 // loop_footer_branch
                  %407 = sbr.rel target = $region68
                $region73: #{_lambda_.13} parent=65 // loop_exit
                  _
                %s416 = ssub.s32 16, 1
                loop: start=0, step=1, limit=1
                $region74: #{_lambda_.13} parent=65 // loop_pre_header
                  _
                $region75: #{_lambda_.13} parent=65 // loop_header
                  %s418 = sphi 0, %s422
                  %p419 = scmp.ge.s32.totalorder %s418, 1
                  %s423 = sphi %s260, %s260
                  %s424 = sphi %s255, %s255
                $region76: #{_lambda_.13} parent=65 // loop_header_branch
                  %421 = sbr.rel (%p419) target = $region80
                $region77: #{_lambda_.13} parent=65 // loop_body
                  %v425 = vld [vmem:[%s423] sm:%s416]
                  %426 = vst [vmem:[%s424] sm:%s416] %v425
                  %v427 = vld [vmem:[%s423 + $0x8] sm:%s416]
                  %428 = vst [vmem:[%s424 + $0x4] sm:%s416] %v427
                  %v429 = vld [vmem:[%s423 + $0x10] sm:%s416]
                  %430 = vst [vmem:[%s424 + $0x8] sm:%s416] %v429
                  %v431 = vld [vmem:[%s423 + $0x18] sm:%s416]
                  %432 = vst [vmem:[%s424 + $0xc] sm:%s416] %v431
                  %v433 = vld [vmem:[%s423 + $0x20] sm:%s416]
                  %434 = vst [vmem:[%s424 + $0x10] sm:%s416] %v433
                  %v435 = vld [vmem:[%s423 + $0x28] sm:%s416]
                  %436 = vst [vmem:[%s424 + $0x14] sm:%s416] %v435
                  %v437 = vld [vmem:[%s423 + $0x30] sm:%s416]
                  %438 = vst [vmem:[%s424 + $0x18] sm:%s416] %v437
                  %v439 = vld [vmem:[%s423 + $0x38] sm:%s416]
                  %440 = vst [vmem:[%s424 + $0x1c] sm:%s416] %v439
                  %v441 = vld [vmem:[%s423 + $0x40] sm:%s416]
                  %442 = vst [vmem:[%s424 + $0x20] sm:%s416] %v441
                  %v443 = vld [vmem:[%s423 + $0x48] sm:%s416]
                  %444 = vst [vmem:[%s424 + $0x24] sm:%s416] %v443
                  %v445 = vld [vmem:[%s423 + $0x50] sm:%s416]
                  %446 = vst [vmem:[%s424 + $0x28] sm:%s416] %v445
                  %v447 = vld [vmem:[%s423 + $0x58] sm:%s416]
                  %448 = vst [vmem:[%s424 + $0x2c] sm:%s416] %v447
                  %v449 = vld [vmem:[%s423 + $0x60] sm:%s416]
                  %450 = vst [vmem:[%s424 + $0x30] sm:%s416] %v449
                  %v451 = vld [vmem:[%s423 + $0x68] sm:%s416]
                  %452 = vst [vmem:[%s424 + $0x34] sm:%s416] %v451
                  %v453 = vld [vmem:[%s423 + $0x70] sm:%s416]
                  %454 = vst [vmem:[%s424 + $0x38] sm:%s416] %v453
                  %v455 = vld [vmem:[%s423 + $0x78] sm:%s416]
                  %456 = vst [vmem:[%s424 + $0x3c] sm:%s416] %v455
                  %v457 = vld [vmem:[%s423 + $0x80] sm:%s416]
                  %458 = vst [vmem:[%s424 + $0x40] sm:%s416] %v457
                  %v459 = vld [vmem:[%s423 + $0x88] sm:%s416]
                  %460 = vst [vmem:[%s424 + $0x44] sm:%s416] %v459
                  %v461 = vld [vmem:[%s423 + $0x90] sm:%s416]
                  %462 = vst [vmem:[%s424 + $0x48] sm:%s416] %v461
                  %v463 = vld [vmem:[%s423 + $0x98] sm:%s416]
                  %464 = vst [vmem:[%s424 + $0x4c] sm:%s416] %v463
                  %v465 = vld [vmem:[%s423 + $0xa0] sm:%s416]
                  %466 = vst [vmem:[%s424 + $0x50] sm:%s416] %v465
                  %v467 = vld [vmem:[%s423 + $0xa8] sm:%s416]
                  %468 = vst [vmem:[%s424 + $0x54] sm:%s416] %v467
                  %v469 = vld [vmem:[%s423 + $0xb0] sm:%s416]
                  %470 = vst [vmem:[%s424 + $0x58] sm:%s416] %v469
                  %v471 = vld [vmem:[%s423 + $0xb8] sm:%s416]
                  %472 = vst [vmem:[%s424 + $0x5c] sm:%s416] %v471
                  %v473 = vld [vmem:[%s423 + $0xc0] sm:%s416]
                  %474 = vst [vmem:[%s424 + $0x60] sm:%s416] %v473
                  %v475 = vld [vmem:[%s423 + $0xc8] sm:%s416]
                  %476 = vst [vmem:[%s424 + $0x64] sm:%s416] %v475
                  %v477 = vld [vmem:[%s423 + $0xd0] sm:%s416]
                  %478 = vst [vmem:[%s424 + $0x68] sm:%s416] %v477
                  %v479 = vld [vmem:[%s423 + $0xd8] sm:%s416]
                  %480 = vst [vmem:[%s424 + $0x6c] sm:%s416] %v479
                  %v481 = vld [vmem:[%s423 + $0xe0] sm:%s416]
                  %482 = vst [vmem:[%s424 + $0x70] sm:%s416] %v481
                  %v483 = vld [vmem:[%s423 + $0xe8] sm:%s416]
                  %484 = vst [vmem:[%s424 + $0x74] sm:%s416] %v483
                  %v485 = vld [vmem:[%s423 + $0xf0] sm:%s416]
                  %486 = vst [vmem:[%s424 + $0x78] sm:%s416] %v485
                  %v487 = vld [vmem:[%s423 + $0xf8] sm:%s416]
                  %488 = vst [vmem:[%s424 + $0x7c] sm:%s416] %v487
                  %v489 = vld [vmem:[%s423 + $0x100] sm:%s416]
                  %490 = vst [vmem:[%s424 + $0x80] sm:%s416] %v489
                  %v491 = vld [vmem:[%s423 + $0x108] sm:%s416]
                  %492 = vst [vmem:[%s424 + $0x84] sm:%s416] %v491
                  %v493 = vld [vmem:[%s423 + $0x110] sm:%s416]
                  %494 = vst [vmem:[%s424 + $0x88] sm:%s416] %v493
                  %v495 = vld [vmem:[%s423 + $0x118] sm:%s416]
                  %496 = vst [vmem:[%s424 + $0x8c] sm:%s416] %v495
                  %v497 = vld [vmem:[%s423 + $0x120] sm:%s416]
                  %498 = vst [vmem:[%s424 + $0x90] sm:%s416] %v497
                  %v499 = vld [vmem:[%s423 + $0x128] sm:%s416]
                  %500 = vst [vmem:[%s424 + $0x94] sm:%s416] %v499
                  %v501 = vld [vmem:[%s423 + $0x130] sm:%s416]
                  %502 = vst [vmem:[%s424 + $0x98] sm:%s416] %v501
                  %v503 = vld [vmem:[%s423 + $0x138] sm:%s416]
                  %504 = vst [vmem:[%s424 + $0x9c] sm:%s416] %v503
                  %v505 = vld [vmem:[%s423 + $0x140] sm:%s416]
                  %506 = vst [vmem:[%s424 + $0xa0] sm:%s416] %v505
                  %v507 = vld [vmem:[%s423 + $0x148] sm:%s416]
                  %508 = vst [vmem:[%s424 + $0xa4] sm:%s416] %v507
                  %v509 = vld [vmem:[%s423 + $0x150] sm:%s416]
                  %510 = vst [vmem:[%s424 + $0xa8] sm:%s416] %v509
                  %v511 = vld [vmem:[%s423 + $0x158] sm:%s416]
                  %512 = vst [vmem:[%s424 + $0xac] sm:%s416] %v511
                  %v513 = vld [vmem:[%s423 + $0x160] sm:%s416]
                  %514 = vst [vmem:[%s424 + $0xb0] sm:%s416] %v513
                  %v515 = vld [vmem:[%s423 + $0x168] sm:%s416]
                  %516 = vst [vmem:[%s424 + $0xb4] sm:%s416] %v515
                  %v517 = vld [vmem:[%s423 + $0x170] sm:%s416]
                  %518 = vst [vmem:[%s424 + $0xb8] sm:%s416] %v517
                  %v519 = vld [vmem:[%s423 + $0x178] sm:%s416]
                  %520 = vst [vmem:[%s424 + $0xbc] sm:%s416] %v519
                  %v521 = vld [vmem:[%s423 + $0x180] sm:%s416]
                  %522 = vst [vmem:[%s424 + $0xc0] sm:%s416] %v521
                  %v523 = vld [vmem:[%s423 + $0x188] sm:%s416]
                  %524 = vst [vmem:[%s424 + $0xc4] sm:%s416] %v523
                  %v525 = vld [vmem:[%s423 + $0x190] sm:%s416]
                  %526 = vst [vmem:[%s424 + $0xc8] sm:%s416] %v525
                  %v527 = vld [vmem:[%s423 + $0x198] sm:%s416]
                  %528 = vst [vmem:[%s424 + $0xcc] sm:%s416] %v527
                  %v529 = vld [vmem:[%s423 + $0x1a0] sm:%s416]
                  %530 = vst [vmem:[%s424 + $0xd0] sm:%s416] %v529
                  %v531 = vld [vmem:[%s423 + $0x1a8] sm:%s416]
                  %532 = vst [vmem:[%s424 + $0xd4] sm:%s416] %v531
                  %v533 = vld [vmem:[%s423 + $0x1b0] sm:%s416]
                  %534 = vst [vmem:[%s424 + $0xd8] sm:%s416] %v533
                  %v535 = vld [vmem:[%s423 + $0x1b8] sm:%s416]
                  %536 = vst [vmem:[%s424 + $0xdc] sm:%s416] %v535
                  %v537 = vld [vmem:[%s423 + $0x1c0] sm:%s416]
                  %538 = vst [vmem:[%s424 + $0xe0] sm:%s416] %v537
                  %v539 = vld [vmem:[%s423 + $0x1c8] sm:%s416]
                  %540 = vst [vmem:[%s424 + $0xe4] sm:%s416] %v539
                  %v541 = vld [vmem:[%s423 + $0x1d0] sm:%s416]
                  %542 = vst [vmem:[%s424 + $0xe8] sm:%s416] %v541
                  %v543 = vld [vmem:[%s423 + $0x1d8] sm:%s416]
                  %544 = vst [vmem:[%s424 + $0xec] sm:%s416] %v543
                  %v545 = vld [vmem:[%s423 + $0x1e0] sm:%s416]
                  %546 = vst [vmem:[%s424 + $0xf0] sm:%s416] %v545
                  %v547 = vld [vmem:[%s423 + $0x1e8] sm:%s416]
                  %548 = vst [vmem:[%s424 + $0xf4] sm:%s416] %v547
                  %v549 = vld [vmem:[%s423 + $0x1f0] sm:%s416]
                  %550 = vst [vmem:[%s424 + $0xf8] sm:%s416] %v549
                  %v551 = vld [vmem:[%s423 + $0x1f8] sm:%s416]
                  %552 = vst [vmem:[%s424 + $0xfc] sm:%s416] %v551
                $region78: #{_lambda_.13} parent=65 // loop_footer
                  %s422 = sadd.s32 1, %s418
                $region79: #{_lambda_.13} parent=65 // loop_footer_branch
                  %417 = sbr.rel target = $region75
                $region80: #{_lambda_.13} parent=65 // loop_exit
                  _
              $region66: #{_lambda_.13} parent=50 // pred_fallthru
                _
            $region51: #{_lambda_.13} parent=46 // pred_fallthru
              _
            // Predicated region
            $region52: #{_lambda_.13} parent=46 // pred_check
              _
            $region53: #{_lambda_.13} parent=46 // pred_check_branch
              %266 = sbr.rel (0) target = $region55
            $region54: #{_lambda_.13} parent=46 // pred_region
              %s268 = ssub.s32 16, 1
              loop: start=0, step=1, limit=1
              $region56: #{_lambda_.13} parent=54 // loop_pre_header
                _
              $region57: #{_lambda_.13} parent=54 // loop_header
                %s270 = sphi 0, %s274
                %p271 = scmp.ge.s32.totalorder %s270, 1
                %s275 = sphi %s260, %s260
                %s276 = sphi %s255, %s255
              $region58: #{_lambda_.13} parent=54 // loop_header_branch
                %273 = sbr.rel (%p271) target = $region62
              $region59: #{_lambda_.13} parent=54 // loop_body
                %v277 = vld [vmem:[%s275] sm:%s268]
                %278 = vst [vmem:[%s276] sm:%s268] %v277
                %v279 = vld [vmem:[%s275 + $0x8] sm:%s268]
                %280 = vst [vmem:[%s276 + $0x4] sm:%s268] %v279
                %v281 = vld [vmem:[%s275 + $0x10] sm:%s268]
                %282 = vst [vmem:[%s276 + $0x8] sm:%s268] %v281
                %v283 = vld [vmem:[%s275 + $0x18] sm:%s268]
                %284 = vst [vmem:[%s276 + $0xc] sm:%s268] %v283
                %v285 = vld [vmem:[%s275 + $0x20] sm:%s268]
                %286 = vst [vmem:[%s276 + $0x10] sm:%s268] %v285
                %v287 = vld [vmem:[%s275 + $0x28] sm:%s268]
                %288 = vst [vmem:[%s276 + $0x14] sm:%s268] %v287
                %v289 = vld [vmem:[%s275 + $0x30] sm:%s268]
                %290 = vst [vmem:[%s276 + $0x18] sm:%s268] %v289
                %v291 = vld [vmem:[%s275 + $0x38] sm:%s268]
                %292 = vst [vmem:[%s276 + $0x1c] sm:%s268] %v291
                %v293 = vld [vmem:[%s275 + $0x40] sm:%s268]
                %294 = vst [vmem:[%s276 + $0x20] sm:%s268] %v293
                %v295 = vld [vmem:[%s275 + $0x48] sm:%s268]
                %296 = vst [vmem:[%s276 + $0x24] sm:%s268] %v295
                %v297 = vld [vmem:[%s275 + $0x50] sm:%s268]
                %298 = vst [vmem:[%s276 + $0x28] sm:%s268] %v297
                %v299 = vld [vmem:[%s275 + $0x58] sm:%s268]
                %300 = vst [vmem:[%s276 + $0x2c] sm:%s268] %v299
                %v301 = vld [vmem:[%s275 + $0x60] sm:%s268]
                %302 = vst [vmem:[%s276 + $0x30] sm:%s268] %v301
                %v303 = vld [vmem:[%s275 + $0x68] sm:%s268]
                %304 = vst [vmem:[%s276 + $0x34] sm:%s268] %v303
                %v305 = vld [vmem:[%s275 + $0x70] sm:%s268]
                %306 = vst [vmem:[%s276 + $0x38] sm:%s268] %v305
                %v307 = vld [vmem:[%s275 + $0x78] sm:%s268]
                %308 = vst [vmem:[%s276 + $0x3c] sm:%s268] %v307
                %v309 = vld [vmem:[%s275 + $0x80] sm:%s268]
                %310 = vst [vmem:[%s276 + $0x40] sm:%s268] %v309
                %v311 = vld [vmem:[%s275 + $0x88] sm:%s268]
                %312 = vst [vmem:[%s276 + $0x44] sm:%s268] %v311
                %v313 = vld [vmem:[%s275 + $0x90] sm:%s268]
                %314 = vst [vmem:[%s276 + $0x48] sm:%s268] %v313
                %v315 = vld [vmem:[%s275 + $0x98] sm:%s268]
                %316 = vst [vmem:[%s276 + $0x4c] sm:%s268] %v315
                %v317 = vld [vmem:[%s275 + $0xa0] sm:%s268]
                %318 = vst [vmem:[%s276 + $0x50] sm:%s268] %v317
                %v319 = vld [vmem:[%s275 + $0xa8] sm:%s268]
                %320 = vst [vmem:[%s276 + $0x54] sm:%s268] %v319
                %v321 = vld [vmem:[%s275 + $0xb0] sm:%s268]
                %322 = vst [vmem:[%s276 + $0x58] sm:%s268] %v321
                %v323 = vld [vmem:[%s275 + $0xb8] sm:%s268]
                %324 = vst [vmem:[%s276 + $0x5c] sm:%s268] %v323
                %v325 = vld [vmem:[%s275 + $0xc0] sm:%s268]
                %326 = vst [vmem:[%s276 + $0x60] sm:%s268] %v325
                %v327 = vld [vmem:[%s275 + $0xc8] sm:%s268]
                %328 = vst [vmem:[%s276 + $0x64] sm:%s268] %v327
                %v329 = vld [vmem:[%s275 + $0xd0] sm:%s268]
                %330 = vst [vmem:[%s276 + $0x68] sm:%s268] %v329
                %v331 = vld [vmem:[%s275 + $0xd8] sm:%s268]
                %332 = vst [vmem:[%s276 + $0x6c] sm:%s268] %v331
                %v333 = vld [vmem:[%s275 + $0xe0] sm:%s268]
                %334 = vst [vmem:[%s276 + $0x70] sm:%s268] %v333
                %v335 = vld [vmem:[%s275 + $0xe8] sm:%s268]
                %336 = vst [vmem:[%s276 + $0x74] sm:%s268] %v335
                %v337 = vld [vmem:[%s275 + $0xf0] sm:%s268]
                %338 = vst [vmem:[%s276 + $0x78] sm:%s268] %v337
                %v339 = vld [vmem:[%s275 + $0xf8] sm:%s268]
                %340 = vst [vmem:[%s276 + $0x7c] sm:%s268] %v339
                %v341 = vld [vmem:[%s275 + $0x100] sm:%s268]
                %342 = vst [vmem:[%s276 + $0x80] sm:%s268] %v341
                %v343 = vld [vmem:[%s275 + $0x108] sm:%s268]
                %344 = vst [vmem:[%s276 + $0x84] sm:%s268] %v343
                %v345 = vld [vmem:[%s275 + $0x110] sm:%s268]
                %346 = vst [vmem:[%s276 + $0x88] sm:%s268] %v345
                %v347 = vld [vmem:[%s275 + $0x118] sm:%s268]
                %348 = vst [vmem:[%s276 + $0x8c] sm:%s268] %v347
                %v349 = vld [vmem:[%s275 + $0x120] sm:%s268]
                %350 = vst [vmem:[%s276 + $0x90] sm:%s268] %v349
                %v351 = vld [vmem:[%s275 + $0x128] sm:%s268]
                %352 = vst [vmem:[%s276 + $0x94] sm:%s268] %v351
                %v353 = vld [vmem:[%s275 + $0x130] sm:%s268]
                %354 = vst [vmem:[%s276 + $0x98] sm:%s268] %v353
                %v355 = vld [vmem:[%s275 + $0x138] sm:%s268]
                %356 = vst [vmem:[%s276 + $0x9c] sm:%s268] %v355
                %v357 = vld [vmem:[%s275 + $0x140] sm:%s268]
                %358 = vst [vmem:[%s276 + $0xa0] sm:%s268] %v357
                %v359 = vld [vmem:[%s275 + $0x148] sm:%s268]
                %360 = vst [vmem:[%s276 + $0xa4] sm:%s268] %v359
                %v361 = vld [vmem:[%s275 + $0x150] sm:%s268]
                %362 = vst [vmem:[%s276 + $0xa8] sm:%s268] %v361
                %v363 = vld [vmem:[%s275 + $0x158] sm:%s268]
                %364 = vst [vmem:[%s276 + $0xac] sm:%s268] %v363
                %v365 = vld [vmem:[%s275 + $0x160] sm:%s268]
                %366 = vst [vmem:[%s276 + $0xb0] sm:%s268] %v365
                %v367 = vld [vmem:[%s275 + $0x168] sm:%s268]
                %368 = vst [vmem:[%s276 + $0xb4] sm:%s268] %v367
                %v369 = vld [vmem:[%s275 + $0x170] sm:%s268]
                %370 = vst [vmem:[%s276 + $0xb8] sm:%s268] %v369
                %v371 = vld [vmem:[%s275 + $0x178] sm:%s268]
                %372 = vst [vmem:[%s276 + $0xbc] sm:%s268] %v371
                %v373 = vld [vmem:[%s275 + $0x180] sm:%s268]
                %374 = vst [vmem:[%s276 + $0xc0] sm:%s268] %v373
                %v375 = vld [vmem:[%s275 + $0x188] sm:%s268]
                %376 = vst [vmem:[%s276 + $0xc4] sm:%s268] %v375
                %v377 = vld [vmem:[%s275 + $0x190] sm:%s268]
                %378 = vst [vmem:[%s276 + $0xc8] sm:%s268] %v377
                %v379 = vld [vmem:[%s275 + $0x198] sm:%s268]
                %380 = vst [vmem:[%s276 + $0xcc] sm:%s268] %v379
                %v381 = vld [vmem:[%s275 + $0x1a0] sm:%s268]
                %382 = vst [vmem:[%s276 + $0xd0] sm:%s268] %v381
                %v383 = vld [vmem:[%s275 + $0x1a8] sm:%s268]
                %384 = vst [vmem:[%s276 + $0xd4] sm:%s268] %v383
                %v385 = vld [vmem:[%s275 + $0x1b0] sm:%s268]
                %386 = vst [vmem:[%s276 + $0xd8] sm:%s268] %v385
                %v387 = vld [vmem:[%s275 + $0x1b8] sm:%s268]
                %388 = vst [vmem:[%s276 + $0xdc] sm:%s268] %v387
                %v389 = vld [vmem:[%s275 + $0x1c0] sm:%s268]
                %390 = vst [vmem:[%s276 + $0xe0] sm:%s268] %v389
                %v391 = vld [vmem:[%s275 + $0x1c8] sm:%s268]
                %392 = vst [vmem:[%s276 + $0xe4] sm:%s268] %v391
                %v393 = vld [vmem:[%s275 + $0x1d0] sm:%s268]
                %394 = vst [vmem:[%s276 + $0xe8] sm:%s268] %v393
                %v395 = vld [vmem:[%s275 + $0x1d8] sm:%s268]
                %396 = vst [vmem:[%s276 + $0xec] sm:%s268] %v395
                %v397 = vld [vmem:[%s275 + $0x1e0] sm:%s268]
                %398 = vst [vmem:[%s276 + $0xf0] sm:%s268] %v397
                %v399 = vld [vmem:[%s275 + $0x1e8] sm:%s268]
                %400 = vst [vmem:[%s276 + $0xf4] sm:%s268] %v399
                %v401 = vld [vmem:[%s275 + $0x1f0] sm:%s268]
                %402 = vst [vmem:[%s276 + $0xf8] sm:%s268] %v401
                %v403 = vld [vmem:[%s275 + $0x1f8] sm:%s268]
                %404 = vst [vmem:[%s276 + $0xfc] sm:%s268] %v403
              $region60: #{_lambda_.13} parent=54 // loop_footer
                %s274 = sadd.s32 1, %s270
              $region61: #{_lambda_.13} parent=54 // loop_footer_branch
                %269 = sbr.rel target = $region57
              $region62: #{_lambda_.13} parent=54 // loop_exit
                _
            $region55: #{_lambda_.13} parent=46 // pred_fallthru
              _
          $region47: #{_lambda_.13} parent=42 // pred_fallthru
            _
          %553 = vnop
        $region43: #{_lambda_.13} parent=15 // pred_fallthru
          _
        // Predicated region
        $region81: #{_lambda_.13} parent=15 // pred_check
          %p554 = pneg %p104
        $region82: #{_lambda_.13} parent=15 // pred_check_branch
          %556 = sbr.rel (%p554) target = $region84
        $region83: #{_lambda_.13} parent=15 // pred_region
          %p557 = scmp.lt.s32.totalorder %s17, 1
          %s558 = scalar_select %p557, %s17, 1
          %s559 = scalar_lea.vmem %s2, %s558
        $region84: #{_lambda_.13} parent=15 // pred_fallthru
          _
      $region16: #{_lambda_.13} parent=5 // pred_fallthru
        _
      %p560 = scmp.le.s32.totalorder 1, %s9
      %p561 = scmp.lt.s32.totalorder %s9, 15
      %p562 = pnand %p560, %p561
      %p563 = pneg %p562
      // Predicated region
      $region85: #{_lambda_.13} parent=5 // pred_check
        _
      $region86: #{_lambda_.13} parent=5 // pred_check_branch
        %565 = sbr.rel (%p562) target = $region88
      $region87: #{_lambda_.13} parent=5 // pred_region
        %s566 = ssub.s32 %s9, 1
        %s567 = sand.u32 %s43, 1
        %s568 = sand.u32 %s43, 1
        %s569 = smul.addr %s568, 256
        %s570 = scalar_lea.vmem [#allocation3], %s569
        // Predicated region
        $region89: #{_lambda_.13} parent=87 // pred_check
          %p571 = pneg %p56
        $region90: #{_lambda_.13} parent=87 // pred_check_branch
          %573 = sbr.rel (%p571) target = $region92
        $region91: #{_lambda_.13} parent=87 // pred_region
          _
        $region92: #{_lambda_.13} parent=87 // pred_fallthru
          _
        %s574 = sand.u32 %s71, 1
        %s575 = sand.u32 %s71, 1
        %s576 = smul.addr %s575, 256
        %s577 = scalar_lea.vmem [#allocation4], %s576
        // Predicated region
        $region93: #{_lambda_.13} parent=87 // pred_check
          %p578 = pneg %p84
        $region94: #{_lambda_.13} parent=87 // pred_check_branch
          %580 = sbr.rel (%p578) target = $region96
        $region95: #{_lambda_.13} parent=87 // pred_region
          _
        $region96: #{_lambda_.13} parent=87 // pred_fallthru
          _
        %s581 = sand.u32 %s43, 1
        %s582 = sand.u32 %s43, 1
        %s583 = smul.addr %s582, 256
        %s584 = scalar_lea.vmem [#allocation3], %s583
        %p585 = pneg %p56
        %p586 = pneg %p53
        %s587 = sand.u32 %s71, 1
        %s588 = sand.u32 %s71, 1
        %s589 = smul.addr %s588, 256
        %s590 = scalar_lea.vmem [#allocation4], %s589
        %p591 = pneg %p84
        %p592 = pneg %p81
        %p593 = scmp.lt.s32.totalorder %s20, 1
        %s594 = scalar_select %p593, %s20, 1
        %s595 = scalar_lea.vmem %s2, %s594
        %p596 = pneg %p110
        %p597 = pneg %p107
        %p598 = pneg %p138
        %p599 = pneg %p135
        %s600 = sand.u32 %s125, 1
        %s601 = sand.u32 %s125, 1
        %s602 = smul.addr %s601, 64
        %s603 = scalar_lea.vmem [#allocation5], %s602
        %s604 = smul.u32 16, %s19
        %s605 = smul.u32 4, %s21
        %s606 = smul.u32 64, %s21
        %p607 = scmp.lt.s32.totalorder %s20, 1
        %s608 = scalar_select %p607, %s20, 1
        %s609 = scalar_lea.vmem %s2, %s608
        %s610 = smul.u32 16, %s19
        %p611 = scmp.eq.s32.totalorder %s21, 0
        // Predicated region
        $region97: #{_lambda_.13} parent=87 // pred_check
          %p612 = pneg %p611
        $region98: #{_lambda_.13} parent=87 // pred_check_branch
          %614 = sbr.rel (%p612) target = $region100
        $region99: #{_lambda_.13} parent=87 // pred_region
          %615 = vst [vmem:[#allocation2] sm:$0xff] 0.0
          %616 = vst [vmem:[#allocation2 + $0x8] sm:$0xff] 0.0
          %617 = vst [vmem:[#allocation2 + $0x10] sm:$0xff] 0.0
          %618 = vst [vmem:[#allocation2 + $0x18] sm:$0xff] 0.0
          %619 = vst [vmem:[#allocation2 + $0x20] sm:$0xff] 0.0
          %620 = vst [vmem:[#allocation2 + $0x28] sm:$0xff] 0.0
          %621 = vst [vmem:[#allocation2 + $0x30] sm:$0xff] 0.0
          %622 = vst [vmem:[#allocation2 + $0x38] sm:$0xff] 0.0
          %623 = vst [vmem:[#allocation2 + $0x40] sm:$0xff] 0.0
          %624 = vst [vmem:[#allocation2 + $0x48] sm:$0xff] 0.0
          %625 = vst [vmem:[#allocation2 + $0x50] sm:$0xff] 0.0
          %626 = vst [vmem:[#allocation2 + $0x58] sm:$0xff] 0.0
          %627 = vst [vmem:[#allocation2 + $0x60] sm:$0xff] 0.0
          %628 = vst [vmem:[#allocation2 + $0x68] sm:$0xff] 0.0
          %629 = vst [vmem:[#allocation2 + $0x70] sm:$0xff] 0.0
          %630 = vst [vmem:[#allocation2 + $0x78] sm:$0xff] 0.0
        $region100: #{_lambda_.13} parent=87 // pred_fallthru
          _
        %v631 = vld [vmem:[#allocation2] sm:$0xff]
        %v632 = vld [vmem:[#allocation2 + $0x8] sm:$0xff]
        %v633 = vld [vmem:[#allocation2 + $0x10] sm:$0xff]
        %v634 = vld [vmem:[#allocation2 + $0x18] sm:$0xff]
        %v635 = vld [vmem:[#allocation2 + $0x20] sm:$0xff]
        %v636 = vld [vmem:[#allocation2 + $0x28] sm:$0xff]
        %v637 = vld [vmem:[#allocation2 + $0x30] sm:$0xff]
        %v638 = vld [vmem:[#allocation2 + $0x38] sm:$0xff]
        %v639 = vld [vmem:[#allocation2 + $0x40] sm:$0xff]
        %v640 = vld [vmem:[#allocation2 + $0x48] sm:$0xff]
        %v641 = vld [vmem:[#allocation2 + $0x50] sm:$0xff]
        %v642 = vld [vmem:[#allocation2 + $0x58] sm:$0xff]
        %v643 = vld [vmem:[#allocation2 + $0x60] sm:$0xff]
        %v644 = vld [vmem:[#allocation2 + $0x68] sm:$0xff]
        %v645 = vld [vmem:[#allocation2 + $0x70] sm:$0xff]
        %v646 = vld [vmem:[#allocation2 + $0x78] sm:$0xff]
        %v647 = vld [vmem:[%s570] sm:$0xff]
        %v648 = vld [vmem:[%s570 + $0x8] sm:$0xff]
        %v649 = vld [vmem:[%s570 + $0x10] sm:$0xff]
        %v650 = vld [vmem:[%s570 + $0x18] sm:$0xff]
        %v651 = vld [vmem:[%s570 + $0x20] sm:$0xff]
        %v652 = vld [vmem:[%s570 + $0x28] sm:$0xff]
        %v653 = vld [vmem:[%s570 + $0x30] sm:$0xff]
        %v654 = vld [vmem:[%s570 + $0x38] sm:$0xff]
        %v655 = vld [vmem:[%s570 + $0x40] sm:$0xff]
        %v656 = vld [vmem:[%s570 + $0x48] sm:$0xff]
        %v657 = vld [vmem:[%s570 + $0x50] sm:$0xff]
        %v658 = vld [vmem:[%s570 + $0x58] sm:$0xff]
        %v659 = vld [vmem:[%s570 + $0x60] sm:$0xff]
        %v660 = vld [vmem:[%s570 + $0x68] sm:$0xff]
        %v661 = vld [vmem:[%s570 + $0x70] sm:$0xff]
        %v662 = vld [vmem:[%s570 + $0x78] sm:$0xff]
        %v663 = vld [vmem:[%s570 + $0x80] sm:$0xff]
        %v664 = vld [vmem:[%s570 + $0x88] sm:$0xff]
        %v665 = vld [vmem:[%s570 + $0x90] sm:$0xff]
        %v666 = vld [vmem:[%s570 + $0x98] sm:$0xff]
        %v667 = vld [vmem:[%s570 + $0xa0] sm:$0xff]
        %v668 = vld [vmem:[%s570 + $0xa8] sm:$0xff]
        %v669 = vld [vmem:[%s570 + $0xb0] sm:$0xff]
        %v670 = vld [vmem:[%s570 + $0xb8] sm:$0xff]
        %v671 = vld [vmem:[%s570 + $0xc0] sm:$0xff]
        %v672 = vld [vmem:[%s570 + $0xc8] sm:$0xff]
        %v673 = vld [vmem:[%s570 + $0xd0] sm:$0xff]
        %v674 = vld [vmem:[%s570 + $0xd8] sm:$0xff]
        %v675 = vld [vmem:[%s570 + $0xe0] sm:$0xff]
        %v676 = vld [vmem:[%s570 + $0xe8] sm:$0xff]
        %v677 = vld [vmem:[%s570 + $0xf0] sm:$0xff]
        %v678 = vld [vmem:[%s570 + $0xf8] sm:$0xff]
        %v679 = vld [vmem:[%s577] sm:$0xf]
        %v680 = vld [vmem:[%s577 + $0x4] sm:$0xf]
        %v681 = vld [vmem:[%s577 + $0x8] sm:$0xf]
        %v682 = vld [vmem:[%s577 + $0xc] sm:$0xf]
        %v683 = vld [vmem:[%s577 + $0x10] sm:$0xf]
        %v684 = vld [vmem:[%s577 + $0x14] sm:$0xf]
        %v685 = vld [vmem:[%s577 + $0x18] sm:$0xf]
        %v686 = vld [vmem:[%s577 + $0x1c] sm:$0xf]
        %v687 = vld [vmem:[%s577 + $0x20] sm:$0xf]
        %v688 = vld [vmem:[%s577 + $0x24] sm:$0xf]
        %v689 = vld [vmem:[%s577 + $0x28] sm:$0xf]
        %v690 = vld [vmem:[%s577 + $0x2c] sm:$0xf]
        %v691 = vld [vmem:[%s577 + $0x30] sm:$0xf]
        %v692 = vld [vmem:[%s577 + $0x34] sm:$0xf]
        %v693 = vld [vmem:[%s577 + $0x38] sm:$0xf]
        %v694 = vld [vmem:[%s577 + $0x3c] sm:$0xf]
        %v695 = vld [vmem:[%s577 + $0x40] sm:$0xf]
        %v696 = vld [vmem:[%s577 + $0x44] sm:$0xf]
        %v697 = vld [vmem:[%s577 + $0x48] sm:$0xf]
        %v698 = vld [vmem:[%s577 + $0x4c] sm:$0xf]
        %v699 = vld [vmem:[%s577 + $0x50] sm:$0xf]
        %v700 = vld [vmem:[%s577 + $0x54] sm:$0xf]
        %v701 = vld [vmem:[%s577 + $0x58] sm:$0xf]
        %v702 = vld [vmem:[%s577 + $0x5c] sm:$0xf]
        %v703 = vld [vmem:[%s577 + $0x60] sm:$0xf]
        %v704 = vld [vmem:[%s577 + $0x64] sm:$0xf]
        %v705 = vld [vmem:[%s577 + $0x68] sm:$0xf]
        %v706 = vld [vmem:[%s577 + $0x6c] sm:$0xf]
        %v707 = vld [vmem:[%s577 + $0x70] sm:$0xf]
        %v708 = vld [vmem:[%s577 + $0x74] sm:$0xf]
        %v709 = vld [vmem:[%s577 + $0x78] sm:$0xf]
        %v710 = vld [vmem:[%s577 + $0x7c] sm:$0xf]
        %v711 = vld [vmem:[%s577 + $0x80] sm:$0xf]
        %v712 = vld [vmem:[%s577 + $0x84] sm:$0xf]
        %v713 = vld [vmem:[%s577 + $0x88] sm:$0xf]
        %v714 = vld [vmem:[%s577 + $0x8c] sm:$0xf]
        %v715 = vld [vmem:[%s577 + $0x90] sm:$0xf]
        %v716 = vld [vmem:[%s577 + $0x94] sm:$0xf]
        %v717 = vld [vmem:[%s577 + $0x98] sm:$0xf]
        %v718 = vld [vmem:[%s577 + $0x9c] sm:$0xf]
        %v719 = vld [vmem:[%s577 + $0xa0] sm:$0xf]
        %v720 = vld [vmem:[%s577 + $0xa4] sm:$0xf]
        %v721 = vld [vmem:[%s577 + $0xa8] sm:$0xf]
        %v722 = vld [vmem:[%s577 + $0xac] sm:$0xf]
        %v723 = vld [vmem:[%s577 + $0xb0] sm:$0xf]
        %v724 = vld [vmem:[%s577 + $0xb4] sm:$0xf]
        %v725 = vld [vmem:[%s577 + $0xb8] sm:$0xf]
        %v726 = vld [vmem:[%s577 + $0xbc] sm:$0xf]
        %v727 = vld [vmem:[%s577 + $0xc0] sm:$0xf]
        %v728 = vld [vmem:[%s577 + $0xc4] sm:$0xf]
        %v729 = vld [vmem:[%s577 + $0xc8] sm:$0xf]
        %v730 = vld [vmem:[%s577 + $0xcc] sm:$0xf]
        %v731 = vld [vmem:[%s577 + $0xd0] sm:$0xf]
        %v732 = vld [vmem:[%s577 + $0xd4] sm:$0xf]
        %v733 = vld [vmem:[%s577 + $0xd8] sm:$0xf]
        %v734 = vld [vmem:[%s577 + $0xdc] sm:$0xf]
        %v735 = vld [vmem:[%s577 + $0xe0] sm:$0xf]
        %v736 = vld [vmem:[%s577 + $0xe4] sm:$0xf]
        %v737 = vld [vmem:[%s577 + $0xe8] sm:$0xf]
        %v738 = vld [vmem:[%s577 + $0xec] sm:$0xf]
        %v739 = vld [vmem:[%s577 + $0xf0] sm:$0xf]
        %v740 = vld [vmem:[%s577 + $0xf4] sm:$0xf]
        %v741 = vld [vmem:[%s577 + $0xf8] sm:$0xf]
        %v742 = vld [vmem:[%s577 + $0xfc] sm:$0xf]
        %v775 = vunpack.c.l.b16 %v647
        %v776 = vunpack.c.h.b16 %v647
        %v777 = vunpack.c.l.b16 %v648
        %v778 = vunpack.c.h.b16 %v648
        %v779 = vunpack.c.l.b16 %v649
        %v780 = vunpack.c.h.b16 %v649
        %v781 = vunpack.c.l.b16 %v650
        %v782 = vunpack.c.h.b16 %v650
        %v783 = vunpack.c.l.b16 %v651
        %v784 = vunpack.c.h.b16 %v651
        %v785 = vunpack.c.l.b16 %v652
        %v786 = vunpack.c.h.b16 %v652
        %v787 = vunpack.c.l.b16 %v653
        %v788 = vunpack.c.h.b16 %v653
        %v789 = vunpack.c.l.b16 %v654
        %v790 = vunpack.c.h.b16 %v654
        %v791 = vunpack.c.l.b16 %v655
        %v792 = vunpack.c.h.b16 %v655
        %v793 = vunpack.c.l.b16 %v656
        %v794 = vunpack.c.h.b16 %v656
        %v795 = vunpack.c.l.b16 %v657
        %v796 = vunpack.c.h.b16 %v657
        %v797 = vunpack.c.l.b16 %v658
        %v798 = vunpack.c.h.b16 %v658
        %v799 = vunpack.c.l.b16 %v659
        %v800 = vunpack.c.h.b16 %v659
        %v801 = vunpack.c.l.b16 %v660
        %v802 = vunpack.c.h.b16 %v660
        %v803 = vunpack.c.l.b16 %v661
        %v804 = vunpack.c.h.b16 %v661
        %v805 = vunpack.c.l.b16 %v662
        %v806 = vunpack.c.h.b16 %v662
        %v807 = vunpack.c.l.b16 %v663
        %v808 = vunpack.c.h.b16 %v663
        %v809 = vunpack.c.l.b16 %v664
        %v810 = vunpack.c.h.b16 %v664
        %v811 = vunpack.c.l.b16 %v665
        %v812 = vunpack.c.h.b16 %v665
        %v813 = vunpack.c.l.b16 %v666
        %v814 = vunpack.c.h.b16 %v666
        %v815 = vunpack.c.l.b16 %v667
        %v816 = vunpack.c.h.b16 %v667
        %v817 = vunpack.c.l.b16 %v668
        %v818 = vunpack.c.h.b16 %v668
        %v819 = vunpack.c.l.b16 %v669
        %v820 = vunpack.c.h.b16 %v669
        %v821 = vunpack.c.l.b16 %v670
        %v822 = vunpack.c.h.b16 %v670
        %v823 = vunpack.c.l.b16 %v671
        %v824 = vunpack.c.h.b16 %v671
        %v825 = vunpack.c.l.b16 %v672
        %v826 = vunpack.c.h.b16 %v672
        %v827 = vunpack.c.l.b16 %v673
        %v828 = vunpack.c.h.b16 %v673
        %v829 = vunpack.c.l.b16 %v674
        %v830 = vunpack.c.h.b16 %v674
        %v831 = vunpack.c.l.b16 %v675
        %v832 = vunpack.c.h.b16 %v675
        %v833 = vunpack.c.l.b16 %v676
        %v834 = vunpack.c.h.b16 %v676
        %v835 = vunpack.c.l.b16 %v677
        %v836 = vunpack.c.h.b16 %v677
        %v837 = vunpack.c.l.b16 %v678
        %v838 = vunpack.c.h.b16 %v678
        %v839 = vpack.c.b16 %v779, %v775
        %v840 = vpack.c.b16 %v780, %v776
        %v841 = vpack.c.b16 %v781, %v777
        %v842 = vpack.c.b16 %v782, %v778
        %v843 = vpack.c.b16 %v787, %v783
        %v844 = vpack.c.b16 %v788, %v784
        %v845 = vpack.c.b16 %v789, %v785
        %v846 = vpack.c.b16 %v790, %v786
        %v847 = vpack.c.b16 %v795, %v791
        %v848 = vpack.c.b16 %v796, %v792
        %v849 = vpack.c.b16 %v797, %v793
        %v850 = vpack.c.b16 %v798, %v794
        %v851 = vpack.c.b16 %v803, %v799
        %v852 = vpack.c.b16 %v804, %v800
        %v853 = vpack.c.b16 %v805, %v801
        %v854 = vpack.c.b16 %v806, %v802
        %v855 = vpack.c.b16 %v811, %v807
        %v856 = vpack.c.b16 %v812, %v808
        %v857 = vpack.c.b16 %v813, %v809
        %v858 = vpack.c.b16 %v814, %v810
        %v859 = vpack.c.b16 %v819, %v815
        %v860 = vpack.c.b16 %v820, %v816
        %v861 = vpack.c.b16 %v821, %v817
        %v862 = vpack.c.b16 %v822, %v818
        %v863 = vpack.c.b16 %v827, %v823
        %v864 = vpack.c.b16 %v828, %v824
        %v865 = vpack.c.b16 %v829, %v825
        %v866 = vpack.c.b16 %v830, %v826
        %v867 = vpack.c.b16 %v835, %v831
        %v868 = vpack.c.b16 %v836, %v832
        %v869 = vpack.c.b16 %v837, %v833
        %v870 = vpack.c.b16 %v838, %v834
        %v967 = vunpack.c.l.b16 %v679
        %v968 = vunpack.c.l.b16 %v680
        %v969 = vunpack.c.l.b16 %v681
        %v970 = vunpack.c.l.b16 %v682
        %v971 = vunpack.c.l.b16 %v683
        %v972 = vunpack.c.l.b16 %v684
        %v973 = vunpack.c.l.b16 %v685
        %v974 = vunpack.c.l.b16 %v686
        %v975 = vunpack.c.l.b16 %v687
        %v976 = vunpack.c.l.b16 %v688
        %v977 = vunpack.c.l.b16 %v689
        %v978 = vunpack.c.l.b16 %v690
        %v979 = vunpack.c.l.b16 %v691
        %v980 = vunpack.c.l.b16 %v692
        %v981 = vunpack.c.l.b16 %v693
        %v982 = vunpack.c.l.b16 %v694
        %v983 = vunpack.c.l.b16 %v695
        %v984 = vunpack.c.l.b16 %v696
        %v985 = vunpack.c.l.b16 %v697
        %v986 = vunpack.c.l.b16 %v698
        %v987 = vunpack.c.l.b16 %v699
        %v988 = vunpack.c.l.b16 %v700
        %v989 = vunpack.c.l.b16 %v701
        %v990 = vunpack.c.l.b16 %v702
        %v991 = vunpack.c.l.b16 %v703
        %v992 = vunpack.c.l.b16 %v704
        %v993 = vunpack.c.l.b16 %v705
        %v994 = vunpack.c.l.b16 %v706
        %v995 = vunpack.c.l.b16 %v707
        %v996 = vunpack.c.l.b16 %v708
        %v997 = vunpack.c.l.b16 %v709
        %v998 = vunpack.c.l.b16 %v710
        %v999 = vunpack.c.l.b16 %v711
        %v1000 = vunpack.c.l.b16 %v712
        %v1001 = vunpack.c.l.b16 %v713
        %v1002 = vunpack.c.l.b16 %v714
        %v1003 = vunpack.c.l.b16 %v715
        %v1004 = vunpack.c.l.b16 %v716
        %v1005 = vunpack.c.l.b16 %v717
        %v1006 = vunpack.c.l.b16 %v718
        %v1007 = vunpack.c.l.b16 %v719
        %v1008 = vunpack.c.l.b16 %v720
        %v1009 = vunpack.c.l.b16 %v721
        %v1010 = vunpack.c.l.b16 %v722
        %v1011 = vunpack.c.l.b16 %v723
        %v1012 = vunpack.c.l.b16 %v724
        %v1013 = vunpack.c.l.b16 %v725
        %v1014 = vunpack.c.l.b16 %v726
        %v1015 = vunpack.c.l.b16 %v727
        %v1016 = vunpack.c.l.b16 %v728
        %v1017 = vunpack.c.l.b16 %v729
        %v1018 = vunpack.c.l.b16 %v730
        %v1019 = vunpack.c.l.b16 %v731
        %v1020 = vunpack.c.l.b16 %v732
        %v1021 = vunpack.c.l.b16 %v733
        %v1022 = vunpack.c.l.b16 %v734
        %v1023 = vunpack.c.l.b16 %v735
        %v1024 = vunpack.c.l.b16 %v736
        %v1025 = vunpack.c.l.b16 %v737
        %v1026 = vunpack.c.l.b16 %v738
        %v1027 = vunpack.c.l.b16 %v739
        %v1028 = vunpack.c.l.b16 %v740
        %v1029 = vunpack.c.l.b16 %v741
        %v1030 = vunpack.c.l.b16 %v742
        %v1031 = vpack.c.b16 %v968, %v967
        %v1032 = vpack.c.b16 %v970, %v969
        %v1033 = vpack.c.b16 %v972, %v971
        %v1034 = vpack.c.b16 %v974, %v973
        %v1035 = vpack.c.b16 %v976, %v975
        %v1036 = vpack.c.b16 %v978, %v977
        %v1037 = vpack.c.b16 %v980, %v979
        %v1038 = vpack.c.b16 %v982, %v981
        %v1039 = vpack.c.b16 %v984, %v983
        %v1040 = vpack.c.b16 %v986, %v985
        %v1041 = vpack.c.b16 %v988, %v987
        %v1042 = vpack.c.b16 %v990, %v989
        %v1043 = vpack.c.b16 %v992, %v991
        %v1044 = vpack.c.b16 %v994, %v993
        %v1045 = vpack.c.b16 %v996, %v995
        %v1046 = vpack.c.b16 %v998, %v997
        %v1047 = vpack.c.b16 %v1000, %v999
        %v1048 = vpack.c.b16 %v1002, %v1001
        %v1049 = vpack.c.b16 %v1004, %v1003
        %v1050 = vpack.c.b16 %v1006, %v1005
        %v1051 = vpack.c.b16 %v1008, %v1007
        %v1052 = vpack.c.b16 %v1010, %v1009
        %v1053 = vpack.c.b16 %v1012, %v1011
        %v1054 = vpack.c.b16 %v1014, %v1013
        %v1055 = vpack.c.b16 %v1016, %v1015
        %v1056 = vpack.c.b16 %v1018, %v1017
        %v1057 = vpack.c.b16 %v1020, %v1019
        %v1058 = vpack.c.b16 %v1022, %v1021
        %v1059 = vpack.c.b16 %v1024, %v1023
        %v1060 = vpack.c.b16 %v1026, %v1025
        %v1061 = vpack.c.b16 %v1028, %v1027
        %v1062 = vpack.c.b16 %v1030, %v1029
        %1095 = vmatpush.bf16.msra.mxu0 %v1038
        %1096 = vmatpush.bf16.msra.mxu0 %v1037
        %1097 = vmatpush.bf16.msra.mxu0 %v1036
        %1098 = vmatpush.bf16.msra.mxu0 %v1035
        %1099 = vmatpush.bf16.msra.mxu0 %v1034
        %1100 = vmatpush.bf16.msra.mxu0 %v1033
        %1101 = vmatpush.bf16.msra.mxu0 %v1032
        %1102 = vmatpush.bf16.msra.mxu0 %v1031
        %1103 = vmatmul.bf16.gmra.mxu0 %v839
        %v1104 = vpop.f32.mrf.mxu0
        %v1105 = vadd.f32 0.0, %v1104
        %v1106 = vpop.f32.mrf.mxu0
        %v1107 = vadd.f32 0.0, %v1106
        %1108 = vmatmul.bf16.gmra.mxu0 %v843
        %v1109 = vpop.f32.mrf.mxu0
        %v1110 = vadd.f32 0.0, %v1109
        %v1111 = vpop.f32.mrf.mxu0
        %v1112 = vadd.f32 0.0, %v1111
        %1113 = vmatmul.bf16.gmra.mxu0 %v847
        %v1114 = vpop.f32.mrf.mxu0
        %v1115 = vadd.f32 0.0, %v1114
        %v1116 = vpop.f32.mrf.mxu0
        %v1117 = vadd.f32 0.0, %v1116
        %1118 = vmatmul.bf16.gmra.mxu0 %v851
        %v1119 = vpop.f32.mrf.mxu0
        %v1120 = vadd.f32 0.0, %v1119
        %v1121 = vpop.f32.mrf.mxu0
        %v1122 = vadd.f32 0.0, %v1121
        %1123 = vmatmul.bf16.gmra.mxu0 %v855
        %v1124 = vpop.f32.mrf.mxu0
        %v1125 = vadd.f32 0.0, %v1124
        %v1126 = vpop.f32.mrf.mxu0
        %v1127 = vadd.f32 0.0, %v1126
        %1128 = vmatmul.bf16.gmra.mxu0 %v859
        %v1129 = vpop.f32.mrf.mxu0
        %v1130 = vadd.f32 0.0, %v1129
        %v1131 = vpop.f32.mrf.mxu0
        %v1132 = vadd.f32 0.0, %v1131
        %1133 = vmatmul.bf16.gmra.mxu0 %v863
        %v1134 = vpop.f32.mrf.mxu0
        %v1135 = vadd.f32 0.0, %v1134
        %v1136 = vpop.f32.mrf.mxu0
        %v1137 = vadd.f32 0.0, %v1136
        %1138 = vmatmul.bf16.gmra.mxu0 %v867
        %v1139 = vpop.f32.mrf.mxu0
        %v1140 = vadd.f32 0.0, %v1139
        %v1141 = vpop.f32.mrf.mxu0
        %v1142 = vadd.f32 0.0, %v1141
        %1143 = vdwg.mxu0
        %1144 = vmatpush.bf16.msra.mxu0 %v1046
        %1145 = vmatpush.bf16.msra.mxu0 %v1045
        %1146 = vmatpush.bf16.msra.mxu0 %v1044
        %1147 = vmatpush.bf16.msra.mxu0 %v1043
        %1148 = vmatpush.bf16.msra.mxu0 %v1042
        %1149 = vmatpush.bf16.msra.mxu0 %v1041
        %1150 = vmatpush.bf16.msra.mxu0 %v1040
        %1151 = vmatpush.bf16.msra.mxu0 %v1039
        %1152 = vmatmul.bf16.gmra.mxu0 %v840
        %v1153 = vpop.f32.mrf.mxu0
        %v1154 = vadd.f32 %v1105, %v1153
        %v1155 = vpop.f32.mrf.mxu0
        %v1156 = vadd.f32 %v1107, %v1155
        %1157 = vmatmul.bf16.gmra.mxu0 %v844
        %v1158 = vpop.f32.mrf.mxu0
        %v1159 = vadd.f32 %v1110, %v1158
        %v1160 = vpop.f32.mrf.mxu0
        %v1161 = vadd.f32 %v1112, %v1160
        %1162 = vmatmul.bf16.gmra.mxu0 %v848
        %v1163 = vpop.f32.mrf.mxu0
        %v1164 = vadd.f32 %v1115, %v1163
        %v1165 = vpop.f32.mrf.mxu0
        %v1166 = vadd.f32 %v1117, %v1165
        %1167 = vmatmul.bf16.gmra.mxu0 %v852
        %v1168 = vpop.f32.mrf.mxu0
        %v1169 = vadd.f32 %v1120, %v1168
        %v1170 = vpop.f32.mrf.mxu0
        %v1171 = vadd.f32 %v1122, %v1170
        %1172 = vmatmul.bf16.gmra.mxu0 %v856
        %v1173 = vpop.f32.mrf.mxu0
        %v1174 = vadd.f32 %v1125, %v1173
        %v1175 = vpop.f32.mrf.mxu0
        %v1176 = vadd.f32 %v1127, %v1175
        %1177 = vmatmul.bf16.gmra.mxu0 %v860
        %v1178 = vpop.f32.mrf.mxu0
        %v1179 = vadd.f32 %v1130, %v1178
        %v1180 = vpop.f32.mrf.mxu0
        %v1181 = vadd.f32 %v1132, %v1180
        %1182 = vmatmul.bf16.gmra.mxu0 %v864
        %v1183 = vpop.f32.mrf.mxu0
        %v1184 = vadd.f32 %v1135, %v1183
        %v1185 = vpop.f32.mrf.mxu0
        %v1186 = vadd.f32 %v1137, %v1185
        %1187 = vmatmul.bf16.gmra.mxu0 %v868
        %v1188 = vpop.f32.mrf.mxu0
        %v1189 = vadd.f32 %v1140, %v1188
        %v1190 = vpop.f32.mrf.mxu0
        %v1191 = vadd.f32 %v1142, %v1190
        %1192 = vdwg.mxu0
        %1193 = vmatpush.bf16.msra.mxu0 %v1054
        %1194 = vmatpush.bf16.msra.mxu0 %v1053
        %1195 = vmatpush.bf16.msra.mxu0 %v1052
        %1196 = vmatpush.bf16.msra.mxu0 %v1051
        %1197 = vmatpush.bf16.msra.mxu0 %v1050
        %1198 = vmatpush.bf16.msra.mxu0 %v1049
        %1199 = vmatpush.bf16.msra.mxu0 %v1048
        %1200 = vmatpush.bf16.msra.mxu0 %v1047
        %1201 = vmatmul.bf16.gmra.mxu0 %v841
        %v1202 = vpop.f32.mrf.mxu0
        %v1203 = vadd.f32 %v1154, %v1202
        %v1204 = vpop.f32.mrf.mxu0
        %v1205 = vadd.f32 %v1156, %v1204
        %1206 = vmatmul.bf16.gmra.mxu0 %v845
        %v1207 = vpop.f32.mrf.mxu0
        %v1208 = vadd.f32 %v1159, %v1207
        %v1209 = vpop.f32.mrf.mxu0
        %v1210 = vadd.f32 %v1161, %v1209
        %1211 = vmatmul.bf16.gmra.mxu0 %v849
        %v1212 = vpop.f32.mrf.mxu0
        %v1213 = vadd.f32 %v1164, %v1212
        %v1214 = vpop.f32.mrf.mxu0
        %v1215 = vadd.f32 %v1166, %v1214
        %1216 = vmatmul.bf16.gmra.mxu0 %v853
        %v1217 = vpop.f32.mrf.mxu0
        %v1218 = vadd.f32 %v1169, %v1217
        %v1219 = vpop.f32.mrf.mxu0
        %v1220 = vadd.f32 %v1171, %v1219
        %1221 = vmatmul.bf16.gmra.mxu0 %v857
        %v1222 = vpop.f32.mrf.mxu0
        %v1223 = vadd.f32 %v1174, %v1222
        %v1224 = vpop.f32.mrf.mxu0
        %v1225 = vadd.f32 %v1176, %v1224
        %1226 = vmatmul.bf16.gmra.mxu0 %v861
        %v1227 = vpop.f32.mrf.mxu0
        %v1228 = vadd.f32 %v1179, %v1227
        %v1229 = vpop.f32.mrf.mxu0
        %v1230 = vadd.f32 %v1181, %v1229
        %1231 = vmatmul.bf16.gmra.mxu0 %v865
        %v1232 = vpop.f32.mrf.mxu0
        %v1233 = vadd.f32 %v1184, %v1232
        %v1234 = vpop.f32.mrf.mxu0
        %v1235 = vadd.f32 %v1186, %v1234
        %1236 = vmatmul.bf16.gmra.mxu0 %v869
        %v1237 = vpop.f32.mrf.mxu0
        %v1238 = vadd.f32 %v1189, %v1237
        %v1239 = vpop.f32.mrf.mxu0
        %v1240 = vadd.f32 %v1191, %v1239
        %1241 = vdwg.mxu0
        %1242 = vmatpush.bf16.msra.mxu0 %v1062
        %1243 = vmatpush.bf16.msra.mxu0 %v1061
        %1244 = vmatpush.bf16.msra.mxu0 %v1060
        %1245 = vmatpush.bf16.msra.mxu0 %v1059
        %1246 = vmatpush.bf16.msra.mxu0 %v1058
        %1247 = vmatpush.bf16.msra.mxu0 %v1057
        %1248 = vmatpush.bf16.msra.mxu0 %v1056
        %1249 = vmatpush.bf16.msra.mxu0 %v1055
        %1250 = vmatmul.bf16.gmra.mxu0 %v842
        %v1251 = vpop.f32.mrf.mxu0
        %v1252 = vadd.f32 %v1203, %v1251
        %v1253 = vpop.f32.mrf.mxu0
        %v1254 = vadd.f32 %v1205, %v1253
        %1255 = vmatmul.bf16.gmra.mxu0 %v846
        %v1256 = vpop.f32.mrf.mxu0
        %v1257 = vadd.f32 %v1208, %v1256
        %v1258 = vpop.f32.mrf.mxu0
        %v1259 = vadd.f32 %v1210, %v1258
        %1260 = vmatmul.bf16.gmra.mxu0 %v850
        %v1261 = vpop.f32.mrf.mxu0
        %v1262 = vadd.f32 %v1213, %v1261
        %v1263 = vpop.f32.mrf.mxu0
        %v1264 = vadd.f32 %v1215, %v1263
        %1265 = vmatmul.bf16.gmra.mxu0 %v854
        %v1266 = vpop.f32.mrf.mxu0
        %v1267 = vadd.f32 %v1218, %v1266
        %v1268 = vpop.f32.mrf.mxu0
        %v1269 = vadd.f32 %v1220, %v1268
        %1270 = vmatmul.bf16.gmra.mxu0 %v858
        %v1271 = vpop.f32.mrf.mxu0
        %v1272 = vadd.f32 %v1223, %v1271
        %v1273 = vpop.f32.mrf.mxu0
        %v1274 = vadd.f32 %v1225, %v1273
        %1275 = vmatmul.bf16.gmra.mxu0 %v862
        %v1276 = vpop.f32.mrf.mxu0
        %v1277 = vadd.f32 %v1228, %v1276
        %v1278 = vpop.f32.mrf.mxu0
        %v1279 = vadd.f32 %v1230, %v1278
        %1280 = vmatmul.bf16.gmra.mxu0 %v866
        %v1281 = vpop.f32.mrf.mxu0
        %v1282 = vadd.f32 %v1233, %v1281
        %v1283 = vpop.f32.mrf.mxu0
        %v1284 = vadd.f32 %v1235, %v1283
        %1285 = vmatmul.bf16.gmra.mxu0 %v870
        %v1286 = vpop.f32.mrf.mxu0
        %v1287 = vadd.f32 %v1238, %v1286
        %v1288 = vpop.f32.mrf.mxu0
        %v1289 = vadd.f32 %v1240, %v1288
        %1290 = vdwg.mxu0
        %v1291 = vadd.f32 %v631, %v1252
        %v1292 = vadd.f32 %v632, %v1254
        %v1293 = vadd.f32 %v633, %v1257
        %v1294 = vadd.f32 %v634, %v1259
        %v1295 = vadd.f32 %v635, %v1262
        %v1296 = vadd.f32 %v636, %v1264
        %v1297 = vadd.f32 %v637, %v1267
        %v1298 = vadd.f32 %v638, %v1269
        %v1299 = vadd.f32 %v639, %v1272
        %v1300 = vadd.f32 %v640, %v1274
        %v1301 = vadd.f32 %v641, %v1277
        %v1302 = vadd.f32 %v642, %v1279
        %v1303 = vadd.f32 %v643, %v1282
        %v1304 = vadd.f32 %v644, %v1284
        %v1305 = vadd.f32 %v645, %v1287
        %v1306 = vadd.f32 %v646, %v1289
        %1307 = vst [vmem:[#allocation2] sm:$0xff] %v1291
        %1308 = vst [vmem:[#allocation2 + $0x8] sm:$0xff] %v1292
        %1309 = vst [vmem:[#allocation2 + $0x10] sm:$0xff] %v1293
        %1310 = vst [vmem:[#allocation2 + $0x18] sm:$0xff] %v1294
        %1311 = vst [vmem:[#allocation2 + $0x20] sm:$0xff] %v1295
        %1312 = vst [vmem:[#allocation2 + $0x28] sm:$0xff] %v1296
        %1313 = vst [vmem:[#allocation2 + $0x30] sm:$0xff] %v1297
        %1314 = vst [vmem:[#allocation2 + $0x38] sm:$0xff] %v1298
        %1315 = vst [vmem:[#allocation2 + $0x40] sm:$0xff] %v1299
        %1316 = vst [vmem:[#allocation2 + $0x48] sm:$0xff] %v1300
        %1317 = vst [vmem:[#allocation2 + $0x50] sm:$0xff] %v1301
        %1318 = vst [vmem:[#allocation2 + $0x58] sm:$0xff] %v1302
        %1319 = vst [vmem:[#allocation2 + $0x60] sm:$0xff] %v1303
        %1320 = vst [vmem:[#allocation2 + $0x68] sm:$0xff] %v1304
        %1321 = vst [vmem:[#allocation2 + $0x70] sm:$0xff] %v1305
        %1322 = vst [vmem:[#allocation2 + $0x78] sm:$0xff] %v1306
        %p1323 = scmp.eq.s32.totalorder %s21, 6
        // Predicated region
        $region101: #{_lambda_.13} parent=87 // pred_check
          %p1324 = pneg %p1323
        $region102: #{_lambda_.13} parent=87 // pred_check_branch
          %1326 = sbr.rel (%p1324) target = $region104
        $region103: #{_lambda_.13} parent=87 // pred_region
          %v1327 = vld [vmem:[#allocation2] sm:$0xff]
          %v1328 = vld [vmem:[#allocation2 + $0x8] sm:$0xff]
          %v1329 = vld [vmem:[#allocation2 + $0x10] sm:$0xff]
          %v1330 = vld [vmem:[#allocation2 + $0x18] sm:$0xff]
          %v1331 = vld [vmem:[#allocation2 + $0x20] sm:$0xff]
          %v1332 = vld [vmem:[#allocation2 + $0x28] sm:$0xff]
          %v1333 = vld [vmem:[#allocation2 + $0x30] sm:$0xff]
          %v1334 = vld [vmem:[#allocation2 + $0x38] sm:$0xff]
          %v1335 = vld [vmem:[#allocation2 + $0x40] sm:$0xff]
          %v1336 = vld [vmem:[#allocation2 + $0x48] sm:$0xff]
          %v1337 = vld [vmem:[#allocation2 + $0x50] sm:$0xff]
          %v1338 = vld [vmem:[#allocation2 + $0x58] sm:$0xff]
          %v1339 = vld [vmem:[#allocation2 + $0x60] sm:$0xff]
          %v1340 = vld [vmem:[#allocation2 + $0x68] sm:$0xff]
          %v1341 = vld [vmem:[#allocation2 + $0x70] sm:$0xff]
          %v1342 = vld [vmem:[#allocation2 + $0x78] sm:$0xff]
          %v1343 = vld [vmem:[%s609] sm:$0x1]
          %v1345 = vperm.slane %v1343, 0
          %v1347 = vadd.f32 %v1327, %v1345
          %v1348 = vadd.f32 %v1328, %v1345
          %v1349 = vadd.f32 %v1329, %v1345
          %v1350 = vadd.f32 %v1330, %v1345
          %v1351 = vadd.f32 %v1331, %v1345
          %v1352 = vadd.f32 %v1332, %v1345
          %v1353 = vadd.f32 %v1333, %v1345
          %v1354 = vadd.f32 %v1334, %v1345
          %v1355 = vadd.f32 %v1335, %v1345
          %v1356 = vadd.f32 %v1336, %v1345
          %v1357 = vadd.f32 %v1337, %v1345
          %v1358 = vadd.f32 %v1338, %v1345
          %v1359 = vadd.f32 %v1339, %v1345
          %v1360 = vadd.f32 %v1340, %v1345
          %v1361 = vadd.f32 %v1341, %v1345
          %v1362 = vadd.f32 %v1342, %v1345
          %v1363 = vmax.f32 %v1347, 0.0
          %v1364 = vmax.f32 %v1348, 0.0
          %v1365 = vmax.f32 %v1349, 0.0
          %v1366 = vmax.f32 %v1350, 0.0
          %v1367 = vmax.f32 %v1351, 0.0
          %v1368 = vmax.f32 %v1352, 0.0
          %v1369 = vmax.f32 %v1353, 0.0
          %v1370 = vmax.f32 %v1354, 0.0
          %v1371 = vmax.f32 %v1355, 0.0
          %v1372 = vmax.f32 %v1356, 0.0
          %v1373 = vmax.f32 %v1357, 0.0
          %v1374 = vmax.f32 %v1358, 0.0
          %v1375 = vmax.f32 %v1359, 0.0
          %v1376 = vmax.f32 %v1360, 0.0
          %v1377 = vmax.f32 %v1361, 0.0
          %v1378 = vmax.f32 %v1362, 0.0
          %v1379 = vpack.c.bf16 %v1363, %v1363
          %v1380 = vpack.c.bf16 %v1364, %v1364
          %v1381 = vpack.c.bf16 %v1365, %v1365
          %v1382 = vpack.c.bf16 %v1366, %v1366
          %v1383 = vpack.c.bf16 %v1367, %v1367
          %v1384 = vpack.c.bf16 %v1368, %v1368
          %v1385 = vpack.c.bf16 %v1369, %v1369
          %v1386 = vpack.c.bf16 %v1370, %v1370
          %v1387 = vpack.c.bf16 %v1371, %v1371
          %v1388 = vpack.c.bf16 %v1372, %v1372
          %v1389 = vpack.c.bf16 %v1373, %v1373
          %v1390 = vpack.c.bf16 %v1374, %v1374
          %v1391 = vpack.c.bf16 %v1375, %v1375
          %v1392 = vpack.c.bf16 %v1376, %v1376
          %v1393 = vpack.c.bf16 %v1377, %v1377
          %v1394 = vpack.c.bf16 %v1378, %v1378
          %1395 = vst [vmem:[%s603] sm:$0xf] %v1379
          %1396 = vst [vmem:[%s603 + $0x4] sm:$0xf] %v1380
          %1397 = vst [vmem:[%s603 + $0x8] sm:$0xf] %v1381
          %1398 = vst [vmem:[%s603 + $0xc] sm:$0xf] %v1382
          %1399 = vst [vmem:[%s603 + $0x10] sm:$0xf] %v1383
          %1400 = vst [vmem:[%s603 + $0x14] sm:$0xf] %v1384
          %1401 = vst [vmem:[%s603 + $0x18] sm:$0xf] %v1385
          %1402 = vst [vmem:[%s603 + $0x1c] sm:$0xf] %v1386
          %1403 = vst [vmem:[%s603 + $0x20] sm:$0xf] %v1387
          %1404 = vst [vmem:[%s603 + $0x24] sm:$0xf] %v1388
          %1405 = vst [vmem:[%s603 + $0x28] sm:$0xf] %v1389
          %1406 = vst [vmem:[%s603 + $0x2c] sm:$0xf] %v1390
          %1407 = vst [vmem:[%s603 + $0x30] sm:$0xf] %v1391
          %1408 = vst [vmem:[%s603 + $0x34] sm:$0xf] %v1392
          %1409 = vst [vmem:[%s603 + $0x38] sm:$0xf] %v1393
          %1410 = vst [vmem:[%s603 + $0x3c] sm:$0xf] %v1394
        $region104: #{_lambda_.13} parent=87 // pred_fallthru
          _
        %s1411 = sand.u32 %s125, 1
        %s1412 = sand.u32 %s125, 1
        %s1413 = smul.addr %s1412, 64
        %s1414 = scalar_lea.vmem [#allocation5], %s1413
        // Predicated region
        $region105: #{_lambda_.13} parent=87 // pred_check
          %p1415 = pneg %p135
        $region106: #{_lambda_.13} parent=87 // pred_check_branch
          %1417 = sbr.rel (%p1415) target = $region108
        $region107: #{_lambda_.13} parent=87 // pred_region
          %s1418 = smul.u32 16, %s19
          %s1419 = smul.addr %s1418, 2
          %s1420 = sadd.s32 %s20, %s1419
          %s1421 = smul.addr %s1420, 4
          %s1422 = scalar_lea.vmem %s3, %s1421
          // Predicated region
          $region109: #{_lambda_.13} parent=107 // pred_check
            _
          $region110: #{_lambda_.13} parent=107 // pred_check_branch
            %1424 = sbr.rel (0) target = $region112
          $region111: #{_lambda_.13} parent=107 // pred_region
            // Predicated region
            $region113: #{_lambda_.13} parent=111 // pred_check
              _
            $region114: #{_lambda_.13} parent=111 // pred_check_branch
              %1426 = sbr.rel target = $region116
            $region115: #{_lambda_.13} parent=111 // pred_region
              // Predicated region
              $region128: #{_lambda_.13} parent=115 // pred_check
                _
              $region129: #{_lambda_.13} parent=115 // pred_check_branch
                %1472 = sbr.rel (0) target = $region131
              $region130: #{_lambda_.13} parent=115 // pred_region
                loop: start=0, step=1, limit=1
                $region132: #{_lambda_.13} parent=130 // loop_pre_header
                  _
                $region133: #{_lambda_.13} parent=130 // loop_header
                  %s1474 = sphi 0, %s1478
                  %p1475 = scmp.ge.s32.totalorder %s1474, 1
                  %s1479 = sphi %s1414, %s1414
                  %s1480 = sphi %s1422, %s1422
                $region134: #{_lambda_.13} parent=130 // loop_header_branch
                  %1477 = sbr.rel (%p1475) target = $region138
                $region135: #{_lambda_.13} parent=130 // loop_body
                  _
                $region136: #{_lambda_.13} parent=130 // loop_footer
                  %s1478 = sadd.s32 1, %s1474
                $region137: #{_lambda_.13} parent=130 // loop_footer_branch
                  %1473 = sbr.rel target = $region133
                $region138: #{_lambda_.13} parent=130 // loop_exit
                  _
                %s1482 = ssub.s32 16, 1
                loop: start=0, step=1, limit=1
                $region139: #{_lambda_.13} parent=130 // loop_pre_header
                  _
                $region140: #{_lambda_.13} parent=130 // loop_header
                  %s1484 = sphi 0, %s1488
                  %p1485 = scmp.ge.s32.totalorder %s1484, 1
                  %s1489 = sphi %s1414, %s1414
                  %s1490 = sphi %s1422, %s1422
                $region141: #{_lambda_.13} parent=130 // loop_header_branch
                  %1487 = sbr.rel (%p1485) target = $region145
                $region142: #{_lambda_.13} parent=130 // loop_body
                  %v1491 = vld [vmem:[%s1489] sm:%s1482]
                  %1492 = vst [vmem:[%s1490] sm:%s1482] %v1491
                  %v1493 = vld [vmem:[%s1489 + $0x4] sm:%s1482]
                  %1494 = vst [vmem:[%s1490 + $0x8] sm:%s1482] %v1493
                  %v1495 = vld [vmem:[%s1489 + $0x8] sm:%s1482]
                  %1496 = vst [vmem:[%s1490 + $0x10] sm:%s1482] %v1495
                  %v1497 = vld [vmem:[%s1489 + $0xc] sm:%s1482]
                  %1498 = vst [vmem:[%s1490 + $0x18] sm:%s1482] %v1497
                  %v1499 = vld [vmem:[%s1489 + $0x10] sm:%s1482]
                  %1500 = vst [vmem:[%s1490 + $0x20] sm:%s1482] %v1499
                  %v1501 = vld [vmem:[%s1489 + $0x14] sm:%s1482]
                  %1502 = vst [vmem:[%s1490 + $0x28] sm:%s1482] %v1501
                  %v1503 = vld [vmem:[%s1489 + $0x18] sm:%s1482]
                  %1504 = vst [vmem:[%s1490 + $0x30] sm:%s1482] %v1503
                  %v1505 = vld [vmem:[%s1489 + $0x1c] sm:%s1482]
                  %1506 = vst [vmem:[%s1490 + $0x38] sm:%s1482] %v1505
                  %v1507 = vld [vmem:[%s1489 + $0x20] sm:%s1482]
                  %1508 = vst [vmem:[%s1490 + $0x40] sm:%s1482] %v1507
                  %v1509 = vld [vmem:[%s1489 + $0x24] sm:%s1482]
                  %1510 = vst [vmem:[%s1490 + $0x48] sm:%s1482] %v1509
                  %v1511 = vld [vmem:[%s1489 + $0x28] sm:%s1482]
                  %1512 = vst [vmem:[%s1490 + $0x50] sm:%s1482] %v1511
                  %v1513 = vld [vmem:[%s1489 + $0x2c] sm:%s1482]
                  %1514 = vst [vmem:[%s1490 + $0x58] sm:%s1482] %v1513
                  %v1515 = vld [vmem:[%s1489 + $0x30] sm:%s1482]
                  %1516 = vst [vmem:[%s1490 + $0x60] sm:%s1482] %v1515
                  %v1517 = vld [vmem:[%s1489 + $0x34] sm:%s1482]
                  %1518 = vst [vmem:[%s1490 + $0x68] sm:%s1482] %v1517
                  %v1519 = vld [vmem:[%s1489 + $0x38] sm:%s1482]
                  %1520 = vst [vmem:[%s1490 + $0x70] sm:%s1482] %v1519
                  %v1521 = vld [vmem:[%s1489 + $0x3c] sm:%s1482]
                  %1522 = vst [vmem:[%s1490 + $0x78] sm:%s1482] %v1521
                $region143: #{_lambda_.13} parent=130 // loop_footer
                  %s1488 = sadd.s32 1, %s1484
                $region144: #{_lambda_.13} parent=130 // loop_footer_branch
                  %1483 = sbr.rel target = $region140
                $region145: #{_lambda_.13} parent=130 // loop_exit
                  _
              $region131: #{_lambda_.13} parent=115 // pred_fallthru
                _
            $region116: #{_lambda_.13} parent=111 // pred_fallthru
              _
            // Predicated region
            $region117: #{_lambda_.13} parent=111 // pred_check
              _
            $region118: #{_lambda_.13} parent=111 // pred_check_branch
              %1428 = sbr.rel (0) target = $region120
            $region119: #{_lambda_.13} parent=111 // pred_region
              %s1430 = ssub.s32 16, 1
              loop: start=0, step=1, limit=1
              $region121: #{_lambda_.13} parent=119 // loop_pre_header
                _
              $region122: #{_lambda_.13} parent=119 // loop_header
                %s1432 = sphi 0, %s1436
                %p1433 = scmp.ge.s32.totalorder %s1432, 1
                %s1437 = sphi %s1414, %s1414
                %s1438 = sphi %s1422, %s1422
              $region123: #{_lambda_.13} parent=119 // loop_header_branch
                %1435 = sbr.rel (%p1433) target = $region127
              $region124: #{_lambda_.13} parent=119 // loop_body
                %v1439 = vld [vmem:[%s1437] sm:%s1430]
                %1440 = vst [vmem:[%s1438] sm:%s1430] %v1439
                %v1441 = vld [vmem:[%s1437 + $0x4] sm:%s1430]
                %1442 = vst [vmem:[%s1438 + $0x8] sm:%s1430] %v1441
                %v1443 = vld [vmem:[%s1437 + $0x8] sm:%s1430]
                %1444 = vst [vmem:[%s1438 + $0x10] sm:%s1430] %v1443
                %v1445 = vld [vmem:[%s1437 + $0xc] sm:%s1430]
                %1446 = vst [vmem:[%s1438 + $0x18] sm:%s1430] %v1445
                %v1447 = vld [vmem:[%s1437 + $0x10] sm:%s1430]
                %1448 = vst [vmem:[%s1438 + $0x20] sm:%s1430] %v1447
                %v1449 = vld [vmem:[%s1437 + $0x14] sm:%s1430]
                %1450 = vst [vmem:[%s1438 + $0x28] sm:%s1430] %v1449
                %v1451 = vld [vmem:[%s1437 + $0x18] sm:%s1430]
                %1452 = vst [vmem:[%s1438 + $0x30] sm:%s1430] %v1451
                %v1453 = vld [vmem:[%s1437 + $0x1c] sm:%s1430]
                %1454 = vst [vmem:[%s1438 + $0x38] sm:%s1430] %v1453
                %v1455 = vld [vmem:[%s1437 + $0x20] sm:%s1430]
                %1456 = vst [vmem:[%s1438 + $0x40] sm:%s1430] %v1455
                %v1457 = vld [vmem:[%s1437 + $0x24] sm:%s1430]
                %1458 = vst [vmem:[%s1438 + $0x48] sm:%s1430] %v1457
                %v1459 = vld [vmem:[%s1437 + $0x28] sm:%s1430]
                %1460 = vst [vmem:[%s1438 + $0x50] sm:%s1430] %v1459
                %v1461 = vld [vmem:[%s1437 + $0x2c] sm:%s1430]
                %1462 = vst [vmem:[%s1438 + $0x58] sm:%s1430] %v1461
                %v1463 = vld [vmem:[%s1437 + $0x30] sm:%s1430]
                %1464 = vst [vmem:[%s1438 + $0x60] sm:%s1430] %v1463
                %v1465 = vld [vmem:[%s1437 + $0x34] sm:%s1430]
                %1466 = vst [vmem:[%s1438 + $0x68] sm:%s1430] %v1465
                %v1467 = vld [vmem:[%s1437 + $0x38] sm:%s1430]
                %1468 = vst [vmem:[%s1438 + $0x70] sm:%s1430] %v1467
                %v1469 = vld [vmem:[%s1437 + $0x3c] sm:%s1430]
                %1470 = vst [vmem:[%s1438 + $0x78] sm:%s1430] %v1469
              $region125: #{_lambda_.13} parent=119 // loop_footer
                %s1436 = sadd.s32 1, %s1432
              $region126: #{_lambda_.13} parent=119 // loop_footer_branch
                %1431 = sbr.rel target = $region122
              $region127: #{_lambda_.13} parent=119 // loop_exit
                _
            $region120: #{_lambda_.13} parent=111 // pred_fallthru
              _
          $region112: #{_lambda_.13} parent=107 // pred_fallthru
            _
          %1523 = vnop
        $region108: #{_lambda_.13} parent=87 // pred_fallthru
          _
      $region88: #{_lambda_.13} parent=5 // pred_fallthru
        _
      %p1524 = scmp.le.s32.totalorder 2, %s9
      // Predicated region
      $region146: #{_lambda_.13} parent=5 // pred_check
        %p1525 = pneg %p1524
      $region147: #{_lambda_.13} parent=5 // pred_check_branch
        %1527 = sbr.rel (%p1525) target = $region149
      $region148: #{_lambda_.13} parent=5 // pred_region
        %s1528 = ssub.s32 %s9, 2
        // Predicated region
        $region150: #{_lambda_.13} parent=148 // pred_check
          %p1529 = pneg %p141
        $region151: #{_lambda_.13} parent=148 // pred_check_branch
          %1531 = sbr.rel (%p1529) target = $region153
        $region152: #{_lambda_.13} parent=148 // pred_region
          %s1532 = sand.u32 %s126, 1
          %s1533 = sand.u32 %s126, 1
          %s1534 = smul.addr %s1533, 64
          %s1535 = scalar_lea.vmem [#allocation5], %s1534
        $region153: #{_lambda_.13} parent=148 // pred_fallthru
          _
      $region149: #{_lambda_.13} parent=5 // pred_fallthru
        _
    $region6: #{_lambda_.13} parent=1 // loop_footer
      %s13 = sadd.s32 1, %s9
    $region7: #{_lambda_.13} parent=1 // loop_footer_branch
      %8 = sbr.rel target = $region3
    $region8: #{_lambda_.13} parent=1 // loop_exit
      _

// kernel: _lambda_.15
$region0: #{_lambda_.15}
  #allocation0 [shape = 'u32[]', space=smem, size = 0x4, offset = 0x4, fixed_abs, tag = 'smem constant byte address 0x4 - core index']
  #allocation1 [shape = 'u32[72,128]{1,0:T(1,128)}', space=vmem, size = 0x9000, scoped, tag = 'internal scratch']
  %s0 = inlined_call_operand.vmem [shape: bf16[2,3,3,256], index: 0, kind: input, shape index: {}]
  %s1 = inlined_call_operand.vmem [shape: bf16[2,1,1,256], index: 1, kind: output, shape index: {}]
  %s2 = sld [smem:[#allocation0]]
  $region37: #{_lambda_.15} parent=0
    _
  %s4 = ssub.s32 1, %s2
  %s5 = scalar_select 0, %s4, %s2
  loop: start=0, step=1, limit=4
  $region2: #{_lambda_.15} parent=0 // loop_pre_header
    _
  $region3: #{_lambda_.15} parent=0 // loop_header
    %s7 = sphi 0, %s11
    %p8 = scmp.ge.s32.totalorder %s7, 4
    %s17 = sphi 0, %s19
    %s20 = sphi 0, %s17
    %s21 = sphi 0, %s20
    %s37 = sphi 0, %s21
    %s43 = sphi 0, %s45
    %s46 = sphi 0, %s43
    %s47 = sphi 0, %s46
    %s63 = sphi 0, %s47
  $region4: #{_lambda_.15} parent=0 // loop_header_branch
    %10 = sbr.rel (%p8) target = $region8
  $region5: #{_lambda_.15} parent=0 // loop_body
    %s12 = ssub.s32 %s7, 1
    %s13 = ssub.s32 %s7, 2
    %s14 = sadd.s32 %s7, 1
    %s15 = ssub.s32 %s7, %s14
    %p16 = scmp.eq.s32.totalorder %s15, 0
    %s18 = sadd.s32 %s17, 1
    %s19 = scalar_select %p16, %s17, %s18
    %p22 = pneg %p16
    %p23 = scmp.eq.s32.totalorder %s7, 1
    %p24 = por %p22, %p23
    %p25 = scmp.ne.s32.totalorder %s17, %s20
    %p26 = scmp.eq.s32.totalorder %s7, 0
    %p27 = por %p25, %p26
    %p28 = scmp.ne.s32.totalorder %s17, %s20
    %p29 = scmp.eq.s32.totalorder %s12, 1
    %p30 = por %p28, %p29
    %p31 = scmp.ne.s32.totalorder %s20, %s21
    %p32 = scmp.eq.s32.totalorder %s12, 0
    %p33 = por %p31, %p32
    %p34 = scmp.ne.s32.totalorder %s20, %s21
    %p35 = scmp.eq.s32.totalorder %s13, 1
    %p36 = por %p34, %p35
    %p38 = scmp.ne.s32.totalorder %s21, %s37
    %p39 = scmp.eq.s32.totalorder %s13, 0
    %p40 = por %p38, %p39
    %s41 = ssub.s32 %s7, %s14
    %p42 = scmp.eq.s32.totalorder %s41, 0
    %s44 = sadd.s32 %s43, 1
    %s45 = scalar_select %p42, %s43, %s44
    %p48 = pneg %p42
    %p49 = scmp.eq.s32.totalorder %s7, 1
    %p50 = por %p48, %p49
    %p51 = scmp.ne.s32.totalorder %s43, %s46
    %p52 = scmp.eq.s32.totalorder %s7, 0
    %p53 = por %p51, %p52
    %p54 = scmp.ne.s32.totalorder %s43, %s46
    %p55 = scmp.eq.s32.totalorder %s12, 1
    %p56 = por %p54, %p55
    %p57 = scmp.ne.s32.totalorder %s46, %s47
    %p58 = scmp.eq.s32.totalorder %s12, 0
    %p59 = por %p57, %p58
    %p60 = scmp.ne.s32.totalorder %s46, %s47
    %p61 = scmp.eq.s32.totalorder %s13, 1
    %p62 = por %p60, %p61
    %p64 = scmp.ne.s32.totalorder %s47, %s63
    %p65 = scmp.eq.s32.totalorder %s13, 0
    %p66 = por %p64, %p65
    %p67 = scmp.le.s32.totalorder 1, %s7
    %p68 = scmp.lt.s32.totalorder %s7, 3
    %p69 = pnand %p67, %p68
    %p70 = pneg %p69
    // Predicated region
    $region9: #{_lambda_.15} parent=5 // pred_check
      _
    $region10: #{_lambda_.15} parent=5 // pred_check_branch
      %72 = sbr.rel (%p69) target = $region12
    $region11: #{_lambda_.15} parent=5 // pred_region
      %s73 = ssub.s32 %s7, 1
    $region12: #{_lambda_.15} parent=5 // pred_fallthru
      _
    %p74 = scmp.lt.s32.totalorder %s7, 2
    // Predicated region
    $region13: #{_lambda_.15} parent=5 // pred_check
      %p75 = pneg %p74
    $region14: #{_lambda_.15} parent=5 // pred_check_branch
      %77 = sbr.rel (%p75) target = $region16
    $region15: #{_lambda_.15} parent=5 // pred_region
      // Predicated region
      $region17: #{_lambda_.15} parent=15 // pred_check
        %p78 = pneg %p27
      $region18: #{_lambda_.15} parent=15 // pred_check_branch
        %80 = sbr.rel (%p78) target = $region20
      $region19: #{_lambda_.15} parent=15 // pred_region
        %p81 = scmp.lt.s32.totalorder %s7, 1
        %s82 = scalar_select %p81, %s7, 1
        %s83 = smul.addr %s82, 6
        %s84 = smul.addr %s83, 2
        %s85 = scalar_lea.vmem %s0, %s84
      $region20: #{_lambda_.15} parent=15 // pred_fallthru
        _
    $region16: #{_lambda_.15} parent=5 // pred_fallthru
      _
    %p86 = scmp.le.s32.totalorder 1, %s7
    %p87 = scmp.lt.s32.totalorder %s7, 3
    %p88 = pnand %p86, %p87
    %p89 = pneg %p88
    // Predicated region
    $region21: #{_lambda_.15} parent=5 // pred_check
      _
    $region22: #{_lambda_.15} parent=5 // pred_check_branch
      %91 = sbr.rel (%p88) target = $region24
    $region23: #{_lambda_.15} parent=5 // pred_region
      %s92 = ssub.s32 %s7, 1
      %p93 = scmp.lt.s32.totalorder %s12, 1
      %s94 = scalar_select %p93, %s12, 1
      %s95 = smul.addr %s94, 6
      %s96 = smul.addr %s95, 2
      %s97 = scalar_lea.vmem %s0, %s96
      %p98 = pneg %p33
      %p99 = pneg %p30
      %p100 = pneg %p59
      %p101 = pneg %p56
      %p102 = scmp.lt.s32.totalorder %s12, 1
      %s103 = scalar_select %p102, %s12, 1
      %s104 = smul.addr %s103, 2
      %s105 = scalar_lea.vmem %s1, %s104
      %p106 = scmp.lt.s32.totalorder %s12, 1
      %s107 = scalar_select %p106, %s12, 1
      %s108 = smul.addr %s107, 6
      %s109 = smul.addr %s108, 2
      %s110 = scalar_lea.vmem %s0, %s109
      %p111 = scmp.lt.s32.totalorder %s12, 1
      %s112 = scalar_select %p111, %s12, 1
      %s113 = smul.addr %s112, 2
      %s114 = scalar_lea.vmem %s1, %s113
      %v115 = vld [vmem:[%s110] sm:$0xf]
      %v116 = vld [vmem:[%s110 + $0x4] sm:$0xf]
      %v117 = vld [vmem:[%s110 + $0x8] sm:$0xf]
      %v118 = vunpack.c.l.bf16 %v115
      %v119 = vunpack.c.l.bf16 %v116
      %v120 = vmax.f32 %v118, %v119
      %122 = vst [vmem:[#allocation1] ss:$2 sm:$0xff] %v120
      %v123 = vld.sshfl [vmem:[#allocation1] sm:$0xff pattern:$0x75316420]
      %v124 = vld.sshfl [vmem:[#allocation1 + $0x8] sm:$0xff pattern:$0x75316420]
      %v127 = vpack.c.bf16 %v124, %v123
      %v128 = vunpack.c.l.bf16 %v127
      %v129 = vunpack.c.h.bf16 %v127
      %v130 = vunpack.c.l.bf16 %v117
      %132 = vst [vmem:[#allocation1] ss:$2 sm:$0xff] %v130
      %v133 = vld.sshfl [vmem:[#allocation1] sm:$0xff pattern:$0x75316420]
      %v134 = vld.sshfl [vmem:[#allocation1 + $0x8] sm:$0xff pattern:$0x75316420]
      %v137 = vmax.f32 %v128, %v133
      %v138 = vmax.f32 %v129, %v134
      %v139 = vpack.c.bf16 %v138, %v137
      %v140 = vunpack.c.l.bf16 %v139
      %v141 = vunpack.c.h.bf16 %v139
      %v144 = vrot.slane %v140, 1
      %v145 = vrot.slane %v141, 1
      %v148 = vmax.f32 %v140, %v144
      %v149 = vmax.f32 %v141, %v145
      %v150 = vpack.c.bf16 %v149, %v148
      %v151 = vunpack.c.l.bf16 %v150
      %v152 = vunpack.c.h.bf16 %v150
      %v153 = vrot.slane %v140, 2
      %v154 = vrot.slane %v141, 2
      %v157 = vmax.f32 %v151, %v153
      %v158 = vmax.f32 %v152, %v154
      %v159 = vpack.c.bf16 %v158, %v157
      %v161 = vrot.slane %v159, 3
      %vm162 = vcmask 1040384
      %v165 = vsel %vm162, %v159, %v161
      %vm167 = vcmask 1040384
      %vm168 = vsmask.f32 256
      %vm169 = vmand %vm167, %vm168
      %vm170 = vcmask 1041409
      %vm171 = vsmask.f32 1280
      %vm172 = vmand %vm170, %vm171
      %vm173 = vmor %vm172, %vm169
      %v174 = vld [vmem:[%s114] sm:$0x3]
      %v175 = vsel %vm173, %v165, %v174
      %176 = vst [vmem:[%s114] sm:$0x3] %v175
      %p177 = scmp.lt.s32.totalorder %s12, 1
      %s178 = scalar_select %p177, %s12, 1
      %s179 = smul.addr %s178, 2
      %s180 = scalar_lea.vmem %s1, %s179
      // Predicated region
      $region25: #{_lambda_.15} parent=23 // pred_check
        %p181 = pneg %p56
      $region26: #{_lambda_.15} parent=23 // pred_check_branch
        %183 = sbr.rel (%p181) target = $region28
      $region27: #{_lambda_.15} parent=23 // pred_region
        _
      $region28: #{_lambda_.15} parent=23 // pred_fallthru
        _
    $region24: #{_lambda_.15} parent=5 // pred_fallthru
      _
    %p184 = scmp.le.s32.totalorder 2, %s7
    // Predicated region
    $region29: #{_lambda_.15} parent=5 // pred_check
      %p185 = pneg %p184
    $region30: #{_lambda_.15} parent=5 // pred_check_branch
      %187 = sbr.rel (%p185) target = $region32
    $region31: #{_lambda_.15} parent=5 // pred_region
      %s188 = ssub.s32 %s7, 2
      // Predicated region
      $region33: #{_lambda_.15} parent=31 // pred_check
        %p189 = pneg %p62
      $region34: #{_lambda_.15} parent=31 // pred_check_branch
        %191 = sbr.rel (%p189) target = $region36
      $region35: #{_lambda_.15} parent=31 // pred_region
        %p192 = scmp.lt.s32.totalorder %s13, 1
        %s193 = scalar_select %p192, %s13, 1
        %s194 = smul.addr %s193, 2
        %s195 = scalar_lea.vmem %s1, %s194
      $region36: #{_lambda_.15} parent=31 // pred_fallthru
        _
    $region32: #{_lambda_.15} parent=5 // pred_fallthru
      _
  $region6: #{_lambda_.15} parent=0 // loop_footer
    %s11 = sadd.s32 1, %s7
  $region7: #{_lambda_.15} parent=0 // loop_footer_branch
    %6 = sbr.rel target = $region3
  $region8: #{_lambda_.15} parent=0 // loop_exit
    _

// kernel: _lambda_.14
$region0: #{_lambda_.14}
  #allocation0 [shape = 'u32[]', space=smem, size = 0x4, offset = 0x4, fixed_abs, tag = 'smem constant byte address 0x4 - core index']
  #allocation1 [shape = 'u32[72,128]{1,0:T(1,128)}', space=vmem, size = 0x9000, scoped, tag = 'internal scratch']
  #allocation2 [shape = 'f32[128,128]{1,0:T(8,128)}', space=vmem, size = 0x10000, scoped, tag = 'scratch operand']
  %s0 = inlined_call_operand.vmem [shape: bf16[128,2560], index: 0, kind: input, shape index: {}]
  %s1 = inlined_call_operand.vmem [shape: bf16[2560,256], index: 1, kind: input, shape index: {}]
  %s2 = inlined_call_operand.vmem [shape: f32[1,256], index: 2, kind: input, shape index: {}]
  %s3 = inlined_call_operand.vmem [shape: bf16[128,256], index: 3, kind: output, shape index: {}]
  %s4 = sld [smem:[#allocation0]]
  $region154: #{_lambda_.14} parent=0
    _
  %s6 = ssub.s32 1, %s4
  %s7 = scalar_select 0, %s6, %s4
  $region1: #{_lambda_.14} parent=0
    #allocation3 [shape = 'u8[262144]{0}', space=vmem, size = 0x40000, scoped, tag = 'input window, operand 0']
    #allocation4 [shape = 'u8[262144]{0}', space=vmem, size = 0x40000, scoped, tag = 'input window, operand 1']
    #allocation5 [shape = 'u8[65536]{0}', space=vmem, size = 0x10000, scoped, tag = 'output window, operand 0']
    loop: start=0, step=1, limit=12
    $region2: #{_lambda_.14} parent=1 // loop_pre_header
      _
    $region3: #{_lambda_.14} parent=1 // loop_header
      %s9 = sphi 0, %s13
      %p10 = scmp.ge.s32.totalorder %s9, 12
      %s16 = sphi 0, %s35
      %s17 = sphi 0, %s31
      %s18 = sphi 0, %s27
      %s19 = sphi 0, %s16
      %s20 = sphi 0, %s17
      %s21 = sphi 0, %s18
      %s22 = sphi 0, %s19
      %s23 = sphi 0, %s20
      %s24 = sphi 0, %s21
      %s40 = sphi 0, %s42
      %s43 = sphi 0, %s40
      %s44 = sphi 0, %s43
      %s60 = sphi 0, %s44
      %s68 = sphi 0, %s70
      %s71 = sphi 0, %s68
      %s72 = sphi 0, %s71
      %s88 = sphi 0, %s72
      %s94 = sphi 0, %s96
      %s97 = sphi 0, %s94
      %s98 = sphi 0, %s97
      %s114 = sphi 0, %s98
      %s122 = sphi 0, %s124
      %s125 = sphi 0, %s122
      %s126 = sphi 0, %s125
      %s142 = sphi 0, %s126
    $region4: #{_lambda_.14} parent=1 // loop_header_branch
      %12 = sbr.rel (%p10) target = $region8
    $region5: #{_lambda_.14} parent=1 // loop_body
      %s14 = ssub.s32 %s9, 1
      %s15 = ssub.s32 %s9, 2
      %s25 = sadd.s32 1, %s18
      %p26 = scmp.ge.s32.totalorder %s25, 5
      %s27 = scalar_select %p26, 0, %s25
      %s28 = sadd.s32 1, %s17
      %s29 = scalar_select %p26, %s28, %s17
      %p30 = scmp.ge.s32.totalorder %s29, 2
      %s31 = scalar_select %p30, 0, %s29
      %s32 = sadd.s32 1, %s16
      %s33 = scalar_select %p30, %s32, %s16
      %p34 = scmp.ge.s32.totalorder %s33, 1
      %s35 = scalar_select %p34, 0, %s33
      %s36 = ssub.s32 %s16, %s35
      %s37 = ssub.s32 %s18, %s27
      %s38 = sor.u32 %s36, %s37
      %p39 = scmp.eq.s32.totalorder %s38, 0
      %s41 = sadd.s32 %s40, 1
      %s42 = scalar_select %p39, %s40, %s41
      %p45 = pneg %p39
      %p46 = scmp.eq.s32.totalorder %s9, 9
      %p47 = por %p45, %p46
      %p48 = scmp.ne.s32.totalorder %s40, %s43
      %p49 = scmp.eq.s32.totalorder %s9, 0
      %p50 = por %p48, %p49
      %p51 = scmp.ne.s32.totalorder %s40, %s43
      %p52 = scmp.eq.s32.totalorder %s14, 9
      %p53 = por %p51, %p52
      %p54 = scmp.ne.s32.totalorder %s43, %s44
      %p55 = scmp.eq.s32.totalorder %s14, 0
      %p56 = por %p54, %p55
      %p57 = scmp.ne.s32.totalorder %s43, %s44
      %p58 = scmp.eq.s32.totalorder %s15, 9
      %p59 = por %p57, %p58
      %p61 = scmp.ne.s32.totalorder %s44, %s60
      %p62 = scmp.eq.s32.totalorder %s15, 0
      %p63 = por %p61, %p62
      %s64 = ssub.s32 %s18, %s27
      %s65 = ssub.s32 %s17, %s31
      %s66 = sor.u32 %s64, %s65
      %p67 = scmp.eq.s32.totalorder %s66, 0
      %s69 = sadd.s32 %s68, 1
      %s70 = scalar_select %p67, %s68, %s69
      %p73 = pneg %p67
      %p74 = scmp.eq.s32.totalorder %s9, 9
      %p75 = por %p73, %p74
      %p76 = scmp.ne.s32.totalorder %s68, %s71
      %p77 = scmp.eq.s32.totalorder %s9, 0
      %p78 = por %p76, %p77
      %p79 = scmp.ne.s32.totalorder %s68, %s71
      %p80 = scmp.eq.s32.totalorder %s14, 9
      %p81 = por %p79, %p80
      %p82 = scmp.ne.s32.totalorder %s71, %s72
      %p83 = scmp.eq.s32.totalorder %s14, 0
      %p84 = por %p82, %p83
      %p85 = scmp.ne.s32.totalorder %s71, %s72
      %p86 = scmp.eq.s32.totalorder %s15, 9
      %p87 = por %p85, %p86
      %p89 = scmp.ne.s32.totalorder %s72, %s88
      %p90 = scmp.eq.s32.totalorder %s15, 0
      %p91 = por %p89, %p90
      %s92 = ssub.s32 %s17, %s31
      %p93 = scmp.eq.s32.totalorder %s92, 0
      %s95 = sadd.s32 %s94, 1
      %s96 = scalar_select %p93, %s94, %s95
      %p99 = pneg %p93
      %p100 = scmp.eq.s32.totalorder %s9, 9
      %p101 = por %p99, %p100
      %p102 = scmp.ne.s32.totalorder %s94, %s97
      %p103 = scmp.eq.s32.totalorder %s9, 0
      %p104 = por %p102, %p103
      %p105 = scmp.ne.s32.totalorder %s94, %s97
      %p106 = scmp.eq.s32.totalorder %s14, 9
      %p107 = por %p105, %p106
      %p108 = scmp.ne.s32.totalorder %s97, %s98
      %p109 = scmp.eq.s32.totalorder %s14, 0
      %p110 = por %p108, %p109
      %p111 = scmp.ne.s32.totalorder %s97, %s98
      %p112 = scmp.eq.s32.totalorder %s15, 9
      %p113 = por %p111, %p112
      %p115 = scmp.ne.s32.totalorder %s98, %s114
      %p116 = scmp.eq.s32.totalorder %s15, 0
      %p117 = por %p115, %p116
      %s118 = ssub.s32 %s16, %s35
      %s119 = ssub.s32 %s17, %s31
      %s120 = sor.u32 %s118, %s119
      %p121 = scmp.eq.s32.totalorder %s120, 0
      %s123 = sadd.s32 %s122, 1
      %s124 = scalar_select %p121, %s122, %s123
      %p127 = pneg %p121
      %p128 = scmp.eq.s32.totalorder %s9, 9
      %p129 = por %p127, %p128
      %p130 = scmp.ne.s32.totalorder %s122, %s125
      %p131 = scmp.eq.s32.totalorder %s9, 0
      %p132 = por %p130, %p131
      %p133 = scmp.ne.s32.totalorder %s122, %s125
      %p134 = scmp.eq.s32.totalorder %s14, 9
      %p135 = por %p133, %p134
      %p136 = scmp.ne.s32.totalorder %s125, %s126
      %p137 = scmp.eq.s32.totalorder %s14, 0
      %p138 = por %p136, %p137
      %p139 = scmp.ne.s32.totalorder %s125, %s126
      %p140 = scmp.eq.s32.totalorder %s15, 9
      %p141 = por %p139, %p140
      %p143 = scmp.ne.s32.totalorder %s126, %s142
      %p144 = scmp.eq.s32.totalorder %s15, 0
      %p145 = por %p143, %p144
      %p146 = scmp.le.s32.totalorder 1, %s9
      %p147 = scmp.lt.s32.totalorder %s9, 11
      %p148 = pnand %p146, %p147
      %p149 = pneg %p148
      // Predicated region
      $region9: #{_lambda_.14} parent=5 // pred_check
        _
      $region10: #{_lambda_.14} parent=5 // pred_check_branch
        %151 = sbr.rel (%p148) target = $region12
      $region11: #{_lambda_.14} parent=5 // pred_region
        %s152 = ssub.s32 %s9, 1
      $region12: #{_lambda_.14} parent=5 // pred_fallthru
        _
      %p153 = scmp.lt.s32.totalorder %s9, 10
      // Predicated region
      $region13: #{_lambda_.14} parent=5 // pred_check
        %p154 = pneg %p153
      $region14: #{_lambda_.14} parent=5 // pred_check_branch
        %156 = sbr.rel (%p154) target = $region16
      $region15: #{_lambda_.14} parent=5 // pred_region
        // Predicated region
        $region17: #{_lambda_.14} parent=15 // pred_check
          %p157 = pneg %p50
        $region18: #{_lambda_.14} parent=15 // pred_check_branch
          %159 = sbr.rel (%p157) target = $region20
        $region19: #{_lambda_.14} parent=15 // pred_region
          %s160 = sand.u32 %s40, 1
          %s161 = sand.u32 %s40, 1
          %s162 = smul.addr %s161, 256
          %s163 = scalar_lea.vmem [#allocation3], %s162
          %s164 = smul.u32 16, %s16
          %s165 = smul.u32 4, %s18
          %s166 = smul.addr %s164, 20
          %s167 = sadd.s32 %s165, %s166
          %s168 = smul.addr %s167, 4
          %s169 = scalar_lea.vmem %s0, %s168
          // Predicated region
          $region21: #{_lambda_.14} parent=19 // pred_check
            _
          $region22: #{_lambda_.14} parent=19 // pred_check_branch
            %171 = sbr.rel (0) target = $region24
          $region23: #{_lambda_.14} parent=19 // pred_region
            // Predicated region
            $region25: #{_lambda_.14} parent=23 // pred_check
              _
            $region26: #{_lambda_.14} parent=23 // pred_check_branch
              %173 = sbr.rel (0) target = $region28
            $region27: #{_lambda_.14} parent=23 // pred_region
              loop: start=0, step=1, limit=1
              $region29: #{_lambda_.14} parent=27 // loop_pre_header
                _
              $region30: #{_lambda_.14} parent=27 // loop_header
                %s175 = sphi 0, %s179
                %p176 = scmp.ge.s32.totalorder %s175, 1
                %s180 = sphi %s169, %s169
                %s181 = sphi %s163, %s163
              $region31: #{_lambda_.14} parent=27 // loop_header_branch
                %178 = sbr.rel (%p176) target = $region35
              $region32: #{_lambda_.14} parent=27 // loop_body
                %v182 = vld [vmem:[%s180] sm:$0xff]
                %183 = vst [vmem:[%s181] sm:$0xff] %v182
                %v184 = vld [vmem:[%s180 + $0x8] sm:$0xff]
                %185 = vst [vmem:[%s181 + $0x8] sm:$0xff] %v184
                %v186 = vld [vmem:[%s180 + $0x50] sm:$0xff]
                %187 = vst [vmem:[%s181 + $0x10] sm:$0xff] %v186
                %v188 = vld [vmem:[%s180 + $0x58] sm:$0xff]
                %189 = vst [vmem:[%s181 + $0x18] sm:$0xff] %v188
                %v190 = vld [vmem:[%s180 + $0xa0] sm:$0xff]
                %191 = vst [vmem:[%s181 + $0x20] sm:$0xff] %v190
                %v192 = vld [vmem:[%s180 + $0xa8] sm:$0xff]
                %193 = vst [vmem:[%s181 + $0x28] sm:$0xff] %v192
                %v194 = vld [vmem:[%s180 + $0xf0] sm:$0xff]
                %195 = vst [vmem:[%s181 + $0x30] sm:$0xff] %v194
                %v196 = vld [vmem:[%s180 + $0xf8] sm:$0xff]
                %197 = vst [vmem:[%s181 + $0x38] sm:$0xff] %v196
                %v198 = vld [vmem:[%s180 + $0x140] sm:$0xff]
                %199 = vst [vmem:[%s181 + $0x40] sm:$0xff] %v198
                %v200 = vld [vmem:[%s180 + $0x148] sm:$0xff]
                %201 = vst [vmem:[%s181 + $0x48] sm:$0xff] %v200
                %v202 = vld [vmem:[%s180 + $0x190] sm:$0xff]
                %203 = vst [vmem:[%s181 + $0x50] sm:$0xff] %v202
                %v204 = vld [vmem:[%s180 + $0x198] sm:$0xff]
                %205 = vst [vmem:[%s181 + $0x58] sm:$0xff] %v204
                %v206 = vld [vmem:[%s180 + $0x1e0] sm:$0xff]
                %207 = vst [vmem:[%s181 + $0x60] sm:$0xff] %v206
                %v208 = vld [vmem:[%s180 + $0x1e8] sm:$0xff]
                %209 = vst [vmem:[%s181 + $0x68] sm:$0xff] %v208
                %v210 = vld [vmem:[%s180 + $0x230] sm:$0xff]
                %211 = vst [vmem:[%s181 + $0x70] sm:$0xff] %v210
                %v212 = vld [vmem:[%s180 + $0x238] sm:$0xff]
                %213 = vst [vmem:[%s181 + $0x78] sm:$0xff] %v212
                %v214 = vld [vmem:[%s180 + $0x280] sm:$0xff]
                %215 = vst [vmem:[%s181 + $0x80] sm:$0xff] %v214
                %v216 = vld [vmem:[%s180 + $0x288] sm:$0xff]
                %217 = vst [vmem:[%s181 + $0x88] sm:$0xff] %v216
                %v218 = vld [vmem:[%s180 + $0x2d0] sm:$0xff]
                %219 = vst [vmem:[%s181 + $0x90] sm:$0xff] %v218
                %v220 = vld [vmem:[%s180 + $0x2d8] sm:$0xff]
                %221 = vst [vmem:[%s181 + $0x98] sm:$0xff] %v220
                %v222 = vld [vmem:[%s180 + $0x320] sm:$0xff]
                %223 = vst [vmem:[%s181 + $0xa0] sm:$0xff] %v222
                %v224 = vld [vmem:[%s180 + $0x328] sm:$0xff]
                %225 = vst [vmem:[%s181 + $0xa8] sm:$0xff] %v224
                %v226 = vld [vmem:[%s180 + $0x370] sm:$0xff]
                %227 = vst [vmem:[%s181 + $0xb0] sm:$0xff] %v226
                %v228 = vld [vmem:[%s180 + $0x378] sm:$0xff]
                %229 = vst [vmem:[%s181 + $0xb8] sm:$0xff] %v228
                %v230 = vld [vmem:[%s180 + $0x3c0] sm:$0xff]
                %231 = vst [vmem:[%s181 + $0xc0] sm:$0xff] %v230
                %v232 = vld [vmem:[%s180 + $0x3c8] sm:$0xff]
                %233 = vst [vmem:[%s181 + $0xc8] sm:$0xff] %v232
                %v234 = vld [vmem:[%s180 + $0x410] sm:$0xff]
                %235 = vst [vmem:[%s181 + $0xd0] sm:$0xff] %v234
                %v236 = vld [vmem:[%s180 + $0x418] sm:$0xff]
                %237 = vst [vmem:[%s181 + $0xd8] sm:$0xff] %v236
                %v238 = vld [vmem:[%s180 + $0x460] sm:$0xff]
                %239 = vst [vmem:[%s181 + $0xe0] sm:$0xff] %v238
                %v240 = vld [vmem:[%s180 + $0x468] sm:$0xff]
                %241 = vst [vmem:[%s181 + $0xe8] sm:$0xff] %v240
                %v242 = vld [vmem:[%s180 + $0x4b0] sm:$0xff]
                %243 = vst [vmem:[%s181 + $0xf0] sm:$0xff] %v242
                %v244 = vld [vmem:[%s180 + $0x4b8] sm:$0xff]
                %245 = vst [vmem:[%s181 + $0xf8] sm:$0xff] %v244
              $region33: #{_lambda_.14} parent=27 // loop_footer
                %s179 = sadd.s32 1, %s175
              $region34: #{_lambda_.14} parent=27 // loop_footer_branch
                %174 = sbr.rel target = $region30
              $region35: #{_lambda_.14} parent=27 // loop_exit
                _
            $region28: #{_lambda_.14} parent=23 // pred_fallthru
              _
            // Predicated region
            $region36: #{_lambda_.14} parent=23 // pred_check
              _
            $region37: #{_lambda_.14} parent=23 // pred_check_branch
              %247 = sbr.rel target = $region39
            $region38: #{_lambda_.14} parent=23 // pred_region
              _
            $region39: #{_lambda_.14} parent=23 // pred_fallthru
              _
          $region24: #{_lambda_.14} parent=19 // pred_fallthru
            _
          %248 = vnop
        $region20: #{_lambda_.14} parent=15 // pred_fallthru
          _
        // Predicated region
        $region40: #{_lambda_.14} parent=15 // pred_check
          %p249 = pneg %p78
        $region41: #{_lambda_.14} parent=15 // pred_check_branch
          %251 = sbr.rel (%p249) target = $region43
        $region42: #{_lambda_.14} parent=15 // pred_region
          %s252 = sand.u32 %s68, 1
          %s253 = sand.u32 %s68, 1
          %s254 = smul.addr %s253, 256
          %s255 = scalar_lea.vmem [#allocation4], %s254
          %s256 = smul.u32 64, %s18
          %s257 = smul.addr %s256, 2
          %s258 = sadd.s32 %s17, %s257
          %s259 = smul.addr %s258, 4
          %s260 = scalar_lea.vmem %s1, %s259
          // Predicated region
          $region44: #{_lambda_.14} parent=42 // pred_check
            _
          $region45: #{_lambda_.14} parent=42 // pred_check_branch
            %262 = sbr.rel (0) target = $region47
          $region46: #{_lambda_.14} parent=42 // pred_region
            // Predicated region
            $region48: #{_lambda_.14} parent=46 // pred_check
              _
            $region49: #{_lambda_.14} parent=46 // pred_check_branch
              %264 = sbr.rel target = $region51
            $region50: #{_lambda_.14} parent=46 // pred_region
              // Predicated region
              $region63: #{_lambda_.14} parent=50 // pred_check
                _
              $region64: #{_lambda_.14} parent=50 // pred_check_branch
                %406 = sbr.rel (0) target = $region66
              $region65: #{_lambda_.14} parent=50 // pred_region
                loop: start=0, step=1, limit=1
                $region67: #{_lambda_.14} parent=65 // loop_pre_header
                  _
                $region68: #{_lambda_.14} parent=65 // loop_header
                  %s408 = sphi 0, %s412
                  %p409 = scmp.ge.s32.totalorder %s408, 1
                  %s413 = sphi %s260, %s260
                  %s414 = sphi %s255, %s255
                $region69: #{_lambda_.14} parent=65 // loop_header_branch
                  %411 = sbr.rel (%p409) target = $region73
                $region70: #{_lambda_.14} parent=65 // loop_body
                  _
                $region71: #{_lambda_.14} parent=65 // loop_footer
                  %s412 = sadd.s32 1, %s408
                $region72: #{_lambda_.14} parent=65 // loop_footer_branch
                  %407 = sbr.rel target = $region68
                $region73: #{_lambda_.14} parent=65 // loop_exit
                  _
                %s416 = ssub.s32 16, 1
                loop: start=0, step=1, limit=1
                $region74: #{_lambda_.14} parent=65 // loop_pre_header
                  _
                $region75: #{_lambda_.14} parent=65 // loop_header
                  %s418 = sphi 0, %s422
                  %p419 = scmp.ge.s32.totalorder %s418, 1
                  %s423 = sphi %s260, %s260
                  %s424 = sphi %s255, %s255
                $region76: #{_lambda_.14} parent=65 // loop_header_branch
                  %421 = sbr.rel (%p419) target = $region80
                $region77: #{_lambda_.14} parent=65 // loop_body
                  %v425 = vld [vmem:[%s423] sm:%s416]
                  %426 = vst [vmem:[%s424] sm:%s416] %v425
                  %v427 = vld [vmem:[%s423 + $0x8] sm:%s416]
                  %428 = vst [vmem:[%s424 + $0x4] sm:%s416] %v427
                  %v429 = vld [vmem:[%s423 + $0x10] sm:%s416]
                  %430 = vst [vmem:[%s424 + $0x8] sm:%s416] %v429
                  %v431 = vld [vmem:[%s423 + $0x18] sm:%s416]
                  %432 = vst [vmem:[%s424 + $0xc] sm:%s416] %v431
                  %v433 = vld [vmem:[%s423 + $0x20] sm:%s416]
                  %434 = vst [vmem:[%s424 + $0x10] sm:%s416] %v433
                  %v435 = vld [vmem:[%s423 + $0x28] sm:%s416]
                  %436 = vst [vmem:[%s424 + $0x14] sm:%s416] %v435
                  %v437 = vld [vmem:[%s423 + $0x30] sm:%s416]
                  %438 = vst [vmem:[%s424 + $0x18] sm:%s416] %v437
                  %v439 = vld [vmem:[%s423 + $0x38] sm:%s416]
                  %440 = vst [vmem:[%s424 + $0x1c] sm:%s416] %v439
                  %v441 = vld [vmem:[%s423 + $0x40] sm:%s416]
                  %442 = vst [vmem:[%s424 + $0x20] sm:%s416] %v441
                  %v443 = vld [vmem:[%s423 + $0x48] sm:%s416]
                  %444 = vst [vmem:[%s424 + $0x24] sm:%s416] %v443
                  %v445 = vld [vmem:[%s423 + $0x50] sm:%s416]
                  %446 = vst [vmem:[%s424 + $0x28] sm:%s416] %v445
                  %v447 = vld [vmem:[%s423 + $0x58] sm:%s416]
                  %448 = vst [vmem:[%s424 + $0x2c] sm:%s416] %v447
                  %v449 = vld [vmem:[%s423 + $0x60] sm:%s416]
                  %450 = vst [vmem:[%s424 + $0x30] sm:%s416] %v449
                  %v451 = vld [vmem:[%s423 + $0x68] sm:%s416]
                  %452 = vst [vmem:[%s424 + $0x34] sm:%s416] %v451
                  %v453 = vld [vmem:[%s423 + $0x70] sm:%s416]
                  %454 = vst [vmem:[%s424 + $0x38] sm:%s416] %v453
                  %v455 = vld [vmem:[%s423 + $0x78] sm:%s416]
                  %456 = vst [vmem:[%s424 + $0x3c] sm:%s416] %v455
                  %v457 = vld [vmem:[%s423 + $0x80] sm:%s416]
                  %458 = vst [vmem:[%s424 + $0x40] sm:%s416] %v457
                  %v459 = vld [vmem:[%s423 + $0x88] sm:%s416]
                  %460 = vst [vmem:[%s424 + $0x44] sm:%s416] %v459
                  %v461 = vld [vmem:[%s423 + $0x90] sm:%s416]
                  %462 = vst [vmem:[%s424 + $0x48] sm:%s416] %v461
                  %v463 = vld [vmem:[%s423 + $0x98] sm:%s416]
                  %464 = vst [vmem:[%s424 + $0x4c] sm:%s416] %v463
                  %v465 = vld [vmem:[%s423 + $0xa0] sm:%s416]
                  %466 = vst [vmem:[%s424 + $0x50] sm:%s416] %v465
                  %v467 = vld [vmem:[%s423 + $0xa8] sm:%s416]
                  %468 = vst [vmem:[%s424 + $0x54] sm:%s416] %v467
                  %v469 = vld [vmem:[%s423 + $0xb0] sm:%s416]
                  %470 = vst [vmem:[%s424 + $0x58] sm:%s416] %v469
                  %v471 = vld [vmem:[%s423 + $0xb8] sm:%s416]
                  %472 = vst [vmem:[%s424 + $0x5c] sm:%s416] %v471
                  %v473 = vld [vmem:[%s423 + $0xc0] sm:%s416]
                  %474 = vst [vmem:[%s424 + $0x60] sm:%s416] %v473
                  %v475 = vld [vmem:[%s423 + $0xc8] sm:%s416]
                  %476 = vst [vmem:[%s424 + $0x64] sm:%s416] %v475
                  %v477 = vld [vmem:[%s423 + $0xd0] sm:%s416]
                  %478 = vst [vmem:[%s424 + $0x68] sm:%s416] %v477
                  %v479 = vld [vmem:[%s423 + $0xd8] sm:%s416]
                  %480 = vst [vmem:[%s424 + $0x6c] sm:%s416] %v479
                  %v481 = vld [vmem:[%s423 + $0xe0] sm:%s416]
                  %482 = vst [vmem:[%s424 + $0x70] sm:%s416] %v481
                  %v483 = vld [vmem:[%s423 + $0xe8] sm:%s416]
                  %484 = vst [vmem:[%s424 + $0x74] sm:%s416] %v483
                  %v485 = vld [vmem:[%s423 + $0xf0] sm:%s416]
                  %486 = vst [vmem:[%s424 + $0x78] sm:%s416] %v485
                  %v487 = vld [vmem:[%s423 + $0xf8] sm:%s416]
                  %488 = vst [vmem:[%s424 + $0x7c] sm:%s416] %v487
                  %v489 = vld [vmem:[%s423 + $0x100] sm:%s416]
                  %490 = vst [vmem:[%s424 + $0x80] sm:%s416] %v489
                  %v491 = vld [vmem:[%s423 + $0x108] sm:%s416]
                  %492 = vst [vmem:[%s424 + $0x84] sm:%s416] %v491
                  %v493 = vld [vmem:[%s423 + $0x110] sm:%s416]
                  %494 = vst [vmem:[%s424 + $0x88] sm:%s416] %v493
                  %v495 = vld [vmem:[%s423 + $0x118] sm:%s416]
                  %496 = vst [vmem:[%s424 + $0x8c] sm:%s416] %v495
                  %v497 = vld [vmem:[%s423 + $0x120] sm:%s416]
                  %498 = vst [vmem:[%s424 + $0x90] sm:%s416] %v497
                  %v499 = vld [vmem:[%s423 + $0x128] sm:%s416]
                  %500 = vst [vmem:[%s424 + $0x94] sm:%s416] %v499
                  %v501 = vld [vmem:[%s423 + $0x130] sm:%s416]
                  %502 = vst [vmem:[%s424 + $0x98] sm:%s416] %v501
                  %v503 = vld [vmem:[%s423 + $0x138] sm:%s416]
                  %504 = vst [vmem:[%s424 + $0x9c] sm:%s416] %v503
                  %v505 = vld [vmem:[%s423 + $0x140] sm:%s416]
                  %506 = vst [vmem:[%s424 + $0xa0] sm:%s416] %v505
                  %v507 = vld [vmem:[%s423 + $0x148] sm:%s416]
                  %508 = vst [vmem:[%s424 + $0xa4] sm:%s416] %v507
                  %v509 = vld [vmem:[%s423 + $0x150] sm:%s416]
                  %510 = vst [vmem:[%s424 + $0xa8] sm:%s416] %v509
                  %v511 = vld [vmem:[%s423 + $0x158] sm:%s416]
                  %512 = vst [vmem:[%s424 + $0xac] sm:%s416] %v511
                  %v513 = vld [vmem:[%s423 + $0x160] sm:%s416]
                  %514 = vst [vmem:[%s424 + $0xb0] sm:%s416] %v513
                  %v515 = vld [vmem:[%s423 + $0x168] sm:%s416]
                  %516 = vst [vmem:[%s424 + $0xb4] sm:%s416] %v515
                  %v517 = vld [vmem:[%s423 + $0x170] sm:%s416]
                  %518 = vst [vmem:[%s424 + $0xb8] sm:%s416] %v517
                  %v519 = vld [vmem:[%s423 + $0x178] sm:%s416]
                  %520 = vst [vmem:[%s424 + $0xbc] sm:%s416] %v519
                  %v521 = vld [vmem:[%s423 + $0x180] sm:%s416]
                  %522 = vst [vmem:[%s424 + $0xc0] sm:%s416] %v521
                  %v523 = vld [vmem:[%s423 + $0x188] sm:%s416]
                  %524 = vst [vmem:[%s424 + $0xc4] sm:%s416] %v523
                  %v525 = vld [vmem:[%s423 + $0x190] sm:%s416]
                  %526 = vst [vmem:[%s424 + $0xc8] sm:%s416] %v525
                  %v527 = vld [vmem:[%s423 + $0x198] sm:%s416]
                  %528 = vst [vmem:[%s424 + $0xcc] sm:%s416] %v527
                  %v529 = vld [vmem:[%s423 + $0x1a0] sm:%s416]
                  %530 = vst [vmem:[%s424 + $0xd0] sm:%s416] %v529
                  %v531 = vld [vmem:[%s423 + $0x1a8] sm:%s416]
                  %532 = vst [vmem:[%s424 + $0xd4] sm:%s416] %v531
                  %v533 = vld [vmem:[%s423 + $0x1b0] sm:%s416]
                  %534 = vst [vmem:[%s424 + $0xd8] sm:%s416] %v533
                  %v535 = vld [vmem:[%s423 + $0x1b8] sm:%s416]
                  %536 = vst [vmem:[%s424 + $0xdc] sm:%s416] %v535
                  %v537 = vld [vmem:[%s423 + $0x1c0] sm:%s416]
                  %538 = vst [vmem:[%s424 + $0xe0] sm:%s416] %v537
                  %v539 = vld [vmem:[%s423 + $0x1c8] sm:%s416]
                  %540 = vst [vmem:[%s424 + $0xe4] sm:%s416] %v539
                  %v541 = vld [vmem:[%s423 + $0x1d0] sm:%s416]
                  %542 = vst [vmem:[%s424 + $0xe8] sm:%s416] %v541
                  %v543 = vld [vmem:[%s423 + $0x1d8] sm:%s416]
                  %544 = vst [vmem:[%s424 + $0xec] sm:%s416] %v543
                  %v545 = vld [vmem:[%s423 + $0x1e0] sm:%s416]
                  %546 = vst [vmem:[%s424 + $0xf0] sm:%s416] %v545
                  %v547 = vld [vmem:[%s423 + $0x1e8] sm:%s416]
                  %548 = vst [vmem:[%s424 + $0xf4] sm:%s416] %v547
                  %v549 = vld [vmem:[%s423 + $0x1f0] sm:%s416]
                  %550 = vst [vmem:[%s424 + $0xf8] sm:%s416] %v549
                  %v551 = vld [vmem:[%s423 + $0x1f8] sm:%s416]
                  %552 = vst [vmem:[%s424 + $0xfc] sm:%s416] %v551
                $region78: #{_lambda_.14} parent=65 // loop_footer
                  %s422 = sadd.s32 1, %s418
                $region79: #{_lambda_.14} parent=65 // loop_footer_branch
                  %417 = sbr.rel target = $region75
                $region80: #{_lambda_.14} parent=65 // loop_exit
                  _
              $region66: #{_lambda_.14} parent=50 // pred_fallthru
                _
            $region51: #{_lambda_.14} parent=46 // pred_fallthru
              _
            // Predicated region
            $region52: #{_lambda_.14} parent=46 // pred_check
              _
            $region53: #{_lambda_.14} parent=46 // pred_check_branch
              %266 = sbr.rel (0) target = $region55
            $region54: #{_lambda_.14} parent=46 // pred_region
              %s268 = ssub.s32 16, 1
              loop: start=0, step=1, limit=1
              $region56: #{_lambda_.14} parent=54 // loop_pre_header
                _
              $region57: #{_lambda_.14} parent=54 // loop_header
                %s270 = sphi 0, %s274
                %p271 = scmp.ge.s32.totalorder %s270, 1
                %s275 = sphi %s260, %s260
                %s276 = sphi %s255, %s255
              $region58: #{_lambda_.14} parent=54 // loop_header_branch
                %273 = sbr.rel (%p271) target = $region62
              $region59: #{_lambda_.14} parent=54 // loop_body
                %v277 = vld [vmem:[%s275] sm:%s268]
                %278 = vst [vmem:[%s276] sm:%s268] %v277
                %v279 = vld [vmem:[%s275 + $0x8] sm:%s268]
                %280 = vst [vmem:[%s276 + $0x4] sm:%s268] %v279
                %v281 = vld [vmem:[%s275 + $0x10] sm:%s268]
                %282 = vst [vmem:[%s276 + $0x8] sm:%s268] %v281
                %v283 = vld [vmem:[%s275 + $0x18] sm:%s268]
                %284 = vst [vmem:[%s276 + $0xc] sm:%s268] %v283
                %v285 = vld [vmem:[%s275 + $0x20] sm:%s268]
                %286 = vst [vmem:[%s276 + $0x10] sm:%s268] %v285
                %v287 = vld [vmem:[%s275 + $0x28] sm:%s268]
                %288 = vst [vmem:[%s276 + $0x14] sm:%s268] %v287
                %v289 = vld [vmem:[%s275 + $0x30] sm:%s268]
                %290 = vst [vmem:[%s276 + $0x18] sm:%s268] %v289
                %v291 = vld [vmem:[%s275 + $0x38] sm:%s268]
                %292 = vst [vmem:[%s276 + $0x1c] sm:%s268] %v291
                %v293 = vld [vmem:[%s275 + $0x40] sm:%s268]
                %294 = vst [vmem:[%s276 + $0x20] sm:%s268] %v293
                %v295 = vld [vmem:[%s275 + $0x48] sm:%s268]
                %296 = vst [vmem:[%s276 + $0x24] sm:%s268] %v295
                %v297 = vld [vmem:[%s275 + $0x50] sm:%s268]
                %298 = vst [vmem:[%s276 + $0x28] sm:%s268] %v297
                %v299 = vld [vmem:[%s275 + $0x58] sm:%s268]
                %300 = vst [vmem:[%s276 + $0x2c] sm:%s268] %v299
                %v301 = vld [vmem:[%s275 + $0x60] sm:%s268]
                %302 = vst [vmem:[%s276 + $0x30] sm:%s268] %v301
                %v303 = vld [vmem:[%s275 + $0x68] sm:%s268]
                %304 = vst [vmem:[%s276 + $0x34] sm:%s268] %v303
                %v305 = vld [vmem:[%s275 + $0x70] sm:%s268]
                %306 = vst [vmem:[%s276 + $0x38] sm:%s268] %v305
                %v307 = vld [vmem:[%s275 + $0x78] sm:%s268]
                %308 = vst [vmem:[%s276 + $0x3c] sm:%s268] %v307
                %v309 = vld [vmem:[%s275 + $0x80] sm:%s268]
                %310 = vst [vmem:[%s276 + $0x40] sm:%s268] %v309
                %v311 = vld [vmem:[%s275 + $0x88] sm:%s268]
                %312 = vst [vmem:[%s276 + $0x44] sm:%s268] %v311
                %v313 = vld [vmem:[%s275 + $0x90] sm:%s268]
                %314 = vst [vmem:[%s276 + $0x48] sm:%s268] %v313
                %v315 = vld [vmem:[%s275 + $0x98] sm:%s268]
                %316 = vst [vmem:[%s276 + $0x4c] sm:%s268] %v315
                %v317 = vld [vmem:[%s275 + $0xa0] sm:%s268]
                %318 = vst [vmem:[%s276 + $0x50] sm:%s268] %v317
                %v319 = vld [vmem:[%s275 + $0xa8] sm:%s268]
                %320 = vst [vmem:[%s276 + $0x54] sm:%s268] %v319
                %v321 = vld [vmem:[%s275 + $0xb0] sm:%s268]
                %322 = vst [vmem:[%s276 + $0x58] sm:%s268] %v321
                %v323 = vld [vmem:[%s275 + $0xb8] sm:%s268]
                %324 = vst [vmem:[%s276 + $0x5c] sm:%s268] %v323
                %v325 = vld [vmem:[%s275 + $0xc0] sm:%s268]
                %326 = vst [vmem:[%s276 + $0x60] sm:%s268] %v325
                %v327 = vld [vmem:[%s275 + $0xc8] sm:%s268]
                %328 = vst [vmem:[%s276 + $0x64] sm:%s268] %v327
                %v329 = vld [vmem:[%s275 + $0xd0] sm:%s268]
                %330 = vst [vmem:[%s276 + $0x68] sm:%s268] %v329
                %v331 = vld [vmem:[%s275 + $0xd8] sm:%s268]
                %332 = vst [vmem:[%s276 + $0x6c] sm:%s268] %v331
                %v333 = vld [vmem:[%s275 + $0xe0] sm:%s268]
                %334 = vst [vmem:[%s276 + $0x70] sm:%s268] %v333
                %v335 = vld [vmem:[%s275 + $0xe8] sm:%s268]
                %336 = vst [vmem:[%s276 + $0x74] sm:%s268] %v335
                %v337 = vld [vmem:[%s275 + $0xf0] sm:%s268]
                %338 = vst [vmem:[%s276 + $0x78] sm:%s268] %v337
                %v339 = vld [vmem:[%s275 + $0xf8] sm:%s268]
                %340 = vst [vmem:[%s276 + $0x7c] sm:%s268] %v339
                %v341 = vld [vmem:[%s275 + $0x100] sm:%s268]
                %342 = vst [vmem:[%s276 + $0x80] sm:%s268] %v341
                %v343 = vld [vmem:[%s275 + $0x108] sm:%s268]
                %344 = vst [vmem:[%s276 + $0x84] sm:%s268] %v343
                %v345 = vld [vmem:[%s275 + $0x110] sm:%s268]
                %346 = vst [vmem:[%s276 + $0x88] sm:%s268] %v345
                %v347 = vld [vmem:[%s275 + $0x118] sm:%s268]
                %348 = vst [vmem:[%s276 + $0x8c] sm:%s268] %v347
                %v349 = vld [vmem:[%s275 + $0x120] sm:%s268]
                %350 = vst [vmem:[%s276 + $0x90] sm:%s268] %v349
                %v351 = vld [vmem:[%s275 + $0x128] sm:%s268]
                %352 = vst [vmem:[%s276 + $0x94] sm:%s268] %v351
                %v353 = vld [vmem:[%s275 + $0x130] sm:%s268]
                %354 = vst [vmem:[%s276 + $0x98] sm:%s268] %v353
                %v355 = vld [vmem:[%s275 + $0x138] sm:%s268]
                %356 = vst [vmem:[%s276 + $0x9c] sm:%s268] %v355
                %v357 = vld [vmem:[%s275 + $0x140] sm:%s268]
                %358 = vst [vmem:[%s276 + $0xa0] sm:%s268] %v357
                %v359 = vld [vmem:[%s275 + $0x148] sm:%s268]
                %360 = vst [vmem:[%s276 + $0xa4] sm:%s268] %v359
                %v361 = vld [vmem:[%s275 + $0x150] sm:%s268]
                %362 = vst [vmem:[%s276 + $0xa8] sm:%s268] %v361
                %v363 = vld [vmem:[%s275 + $0x158] sm:%s268]
                %364 = vst [vmem:[%s276 + $0xac] sm:%s268] %v363
                %v365 = vld [vmem:[%s275 + $0x160] sm:%s268]
                %366 = vst [vmem:[%s276 + $0xb0] sm:%s268] %v365
                %v367 = vld [vmem:[%s275 + $0x168] sm:%s268]
                %368 = vst [vmem:[%s276 + $0xb4] sm:%s268] %v367
                %v369 = vld [vmem:[%s275 + $0x170] sm:%s268]
                %370 = vst [vmem:[%s276 + $0xb8] sm:%s268] %v369
                %v371 = vld [vmem:[%s275 + $0x178] sm:%s268]
                %372 = vst [vmem:[%s276 + $0xbc] sm:%s268] %v371
                %v373 = vld [vmem:[%s275 + $0x180] sm:%s268]
                %374 = vst [vmem:[%s276 + $0xc0] sm:%s268] %v373
                %v375 = vld [vmem:[%s275 + $0x188] sm:%s268]
                %376 = vst [vmem:[%s276 + $0xc4] sm:%s268] %v375
                %v377 = vld [vmem:[%s275 + $0x190] sm:%s268]
                %378 = vst [vmem:[%s276 + $0xc8] sm:%s268] %v377
                %v379 = vld [vmem:[%s275 + $0x198] sm:%s268]
                %380 = vst [vmem:[%s276 + $0xcc] sm:%s268] %v379
                %v381 = vld [vmem:[%s275 + $0x1a0] sm:%s268]
                %382 = vst [vmem:[%s276 + $0xd0] sm:%s268] %v381
                %v383 = vld [vmem:[%s275 + $0x1a8] sm:%s268]
                %384 = vst [vmem:[%s276 + $0xd4] sm:%s268] %v383
                %v385 = vld [vmem:[%s275 + $0x1b0] sm:%s268]
                %386 = vst [vmem:[%s276 + $0xd8] sm:%s268] %v385
                %v387 = vld [vmem:[%s275 + $0x1b8] sm:%s268]
                %388 = vst [vmem:[%s276 + $0xdc] sm:%s268] %v387
                %v389 = vld [vmem:[%s275 + $0x1c0] sm:%s268]
                %390 = vst [vmem:[%s276 + $0xe0] sm:%s268] %v389
                %v391 = vld [vmem:[%s275 + $0x1c8] sm:%s268]
                %392 = vst [vmem:[%s276 + $0xe4] sm:%s268] %v391
                %v393 = vld [vmem:[%s275 + $0x1d0] sm:%s268]
                %394 = vst [vmem:[%s276 + $0xe8] sm:%s268] %v393
                %v395 = vld [vmem:[%s275 + $0x1d8] sm:%s268]
                %396 = vst [vmem:[%s276 + $0xec] sm:%s268] %v395
                %v397 = vld [vmem:[%s275 + $0x1e0] sm:%s268]
                %398 = vst [vmem:[%s276 + $0xf0] sm:%s268] %v397
                %v399 = vld [vmem:[%s275 + $0x1e8] sm:%s268]
                %400 = vst [vmem:[%s276 + $0xf4] sm:%s268] %v399
                %v401 = vld [vmem:[%s275 + $0x1f0] sm:%s268]
                %402 = vst [vmem:[%s276 + $0xf8] sm:%s268] %v401
                %v403 = vld [vmem:[%s275 + $0x1f8] sm:%s268]
                %404 = vst [vmem:[%s276 + $0xfc] sm:%s268] %v403
              $region60: #{_lambda_.14} parent=54 // loop_footer
                %s274 = sadd.s32 1, %s270
              $region61: #{_lambda_.14} parent=54 // loop_footer_branch
                %269 = sbr.rel target = $region57
              $region62: #{_lambda_.14} parent=54 // loop_exit
                _
            $region55: #{_lambda_.14} parent=46 // pred_fallthru
              _
          $region47: #{_lambda_.14} parent=42 // pred_fallthru
            _
          %553 = vnop
        $region43: #{_lambda_.14} parent=15 // pred_fallthru
          _
        // Predicated region
        $region81: #{_lambda_.14} parent=15 // pred_check
          %p554 = pneg %p104
        $region82: #{_lambda_.14} parent=15 // pred_check_branch
          %556 = sbr.rel (%p554) target = $region84
        $region83: #{_lambda_.14} parent=15 // pred_region
          %p557 = scmp.lt.s32.totalorder %s17, 1
          %s558 = scalar_select %p557, %s17, 1
          %s559 = scalar_lea.vmem %s2, %s558
        $region84: #{_lambda_.14} parent=15 // pred_fallthru
          _
      $region16: #{_lambda_.14} parent=5 // pred_fallthru
        _
      %p560 = scmp.le.s32.totalorder 1, %s9
      %p561 = scmp.lt.s32.totalorder %s9, 11
      %p562 = pnand %p560, %p561
      %p563 = pneg %p562
      // Predicated region
      $region85: #{_lambda_.14} parent=5 // pred_check
        _
      $region86: #{_lambda_.14} parent=5 // pred_check_branch
        %565 = sbr.rel (%p562) target = $region88
      $region87: #{_lambda_.14} parent=5 // pred_region
        %s566 = ssub.s32 %s9, 1
        %s567 = sand.u32 %s43, 1
        %s568 = sand.u32 %s43, 1
        %s569 = smul.addr %s568, 256
        %s570 = scalar_lea.vmem [#allocation3], %s569
        // Predicated region
        $region89: #{_lambda_.14} parent=87 // pred_check
          %p571 = pneg %p56
        $region90: #{_lambda_.14} parent=87 // pred_check_branch
          %573 = sbr.rel (%p571) target = $region92
        $region91: #{_lambda_.14} parent=87 // pred_region
          _
        $region92: #{_lambda_.14} parent=87 // pred_fallthru
          _
        %s574 = sand.u32 %s71, 1
        %s575 = sand.u32 %s71, 1
        %s576 = smul.addr %s575, 256
        %s577 = scalar_lea.vmem [#allocation4], %s576
        // Predicated region
        $region93: #{_lambda_.14} parent=87 // pred_check
          %p578 = pneg %p84
        $region94: #{_lambda_.14} parent=87 // pred_check_branch
          %580 = sbr.rel (%p578) target = $region96
        $region95: #{_lambda_.14} parent=87 // pred_region
          _
        $region96: #{_lambda_.14} parent=87 // pred_fallthru
          _
        %s581 = sand.u32 %s43, 1
        %s582 = sand.u32 %s43, 1
        %s583 = smul.addr %s582, 256
        %s584 = scalar_lea.vmem [#allocation3], %s583
        %p585 = pneg %p56
        %p586 = pneg %p53
        %s587 = sand.u32 %s71, 1
        %s588 = sand.u32 %s71, 1
        %s589 = smul.addr %s588, 256
        %s590 = scalar_lea.vmem [#allocation4], %s589
        %p591 = pneg %p84
        %p592 = pneg %p81
        %p593 = scmp.lt.s32.totalorder %s20, 1
        %s594 = scalar_select %p593, %s20, 1
        %s595 = scalar_lea.vmem %s2, %s594
        %p596 = pneg %p110
        %p597 = pneg %p107
        %p598 = pneg %p138
        %p599 = pneg %p135
        %s600 = sand.u32 %s125, 1
        %s601 = sand.u32 %s125, 1
        %s602 = smul.addr %s601, 64
        %s603 = scalar_lea.vmem [#allocation5], %s602
        %s604 = smul.u32 16, %s19
        %s605 = smul.u32 4, %s21
        %s606 = smul.u32 64, %s21
        %p607 = scmp.lt.s32.totalorder %s20, 1
        %s608 = scalar_select %p607, %s20, 1
        %s609 = scalar_lea.vmem %s2, %s608
        %s610 = smul.u32 16, %s19
        %p611 = scmp.eq.s32.totalorder %s21, 0
        // Predicated region
        $region97: #{_lambda_.14} parent=87 // pred_check
          %p612 = pneg %p611
        $region98: #{_lambda_.14} parent=87 // pred_check_branch
          %614 = sbr.rel (%p612) target = $region100
        $region99: #{_lambda_.14} parent=87 // pred_region
          %615 = vst [vmem:[#allocation2] sm:$0xff] 0.0
          %616 = vst [vmem:[#allocation2 + $0x8] sm:$0xff] 0.0
          %617 = vst [vmem:[#allocation2 + $0x10] sm:$0xff] 0.0
          %618 = vst [vmem:[#allocation2 + $0x18] sm:$0xff] 0.0
          %619 = vst [vmem:[#allocation2 + $0x20] sm:$0xff] 0.0
          %620 = vst [vmem:[#allocation2 + $0x28] sm:$0xff] 0.0
          %621 = vst [vmem:[#allocation2 + $0x30] sm:$0xff] 0.0
          %622 = vst [vmem:[#allocation2 + $0x38] sm:$0xff] 0.0
          %623 = vst [vmem:[#allocation2 + $0x40] sm:$0xff] 0.0
          %624 = vst [vmem:[#allocation2 + $0x48] sm:$0xff] 0.0
          %625 = vst [vmem:[#allocation2 + $0x50] sm:$0xff] 0.0
          %626 = vst [vmem:[#allocation2 + $0x58] sm:$0xff] 0.0
          %627 = vst [vmem:[#allocation2 + $0x60] sm:$0xff] 0.0
          %628 = vst [vmem:[#allocation2 + $0x68] sm:$0xff] 0.0
          %629 = vst [vmem:[#allocation2 + $0x70] sm:$0xff] 0.0
          %630 = vst [vmem:[#allocation2 + $0x78] sm:$0xff] 0.0
        $region100: #{_lambda_.14} parent=87 // pred_fallthru
          _
        %v631 = vld [vmem:[#allocation2] sm:$0xff]
        %v632 = vld [vmem:[#allocation2 + $0x8] sm:$0xff]
        %v633 = vld [vmem:[#allocation2 + $0x10] sm:$0xff]
        %v634 = vld [vmem:[#allocation2 + $0x18] sm:$0xff]
        %v635 = vld [vmem:[#allocation2 + $0x20] sm:$0xff]
        %v636 = vld [vmem:[#allocation2 + $0x28] sm:$0xff]
        %v637 = vld [vmem:[#allocation2 + $0x30] sm:$0xff]
        %v638 = vld [vmem:[#allocation2 + $0x38] sm:$0xff]
        %v639 = vld [vmem:[#allocation2 + $0x40] sm:$0xff]
        %v640 = vld [vmem:[#allocation2 + $0x48] sm:$0xff]
        %v641 = vld [vmem:[#allocation2 + $0x50] sm:$0xff]
        %v642 = vld [vmem:[#allocation2 + $0x58] sm:$0xff]
        %v643 = vld [vmem:[#allocation2 + $0x60] sm:$0xff]
        %v644 = vld [vmem:[#allocation2 + $0x68] sm:$0xff]
        %v645 = vld [vmem:[#allocation2 + $0x70] sm:$0xff]
        %v646 = vld [vmem:[#allocation2 + $0x78] sm:$0xff]
        %v647 = vld [vmem:[%s570] sm:$0xff]
        %v648 = vld [vmem:[%s570 + $0x8] sm:$0xff]
        %v649 = vld [vmem:[%s570 + $0x10] sm:$0xff]
        %v650 = vld [vmem:[%s570 + $0x18] sm:$0xff]
        %v651 = vld [vmem:[%s570 + $0x20] sm:$0xff]
        %v652 = vld [vmem:[%s570 + $0x28] sm:$0xff]
        %v653 = vld [vmem:[%s570 + $0x30] sm:$0xff]
        %v654 = vld [vmem:[%s570 + $0x38] sm:$0xff]
        %v655 = vld [vmem:[%s570 + $0x40] sm:$0xff]
        %v656 = vld [vmem:[%s570 + $0x48] sm:$0xff]
        %v657 = vld [vmem:[%s570 + $0x50] sm:$0xff]
        %v658 = vld [vmem:[%s570 + $0x58] sm:$0xff]
        %v659 = vld [vmem:[%s570 + $0x60] sm:$0xff]
        %v660 = vld [vmem:[%s570 + $0x68] sm:$0xff]
        %v661 = vld [vmem:[%s570 + $0x70] sm:$0xff]
        %v662 = vld [vmem:[%s570 + $0x78] sm:$0xff]
        %v663 = vld [vmem:[%s570 + $0x80] sm:$0xff]
        %v664 = vld [vmem:[%s570 + $0x88] sm:$0xff]
        %v665 = vld [vmem:[%s570 + $0x90] sm:$0xff]
        %v666 = vld [vmem:[%s570 + $0x98] sm:$0xff]
        %v667 = vld [vmem:[%s570 + $0xa0] sm:$0xff]
        %v668 = vld [vmem:[%s570 + $0xa8] sm:$0xff]
        %v669 = vld [vmem:[%s570 + $0xb0] sm:$0xff]
        %v670 = vld [vmem:[%s570 + $0xb8] sm:$0xff]
        %v671 = vld [vmem:[%s570 + $0xc0] sm:$0xff]
        %v672 = vld [vmem:[%s570 + $0xc8] sm:$0xff]
        %v673 = vld [vmem:[%s570 + $0xd0] sm:$0xff]
        %v674 = vld [vmem:[%s570 + $0xd8] sm:$0xff]
        %v675 = vld [vmem:[%s570 + $0xe0] sm:$0xff]
        %v676 = vld [vmem:[%s570 + $0xe8] sm:$0xff]
        %v677 = vld [vmem:[%s570 + $0xf0] sm:$0xff]
        %v678 = vld [vmem:[%s570 + $0xf8] sm:$0xff]
        %v679 = vld [vmem:[%s577] sm:$0xf]
        %v680 = vld [vmem:[%s577 + $0x4] sm:$0xf]
        %v681 = vld [vmem:[%s577 + $0x8] sm:$0xf]
        %v682 = vld [vmem:[%s577 + $0xc] sm:$0xf]
        %v683 = vld [vmem:[%s577 + $0x10] sm:$0xf]
        %v684 = vld [vmem:[%s577 + $0x14] sm:$0xf]
        %v685 = vld [vmem:[%s577 + $0x18] sm:$0xf]
        %v686 = vld [vmem:[%s577 + $0x1c] sm:$0xf]
        %v687 = vld [vmem:[%s577 + $0x20] sm:$0xf]
        %v688 = vld [vmem:[%s577 + $0x24] sm:$0xf]
        %v689 = vld [vmem:[%s577 + $0x28] sm:$0xf]
        %v690 = vld [vmem:[%s577 + $0x2c] sm:$0xf]
        %v691 = vld [vmem:[%s577 + $0x30] sm:$0xf]
        %v692 = vld [vmem:[%s577 + $0x34] sm:$0xf]
        %v693 = vld [vmem:[%s577 + $0x38] sm:$0xf]
        %v694 = vld [vmem:[%s577 + $0x3c] sm:$0xf]
        %v695 = vld [vmem:[%s577 + $0x40] sm:$0xf]
        %v696 = vld [vmem:[%s577 + $0x44] sm:$0xf]
        %v697 = vld [vmem:[%s577 + $0x48] sm:$0xf]
        %v698 = vld [vmem:[%s577 + $0x4c] sm:$0xf]
        %v699 = vld [vmem:[%s577 + $0x50] sm:$0xf]
        %v700 = vld [vmem:[%s577 + $0x54] sm:$0xf]
        %v701 = vld [vmem:[%s577 + $0x58] sm:$0xf]
        %v702 = vld [vmem:[%s577 + $0x5c] sm:$0xf]
        %v703 = vld [vmem:[%s577 + $0x60] sm:$0xf]
        %v704 = vld [vmem:[%s577 + $0x64] sm:$0xf]
        %v705 = vld [vmem:[%s577 + $0x68] sm:$0xf]
        %v706 = vld [vmem:[%s577 + $0x6c] sm:$0xf]
        %v707 = vld [vmem:[%s577 + $0x70] sm:$0xf]
        %v708 = vld [vmem:[%s577 + $0x74] sm:$0xf]
        %v709 = vld [vmem:[%s577 + $0x78] sm:$0xf]
        %v710 = vld [vmem:[%s577 + $0x7c] sm:$0xf]
        %v711 = vld [vmem:[%s577 + $0x80] sm:$0xf]
        %v712 = vld [vmem:[%s577 + $0x84] sm:$0xf]
        %v713 = vld [vmem:[%s577 + $0x88] sm:$0xf]
        %v714 = vld [vmem:[%s577 + $0x8c] sm:$0xf]
        %v715 = vld [vmem:[%s577 + $0x90] sm:$0xf]
        %v716 = vld [vmem:[%s577 + $0x94] sm:$0xf]
        %v717 = vld [vmem:[%s577 + $0x98] sm:$0xf]
        %v718 = vld [vmem:[%s577 + $0x9c] sm:$0xf]
        %v719 = vld [vmem:[%s577 + $0xa0] sm:$0xf]
        %v720 = vld [vmem:[%s577 + $0xa4] sm:$0xf]
        %v721 = vld [vmem:[%s577 + $0xa8] sm:$0xf]
        %v722 = vld [vmem:[%s577 + $0xac] sm:$0xf]
        %v723 = vld [vmem:[%s577 + $0xb0] sm:$0xf]
        %v724 = vld [vmem:[%s577 + $0xb4] sm:$0xf]
        %v725 = vld [vmem:[%s577 + $0xb8] sm:$0xf]
        %v726 = vld [vmem:[%s577 + $0xbc] sm:$0xf]
        %v727 = vld [vmem:[%s577 + $0xc0] sm:$0xf]
        %v728 = vld [vmem:[%s577 + $0xc4] sm:$0xf]
        %v729 = vld [vmem:[%s577 + $0xc8] sm:$0xf]
        %v730 = vld [vmem:[%s577 + $0xcc] sm:$0xf]
        %v731 = vld [vmem:[%s577 + $0xd0] sm:$0xf]
        %v732 = vld [vmem:[%s577 + $0xd4] sm:$0xf]
        %v733 = vld [vmem:[%s577 + $0xd8] sm:$0xf]
        %v734 = vld [vmem:[%s577 + $0xdc] sm:$0xf]
        %v735 = vld [vmem:[%s577 + $0xe0] sm:$0xf]
        %v736 = vld [vmem:[%s577 + $0xe4] sm:$0xf]
        %v737 = vld [vmem:[%s577 + $0xe8] sm:$0xf]
        %v738 = vld [vmem:[%s577 + $0xec] sm:$0xf]
        %v739 = vld [vmem:[%s577 + $0xf0] sm:$0xf]
        %v740 = vld [vmem:[%s577 + $0xf4] sm:$0xf]
        %v741 = vld [vmem:[%s577 + $0xf8] sm:$0xf]
        %v742 = vld [vmem:[%s577 + $0xfc] sm:$0xf]
        %v775 = vunpack.c.l.b16 %v647
        %v776 = vunpack.c.h.b16 %v647
        %v777 = vunpack.c.l.b16 %v648
        %v778 = vunpack.c.h.b16 %v648
        %v779 = vunpack.c.l.b16 %v649
        %v780 = vunpack.c.h.b16 %v649
        %v781 = vunpack.c.l.b16 %v650
        %v782 = vunpack.c.h.b16 %v650
        %v783 = vunpack.c.l.b16 %v651
        %v784 = vunpack.c.h.b16 %v651
        %v785 = vunpack.c.l.b16 %v652
        %v786 = vunpack.c.h.b16 %v652
        %v787 = vunpack.c.l.b16 %v653
        %v788 = vunpack.c.h.b16 %v653
        %v789 = vunpack.c.l.b16 %v654
        %v790 = vunpack.c.h.b16 %v654
        %v791 = vunpack.c.l.b16 %v655
        %v792 = vunpack.c.h.b16 %v655
        %v793 = vunpack.c.l.b16 %v656
        %v794 = vunpack.c.h.b16 %v656
        %v795 = vunpack.c.l.b16 %v657
        %v796 = vunpack.c.h.b16 %v657
        %v797 = vunpack.c.l.b16 %v658
        %v798 = vunpack.c.h.b16 %v658
        %v799 = vunpack.c.l.b16 %v659
        %v800 = vunpack.c.h.b16 %v659
        %v801 = vunpack.c.l.b16 %v660
        %v802 = vunpack.c.h.b16 %v660
        %v803 = vunpack.c.l.b16 %v661
        %v804 = vunpack.c.h.b16 %v661
        %v805 = vunpack.c.l.b16 %v662
        %v806 = vunpack.c.h.b16 %v662
        %v807 = vunpack.c.l.b16 %v663
        %v808 = vunpack.c.h.b16 %v663
        %v809 = vunpack.c.l.b16 %v664
        %v810 = vunpack.c.h.b16 %v664
        %v811 = vunpack.c.l.b16 %v665
        %v812 = vunpack.c.h.b16 %v665
        %v813 = vunpack.c.l.b16 %v666
        %v814 = vunpack.c.h.b16 %v666
        %v815 = vunpack.c.l.b16 %v667
        %v816 = vunpack.c.h.b16 %v667
        %v817 = vunpack.c.l.b16 %v668
        %v818 = vunpack.c.h.b16 %v668
        %v819 = vunpack.c.l.b16 %v669
        %v820 = vunpack.c.h.b16 %v669
        %v821 = vunpack.c.l.b16 %v670
        %v822 = vunpack.c.h.b16 %v670
        %v823 = vunpack.c.l.b16 %v671
        %v824 = vunpack.c.h.b16 %v671
        %v825 = vunpack.c.l.b16 %v672
        %v826 = vunpack.c.h.b16 %v672
        %v827 = vunpack.c.l.b16 %v673
        %v828 = vunpack.c.h.b16 %v673
        %v829 = vunpack.c.l.b16 %v674
        %v830 = vunpack.c.h.b16 %v674
        %v831 = vunpack.c.l.b16 %v675
        %v832 = vunpack.c.h.b16 %v675
        %v833 = vunpack.c.l.b16 %v676
        %v834 = vunpack.c.h.b16 %v676
        %v835 = vunpack.c.l.b16 %v677
        %v836 = vunpack.c.h.b16 %v677
        %v837 = vunpack.c.l.b16 %v678
        %v838 = vunpack.c.h.b16 %v678
        %v839 = vpack.c.b16 %v779, %v775
        %v840 = vpack.c.b16 %v780, %v776
        %v841 = vpack.c.b16 %v781, %v777
        %v842 = vpack.c.b16 %v782, %v778
        %v843 = vpack.c.b16 %v787, %v783
        %v844 = vpack.c.b16 %v788, %v784
        %v845 = vpack.c.b16 %v789, %v785
        %v846 = vpack.c.b16 %v790, %v786
        %v847 = vpack.c.b16 %v795, %v791
        %v848 = vpack.c.b16 %v796, %v792
        %v849 = vpack.c.b16 %v797, %v793
        %v850 = vpack.c.b16 %v798, %v794
        %v851 = vpack.c.b16 %v803, %v799
        %v852 = vpack.c.b16 %v804, %v800
        %v853 = vpack.c.b16 %v805, %v801
        %v854 = vpack.c.b16 %v806, %v802
        %v855 = vpack.c.b16 %v811, %v807
        %v856 = vpack.c.b16 %v812, %v808
        %v857 = vpack.c.b16 %v813, %v809
        %v858 = vpack.c.b16 %v814, %v810
        %v859 = vpack.c.b16 %v819, %v815
        %v860 = vpack.c.b16 %v820, %v816
        %v861 = vpack.c.b16 %v821, %v817
        %v862 = vpack.c.b16 %v822, %v818
        %v863 = vpack.c.b16 %v827, %v823
        %v864 = vpack.c.b16 %v828, %v824
        %v865 = vpack.c.b16 %v829, %v825
        %v866 = vpack.c.b16 %v830, %v826
        %v867 = vpack.c.b16 %v835, %v831
        %v868 = vpack.c.b16 %v836, %v832
        %v869 = vpack.c.b16 %v837, %v833
        %v870 = vpack.c.b16 %v838, %v834
        %v967 = vunpack.c.l.b16 %v679
        %v968 = vunpack.c.l.b16 %v680
        %v969 = vunpack.c.l.b16 %v681
        %v970 = vunpack.c.l.b16 %v682
        %v971 = vunpack.c.l.b16 %v683
        %v972 = vunpack.c.l.b16 %v684
        %v973 = vunpack.c.l.b16 %v685
        %v974 = vunpack.c.l.b16 %v686
        %v975 = vunpack.c.l.b16 %v687
        %v976 = vunpack.c.l.b16 %v688
        %v977 = vunpack.c.l.b16 %v689
        %v978 = vunpack.c.l.b16 %v690
        %v979 = vunpack.c.l.b16 %v691
        %v980 = vunpack.c.l.b16 %v692
        %v981 = vunpack.c.l.b16 %v693
        %v982 = vunpack.c.l.b16 %v694
        %v983 = vunpack.c.l.b16 %v695
        %v984 = vunpack.c.l.b16 %v696
        %v985 = vunpack.c.l.b16 %v697
        %v986 = vunpack.c.l.b16 %v698
        %v987 = vunpack.c.l.b16 %v699
        %v988 = vunpack.c.l.b16 %v700
        %v989 = vunpack.c.l.b16 %v701
        %v990 = vunpack.c.l.b16 %v702
        %v991 = vunpack.c.l.b16 %v703
        %v992 = vunpack.c.l.b16 %v704
        %v993 = vunpack.c.l.b16 %v705
        %v994 = vunpack.c.l.b16 %v706
        %v995 = vunpack.c.l.b16 %v707
        %v996 = vunpack.c.l.b16 %v708
        %v997 = vunpack.c.l.b16 %v709
        %v998 = vunpack.c.l.b16 %v710
        %v999 = vunpack.c.l.b16 %v711
        %v1000 = vunpack.c.l.b16 %v712
        %v1001 = vunpack.c.l.b16 %v713
        %v1002 = vunpack.c.l.b16 %v714
        %v1003 = vunpack.c.l.b16 %v715
        %v1004 = vunpack.c.l.b16 %v716
        %v1005 = vunpack.c.l.b16 %v717
        %v1006 = vunpack.c.l.b16 %v718
        %v1007 = vunpack.c.l.b16 %v719
        %v1008 = vunpack.c.l.b16 %v720
        %v1009 = vunpack.c.l.b16 %v721
        %v1010 = vunpack.c.l.b16 %v722
        %v1011 = vunpack.c.l.b16 %v723
        %v1012 = vunpack.c.l.b16 %v724
        %v1013 = vunpack.c.l.b16 %v725
        %v1014 = vunpack.c.l.b16 %v726
        %v1015 = vunpack.c.l.b16 %v727
        %v1016 = vunpack.c.l.b16 %v728
        %v1017 = vunpack.c.l.b16 %v729
        %v1018 = vunpack.c.l.b16 %v730
        %v1019 = vunpack.c.l.b16 %v731
        %v1020 = vunpack.c.l.b16 %v732
        %v1021 = vunpack.c.l.b16 %v733
        %v1022 = vunpack.c.l.b16 %v734
        %v1023 = vunpack.c.l.b16 %v735
        %v1024 = vunpack.c.l.b16 %v736
        %v1025 = vunpack.c.l.b16 %v737
        %v1026 = vunpack.c.l.b16 %v738
        %v1027 = vunpack.c.l.b16 %v739
        %v1028 = vunpack.c.l.b16 %v740
        %v1029 = vunpack.c.l.b16 %v741
        %v1030 = vunpack.c.l.b16 %v742
        %v1031 = vpack.c.b16 %v968, %v967
        %v1032 = vpack.c.b16 %v970, %v969
        %v1033 = vpack.c.b16 %v972, %v971
        %v1034 = vpack.c.b16 %v974, %v973
        %v1035 = vpack.c.b16 %v976, %v975
        %v1036 = vpack.c.b16 %v978, %v977
        %v1037 = vpack.c.b16 %v980, %v979
        %v1038 = vpack.c.b16 %v982, %v981
        %v1039 = vpack.c.b16 %v984, %v983
        %v1040 = vpack.c.b16 %v986, %v985
        %v1041 = vpack.c.b16 %v988, %v987
        %v1042 = vpack.c.b16 %v990, %v989
        %v1043 = vpack.c.b16 %v992, %v991
        %v1044 = vpack.c.b16 %v994, %v993
        %v1045 = vpack.c.b16 %v996, %v995
        %v1046 = vpack.c.b16 %v998, %v997
        %v1047 = vpack.c.b16 %v1000, %v999
        %v1048 = vpack.c.b16 %v1002, %v1001
        %v1049 = vpack.c.b16 %v1004, %v1003
        %v1050 = vpack.c.b16 %v1006, %v1005
        %v1051 = vpack.c.b16 %v1008, %v1007
        %v1052 = vpack.c.b16 %v1010, %v1009
        %v1053 = vpack.c.b16 %v1012, %v1011
        %v1054 = vpack.c.b16 %v1014, %v1013
        %v1055 = vpack.c.b16 %v1016, %v1015
        %v1056 = vpack.c.b16 %v1018, %v1017
        %v1057 = vpack.c.b16 %v1020, %v1019
        %v1058 = vpack.c.b16 %v1022, %v1021
        %v1059 = vpack.c.b16 %v1024, %v1023
        %v1060 = vpack.c.b16 %v1026, %v1025
        %v1061 = vpack.c.b16 %v1028, %v1027
        %v1062 = vpack.c.b16 %v1030, %v1029
        %1095 = vmatpush.bf16.msra.mxu0 %v1038
        %1096 = vmatpush.bf16.msra.mxu0 %v1037
        %1097 = vmatpush.bf16.msra.mxu0 %v1036
        %1098 = vmatpush.bf16.msra.mxu0 %v1035
        %1099 = vmatpush.bf16.msra.mxu0 %v1034
        %1100 = vmatpush.bf16.msra.mxu0 %v1033
        %1101 = vmatpush.bf16.msra.mxu0 %v1032
        %1102 = vmatpush.bf16.msra.mxu0 %v1031
        %1103 = vmatmul.bf16.gmra.mxu0 %v839
        %v1104 = vpop.f32.mrf.mxu0
        %v1105 = vadd.f32 0.0, %v1104
        %v1106 = vpop.f32.mrf.mxu0
        %v1107 = vadd.f32 0.0, %v1106
        %1108 = vmatmul.bf16.gmra.mxu0 %v843
        %v1109 = vpop.f32.mrf.mxu0
        %v1110 = vadd.f32 0.0, %v1109
        %v1111 = vpop.f32.mrf.mxu0
        %v1112 = vadd.f32 0.0, %v1111
        %1113 = vmatmul.bf16.gmra.mxu0 %v847
        %v1114 = vpop.f32.mrf.mxu0
        %v1115 = vadd.f32 0.0, %v1114
        %v1116 = vpop.f32.mrf.mxu0
        %v1117 = vadd.f32 0.0, %v1116
        %1118 = vmatmul.bf16.gmra.mxu0 %v851
        %v1119 = vpop.f32.mrf.mxu0
        %v1120 = vadd.f32 0.0, %v1119
        %v1121 = vpop.f32.mrf.mxu0
        %v1122 = vadd.f32 0.0, %v1121
        %1123 = vmatmul.bf16.gmra.mxu0 %v855
        %v1124 = vpop.f32.mrf.mxu0
        %v1125 = vadd.f32 0.0, %v1124
        %v1126 = vpop.f32.mrf.mxu0
        %v1127 = vadd.f32 0.0, %v1126
        %1128 = vmatmul.bf16.gmra.mxu0 %v859
        %v1129 = vpop.f32.mrf.mxu0
        %v1130 = vadd.f32 0.0, %v1129
        %v1131 = vpop.f32.mrf.mxu0
        %v1132 = vadd.f32 0.0, %v1131
        %1133 = vmatmul.bf16.gmra.mxu0 %v863
        %v1134 = vpop.f32.mrf.mxu0
        %v1135 = vadd.f32 0.0, %v1134
        %v1136 = vpop.f32.mrf.mxu0
        %v1137 = vadd.f32 0.0, %v1136
        %1138 = vmatmul.bf16.gmra.mxu0 %v867
        %v1139 = vpop.f32.mrf.mxu0
        %v1140 = vadd.f32 0.0, %v1139
        %v1141 = vpop.f32.mrf.mxu0
        %v1142 = vadd.f32 0.0, %v1141
        %1143 = vdwg.mxu0
        %1144 = vmatpush.bf16.msra.mxu0 %v1046
        %1145 = vmatpush.bf16.msra.mxu0 %v1045
        %1146 = vmatpush.bf16.msra.mxu0 %v1044
        %1147 = vmatpush.bf16.msra.mxu0 %v1043
        %1148 = vmatpush.bf16.msra.mxu0 %v1042
        %1149 = vmatpush.bf16.msra.mxu0 %v1041
        %1150 = vmatpush.bf16.msra.mxu0 %v1040
        %1151 = vmatpush.bf16.msra.mxu0 %v1039
        %1152 = vmatmul.bf16.gmra.mxu0 %v840
        %v1153 = vpop.f32.mrf.mxu0
        %v1154 = vadd.f32 %v1105, %v1153
        %v1155 = vpop.f32.mrf.mxu0
        %v1156 = vadd.f32 %v1107, %v1155
        %1157 = vmatmul.bf16.gmra.mxu0 %v844
        %v1158 = vpop.f32.mrf.mxu0
        %v1159 = vadd.f32 %v1110, %v1158
        %v1160 = vpop.f32.mrf.mxu0
        %v1161 = vadd.f32 %v1112, %v1160
        %1162 = vmatmul.bf16.gmra.mxu0 %v848
        %v1163 = vpop.f32.mrf.mxu0
        %v1164 = vadd.f32 %v1115, %v1163
        %v1165 = vpop.f32.mrf.mxu0
        %v1166 = vadd.f32 %v1117, %v1165
        %1167 = vmatmul.bf16.gmra.mxu0 %v852
        %v1168 = vpop.f32.mrf.mxu0
        %v1169 = vadd.f32 %v1120, %v1168
        %v1170 = vpop.f32.mrf.mxu0
        %v1171 = vadd.f32 %v1122, %v1170
        %1172 = vmatmul.bf16.gmra.mxu0 %v856
        %v1173 = vpop.f32.mrf.mxu0
        %v1174 = vadd.f32 %v1125, %v1173
        %v1175 = vpop.f32.mrf.mxu0
        %v1176 = vadd.f32 %v1127, %v1175
        %1177 = vmatmul.bf16.gmra.mxu0 %v860
        %v1178 = vpop.f32.mrf.mxu0
        %v1179 = vadd.f32 %v1130, %v1178
        %v1180 = vpop.f32.mrf.mxu0
        %v1181 = vadd.f32 %v1132, %v1180
        %1182 = vmatmul.bf16.gmra.mxu0 %v864
        %v1183 = vpop.f32.mrf.mxu0
        %v1184 = vadd.f32 %v1135, %v1183
        %v1185 = vpop.f32.mrf.mxu0
        %v1186 = vadd.f32 %v1137, %v1185
        %1187 = vmatmul.bf16.gmra.mxu0 %v868
        %v1188 = vpop.f32.mrf.mxu0
        %v1189 = vadd.f32 %v1140, %v1188
        %v1190 = vpop.f32.mrf.mxu0
        %v1191 = vadd.f32 %v1142, %v1190
        %1192 = vdwg.mxu0
        %1193 = vmatpush.bf16.msra.mxu0 %v1054
        %1194 = vmatpush.bf16.msra.mxu0 %v1053
        %1195 = vmatpush.bf16.msra.mxu0 %v1052
        %1196 = vmatpush.bf16.msra.mxu0 %v1051
        %1197 = vmatpush.bf16.msra.mxu0 %v1050
        %1198 = vmatpush.bf16.msra.mxu0 %v1049
        %1199 = vmatpush.bf16.msra.mxu0 %v1048
        %1200 = vmatpush.bf16.msra.mxu0 %v1047
        %1201 = vmatmul.bf16.gmra.mxu0 %v841
        %v1202 = vpop.f32.mrf.mxu0
        %v1203 = vadd.f32 %v1154, %v1202
        %v1204 = vpop.f32.mrf.mxu0
        %v1205 = vadd.f32 %v1156, %v1204
        %1206 = vmatmul.bf16.gmra.mxu0 %v845
        %v1207 = vpop.f32.mrf.mxu0
        %v1208 = vadd.f32 %v1159, %v1207
        %v1209 = vpop.f32.mrf.mxu0
        %v1210 = vadd.f32 %v1161, %v1209
        %1211 = vmatmul.bf16.gmra.mxu0 %v849
        %v1212 = vpop.f32.mrf.mxu0
        %v1213 = vadd.f32 %v1164, %v1212
        %v1214 = vpop.f32.mrf.mxu0
        %v1215 = vadd.f32 %v1166, %v1214
        %1216 = vmatmul.bf16.gmra.mxu0 %v853
        %v1217 = vpop.f32.mrf.mxu0
        %v1218 = vadd.f32 %v1169, %v1217
        %v1219 = vpop.f32.mrf.mxu0
        %v1220 = vadd.f32 %v1171, %v1219
        %1221 = vmatmul.bf16.gmra.mxu0 %v857
        %v1222 = vpop.f32.mrf.mxu0
        %v1223 = vadd.f32 %v1174, %v1222
        %v1224 = vpop.f32.mrf.mxu0
        %v1225 = vadd.f32 %v1176, %v1224
        %1226 = vmatmul.bf16.gmra.mxu0 %v861
        %v1227 = vpop.f32.mrf.mxu0
        %v1228 = vadd.f32 %v1179, %v1227
        %v1229 = vpop.f32.mrf.mxu0
        %v1230 = vadd.f32 %v1181, %v1229
        %1231 = vmatmul.bf16.gmra.mxu0 %v865
        %v1232 = vpop.f32.mrf.mxu0
        %v1233 = vadd.f32 %v1184, %v1232
        %v1234 = vpop.f32.mrf.mxu0
        %v1235 = vadd.f32 %v1186, %v1234
        %1236 = vmatmul.bf16.gmra.mxu0 %v869
        %v1237 = vpop.f32.mrf.mxu0
        %v1238 = vadd.f32 %v1189, %v1237
        %v1239 = vpop.f32.mrf.mxu0
        %v1240 = vadd.f32 %v1191, %v1239
        %1241 = vdwg.mxu0
        %1242 = vmatpush.bf16.msra.mxu0 %v1062
        %1243 = vmatpush.bf16.msra.mxu0 %v1061
        %1244 = vmatpush.bf16.msra.mxu0 %v1060
        %1245 = vmatpush.bf16.msra.mxu0 %v1059
        %1246 = vmatpush.bf16.msra.mxu0 %v1058
        %1247 = vmatpush.bf16.msra.mxu0 %v1057
        %1248 = vmatpush.bf16.msra.mxu0 %v1056
        %1249 = vmatpush.bf16.msra.mxu0 %v1055
        %1250 = vmatmul.bf16.gmra.mxu0 %v842
        %v1251 = vpop.f32.mrf.mxu0
        %v1252 = vadd.f32 %v1203, %v1251
        %v1253 = vpop.f32.mrf.mxu0
        %v1254 = vadd.f32 %v1205, %v1253
        %1255 = vmatmul.bf16.gmra.mxu0 %v846
        %v1256 = vpop.f32.mrf.mxu0
        %v1257 = vadd.f32 %v1208, %v1256
        %v1258 = vpop.f32.mrf.mxu0
        %v1259 = vadd.f32 %v1210, %v1258
        %1260 = vmatmul.bf16.gmra.mxu0 %v850
        %v1261 = vpop.f32.mrf.mxu0
        %v1262 = vadd.f32 %v1213, %v1261
        %v1263 = vpop.f32.mrf.mxu0
        %v1264 = vadd.f32 %v1215, %v1263
        %1265 = vmatmul.bf16.gmra.mxu0 %v854
        %v1266 = vpop.f32.mrf.mxu0
        %v1267 = vadd.f32 %v1218, %v1266
        %v1268 = vpop.f32.mrf.mxu0
        %v1269 = vadd.f32 %v1220, %v1268
        %1270 = vmatmul.bf16.gmra.mxu0 %v858
        %v1271 = vpop.f32.mrf.mxu0
        %v1272 = vadd.f32 %v1223, %v1271
        %v1273 = vpop.f32.mrf.mxu0
        %v1274 = vadd.f32 %v1225, %v1273
        %1275 = vmatmul.bf16.gmra.mxu0 %v862
        %v1276 = vpop.f32.mrf.mxu0
        %v1277 = vadd.f32 %v1228, %v1276
        %v1278 = vpop.f32.mrf.mxu0
        %v1279 = vadd.f32 %v1230, %v1278
        %1280 = vmatmul.bf16.gmra.mxu0 %v866
        %v1281 = vpop.f32.mrf.mxu0
        %v1282 = vadd.f32 %v1233, %v1281
        %v1283 = vpop.f32.mrf.mxu0
        %v1284 = vadd.f32 %v1235, %v1283
        %1285 = vmatmul.bf16.gmra.mxu0 %v870
        %v1286 = vpop.f32.mrf.mxu0
        %v1287 = vadd.f32 %v1238, %v1286
        %v1288 = vpop.f32.mrf.mxu0
        %v1289 = vadd.f32 %v1240, %v1288
        %1290 = vdwg.mxu0
        %v1291 = vadd.f32 %v631, %v1252
        %v1292 = vadd.f32 %v632, %v1254
        %v1293 = vadd.f32 %v633, %v1257
        %v1294 = vadd.f32 %v634, %v1259
        %v1295 = vadd.f32 %v635, %v1262
        %v1296 = vadd.f32 %v636, %v1264
        %v1297 = vadd.f32 %v637, %v1267
        %v1298 = vadd.f32 %v638, %v1269
        %v1299 = vadd.f32 %v639, %v1272
        %v1300 = vadd.f32 %v640, %v1274
        %v1301 = vadd.f32 %v641, %v1277
        %v1302 = vadd.f32 %v642, %v1279
        %v1303 = vadd.f32 %v643, %v1282
        %v1304 = vadd.f32 %v644, %v1284
        %v1305 = vadd.f32 %v645, %v1287
        %v1306 = vadd.f32 %v646, %v1289
        %1307 = vst [vmem:[#allocation2] sm:$0xff] %v1291
        %1308 = vst [vmem:[#allocation2 + $0x8] sm:$0xff] %v1292
        %1309 = vst [vmem:[#allocation2 + $0x10] sm:$0xff] %v1293
        %1310 = vst [vmem:[#allocation2 + $0x18] sm:$0xff] %v1294
        %1311 = vst [vmem:[#allocation2 + $0x20] sm:$0xff] %v1295
        %1312 = vst [vmem:[#allocation2 + $0x28] sm:$0xff] %v1296
        %1313 = vst [vmem:[#allocation2 + $0x30] sm:$0xff] %v1297
        %1314 = vst [vmem:[#allocation2 + $0x38] sm:$0xff] %v1298
        %1315 = vst [vmem:[#allocation2 + $0x40] sm:$0xff] %v1299
        %1316 = vst [vmem:[#allocation2 + $0x48] sm:$0xff] %v1300
        %1317 = vst [vmem:[#allocation2 + $0x50] sm:$0xff] %v1301
        %1318 = vst [vmem:[#allocation2 + $0x58] sm:$0xff] %v1302
        %1319 = vst [vmem:[#allocation2 + $0x60] sm:$0xff] %v1303
        %1320 = vst [vmem:[#allocation2 + $0x68] sm:$0xff] %v1304
        %1321 = vst [vmem:[#allocation2 + $0x70] sm:$0xff] %v1305
        %1322 = vst [vmem:[#allocation2 + $0x78] sm:$0xff] %v1306
        %p1323 = scmp.eq.s32.totalorder %s21, 4
        // Predicated region
        $region101: #{_lambda_.14} parent=87 // pred_check
          %p1324 = pneg %p1323
        $region102: #{_lambda_.14} parent=87 // pred_check_branch
          %1326 = sbr.rel (%p1324) target = $region104
        $region103: #{_lambda_.14} parent=87 // pred_region
          %v1327 = vld [vmem:[#allocation2] sm:$0xff]
          %v1328 = vld [vmem:[#allocation2 + $0x8] sm:$0xff]
          %v1329 = vld [vmem:[#allocation2 + $0x10] sm:$0xff]
          %v1330 = vld [vmem:[#allocation2 + $0x18] sm:$0xff]
          %v1331 = vld [vmem:[#allocation2 + $0x20] sm:$0xff]
          %v1332 = vld [vmem:[#allocation2 + $0x28] sm:$0xff]
          %v1333 = vld [vmem:[#allocation2 + $0x30] sm:$0xff]
          %v1334 = vld [vmem:[#allocation2 + $0x38] sm:$0xff]
          %v1335 = vld [vmem:[#allocation2 + $0x40] sm:$0xff]
          %v1336 = vld [vmem:[#allocation2 + $0x48] sm:$0xff]
          %v1337 = vld [vmem:[#allocation2 + $0x50] sm:$0xff]
          %v1338 = vld [vmem:[#allocation2 + $0x58] sm:$0xff]
          %v1339 = vld [vmem:[#allocation2 + $0x60] sm:$0xff]
          %v1340 = vld [vmem:[#allocation2 + $0x68] sm:$0xff]
          %v1341 = vld [vmem:[#allocation2 + $0x70] sm:$0xff]
          %v1342 = vld [vmem:[#allocation2 + $0x78] sm:$0xff]
          %v1343 = vld [vmem:[%s609] sm:$0x1]
          %v1345 = vperm.slane %v1343, 0
          %v1347 = vadd.f32 %v1327, %v1345
          %v1348 = vadd.f32 %v1328, %v1345
          %v1349 = vadd.f32 %v1329, %v1345
          %v1350 = vadd.f32 %v1330, %v1345
          %v1351 = vadd.f32 %v1331, %v1345
          %v1352 = vadd.f32 %v1332, %v1345
          %v1353 = vadd.f32 %v1333, %v1345
          %v1354 = vadd.f32 %v1334, %v1345
          %v1355 = vadd.f32 %v1335, %v1345
          %v1356 = vadd.f32 %v1336, %v1345
          %v1357 = vadd.f32 %v1337, %v1345
          %v1358 = vadd.f32 %v1338, %v1345
          %v1359 = vadd.f32 %v1339, %v1345
          %v1360 = vadd.f32 %v1340, %v1345
          %v1361 = vadd.f32 %v1341, %v1345
          %v1362 = vadd.f32 %v1342, %v1345
          %v1363 = vmax.f32 %v1347, 0.0
          %v1364 = vmax.f32 %v1348, 0.0
          %v1365 = vmax.f32 %v1349, 0.0
          %v1366 = vmax.f32 %v1350, 0.0
          %v1367 = vmax.f32 %v1351, 0.0
          %v1368 = vmax.f32 %v1352, 0.0
          %v1369 = vmax.f32 %v1353, 0.0
          %v1370 = vmax.f32 %v1354, 0.0
          %v1371 = vmax.f32 %v1355, 0.0
          %v1372 = vmax.f32 %v1356, 0.0
          %v1373 = vmax.f32 %v1357, 0.0
          %v1374 = vmax.f32 %v1358, 0.0
          %v1375 = vmax.f32 %v1359, 0.0
          %v1376 = vmax.f32 %v1360, 0.0
          %v1377 = vmax.f32 %v1361, 0.0
          %v1378 = vmax.f32 %v1362, 0.0
          %v1379 = vpack.c.bf16 %v1363, %v1363
          %v1380 = vpack.c.bf16 %v1364, %v1364
          %v1381 = vpack.c.bf16 %v1365, %v1365
          %v1382 = vpack.c.bf16 %v1366, %v1366
          %v1383 = vpack.c.bf16 %v1367, %v1367
          %v1384 = vpack.c.bf16 %v1368, %v1368
          %v1385 = vpack.c.bf16 %v1369, %v1369
          %v1386 = vpack.c.bf16 %v1370, %v1370
          %v1387 = vpack.c.bf16 %v1371, %v1371
          %v1388 = vpack.c.bf16 %v1372, %v1372
          %v1389 = vpack.c.bf16 %v1373, %v1373
          %v1390 = vpack.c.bf16 %v1374, %v1374
          %v1391 = vpack.c.bf16 %v1375, %v1375
          %v1392 = vpack.c.bf16 %v1376, %v1376
          %v1393 = vpack.c.bf16 %v1377, %v1377
          %v1394 = vpack.c.bf16 %v1378, %v1378
          %1395 = vst [vmem:[%s603] sm:$0xf] %v1379
          %1396 = vst [vmem:[%s603 + $0x4] sm:$0xf] %v1380
          %1397 = vst [vmem:[%s603 + $0x8] sm:$0xf] %v1381
          %1398 = vst [vmem:[%s603 + $0xc] sm:$0xf] %v1382
          %1399 = vst [vmem:[%s603 + $0x10] sm:$0xf] %v1383
          %1400 = vst [vmem:[%s603 + $0x14] sm:$0xf] %v1384
          %1401 = vst [vmem:[%s603 + $0x18] sm:$0xf] %v1385
          %1402 = vst [vmem:[%s603 + $0x1c] sm:$0xf] %v1386
          %1403 = vst [vmem:[%s603 + $0x20] sm:$0xf] %v1387
          %1404 = vst [vmem:[%s603 + $0x24] sm:$0xf] %v1388
          %1405 = vst [vmem:[%s603 + $0x28] sm:$0xf] %v1389
          %1406 = vst [vmem:[%s603 + $0x2c] sm:$0xf] %v1390
          %1407 = vst [vmem:[%s603 + $0x30] sm:$0xf] %v1391
          %1408 = vst [vmem:[%s603 + $0x34] sm:$0xf] %v1392
          %1409 = vst [vmem:[%s603 + $0x38] sm:$0xf] %v1393
          %1410 = vst [vmem:[%s603 + $0x3c] sm:$0xf] %v1394
        $region104: #{_lambda_.14} parent=87 // pred_fallthru
          _
        %s1411 = sand.u32 %s125, 1
        %s1412 = sand.u32 %s125, 1
        %s1413 = smul.addr %s1412, 64
        %s1414 = scalar_lea.vmem [#allocation5], %s1413
        // Predicated region
        $region105: #{_lambda_.14} parent=87 // pred_check
          %p1415 = pneg %p135
        $region106: #{_lambda_.14} parent=87 // pred_check_branch
          %1417 = sbr.rel (%p1415) target = $region108
        $region107: #{_lambda_.14} parent=87 // pred_region
          %s1418 = smul.u32 16, %s19
          %s1419 = smul.addr %s1418, 2
          %s1420 = sadd.s32 %s20, %s1419
          %s1421 = smul.addr %s1420, 4
          %s1422 = scalar_lea.vmem %s3, %s1421
          // Predicated region
          $region109: #{_lambda_.14} parent=107 // pred_check
            _
          $region110: #{_lambda_.14} parent=107 // pred_check_branch
            %1424 = sbr.rel (0) target = $region112
          $region111: #{_lambda_.14} parent=107 // pred_region
            // Predicated region
            $region113: #{_lambda_.14} parent=111 // pred_check
              _
            $region114: #{_lambda_.14} parent=111 // pred_check_branch
              %1426 = sbr.rel target = $region116
            $region115: #{_lambda_.14} parent=111 // pred_region
              // Predicated region
              $region128: #{_lambda_.14} parent=115 // pred_check
                _
              $region129: #{_lambda_.14} parent=115 // pred_check_branch
                %1472 = sbr.rel (0) target = $region131
              $region130: #{_lambda_.14} parent=115 // pred_region
                loop: start=0, step=1, limit=1
                $region132: #{_lambda_.14} parent=130 // loop_pre_header
                  _
                $region133: #{_lambda_.14} parent=130 // loop_header
                  %s1474 = sphi 0, %s1478
                  %p1475 = scmp.ge.s32.totalorder %s1474, 1
                  %s1479 = sphi %s1414, %s1414
                  %s1480 = sphi %s1422, %s1422
                $region134: #{_lambda_.14} parent=130 // loop_header_branch
                  %1477 = sbr.rel (%p1475) target = $region138
                $region135: #{_lambda_.14} parent=130 // loop_body
                  _
                $region136: #{_lambda_.14} parent=130 // loop_footer
                  %s1478 = sadd.s32 1, %s1474
                $region137: #{_lambda_.14} parent=130 // loop_footer_branch
                  %1473 = sbr.rel target = $region133
                $region138: #{_lambda_.14} parent=130 // loop_exit
                  _
                %s1482 = ssub.s32 16, 1
                loop: start=0, step=1, limit=1
                $region139: #{_lambda_.14} parent=130 // loop_pre_header
                  _
                $region140: #{_lambda_.14} parent=130 // loop_header
                  %s1484 = sphi 0, %s1488
                  %p1485 = scmp.ge.s32.totalorder %s1484, 1
                  %s1489 = sphi %s1414, %s1414
                  %s1490 = sphi %s1422, %s1422
                $region141: #{_lambda_.14} parent=130 // loop_header_branch
                  %1487 = sbr.rel (%p1485) target = $region145
                $region142: #{_lambda_.14} parent=130 // loop_body
                  %v1491 = vld [vmem:[%s1489] sm:%s1482]
                  %1492 = vst [vmem:[%s1490] sm:%s1482] %v1491
                  %v1493 = vld [vmem:[%s1489 + $0x4] sm:%s1482]
                  %1494 = vst [vmem:[%s1490 + $0x8] sm:%s1482] %v1493
                  %v1495 = vld [vmem:[%s1489 + $0x8] sm:%s1482]
                  %1496 = vst [vmem:[%s1490 + $0x10] sm:%s1482] %v1495
                  %v1497 = vld [vmem:[%s1489 + $0xc] sm:%s1482]
                  %1498 = vst [vmem:[%s1490 + $0x18] sm:%s1482] %v1497
                  %v1499 = vld [vmem:[%s1489 + $0x10] sm:%s1482]
                  %1500 = vst [vmem:[%s1490 + $0x20] sm:%s1482] %v1499
                  %v1501 = vld [vmem:[%s1489 + $0x14] sm:%s1482]
                  %1502 = vst [vmem:[%s1490 + $0x28] sm:%s1482] %v1501
                  %v1503 = vld [vmem:[%s1489 + $0x18] sm:%s1482]
                  %1504 = vst [vmem:[%s1490 + $0x30] sm:%s1482] %v1503
                  %v1505 = vld [vmem:[%s1489 + $0x1c] sm:%s1482]
                  %1506 = vst [vmem:[%s1490 + $0x38] sm:%s1482] %v1505
                  %v1507 = vld [vmem:[%s1489 + $0x20] sm:%s1482]
                  %1508 = vst [vmem:[%s1490 + $0x40] sm:%s1482] %v1507
                  %v1509 = vld [vmem:[%s1489 + $0x24] sm:%s1482]
                  %1510 = vst [vmem:[%s1490 + $0x48] sm:%s1482] %v1509
                  %v1511 = vld [vmem:[%s1489 + $0x28] sm:%s1482]
                  %1512 = vst [vmem:[%s1490 + $0x50] sm:%s1482] %v1511
                  %v1513 = vld [vmem:[%s1489 + $0x2c] sm:%s1482]
                  %1514 = vst [vmem:[%s1490 + $0x58] sm:%s1482] %v1513
                  %v1515 = vld [vmem:[%s1489 + $0x30] sm:%s1482]
                  %1516 = vst [vmem:[%s1490 + $0x60] sm:%s1482] %v1515
                  %v1517 = vld [vmem:[%s1489 + $0x34] sm:%s1482]
                  %1518 = vst [vmem:[%s1490 + $0x68] sm:%s1482] %v1517
                  %v1519 = vld [vmem:[%s1489 + $0x38] sm:%s1482]
                  %1520 = vst [vmem:[%s1490 + $0x70] sm:%s1482] %v1519
                  %v1521 = vld [vmem:[%s1489 + $0x3c] sm:%s1482]
                  %1522 = vst [vmem:[%s1490 + $0x78] sm:%s1482] %v1521
                $region143: #{_lambda_.14} parent=130 // loop_footer
                  %s1488 = sadd.s32 1, %s1484
                $region144: #{_lambda_.14} parent=130 // loop_footer_branch
                  %1483 = sbr.rel target = $region140
                $region145: #{_lambda_.14} parent=130 // loop_exit
                  _
              $region131: #{_lambda_.14} parent=115 // pred_fallthru
                _
            $region116: #{_lambda_.14} parent=111 // pred_fallthru
              _
            // Predicated region
            $region117: #{_lambda_.14} parent=111 // pred_check
              _
            $region118: #{_lambda_.14} parent=111 // pred_check_branch
              %1428 = sbr.rel (0) target = $region120
            $region119: #{_lambda_.14} parent=111 // pred_region
              %s1430 = ssub.s32 16, 1
              loop: start=0, step=1, limit=1
              $region121: #{_lambda_.14} parent=119 // loop_pre_header
                _
              $region122: #{_lambda_.14} parent=119 // loop_header
                %s1432 = sphi 0, %s1436
                %p1433 = scmp.ge.s32.totalorder %s1432, 1
                %s1437 = sphi %s1414, %s1414
                %s1438 = sphi %s1422, %s1422
              $region123: #{_lambda_.14} parent=119 // loop_header_branch
                %1435 = sbr.rel (%p1433) target = $region127
              $region124: #{_lambda_.14} parent=119 // loop_body
                %v1439 = vld [vmem:[%s1437] sm:%s1430]
                %1440 = vst [vmem:[%s1438] sm:%s1430] %v1439
                %v1441 = vld [vmem:[%s1437 + $0x4] sm:%s1430]
                %1442 = vst [vmem:[%s1438 + $0x8] sm:%s1430] %v1441
                %v1443 = vld [vmem:[%s1437 + $0x8] sm:%s1430]
                %1444 = vst [vmem:[%s1438 + $0x10] sm:%s1430] %v1443
                %v1445 = vld [vmem:[%s1437 + $0xc] sm:%s1430]
                %1446 = vst [vmem:[%s1438 + $0x18] sm:%s1430] %v1445
                %v1447 = vld [vmem:[%s1437 + $0x10] sm:%s1430]
                %1448 = vst [vmem:[%s1438 + $0x20] sm:%s1430] %v1447
                %v1449 = vld [vmem:[%s1437 + $0x14] sm:%s1430]
                %1450 = vst [vmem:[%s1438 + $0x28] sm:%s1430] %v1449
                %v1451 = vld [vmem:[%s1437 + $0x18] sm:%s1430]
                %1452 = vst [vmem:[%s1438 + $0x30] sm:%s1430] %v1451
                %v1453 = vld [vmem:[%s1437 + $0x1c] sm:%s1430]
                %1454 = vst [vmem:[%s1438 + $0x38] sm:%s1430] %v1453
                %v1455 = vld [vmem:[%s1437 + $0x20] sm:%s1430]
                %1456 = vst [vmem:[%s1438 + $0x40] sm:%s1430] %v1455
                %v1457 = vld [vmem:[%s1437 + $0x24] sm:%s1430]
                %1458 = vst [vmem:[%s1438 + $0x48] sm:%s1430] %v1457
                %v1459 = vld [vmem:[%s1437 + $0x28] sm:%s1430]
                %1460 = vst [vmem:[%s1438 + $0x50] sm:%s1430] %v1459
                %v1461 = vld [vmem:[%s1437 + $0x2c] sm:%s1430]
                %1462 = vst [vmem:[%s1438 + $0x58] sm:%s1430] %v1461
                %v1463 = vld [vmem:[%s1437 + $0x30] sm:%s1430]
                %1464 = vst [vmem:[%s1438 + $0x60] sm:%s1430] %v1463
                %v1465 = vld [vmem:[%s1437 + $0x34] sm:%s1430]
                %1466 = vst [vmem:[%s1438 + $0x68] sm:%s1430] %v1465
                %v1467 = vld [vmem:[%s1437 + $0x38] sm:%s1430]
                %1468 = vst [vmem:[%s1438 + $0x70] sm:%s1430] %v1467
                %v1469 = vld [vmem:[%s1437 + $0x3c] sm:%s1430]
                %1470 = vst [vmem:[%s1438 + $0x78] sm:%s1430] %v1469
              $region125: #{_lambda_.14} parent=119 // loop_footer
                %s1436 = sadd.s32 1, %s1432
              $region126: #{_lambda_.14} parent=119 // loop_footer_branch
                %1431 = sbr.rel target = $region122
              $region127: #{_lambda_.14} parent=119 // loop_exit
                _
            $region120: #{_lambda_.14} parent=111 // pred_fallthru
              _
          $region112: #{_lambda_.14} parent=107 // pred_fallthru
            _
          %1523 = vnop
        $region108: #{_lambda_.14} parent=87 // pred_fallthru
          _
      $region88: #{_lambda_.14} parent=5 // pred_fallthru
        _
      %p1524 = scmp.le.s32.totalorder 2, %s9
      // Predicated region
      $region146: #{_lambda_.14} parent=5 // pred_check
        %p1525 = pneg %p1524
      $region147: #{_lambda_.14} parent=5 // pred_check_branch
        %1527 = sbr.rel (%p1525) target = $region149
      $region148: #{_lambda_.14} parent=5 // pred_region
        %s1528 = ssub.s32 %s9, 2
        // Predicated region
        $region150: #{_lambda_.14} parent=148 // pred_check
          %p1529 = pneg %p141
        $region151: #{_lambda_.14} parent=148 // pred_check_branch
          %1531 = sbr.rel (%p1529) target = $region153
        $region152: #{_lambda_.14} parent=148 // pred_region
          %s1532 = sand.u32 %s126, 1
          %s1533 = sand.u32 %s126, 1
          %s1534 = smul.addr %s1533, 64
          %s1535 = scalar_lea.vmem [#allocation5], %s1534
        $region153: #{_lambda_.14} parent=148 // pred_fallthru
          _
      $region149: #{_lambda_.14} parent=5 // pred_fallthru
        _
    $region6: #{_lambda_.14} parent=1 // loop_footer
      %s13 = sadd.s32 1, %s9
    $region7: #{_lambda_.14} parent=1 // loop_footer_branch
      %8 = sbr.rel target = $region3
    $region8: #{_lambda_.14} parent=1 // loop_exit
      _

</llo_original>
